<compile_context>
chip_gen: v5e
topology: v5e:2x2
jax: 0.10.0
libtpu: 0.0.40
codegen_flags: <defaults>
</compile_context>

<pallas_src>
import numpy as np
import jax
import jax.numpy as jnp
from jax import lax
from jax.experimental import pallas as pl
from jax.experimental.pallas import tpu as pltpu

# ----------------------------- model constants -----------------------------
H, W = 4, 9                     # board spatial dims
PH, PW = H + 2, W + 2           # zero-halo padded grid: 6 x 11
PGRID = PH * PW                 # 66 padded positions
MARGIN = PW + 1                 # 12 = max |dy*PW + dx| for a 3x3 kernel
C_IN, C1, C2, C3 = 6, 64, 64, 32
FEAT = C3 * H * W               # 1152
HID = 256
N_ACT = 235

_VMEM = pl.BlockSpec(memory_space=pltpu.MemorySpace.VMEM)


# ------------------------------- fused kernel ------------------------------
def _policy_kernel(x_ref, mask_ref, int_ref,
                   wc1_ref, wc2_ref, wc3_ref,
                   wcat_ref, bcat_ref, w2l_ref, b2l_ref, w2v_ref, b2v_ref,
                   logits_ref, value_ref, hbuf):
    batch = logits_ref.shape[0]
    n_grid = PGRID * batch
    base = MARGIN * batch
    interior = int_ref[...]                      # (n_grid, 1): 1.0 on real cells

    # ---- load observation into the zero-padded activation buffer ----------
    hbuf[...] = jnp.zeros_like(hbuf)
    for y in range(H):
        dst = base + ((y + 1) * PW + 1) * batch
        src = y * W * batch
        hbuf[dst:dst + W * batch, 0:C_IN] = x_ref[src:src + W * batch, :]

    # ---- Conv2d(3x3, pad=1, no bias) + ReLU as 9 shifted matmuls ----------
    def conv3x3_relu(w_ref, cin, cout):
        acc = None
        for t in range(9):
            dy, dx = t // 3 - 1, t % 3 - 1
            start = base + (dy * PW + dx) * batch
            tap = hbuf[start:start + n_grid, 0:cin]          # shifted activations
            contrib = jnp.dot(tap, w_ref[t], preferred_element_type=jnp.float32)
            acc = contrib if acc is None else acc + contrib
        # ReLU, then re-zero halo rows so the zero-padding invariant holds.
        hbuf[base:base + n_grid, 0:cout] = jnp.maximum(acc, 0.0) * interior

    conv3x3_relu(wc1_ref, C_IN, C1)
    conv3x3_relu(wc2_ref, C1, C2)
    conv3x3_relu(wc3_ref, C2, C3)

    # ---- Flatten + first Linear of BOTH heads (1152 -> 256 | 256, fused) ---
    acc = None
    for p in range(H * W):
        y, x = p // W, p % W
        start = base + ((y + 1) * PW + (x + 1)) * batch
        blk = hbuf[start:start + batch, 0:C3]                 # (B, 32)
        contrib = jnp.dot(blk, wcat_ref[p], preferred_element_type=jnp.float32)
        acc = contrib if acc is None else acc + contrib
    hidden = jnp.maximum(acc + bcat_ref[...], 0.0)            # (B, 512)

    # ---- second Linears + in-kernel action masking -------------------------
    logits = (jnp.dot(hidden[:, 0:HID], w2l_ref[...],
                      preferred_element_type=jnp.float32) + b2l_ref[...])
    inf_mask = jnp.clip(jnp.log(mask_ref[...]), -1e38, 1e38)
    logits_ref[...] = logits + inf_mask
    value_ref[...] = (jnp.dot(hidden[:, HID:2 * HID], w2v_ref[...],
                              preferred_element_type=jnp.float32) + b2v_ref[...])


# ------------------------------- wrapper ------------------------------------
def _interior_mask(batch):
    """(PGRID*batch, 1) float mask of real (non-halo) board cells.

    Built with numpy at trace time -> baked-in constant, linear in batch."""
    pr = np.arange(PGRID)
    py, px = pr // PW, pr % PW
    valid = (py >= 1) & (py <= H) & (px >= 1) & (px <= W)
    return jnp.asarray(np.repeat(valid.astype(np.float32), batch)[:, None])


@jax.jit
def pallas_forward(obs, action_mask, prepped):
    obs = obs.astype(jnp.float32)
    batch = obs.shape[0]
    # (B, 6, 4, 9) -> (4, 9, B, 6) -> (36*B, 6): position-major, channels-last.
    x = jnp.transpose(obs, (2, 3, 0, 1)).reshape(H * W * batch, C_IN)
    mask = action_mask.astype(jnp.float32)
    interior = _interior_mask(batch)

    n_buf = (PGRID + 2 * MARGIN) * batch          # padded grid + slice margins
    out_shape = (jax.ShapeDtypeStruct((batch, N_ACT), jnp.float32),
                 jax.ShapeDtypeStruct((batch, 1), jnp.float32))
    # NOTE: for large batch, add a grid over batch blocks with
    # dimension_semantics=("parallel",) to use both TensorCores on v7x.
    logits, value = pl.pallas_call(
        _policy_kernel,
        out_shape=out_shape,
        in_specs=[_VMEM] * 12,
        out_specs=(_VMEM, _VMEM),
        scratch_shapes=[pltpu.VMEM((n_buf, C1), jnp.float32)],
    )(x, mask, interior,
      prepped["wc1"], prepped["wc2"], prepped["wc3"],
      prepped["wcat"], prepped["bcat"],
      prepped["w2l"], prepped["b2l"], prepped["w2v"], prepped["b2v"])
    return logits, value


# ------------------------- one-time parameter prep --------------------------
def prep_params(params):
    """Repack PyTorch-layout weights into kernel-friendly layouts (done once)."""
    def conv_taps(w):            # (Cout, Cin, 3, 3) -> (9, Cin, Cout)
        return jnp.transpose(w, (2, 3, 1, 0)).reshape(9, w.shape[1], w.shape[0])

    def head1(w):                # (256, 1152) -> (36, 32, 256); cols are c*36+p
        return jnp.transpose(w.reshape(HID, C3, H * W), (2, 1, 0))

    return {
        "wc1": conv_taps(params["conv1_w"]),
        "wc2": conv_taps(params["conv2_w"]),
        "wc3": conv_taps(params["conv3_w"]),
        "wcat": jnp.concatenate([head1(params["logits_w1"]),
                                 head1(params["value_w1"])], axis=2),
        "bcat": jnp.concatenate([params["logits_b1"],
                                 params["value_b1"]])[None, :],
        "w2l": params["logits_w2"].T,
        "b2l": params["logits_b2"][None, :],
        "w2v": params["value_w2"].T,
        "b2v": params["value_b2"][None, :],
    }


def init_params(key):
    """Deterministic Kaiming-normal weights in the PyTorch layouts."""
    def kaiming(k, shape, fan_in):
        return jax.random.normal(k, shape, jnp.float32) * np.sqrt(2.0 / fan_in)

    ks = jax.random.split(key, 11)
    return {
        "conv1_w": kaiming(ks[0], (C1, C_IN, 3, 3), C_IN * 9),
        "conv2_w": kaiming(ks[1], (C2, C1, 3, 3), C1 * 9),
        "conv3_w": kaiming(ks[2], (C3, C2, 3, 3), C2 * 9),
        "logits_w1": kaiming(ks[3], (HID, FEAT), FEAT),
        "logits_b1": jax.random.normal(ks[4], (HID,), jnp.float32) * 0.05,
        "logits_w2": kaiming(ks[5], (N_ACT, HID), HID),
        "logits_b2": jax.random.normal(ks[6], (N_ACT,), jnp.float32) * 0.05,
        "value_w1": kaiming(ks[7], (HID, FEAT), FEAT),
        "value_b1": jax.random.normal(ks[8], (HID,), jnp.float32) * 0.05,
        "value_w2": kaiming(ks[9], (1, HID), HID),
        "value_b2": jax.random.normal(ks[10], (1,), jnp.float32) * 0.05,
    }


# ----------------------------- pure-JAX reference ---------------------------
def reference_forward(obs, action_mask, params):
    obs = obs.astype(jnp.float32)
    batch = obs.shape[0]
    with jax.default_matmul_precision("highest"):
        h = obs
        for name in ("conv1_w", "conv2_w", "conv3_w"):
            h = lax.conv_general_dilated(
                h, params[name], window_strides=(1, 1),
                padding=[(1, 1), (1, 1)],
                dimension_numbers=("NCHW", "OIHW", "NCHW"))
            h = jax.nn.relu(h)
        hidden = h.reshape(batch, -1)                        # NCHW flatten
        lh = jax.nn.relu(hidden @ params["logits_w1"].T + params["logits_b1"])
        logits = lh @ params["logits_w2"].T + params["logits_b2"]
        inf_mask = jnp.clip(jnp.log(action_mask.astype(jnp.float32)),
                            -1e38, 1e38)
        vh = jax.nn.relu(hidden @ params["value_w1"].T + params["value_b1"])
        value = vh @ params["value_w2"].T + params["value_b2"]
    return logits + inf_mask, value


if __name__ == "__main__":
    key = jax.random.PRNGKey(0)
    k_param, k_obs, k_mask = jax.random.split(key, 3)
    params = init_params(k_param)
    prepped = prep_params(params)

    batch = 2
    obs = jax.random.randint(k_obs, (batch, C_IN, H, W), 0, 5).astype(jnp.float32)
    action_mask = jax.random.bernoulli(k_mask, 0.6, (batch, N_ACT)).astype(jnp.float32)

    logits, value = pallas_forward(obs, action_mask, prepped)
    logits, value = jax.block_until_ready((logits, value))
    assert logits.shape == (batch, N_ACT), logits.shape
    assert value.shape == (batch, 1), value.shape

    ref_logits, ref_value = reference_forward(obs, action_mask, params)
    np.testing.assert_allclose(np.asarray(value), np.asarray(ref_value),
                               rtol=2e-2, atol=2e-2)
    np.testing.assert_allclose(np.asarray(logits), np.asarray(ref_logits),
                               rtol=2e-2, atol=2e-2)
    print("KERNEL_OK")
</pallas_src>

<mosaic_0001>
module attributes {stable_mosaic.version = 11 : i64} {
  func.func @_policy_kernel(%arg0: memref<72x6xf32, #tpu.memory_space<vmem>>, %arg1: memref<2x235xf32, #tpu.memory_space<vmem>>, %arg2: memref<132x1xf32, #tpu.memory_space<vmem>>, %arg3: memref<9x6x64xf32, #tpu.memory_space<vmem>>, %arg4: memref<9x64x64xf32, #tpu.memory_space<vmem>>, %arg5: memref<9x64x32xf32, #tpu.memory_space<vmem>>, %arg6: memref<36x32x512xf32, #tpu.memory_space<vmem>>, %arg7: memref<1x512xf32, #tpu.memory_space<vmem>>, %arg8: memref<256x235xf32, #tpu.memory_space<vmem>>, %arg9: memref<1x235xf32, #tpu.memory_space<vmem>>, %arg10: memref<256x1xf32, #tpu.memory_space<vmem>>, %arg11: memref<1x1xf32, #tpu.memory_space<vmem>>, %arg12: memref<2x235xf32, #tpu.memory_space<vmem>>, %arg13: memref<2x1xf32, #tpu.memory_space<vmem>>, %arg14: memref<180x64xf32, #tpu.memory_space<vmem>>) attributes {dimension_semantics = [], scalar_prefetch = 0 : i64, scratch_operands = 1 : i64, tpu.core_type = #tpu.core_type<tc>} {
    %c0 = arith.constant 0 : index
    %c0_0 = arith.constant 0 : index
    %0 = vector.load %arg2[%c0, %c0_0] : memref<132x1xf32, #tpu.memory_space<vmem>>, vector<132x1xf32>
    %cst = arith.constant 0.000000e+00 : f32
    %1 = vector.broadcast %cst : f32 to vector<180x64xf32>
    %c0_1 = arith.constant 0 : index
    %c0_2 = arith.constant 0 : index
    %2 = vector.load %arg14[%c0_1, %c0_2] : memref<180x64xf32, #tpu.memory_space<vmem>>, vector<180x64xf32>
    tpu.vector_store %arg14[%c0_1, %c0_2], %1 {strides = array<i32>} : memref<180x64xf32, #tpu.memory_space<vmem>>, vector<180x64xf32>,
    %c0_3 = arith.constant 0 : index
    %c0_4 = arith.constant 0 : index
    %3 = vector.load %arg0[%c0_3, %c0_4] : memref<72x6xf32, #tpu.memory_space<vmem>>, vector<18x6xf32>
    %c48 = arith.constant 48 : index
    %c0_5 = arith.constant 0 : index
    %4 = vector.load %arg14[%c48, %c0_5] : memref<180x64xf32, #tpu.memory_space<vmem>>, vector<18x6xf32>
    tpu.vector_store %arg14[%c48, %c0_5], %3 {strides = array<i32>} : memref<180x64xf32, #tpu.memory_space<vmem>>, vector<18x6xf32>,
    %c18 = arith.constant 18 : index
    %c0_6 = arith.constant 0 : index
    %5 = vector.load %arg0[%c18, %c0_6] : memref<72x6xf32, #tpu.memory_space<vmem>>, vector<18x6xf32>
    %c70 = arith.constant 70 : index
    %c0_7 = arith.constant 0 : index
    %6 = vector.load %arg14[%c70, %c0_7] : memref<180x64xf32, #tpu.memory_space<vmem>>, vector<18x6xf32>
    tpu.vector_store %arg14[%c70, %c0_7], %5 {strides = array<i32>} : memref<180x64xf32, #tpu.memory_space<vmem>>, vector<18x6xf32>,
    %c36 = arith.constant 36 : index
    %c0_8 = arith.constant 0 : index
    %7 = vector.load %arg0[%c36, %c0_8] : memref<72x6xf32, #tpu.memory_space<vmem>>, vector<18x6xf32>
    %c92 = arith.constant 92 : index
    %c0_9 = arith.constant 0 : index
    %8 = vector.load %arg14[%c92, %c0_9] : memref<180x64xf32, #tpu.memory_space<vmem>>, vector<18x6xf32>
    tpu.vector_store %arg14[%c92, %c0_9], %7 {strides = array<i32>} : memref<180x64xf32, #tpu.memory_space<vmem>>, vector<18x6xf32>,
    %c54 = arith.constant 54 : index
    %c0_10 = arith.constant 0 : index
    %9 = vector.load %arg0[%c54, %c0_10] : memref<72x6xf32, #tpu.memory_space<vmem>>, vector<18x6xf32>
    %c114 = arith.constant 114 : index
    %c0_11 = arith.constant 0 : index
    %10 = vector.load %arg14[%c114, %c0_11] : memref<180x64xf32, #tpu.memory_space<vmem>>, vector<18x6xf32>
    tpu.vector_store %arg14[%c114, %c0_11], %9 {strides = array<i32>} : memref<180x64xf32, #tpu.memory_space<vmem>>, vector<18x6xf32>,
    %c0_12 = arith.constant 0 : index
    %c0_13 = arith.constant 0 : index
    %11 = vector.load %arg14[%c0_12, %c0_13] : memref<180x64xf32, #tpu.memory_space<vmem>>, vector<132x6xf32>
    %c0_14 = arith.constant 0 : index
    %c0_15 = arith.constant 0 : index
    %c0_16 = arith.constant 0 : index
    %12 = vector.load %arg3[%c0_14, %c0_15, %c0_16] : memref<9x6x64xf32, #tpu.memory_space<vmem>>, vector<1x6x64xf32>
    %13 = vector.shape_cast %12 : vector<1x6x64xf32> to vector<6x64xf32>
    %cst_17 = arith.constant dense<0.000000e+00> : vector<132x64xf32>
    %14 = tpu.matmul %11, %13, %cst_17 {dimension_numbers = #tpu.dot_dimension_numbers<[1], [0], [0], [1], [0, 0, 1, 1], [], []>} : vector<132x6xf32>, vector<6x64xf32>, vector<132x64xf32> -> vector<132x64xf32>
    %c2 = arith.constant 2 : index
    %c0_18 = arith.constant 0 : index
    %15 = vector.load %arg14[%c2, %c0_18] : memref<180x64xf32, #tpu.memory_space<vmem>>, vector<132x6xf32>
    %c1 = arith.constant 1 : index
    %c0_19 = arith.constant 0 : index
    %c0_20 = arith.constant 0 : index
    %16 = vector.load %arg3[%c1, %c0_19, %c0_20] : memref<9x6x64xf32, #tpu.memory_space<vmem>>, vector<1x6x64xf32>
    %17 = vector.shape_cast %16 : vector<1x6x64xf32> to vector<6x64xf32>
    %cst_21 = arith.constant dense<0.000000e+00> : vector<132x64xf32>
    %18 = tpu.matmul %15, %17, %cst_21 {dimension_numbers = #tpu.dot_dimension_numbers<[1], [0], [0], [1], [0, 0, 1, 1], [], []>} : vector<132x6xf32>, vector<6x64xf32>, vector<132x64xf32> -> vector<132x64xf32>
    %19 = arith.addf %14, %18 : vector<132x64xf32>
    %c4 = arith.constant 4 : index
    %c0_22 = arith.constant 0 : index
    %20 = vector.load %arg14[%c4, %c0_22] : memref<180x64xf32, #tpu.memory_space<vmem>>, vector<132x6xf32>
    %c2_23 = arith.constant 2 : index
    %c0_24 = arith.constant 0 : index
    %c0_25 = arith.constant 0 : index
    %21 = vector.load %arg3[%c2_23, %c0_24, %c0_25] : memref<9x6x64xf32, #tpu.memory_space<vmem>>, vector<1x6x64xf32>
    %22 = vector.shape_cast %21 : vector<1x6x64xf32> to vector<6x64xf32>
    %cst_26 = arith.constant dense<0.000000e+00> : vector<132x64xf32>
    %23 = tpu.matmul %20, %22, %cst_26 {dimension_numbers = #tpu.dot_dimension_numbers<[1], [0], [0], [1], [0, 0, 1, 1], [], []>} : vector<132x6xf32>, vector<6x64xf32>, vector<132x64xf32> -> vector<132x64xf32>
    %24 = arith.addf %19, %23 : vector<132x64xf32>
    %c22 = arith.constant 22 : index
    %c0_27 = arith.constant 0 : index
    %25 = vector.load %arg14[%c22, %c0_27] : memref<180x64xf32, #tpu.memory_space<vmem>>, vector<132x6xf32>
    %c3 = arith.constant 3 : index
    %c0_28 = arith.constant 0 : index
    %c0_29 = arith.constant 0 : index
    %26 = vector.load %arg3[%c3, %c0_28, %c0_29] : memref<9x6x64xf32, #tpu.memory_space<vmem>>, vector<1x6x64xf32>
    %27 = vector.shape_cast %26 : vector<1x6x64xf32> to vector<6x64xf32>
    %cst_30 = arith.constant dense<0.000000e+00> : vector<132x64xf32>
    %28 = tpu.matmul %25, %27, %cst_30 {dimension_numbers = #tpu.dot_dimension_numbers<[1], [0], [0], [1], [0, 0, 1, 1], [], []>} : vector<132x6xf32>, vector<6x64xf32>, vector<132x64xf32> -> vector<132x64xf32>
    %29 = arith.addf %24, %28 : vector<132x64xf32>
    %c24 = arith.constant 24 : index
    %c0_31 = arith.constant 0 : index
    %30 = vector.load %arg14[%c24, %c0_31] : memref<180x64xf32, #tpu.memory_space<vmem>>, vector<132x6xf32>
    %c4_32 = arith.constant 4 : index
    %c0_33 = arith.constant 0 : index
    %c0_34 = arith.constant 0 : index
    %31 = vector.load %arg3[%c4_32, %c0_33, %c0_34] : memref<9x6x64xf32, #tpu.memory_space<vmem>>, vector<1x6x64xf32>
    %32 = vector.shape_cast %31 : vector<1x6x64xf32> to vector<6x64xf32>
    %cst_35 = arith.constant dense<0.000000e+00> : vector<132x64xf32>
    %33 = tpu.matmul %30, %32, %cst_35 {dimension_numbers = #tpu.dot_dimension_numbers<[1], [0], [0], [1], [0, 0, 1, 1], [], []>} : vector<132x6xf32>, vector<6x64xf32>, vector<132x64xf32> -> vector<132x64xf32>
    %34 = arith.addf %29, %33 : vector<132x64xf32>
    %c26 = arith.constant 26 : index
    %c0_36 = arith.constant 0 : index
    %35 = vector.load %arg14[%c26, %c0_36] : memref<180x64xf32, #tpu.memory_space<vmem>>, vector<132x6xf32>
    %c5 = arith.constant 5 : index
    %c0_37 = arith.constant 0 : index
    %c0_38 = arith.constant 0 : index
    %36 = vector.load %arg3[%c5, %c0_37, %c0_38] : memref<9x6x64xf32, #tpu.memory_space<vmem>>, vector<1x6x64xf32>
    %37 = vector.shape_cast %36 : vector<1x6x64xf32> to vector<6x64xf32>
    %cst_39 = arith.constant dense<0.000000e+00> : vector<132x64xf32>
    %38 = tpu.matmul %35, %37, %cst_39 {dimension_numbers = #tpu.dot_dimension_numbers<[1], [0], [0], [1], [0, 0, 1, 1], [], []>} : vector<132x6xf32>, vector<6x64xf32>, vector<132x64xf32> -> vector<132x64xf32>
    %39 = arith.addf %34, %38 : vector<132x64xf32>
    %c44 = arith.constant 44 : index
    %c0_40 = arith.constant 0 : index
    %40 = vector.load %arg14[%c44, %c0_40] : memref<180x64xf32, #tpu.memory_space<vmem>>, vector<132x6xf32>
    %c6 = arith.constant 6 : index
    %c0_41 = arith.constant 0 : index
    %c0_42 = arith.constant 0 : index
    %41 = vector.load %arg3[%c6, %c0_41, %c0_42] : memref<9x6x64xf32, #tpu.memory_space<vmem>>, vector<1x6x64xf32>
    %42 = vector.shape_cast %41 : vector<1x6x64xf32> to vector<6x64xf32>
    %cst_43 = arith.constant dense<0.000000e+00> : vector<132x64xf32>
    %43 = tpu.matmul %40, %42, %cst_43 {dimension_numbers = #tpu.dot_dimension_numbers<[1], [0], [0], [1], [0, 0, 1, 1], [], []>} : vector<132x6xf32>, vector<6x64xf32>, vector<132x64xf32> -> vector<132x64xf32>
    %44 = arith.addf %39, %43 : vector<132x64xf32>
    %c46 = arith.constant 46 : index
    %c0_44 = arith.constant 0 : index
    %45 = vector.load %arg14[%c46, %c0_44] : memref<180x64xf32, #tpu.memory_space<vmem>>, vector<132x6xf32>
    %c7 = arith.constant 7 : index
    %c0_45 = arith.constant 0 : index
    %c0_46 = arith.constant 0 : index
    %46 = vector.load %arg3[%c7, %c0_45, %c0_46] : memref<9x6x64xf32, #tpu.memory_space<vmem>>, vector<1x6x64xf32>
    %47 = vector.shape_cast %46 : vector<1x6x64xf32> to vector<6x64xf32>
    %cst_47 = arith.constant dense<0.000000e+00> : vector<132x64xf32>
    %48 = tpu.matmul %45, %47, %cst_47 {dimension_numbers = #tpu.dot_dimension_numbers<[1], [0], [0], [1], [0, 0, 1, 1], [], []>} : vector<132x6xf32>, vector<6x64xf32>, vector<132x64xf32> -> vector<132x64xf32>
    %49 = arith.addf %44, %48 : vector<132x64xf32>
    %c48_48 = arith.constant 48 : index
    %c0_49 = arith.constant 0 : index
    %50 = vector.load %arg14[%c48_48, %c0_49] : memref<180x64xf32, #tpu.memory_space<vmem>>, vector<132x6xf32>
    %c8 = arith.constant 8 : index
    %c0_50 = arith.constant 0 : index
    %c0_51 = arith.constant 0 : index
    %51 = vector.load %arg3[%c8, %c0_50, %c0_51] : memref<9x6x64xf32, #tpu.memory_space<vmem>>, vector<1x6x64xf32>
    %52 = vector.shape_cast %51 : vector<1x6x64xf32> to vector<6x64xf32>
    %cst_52 = arith.constant dense<0.000000e+00> : vector<132x64xf32>
    %53 = tpu.matmul %50, %52, %cst_52 {dimension_numbers = #tpu.dot_dimension_numbers<[1], [0], [0], [1], [0, 0, 1, 1], [], []>} : vector<132x6xf32>, vector<6x64xf32>, vector<132x64xf32> -> vector<132x64xf32>
    %54 = arith.addf %49, %53 : vector<132x64xf32>
    %cst_53 = arith.constant 0.000000e+00 : f32
    %55 = vector.broadcast %cst_53 : f32 to vector<132x64xf32>
    %56 = arith.maximumf %54, %55 : vector<132x64xf32>
    %57 = vector.broadcast %0 : vector<132x1xf32> to vector<132x64xf32>
    %58 = arith.mulf %56, %57 : vector<132x64xf32>
    %c24_54 = arith.constant 24 : index
    %c0_55 = arith.constant 0 : index
    %59 = vector.load %arg14[%c24_54, %c0_55] : memref<180x64xf32, #tpu.memory_space<vmem>>, vector<132x64xf32>
    tpu.vector_store %arg14[%c24_54, %c0_55], %58 {strides = array<i32>} : memref<180x64xf32, #tpu.memory_space<vmem>>, vector<132x64xf32>,
    %c0_56 = arith.constant 0 : index
    %c0_57 = arith.constant 0 : index
    %60 = vector.load %arg14[%c0_56, %c0_57] : memref<180x64xf32, #tpu.memory_space<vmem>>, vector<132x64xf32>
    %c0_58 = arith.constant 0 : index
    %c0_59 = arith.constant 0 : index
    %c0_60 = arith.constant 0 : index
    %61 = vector.load %arg4[%c0_58, %c0_59, %c0_60] : memref<9x64x64xf32, #tpu.memory_space<vmem>>, vector<1x64x64xf32>
    %62 = vector.shape_cast %61 : vector<1x64x64xf32> to vector<64x64xf32>
    %cst_61 = arith.constant dense<0.000000e+00> : vector<132x64xf32>
    %63 = tpu.matmul %60, %62, %cst_61 {dimension_numbers = #tpu.dot_dimension_numbers<[1], [0], [0], [1], [0, 0, 1, 1], [], []>} : vector<132x64xf32>, vector<64x64xf32>, vector<132x64xf32> -> vector<132x64xf32>
    %c2_62 = arith.constant 2 : index
    %c0_63 = arith.constant 0 : index
    %64 = vector.load %arg14[%c2_62, %c0_63] : memref<180x64xf32, #tpu.memory_space<vmem>>, vector<132x64xf32>
    %c1_64 = arith.constant 1 : index
    %c0_65 = arith.constant 0 : index
    %c0_66 = arith.constant 0 : index
    %65 = vector.load %arg4[%c1_64, %c0_65, %c0_66] : memref<9x64x64xf32, #tpu.memory_space<vmem>>, vector<1x64x64xf32>
    %66 = vector.shape_cast %65 : vector<1x64x64xf32> to vector<64x64xf32>
    %cst_67 = arith.constant dense<0.000000e+00> : vector<132x64xf32>
    %67 = tpu.matmul %64, %66, %cst_67 {dimension_numbers = #tpu.dot_dimension_numbers<[1], [0], [0], [1], [0, 0, 1, 1], [], []>} : vector<132x64xf32>, vector<64x64xf32>, vector<132x64xf32> -> vector<132x64xf32>
    %68 = arith.addf %63, %67 : vector<132x64xf32>
    %c4_68 = arith.constant 4 : index
    %c0_69 = arith.constant 0 : index
    %69 = vector.load %arg14[%c4_68, %c0_69] : memref<180x64xf32, #tpu.memory_space<vmem>>, vector<132x64xf32>
    %c2_70 = arith.constant 2 : index
    %c0_71 = arith.constant 0 : index
    %c0_72 = arith.constant 0 : index
    %70 = vector.load %arg4[%c2_70, %c0_71, %c0_72] : memref<9x64x64xf32, #tpu.memory_space<vmem>>, vector<1x64x64xf32>
    %71 = vector.shape_cast %70 : vector<1x64x64xf32> to vector<64x64xf32>
    %cst_73 = arith.constant dense<0.000000e+00> : vector<132x64xf32>
    %72 = tpu.matmul %69, %71, %cst_73 {dimension_numbers = #tpu.dot_dimension_numbers<[1], [0], [0], [1], [0, 0, 1, 1], [], []>} : vector<132x64xf32>, vector<64x64xf32>, vector<132x64xf32> -> vector<132x64xf32>
    %73 = arith.addf %68, %72 : vector<132x64xf32>
    %c22_74 = arith.constant 22 : index
    %c0_75 = arith.constant 0 : index
    %74 = vector.load %arg14[%c22_74, %c0_75] : memref<180x64xf32, #tpu.memory_space<vmem>>, vector<132x64xf32>
    %c3_76 = arith.constant 3 : index
    %c0_77 = arith.constant 0 : index
    %c0_78 = arith.constant 0 : index
    %75 = vector.load %arg4[%c3_76, %c0_77, %c0_78] : memref<9x64x64xf32, #tpu.memory_space<vmem>>, vector<1x64x64xf32>
    %76 = vector.shape_cast %75 : vector<1x64x64xf32> to vector<64x64xf32>
    %cst_79 = arith.constant dense<0.000000e+00> : vector<132x64xf32>
    %77 = tpu.matmul %74, %76, %cst_79 {dimension_numbers = #tpu.dot_dimension_numbers<[1], [0], [0], [1], [0, 0, 1, 1], [], []>} : vector<132x64xf32>, vector<64x64xf32>, vector<132x64xf32> -> vector<132x64xf32>
    %78 = arith.addf %73, %77 : vector<132x64xf32>
    %c24_80 = arith.constant 24 : index
    %c0_81 = arith.constant 0 : index
    %79 = vector.load %arg14[%c24_80, %c0_81] : memref<180x64xf32, #tpu.memory_space<vmem>>, vector<132x64xf32>
    %c4_82 = arith.constant 4 : index
    %c0_83 = arith.constant 0 : index
    %c0_84 = arith.constant 0 : index
    %80 = vector.load %arg4[%c4_82, %c0_83, %c0_84] : memref<9x64x64xf32, #tpu.memory_space<vmem>>, vector<1x64x64xf32>
    %81 = vector.shape_cast %80 : vector<1x64x64xf32> to vector<64x64xf32>
    %cst_85 = arith.constant dense<0.000000e+00> : vector<132x64xf32>
    %82 = tpu.matmul %79, %81, %cst_85 {dimension_numbers = #tpu.dot_dimension_numbers<[1], [0], [0], [1], [0, 0, 1, 1], [], []>} : vector<132x64xf32>, vector<64x64xf32>, vector<132x64xf32> -> vector<132x64xf32>
    %83 = arith.addf %78, %82 : vector<132x64xf32>
    %c26_86 = arith.constant 26 : index
    %c0_87 = arith.constant 0 : index
    %84 = vector.load %arg14[%c26_86, %c0_87] : memref<180x64xf32, #tpu.memory_space<vmem>>, vector<132x64xf32>
    %c5_88 = arith.constant 5 : index
    %c0_89 = arith.constant 0 : index
    %c0_90 = arith.constant 0 : index
    %85 = vector.load %arg4[%c5_88, %c0_89, %c0_90] : memref<9x64x64xf32, #tpu.memory_space<vmem>>, vector<1x64x64xf32>
    %86 = vector.shape_cast %85 : vector<1x64x64xf32> to vector<64x64xf32>
    %cst_91 = arith.constant dense<0.000000e+00> : vector<132x64xf32>
    %87 = tpu.matmul %84, %86, %cst_91 {dimension_numbers = #tpu.dot_dimension_numbers<[1], [0], [0], [1], [0, 0, 1, 1], [], []>} : vector<132x64xf32>, vector<64x64xf32>, vector<132x64xf32> -> vector<132x64xf32>
    %88 = arith.addf %83, %87 : vector<132x64xf32>
    %c44_92 = arith.constant 44 : index
    %c0_93 = arith.constant 0 : index
    %89 = vector.load %arg14[%c44_92, %c0_93] : memref<180x64xf32, #tpu.memory_space<vmem>>, vector<132x64xf32>
    %c6_94 = arith.constant 6 : index
    %c0_95 = arith.constant 0 : index
    %c0_96 = arith.constant 0 : index
    %90 = vector.load %arg4[%c6_94, %c0_95, %c0_96] : memref<9x64x64xf32, #tpu.memory_space<vmem>>, vector<1x64x64xf32>
    %91 = vector.shape_cast %90 : vector<1x64x64xf32> to vector<64x64xf32>
    %cst_97 = arith.constant dense<0.000000e+00> : vector<132x64xf32>
    %92 = tpu.matmul %89, %91, %cst_97 {dimension_numbers = #tpu.dot_dimension_numbers<[1], [0], [0], [1], [0, 0, 1, 1], [], []>} : vector<132x64xf32>, vector<64x64xf32>, vector<132x64xf32> -> vector<132x64xf32>
    %93 = arith.addf %88, %92 : vector<132x64xf32>
    %c46_98 = arith.constant 46 : index
    %c0_99 = arith.constant 0 : index
    %94 = vector.load %arg14[%c46_98, %c0_99] : memref<180x64xf32, #tpu.memory_space<vmem>>, vector<132x64xf32>
    %c7_100 = arith.constant 7 : index
    %c0_101 = arith.constant 0 : index
    %c0_102 = arith.constant 0 : index
    %95 = vector.load %arg4[%c7_100, %c0_101, %c0_102] : memref<9x64x64xf32, #tpu.memory_space<vmem>>, vector<1x64x64xf32>
    %96 = vector.shape_cast %95 : vector<1x64x64xf32> to vector<64x64xf32>
    %cst_103 = arith.constant dense<0.000000e+00> : vector<132x64xf32>
    %97 = tpu.matmul %94, %96, %cst_103 {dimension_numbers = #tpu.dot_dimension_numbers<[1], [0], [0], [1], [0, 0, 1, 1], [], []>} : vector<132x64xf32>, vector<64x64xf32>, vector<132x64xf32> -> vector<132x64xf32>
    %98 = arith.addf %93, %97 : vector<132x64xf32>
    %c48_104 = arith.constant 48 : index
    %c0_105 = arith.constant 0 : index
    %99 = vector.load %arg14[%c48_104, %c0_105] : memref<180x64xf32, #tpu.memory_space<vmem>>, vector<132x64xf32>
    %c8_106 = arith.constant 8 : index
    %c0_107 = arith.constant 0 : index
    %c0_108 = arith.constant 0 : index
    %100 = vector.load %arg4[%c8_106, %c0_107, %c0_108] : memref<9x64x64xf32, #tpu.memory_space<vmem>>, vector<1x64x64xf32>
    %101 = vector.shape_cast %100 : vector<1x64x64xf32> to vector<64x64xf32>
    %cst_109 = arith.constant dense<0.000000e+00> : vector<132x64xf32>
    %102 = tpu.matmul %99, %101, %cst_109 {dimension_numbers = #tpu.dot_dimension_numbers<[1], [0], [0], [1], [0, 0, 1, 1], [], []>} : vector<132x64xf32>, vector<64x64xf32>, vector<132x64xf32> -> vector<132x64xf32>
    %103 = arith.addf %98, %102 : vector<132x64xf32>
    %cst_110 = arith.constant 0.000000e+00 : f32
    %104 = vector.broadcast %cst_110 : f32 to vector<132x64xf32>
    %105 = arith.maximumf %103, %104 : vector<132x64xf32>
    %106 = vector.broadcast %0 : vector<132x1xf32> to vector<132x64xf32>
    %107 = arith.mulf %105, %106 : vector<132x64xf32>
    %c24_111 = arith.constant 24 : index
    %c0_112 = arith.constant 0 : index
    %108 = vector.load %arg14[%c24_111, %c0_112] : memref<180x64xf32, #tpu.memory_space<vmem>>, vector<132x64xf32>
    tpu.vector_store %arg14[%c24_111, %c0_112], %107 {strides = array<i32>} : memref<180x64xf32, #tpu.memory_space<vmem>>, vector<132x64xf32>,
    %c0_113 = arith.constant 0 : index
    %c0_114 = arith.constant 0 : index
    %109 = vector.load %arg14[%c0_113, %c0_114] : memref<180x64xf32, #tpu.memory_space<vmem>>, vector<132x64xf32>
    %c0_115 = arith.constant 0 : index
    %c0_116 = arith.constant 0 : index
    %c0_117 = arith.constant 0 : index
    %110 = vector.load %arg5[%c0_115, %c0_116, %c0_117] : memref<9x64x32xf32, #tpu.memory_space<vmem>>, vector<1x64x32xf32>
    %111 = vector.shape_cast %110 : vector<1x64x32xf32> to vector<64x32xf32>
    %cst_118 = arith.constant dense<0.000000e+00> : vector<132x32xf32>
    %112 = tpu.matmul %109, %111, %cst_118 {dimension_numbers = #tpu.dot_dimension_numbers<[1], [0], [0], [1], [0, 0, 1, 1], [], []>} : vector<132x64xf32>, vector<64x32xf32>, vector<132x32xf32> -> vector<132x32xf32>
    %c2_119 = arith.constant 2 : index
    %c0_120 = arith.constant 0 : index
    %113 = vector.load %arg14[%c2_119, %c0_120] : memref<180x64xf32, #tpu.memory_space<vmem>>, vector<132x64xf32>
    %c1_121 = arith.constant 1 : index
    %c0_122 = arith.constant 0 : index
    %c0_123 = arith.constant 0 : index
    %114 = vector.load %arg5[%c1_121, %c0_122, %c0_123] : memref<9x64x32xf32, #tpu.memory_space<vmem>>, vector<1x64x32xf32>
    %115 = vector.shape_cast %114 : vector<1x64x32xf32> to vector<64x32xf32>
    %cst_124 = arith.constant dense<0.000000e+00> : vector<132x32xf32>
    %116 = tpu.matmul %113, %115, %cst_124 {dimension_numbers = #tpu.dot_dimension_numbers<[1], [0], [0], [1], [0, 0, 1, 1], [], []>} : vector<132x64xf32>, vector<64x32xf32>, vector<132x32xf32> -> vector<132x32xf32>
    %117 = arith.addf %112, %116 : vector<132x32xf32>
    %c4_125 = arith.constant 4 : index
    %c0_126 = arith.constant 0 : index
    %118 = vector.load %arg14[%c4_125, %c0_126] : memref<180x64xf32, #tpu.memory_space<vmem>>, vector<132x64xf32>
    %c2_127 = arith.constant 2 : index
    %c0_128 = arith.constant 0 : index
    %c0_129 = arith.constant 0 : index
    %119 = vector.load %arg5[%c2_127, %c0_128, %c0_129] : memref<9x64x32xf32, #tpu.memory_space<vmem>>, vector<1x64x32xf32>
    %120 = vector.shape_cast %119 : vector<1x64x32xf32> to vector<64x32xf32>
    %cst_130 = arith.constant dense<0.000000e+00> : vector<132x32xf32>
    %121 = tpu.matmul %118, %120, %cst_130 {dimension_numbers = #tpu.dot_dimension_numbers<[1], [0], [0], [1], [0, 0, 1, 1], [], []>} : vector<132x64xf32>, vector<64x32xf32>, vector<132x32xf32> -> vector<132x32xf32>
    %122 = arith.addf %117, %121 : vector<132x32xf32>
    %c22_131 = arith.constant 22 : index
    %c0_132 = arith.constant 0 : index
    %123 = vector.load %arg14[%c22_131, %c0_132] : memref<180x64xf32, #tpu.memory_space<vmem>>, vector<132x64xf32>
    %c3_133 = arith.constant 3 : index
    %c0_134 = arith.constant 0 : index
    %c0_135 = arith.constant 0 : index
    %124 = vector.load %arg5[%c3_133, %c0_134, %c0_135] : memref<9x64x32xf32, #tpu.memory_space<vmem>>, vector<1x64x32xf32>
    %125 = vector.shape_cast %124 : vector<1x64x32xf32> to vector<64x32xf32>
    %cst_136 = arith.constant dense<0.000000e+00> : vector<132x32xf32>
    %126 = tpu.matmul %123, %125, %cst_136 {dimension_numbers = #tpu.dot_dimension_numbers<[1], [0], [0], [1], [0, 0, 1, 1], [], []>} : vector<132x64xf32>, vector<64x32xf32>, vector<132x32xf32> -> vector<132x32xf32>
    %127 = arith.addf %122, %126 : vector<132x32xf32>
    %c24_137 = arith.constant 24 : index
    %c0_138 = arith.constant 0 : index
    %128 = vector.load %arg14[%c24_137, %c0_138] : memref<180x64xf32, #tpu.memory_space<vmem>>, vector<132x64xf32>
    %c4_139 = arith.constant 4 : index
    %c0_140 = arith.constant 0 : index
    %c0_141 = arith.constant 0 : index
    %129 = vector.load %arg5[%c4_139, %c0_140, %c0_141] : memref<9x64x32xf32, #tpu.memory_space<vmem>>, vector<1x64x32xf32>
    %130 = vector.shape_cast %129 : vector<1x64x32xf32> to vector<64x32xf32>
    %cst_142 = arith.constant dense<0.000000e+00> : vector<132x32xf32>
    %131 = tpu.matmul %128, %130, %cst_142 {dimension_numbers = #tpu.dot_dimension_numbers<[1], [0], [0], [1], [0, 0, 1, 1], [], []>} : vector<132x64xf32>, vector<64x32xf32>, vector<132x32xf32> -> vector<132x32xf32>
    %132 = arith.addf %127, %131 : vector<132x32xf32>
    %c26_143 = arith.constant 26 : index
    %c0_144 = arith.constant 0 : index
    %133 = vector.load %arg14[%c26_143, %c0_144] : memref<180x64xf32, #tpu.memory_space<vmem>>, vector<132x64xf32>
    %c5_145 = arith.constant 5 : index
    %c0_146 = arith.constant 0 : index
    %c0_147 = arith.constant 0 : index
    %134 = vector.load %arg5[%c5_145, %c0_146, %c0_147] : memref<9x64x32xf32, #tpu.memory_space<vmem>>, vector<1x64x32xf32>
    %135 = vector.shape_cast %134 : vector<1x64x32xf32> to vector<64x32xf32>
    %cst_148 = arith.constant dense<0.000000e+00> : vector<132x32xf32>
    %136 = tpu.matmul %133, %135, %cst_148 {dimension_numbers = #tpu.dot_dimension_numbers<[1], [0], [0], [1], [0, 0, 1, 1], [], []>} : vector<132x64xf32>, vector<64x32xf32>, vector<132x32xf32> -> vector<132x32xf32>
    %137 = arith.addf %132, %136 : vector<132x32xf32>
    %c44_149 = arith.constant 44 : index
    %c0_150 = arith.constant 0 : index
    %138 = vector.load %arg14[%c44_149, %c0_150] : memref<180x64xf32, #tpu.memory_space<vmem>>, vector<132x64xf32>
    %c6_151 = arith.constant 6 : index
    %c0_152 = arith.constant 0 : index
    %c0_153 = arith.constant 0 : index
    %139 = vector.load %arg5[%c6_151, %c0_152, %c0_153] : memref<9x64x32xf32, #tpu.memory_space<vmem>>, vector<1x64x32xf32>
    %140 = vector.shape_cast %139 : vector<1x64x32xf32> to vector<64x32xf32>
    %cst_154 = arith.constant dense<0.000000e+00> : vector<132x32xf32>
    %141 = tpu.matmul %138, %140, %cst_154 {dimension_numbers = #tpu.dot_dimension_numbers<[1], [0], [0], [1], [0, 0, 1, 1], [], []>} : vector<132x64xf32>, vector<64x32xf32>, vector<132x32xf32> -> vector<132x32xf32>
    %142 = arith.addf %137, %141 : vector<132x32xf32>
    %c46_155 = arith.constant 46 : index
    %c0_156 = arith.constant 0 : index
    %143 = vector.load %arg14[%c46_155, %c0_156] : memref<180x64xf32, #tpu.memory_space<vmem>>, vector<132x64xf32>
    %c7_157 = arith.constant 7 : index
    %c0_158 = arith.constant 0 : index
    %c0_159 = arith.constant 0 : index
    %144 = vector.load %arg5[%c7_157, %c0_158, %c0_159] : memref<9x64x32xf32, #tpu.memory_space<vmem>>, vector<1x64x32xf32>
    %145 = vector.shape_cast %144 : vector<1x64x32xf32> to vector<64x32xf32>
    %cst_160 = arith.constant dense<0.000000e+00> : vector<132x32xf32>
    %146 = tpu.matmul %143, %145, %cst_160 {dimension_numbers = #tpu.dot_dimension_numbers<[1], [0], [0], [1], [0, 0, 1, 1], [], []>} : vector<132x64xf32>, vector<64x32xf32>, vector<132x32xf32> -> vector<132x32xf32>
    %147 = arith.addf %142, %146 : vector<132x32xf32>
    %c48_161 = arith.constant 48 : index
    %c0_162 = arith.constant 0 : index
    %148 = vector.load %arg14[%c48_161, %c0_162] : memref<180x64xf32, #tpu.memory_space<vmem>>, vector<132x64xf32>
    %c8_163 = arith.constant 8 : index
    %c0_164 = arith.constant 0 : index
    %c0_165 = arith.constant 0 : index
    %149 = vector.load %arg5[%c8_163, %c0_164, %c0_165] : memref<9x64x32xf32, #tpu.memory_space<vmem>>, vector<1x64x32xf32>
    %150 = vector.shape_cast %149 : vector<1x64x32xf32> to vector<64x32xf32>
    %cst_166 = arith.constant dense<0.000000e+00> : vector<132x32xf32>
    %151 = tpu.matmul %148, %150, %cst_166 {dimension_numbers = #tpu.dot_dimension_numbers<[1], [0], [0], [1], [0, 0, 1, 1], [], []>} : vector<132x64xf32>, vector<64x32xf32>, vector<132x32xf32> -> vector<132x32xf32>
    %152 = arith.addf %147, %151 : vector<132x32xf32>
    %cst_167 = arith.constant 0.000000e+00 : f32
    %153 = vector.broadcast %cst_167 : f32 to vector<132x32xf32>
    %154 = arith.maximumf %152, %153 : vector<132x32xf32>
    %155 = vector.broadcast %0 : vector<132x1xf32> to vector<132x32xf32>
    %156 = arith.mulf %154, %155 : vector<132x32xf32>
    %c24_168 = arith.constant 24 : index
    %c0_169 = arith.constant 0 : index
    %157 = vector.load %arg14[%c24_168, %c0_169] : memref<180x64xf32, #tpu.memory_space<vmem>>, vector<132x32xf32>
    tpu.vector_store %arg14[%c24_168, %c0_169], %156 {strides = array<i32>} : memref<180x64xf32, #tpu.memory_space<vmem>>, vector<132x32xf32>,
    %c48_170 = arith.constant 48 : index
    %c0_171 = arith.constant 0 : index
    %158 = vector.load %arg14[%c48_170, %c0_171] : memref<180x64xf32, #tpu.memory_space<vmem>>, vector<2x32xf32>
    %c0_172 = arith.constant 0 : index
    %c0_173 = arith.constant 0 : index
    %c0_174 = arith.constant 0 : index
    %159 = vector.load %arg6[%c0_172, %c0_173, %c0_174] : memref<36x32x512xf32, #tpu.memory_space<vmem>>, vector<1x32x512xf32>
    %160 = vector.shape_cast %159 : vector<1x32x512xf32> to vector<32x512xf32>
    %cst_175 = arith.constant dense<0.000000e+00> : vector<2x512xf32>
    %161 = tpu.matmul %158, %160, %cst_175 {dimension_numbers = #tpu.dot_dimension_numbers<[1], [0], [0], [1], [0, 0, 1, 1], [], []>} : vector<2x32xf32>, vector<32x512xf32>, vector<2x512xf32> -> vector<2x512xf32>
    %c50 = arith.constant 50 : index
    %c0_176 = arith.constant 0 : index
    %162 = vector.load %arg14[%c50, %c0_176] : memref<180x64xf32, #tpu.memory_space<vmem>>, vector<2x32xf32>
    %c1_177 = arith.constant 1 : index
    %c0_178 = arith.constant 0 : index
    %c0_179 = arith.constant 0 : index
    %163 = vector.load %arg6[%c1_177, %c0_178, %c0_179] : memref<36x32x512xf32, #tpu.memory_space<vmem>>, vector<1x32x512xf32>
    %164 = vector.shape_cast %163 : vector<1x32x512xf32> to vector<32x512xf32>
    %cst_180 = arith.constant dense<0.000000e+00> : vector<2x512xf32>
    %165 = tpu.matmul %162, %164, %cst_180 {dimension_numbers = #tpu.dot_dimension_numbers<[1], [0], [0], [1], [0, 0, 1, 1], [], []>} : vector<2x32xf32>, vector<32x512xf32>, vector<2x512xf32> -> vector<2x512xf32>
    %166 = arith.addf %161, %165 : vector<2x512xf32>
    %c52 = arith.constant 52 : index
    %c0_181 = arith.constant 0 : index
    %167 = vector.load %arg14[%c52, %c0_181] : memref<180x64xf32, #tpu.memory_space<vmem>>, vector<2x32xf32>
    %c2_182 = arith.constant 2 : index
    %c0_183 = arith.constant 0 : index
    %c0_184 = arith.constant 0 : index
    %168 = vector.load %arg6[%c2_182, %c0_183, %c0_184] : memref<36x32x512xf32, #tpu.memory_space<vmem>>, vector<1x32x512xf32>
    %169 = vector.shape_cast %168 : vector<1x32x512xf32> to vector<32x512xf32>
    %cst_185 = arith.constant dense<0.000000e+00> : vector<2x512xf32>
    %170 = tpu.matmul %167, %169, %cst_185 {dimension_numbers = #tpu.dot_dimension_numbers<[1], [0], [0], [1], [0, 0, 1, 1], [], []>} : vector<2x32xf32>, vector<32x512xf32>, vector<2x512xf32> -> vector<2x512xf32>
    %171 = arith.addf %166, %170 : vector<2x512xf32>
    %c54_186 = arith.constant 54 : index
    %c0_187 = arith.constant 0 : index
    %172 = vector.load %arg14[%c54_186, %c0_187] : memref<180x64xf32, #tpu.memory_space<vmem>>, vector<2x32xf32>
    %c3_188 = arith.constant 3 : index
    %c0_189 = arith.constant 0 : index
    %c0_190 = arith.constant 0 : index
    %173 = vector.load %arg6[%c3_188, %c0_189, %c0_190] : memref<36x32x512xf32, #tpu.memory_space<vmem>>, vector<1x32x512xf32>
    %174 = vector.shape_cast %173 : vector<1x32x512xf32> to vector<32x512xf32>
    %cst_191 = arith.constant dense<0.000000e+00> : vector<2x512xf32>
    %175 = tpu.matmul %172, %174, %cst_191 {dimension_numbers = #tpu.dot_dimension_numbers<[1], [0], [0], [1], [0, 0, 1, 1], [], []>} : vector<2x32xf32>, vector<32x512xf32>, vector<2x512xf32> -> vector<2x512xf32>
    %176 = arith.addf %171, %175 : vector<2x512xf32>
    %c56 = arith.constant 56 : index
    %c0_192 = arith.constant 0 : index
    %177 = vector.load %arg14[%c56, %c0_192] : memref<180x64xf32, #tpu.memory_space<vmem>>, vector<2x32xf32>
    %c4_193 = arith.constant 4 : index
    %c0_194 = arith.constant 0 : index
    %c0_195 = arith.constant 0 : index
    %178 = vector.load %arg6[%c4_193, %c0_194, %c0_195] : memref<36x32x512xf32, #tpu.memory_space<vmem>>, vector<1x32x512xf32>
    %179 = vector.shape_cast %178 : vector<1x32x512xf32> to vector<32x512xf32>
    %cst_196 = arith.constant dense<0.000000e+00> : vector<2x512xf32>
    %180 = tpu.matmul %177, %179, %cst_196 {dimension_numbers = #tpu.dot_dimension_numbers<[1], [0], [0], [1], [0, 0, 1, 1], [], []>} : vector<2x32xf32>, vector<32x512xf32>, vector<2x512xf32> -> vector<2x512xf32>
    %181 = arith.addf %176, %180 : vector<2x512xf32>
    %c58 = arith.constant 58 : index
    %c0_197 = arith.constant 0 : index
    %182 = vector.load %arg14[%c58, %c0_197] : memref<180x64xf32, #tpu.memory_space<vmem>>, vector<2x32xf32>
    %c5_198 = arith.constant 5 : index
    %c0_199 = arith.constant 0 : index
    %c0_200 = arith.constant 0 : index
    %183 = vector.load %arg6[%c5_198, %c0_199, %c0_200] : memref<36x32x512xf32, #tpu.memory_space<vmem>>, vector<1x32x512xf32>
    %184 = vector.shape_cast %183 : vector<1x32x512xf32> to vector<32x512xf32>
    %cst_201 = arith.constant dense<0.000000e+00> : vector<2x512xf32>
    %185 = tpu.matmul %182, %184, %cst_201 {dimension_numbers = #tpu.dot_dimension_numbers<[1], [0], [0], [1], [0, 0, 1, 1], [], []>} : vector<2x32xf32>, vector<32x512xf32>, vector<2x512xf32> -> vector<2x512xf32>
    %186 = arith.addf %181, %185 : vector<2x512xf32>
    %c60 = arith.constant 60 : index
    %c0_202 = arith.constant 0 : index
    %187 = vector.load %arg14[%c60, %c0_202] : memref<180x64xf32, #tpu.memory_space<vmem>>, vector<2x32xf32>
    %c6_203 = arith.constant 6 : index
    %c0_204 = arith.constant 0 : index
    %c0_205 = arith.constant 0 : index
    %188 = vector.load %arg6[%c6_203, %c0_204, %c0_205] : memref<36x32x512xf32, #tpu.memory_space<vmem>>, vector<1x32x512xf32>
    %189 = vector.shape_cast %188 : vector<1x32x512xf32> to vector<32x512xf32>
    %cst_206 = arith.constant dense<0.000000e+00> : vector<2x512xf32>
    %190 = tpu.matmul %187, %189, %cst_206 {dimension_numbers = #tpu.dot_dimension_numbers<[1], [0], [0], [1], [0, 0, 1, 1], [], []>} : vector<2x32xf32>, vector<32x512xf32>, vector<2x512xf32> -> vector<2x512xf32>
    %191 = arith.addf %186, %190 : vector<2x512xf32>
    %c62 = arith.constant 62 : index
    %c0_207 = arith.constant 0 : index
    %192 = vector.load %arg14[%c62, %c0_207] : memref<180x64xf32, #tpu.memory_space<vmem>>, vector<2x32xf32>
    %c7_208 = arith.constant 7 : index
    %c0_209 = arith.constant 0 : index
    %c0_210 = arith.constant 0 : index
    %193 = vector.load %arg6[%c7_208, %c0_209, %c0_210] : memref<36x32x512xf32, #tpu.memory_space<vmem>>, vector<1x32x512xf32>
    %194 = vector.shape_cast %193 : vector<1x32x512xf32> to vector<32x512xf32>
    %cst_211 = arith.constant dense<0.000000e+00> : vector<2x512xf32>
    %195 = tpu.matmul %192, %194, %cst_211 {dimension_numbers = #tpu.dot_dimension_numbers<[1], [0], [0], [1], [0, 0, 1, 1], [], []>} : vector<2x32xf32>, vector<32x512xf32>, vector<2x512xf32> -> vector<2x512xf32>
    %196 = arith.addf %191, %195 : vector<2x512xf32>
    %c64 = arith.constant 64 : index
    %c0_212 = arith.constant 0 : index
    %197 = vector.load %arg14[%c64, %c0_212] : memref<180x64xf32, #tpu.memory_space<vmem>>, vector<2x32xf32>
    %c8_213 = arith.constant 8 : index
    %c0_214 = arith.constant 0 : index
    %c0_215 = arith.constant 0 : index
    %198 = vector.load %arg6[%c8_213, %c0_214, %c0_215] : memref<36x32x512xf32, #tpu.memory_space<vmem>>, vector<1x32x512xf32>
    %199 = vector.shape_cast %198 : vector<1x32x512xf32> to vector<32x512xf32>
    %cst_216 = arith.constant dense<0.000000e+00> : vector<2x512xf32>
    %200 = tpu.matmul %197, %199, %cst_216 {dimension_numbers = #tpu.dot_dimension_numbers<[1], [0], [0], [1], [0, 0, 1, 1], [], []>} : vector<2x32xf32>, vector<32x512xf32>, vector<2x512xf32> -> vector<2x512xf32>
    %201 = arith.addf %196, %200 : vector<2x512xf32>
    %c70_217 = arith.constant 70 : index
    %c0_218 = arith.constant 0 : index
    %202 = vector.load %arg14[%c70_217, %c0_218] : memref<180x64xf32, #tpu.memory_space<vmem>>, vector<2x32xf32>
    %c9 = arith.constant 9 : index
    %c0_219 = arith.constant 0 : index
    %c0_220 = arith.constant 0 : index
    %203 = vector.load %arg6[%c9, %c0_219, %c0_220] : memref<36x32x512xf32, #tpu.memory_space<vmem>>, vector<1x32x512xf32>
    %204 = vector.shape_cast %203 : vector<1x32x512xf32> to vector<32x512xf32>
    %cst_221 = arith.constant dense<0.000000e+00> : vector<2x512xf32>
    %205 = tpu.matmul %202, %204, %cst_221 {dimension_numbers = #tpu.dot_dimension_numbers<[1], [0], [0], [1], [0, 0, 1, 1], [], []>} : vector<2x32xf32>, vector<32x512xf32>, vector<2x512xf32> -> vector<2x512xf32>
    %206 = arith.addf %201, %205 : vector<2x512xf32>
    %c72 = arith.constant 72 : index
    %c0_222 = arith.constant 0 : index
    %207 = vector.load %arg14[%c72, %c0_222] : memref<180x64xf32, #tpu.memory_space<vmem>>, vector<2x32xf32>
    %c10 = arith.constant 10 : index
    %c0_223 = arith.constant 0 : index
    %c0_224 = arith.constant 0 : index
    %208 = vector.load %arg6[%c10, %c0_223, %c0_224] : memref<36x32x512xf32, #tpu.memory_space<vmem>>, vector<1x32x512xf32>
    %209 = vector.shape_cast %208 : vector<1x32x512xf32> to vector<32x512xf32>
    %cst_225 = arith.constant dense<0.000000e+00> : vector<2x512xf32>
    %210 = tpu.matmul %207, %209, %cst_225 {dimension_numbers = #tpu.dot_dimension_numbers<[1], [0], [0], [1], [0, 0, 1, 1], [], []>} : vector<2x32xf32>, vector<32x512xf32>, vector<2x512xf32> -> vector<2x512xf32>
    %211 = arith.addf %206, %210 : vector<2x512xf32>
    %c74 = arith.constant 74 : index
    %c0_226 = arith.constant 0 : index
    %212 = vector.load %arg14[%c74, %c0_226] : memref<180x64xf32, #tpu.memory_space<vmem>>, vector<2x32xf32>
    %c11 = arith.constant 11 : index
    %c0_227 = arith.constant 0 : index
    %c0_228 = arith.constant 0 : index
    %213 = vector.load %arg6[%c11, %c0_227, %c0_228] : memref<36x32x512xf32, #tpu.memory_space<vmem>>, vector<1x32x512xf32>
    %214 = vector.shape_cast %213 : vector<1x32x512xf32> to vector<32x512xf32>
    %cst_229 = arith.constant dense<0.000000e+00> : vector<2x512xf32>
    %215 = tpu.matmul %212, %214, %cst_229 {dimension_numbers = #tpu.dot_dimension_numbers<[1], [0], [0], [1], [0, 0, 1, 1], [], []>} : vector<2x32xf32>, vector<32x512xf32>, vector<2x512xf32> -> vector<2x512xf32>
    %216 = arith.addf %211, %215 : vector<2x512xf32>
    %c76 = arith.constant 76 : index
    %c0_230 = arith.constant 0 : index
    %217 = vector.load %arg14[%c76, %c0_230] : memref<180x64xf32, #tpu.memory_space<vmem>>, vector<2x32xf32>
    %c12 = arith.constant 12 : index
    %c0_231 = arith.constant 0 : index
    %c0_232 = arith.constant 0 : index
    %218 = vector.load %arg6[%c12, %c0_231, %c0_232] : memref<36x32x512xf32, #tpu.memory_space<vmem>>, vector<1x32x512xf32>
    %219 = vector.shape_cast %218 : vector<1x32x512xf32> to vector<32x512xf32>
    %cst_233 = arith.constant dense<0.000000e+00> : vector<2x512xf32>
    %220 = tpu.matmul %217, %219, %cst_233 {dimension_numbers = #tpu.dot_dimension_numbers<[1], [0], [0], [1], [0, 0, 1, 1], [], []>} : vector<2x32xf32>, vector<32x512xf32>, vector<2x512xf32> -> vector<2x512xf32>
    %221 = arith.addf %216, %220 : vector<2x512xf32>
    %c78 = arith.constant 78 : index
    %c0_234 = arith.constant 0 : index
    %222 = vector.load %arg14[%c78, %c0_234] : memref<180x64xf32, #tpu.memory_space<vmem>>, vector<2x32xf32>
    %c13 = arith.constant 13 : index
    %c0_235 = arith.constant 0 : index
    %c0_236 = arith.constant 0 : index
    %223 = vector.load %arg6[%c13, %c0_235, %c0_236] : memref<36x32x512xf32, #tpu.memory_space<vmem>>, vector<1x32x512xf32>
    %224 = vector.shape_cast %223 : vector<1x32x512xf32> to vector<32x512xf32>
    %cst_237 = arith.constant dense<0.000000e+00> : vector<2x512xf32>
    %225 = tpu.matmul %222, %224, %cst_237 {dimension_numbers = #tpu.dot_dimension_numbers<[1], [0], [0], [1], [0, 0, 1, 1], [], []>} : vector<2x32xf32>, vector<32x512xf32>, vector<2x512xf32> -> vector<2x512xf32>
    %226 = arith.addf %221, %225 : vector<2x512xf32>
    %c80 = arith.constant 80 : index
    %c0_238 = arith.constant 0 : index
    %227 = vector.load %arg14[%c80, %c0_238] : memref<180x64xf32, #tpu.memory_space<vmem>>, vector<2x32xf32>
    %c14 = arith.constant 14 : index
    %c0_239 = arith.constant 0 : index
    %c0_240 = arith.constant 0 : index
    %228 = vector.load %arg6[%c14, %c0_239, %c0_240] : memref<36x32x512xf32, #tpu.memory_space<vmem>>, vector<1x32x512xf32>
    %229 = vector.shape_cast %228 : vector<1x32x512xf32> to vector<32x512xf32>
    %cst_241 = arith.constant dense<0.000000e+00> : vector<2x512xf32>
    %230 = tpu.matmul %227, %229, %cst_241 {dimension_numbers = #tpu.dot_dimension_numbers<[1], [0], [0], [1], [0, 0, 1, 1], [], []>} : vector<2x32xf32>, vector<32x512xf32>, vector<2x512xf32> -> vector<2x512xf32>
    %231 = arith.addf %226, %230 : vector<2x512xf32>
    %c82 = arith.constant 82 : index
    %c0_242 = arith.constant 0 : index
    %232 = vector.load %arg14[%c82, %c0_242] : memref<180x64xf32, #tpu.memory_space<vmem>>, vector<2x32xf32>
    %c15 = arith.constant 15 : index
    %c0_243 = arith.constant 0 : index
    %c0_244 = arith.constant 0 : index
    %233 = vector.load %arg6[%c15, %c0_243, %c0_244] : memref<36x32x512xf32, #tpu.memory_space<vmem>>, vector<1x32x512xf32>
    %234 = vector.shape_cast %233 : vector<1x32x512xf32> to vector<32x512xf32>
    %cst_245 = arith.constant dense<0.000000e+00> : vector<2x512xf32>
    %235 = tpu.matmul %232, %234, %cst_245 {dimension_numbers = #tpu.dot_dimension_numbers<[1], [0], [0], [1], [0, 0, 1, 1], [], []>} : vector<2x32xf32>, vector<32x512xf32>, vector<2x512xf32> -> vector<2x512xf32>
    %236 = arith.addf %231, %235 : vector<2x512xf32>
    %c84 = arith.constant 84 : index
    %c0_246 = arith.constant 0 : index
    %237 = vector.load %arg14[%c84, %c0_246] : memref<180x64xf32, #tpu.memory_space<vmem>>, vector<2x32xf32>
    %c16 = arith.constant 16 : index
    %c0_247 = arith.constant 0 : index
    %c0_248 = arith.constant 0 : index
    %238 = vector.load %arg6[%c16, %c0_247, %c0_248] : memref<36x32x512xf32, #tpu.memory_space<vmem>>, vector<1x32x512xf32>
    %239 = vector.shape_cast %238 : vector<1x32x512xf32> to vector<32x512xf32>
    %cst_249 = arith.constant dense<0.000000e+00> : vector<2x512xf32>
    %240 = tpu.matmul %237, %239, %cst_249 {dimension_numbers = #tpu.dot_dimension_numbers<[1], [0], [0], [1], [0, 0, 1, 1], [], []>} : vector<2x32xf32>, vector<32x512xf32>, vector<2x512xf32> -> vector<2x512xf32>
    %241 = arith.addf %236, %240 : vector<2x512xf32>
    %c86 = arith.constant 86 : index
    %c0_250 = arith.constant 0 : index
    %242 = vector.load %arg14[%c86, %c0_250] : memref<180x64xf32, #tpu.memory_space<vmem>>, vector<2x32xf32>
    %c17 = arith.constant 17 : index
    %c0_251 = arith.constant 0 : index
    %c0_252 = arith.constant 0 : index
    %243 = vector.load %arg6[%c17, %c0_251, %c0_252] : memref<36x32x512xf32, #tpu.memory_space<vmem>>, vector<1x32x512xf32>
    %244 = vector.shape_cast %243 : vector<1x32x512xf32> to vector<32x512xf32>
    %cst_253 = arith.constant dense<0.000000e+00> : vector<2x512xf32>
    %245 = tpu.matmul %242, %244, %cst_253 {dimension_numbers = #tpu.dot_dimension_numbers<[1], [0], [0], [1], [0, 0, 1, 1], [], []>} : vector<2x32xf32>, vector<32x512xf32>, vector<2x512xf32> -> vector<2x512xf32>
    %246 = arith.addf %241, %245 : vector<2x512xf32>
    %c92_254 = arith.constant 92 : index
    %c0_255 = arith.constant 0 : index
    %247 = vector.load %arg14[%c92_254, %c0_255] : memref<180x64xf32, #tpu.memory_space<vmem>>, vector<2x32xf32>
    %c18_256 = arith.constant 18 : index
    %c0_257 = arith.constant 0 : index
    %c0_258 = arith.constant 0 : index
    %248 = vector.load %arg6[%c18_256, %c0_257, %c0_258] : memref<36x32x512xf32, #tpu.memory_space<vmem>>, vector<1x32x512xf32>
    %249 = vector.shape_cast %248 : vector<1x32x512xf32> to vector<32x512xf32>
    %cst_259 = arith.constant dense<0.000000e+00> : vector<2x512xf32>
    %250 = tpu.matmul %247, %249, %cst_259 {dimension_numbers = #tpu.dot_dimension_numbers<[1], [0], [0], [1], [0, 0, 1, 1], [], []>} : vector<2x32xf32>, vector<32x512xf32>, vector<2x512xf32> -> vector<2x512xf32>
    %251 = arith.addf %246, %250 : vector<2x512xf32>
    %c94 = arith.constant 94 : index
    %c0_260 = arith.constant 0 : index
    %252 = vector.load %arg14[%c94, %c0_260] : memref<180x64xf32, #tpu.memory_space<vmem>>, vector<2x32xf32>
    %c19 = arith.constant 19 : index
    %c0_261 = arith.constant 0 : index
    %c0_262 = arith.constant 0 : index
    %253 = vector.load %arg6[%c19, %c0_261, %c0_262] : memref<36x32x512xf32, #tpu.memory_space<vmem>>, vector<1x32x512xf32>
    %254 = vector.shape_cast %253 : vector<1x32x512xf32> to vector<32x512xf32>
    %cst_263 = arith.constant dense<0.000000e+00> : vector<2x512xf32>
    %255 = tpu.matmul %252, %254, %cst_263 {dimension_numbers = #tpu.dot_dimension_numbers<[1], [0], [0], [1], [0, 0, 1, 1], [], []>} : vector<2x32xf32>, vector<32x512xf32>, vector<2x512xf32> -> vector<2x512xf32>
    %256 = arith.addf %251, %255 : vector<2x512xf32>
    %c96 = arith.constant 96 : index
    %c0_264 = arith.constant 0 : index
    %257 = vector.load %arg14[%c96, %c0_264] : memref<180x64xf32, #tpu.memory_space<vmem>>, vector<2x32xf32>
    %c20 = arith.constant 20 : index
    %c0_265 = arith.constant 0 : index
    %c0_266 = arith.constant 0 : index
    %258 = vector.load %arg6[%c20, %c0_265, %c0_266] : memref<36x32x512xf32, #tpu.memory_space<vmem>>, vector<1x32x512xf32>
    %259 = vector.shape_cast %258 : vector<1x32x512xf32> to vector<32x512xf32>
    %cst_267 = arith.constant dense<0.000000e+00> : vector<2x512xf32>
    %260 = tpu.matmul %257, %259, %cst_267 {dimension_numbers = #tpu.dot_dimension_numbers<[1], [0], [0], [1], [0, 0, 1, 1], [], []>} : vector<2x32xf32>, vector<32x512xf32>, vector<2x512xf32> -> vector<2x512xf32>
    %261 = arith.addf %256, %260 : vector<2x512xf32>
    %c98 = arith.constant 98 : index
    %c0_268 = arith.constant 0 : index
    %262 = vector.load %arg14[%c98, %c0_268] : memref<180x64xf32, #tpu.memory_space<vmem>>, vector<2x32xf32>
    %c21 = arith.constant 21 : index
    %c0_269 = arith.constant 0 : index
    %c0_270 = arith.constant 0 : index
    %263 = vector.load %arg6[%c21, %c0_269, %c0_270] : memref<36x32x512xf32, #tpu.memory_space<vmem>>, vector<1x32x512xf32>
    %264 = vector.shape_cast %263 : vector<1x32x512xf32> to vector<32x512xf32>
    %cst_271 = arith.constant dense<0.000000e+00> : vector<2x512xf32>
    %265 = tpu.matmul %262, %264, %cst_271 {dimension_numbers = #tpu.dot_dimension_numbers<[1], [0], [0], [1], [0, 0, 1, 1], [], []>} : vector<2x32xf32>, vector<32x512xf32>, vector<2x512xf32> -> vector<2x512xf32>
    %266 = arith.addf %261, %265 : vector<2x512xf32>
    %c100 = arith.constant 100 : index
    %c0_272 = arith.constant 0 : index
    %267 = vector.load %arg14[%c100, %c0_272] : memref<180x64xf32, #tpu.memory_space<vmem>>, vector<2x32xf32>
    %c22_273 = arith.constant 22 : index
    %c0_274 = arith.constant 0 : index
    %c0_275 = arith.constant 0 : index
    %268 = vector.load %arg6[%c22_273, %c0_274, %c0_275] : memref<36x32x512xf32, #tpu.memory_space<vmem>>, vector<1x32x512xf32>
    %269 = vector.shape_cast %268 : vector<1x32x512xf32> to vector<32x512xf32>
    %cst_276 = arith.constant dense<0.000000e+00> : vector<2x512xf32>
    %270 = tpu.matmul %267, %269, %cst_276 {dimension_numbers = #tpu.dot_dimension_numbers<[1], [0], [0], [1], [0, 0, 1, 1], [], []>} : vector<2x32xf32>, vector<32x512xf32>, vector<2x512xf32> -> vector<2x512xf32>
    %271 = arith.addf %266, %270 : vector<2x512xf32>
    %c102 = arith.constant 102 : index
    %c0_277 = arith.constant 0 : index
    %272 = vector.load %arg14[%c102, %c0_277] : memref<180x64xf32, #tpu.memory_space<vmem>>, vector<2x32xf32>
    %c23 = arith.constant 23 : index
    %c0_278 = arith.constant 0 : index
    %c0_279 = arith.constant 0 : index
    %273 = vector.load %arg6[%c23, %c0_278, %c0_279] : memref<36x32x512xf32, #tpu.memory_space<vmem>>, vector<1x32x512xf32>
    %274 = vector.shape_cast %273 : vector<1x32x512xf32> to vector<32x512xf32>
    %cst_280 = arith.constant dense<0.000000e+00> : vector<2x512xf32>
    %275 = tpu.matmul %272, %274, %cst_280 {dimension_numbers = #tpu.dot_dimension_numbers<[1], [0], [0], [1], [0, 0, 1, 1], [], []>} : vector<2x32xf32>, vector<32x512xf32>, vector<2x512xf32> -> vector<2x512xf32>
    %276 = arith.addf %271, %275 : vector<2x512xf32>
    %c104 = arith.constant 104 : index
    %c0_281 = arith.constant 0 : index
    %277 = vector.load %arg14[%c104, %c0_281] : memref<180x64xf32, #tpu.memory_space<vmem>>, vector<2x32xf32>
    %c24_282 = arith.constant 24 : index
    %c0_283 = arith.constant 0 : index
    %c0_284 = arith.constant 0 : index
    %278 = vector.load %arg6[%c24_282, %c0_283, %c0_284] : memref<36x32x512xf32, #tpu.memory_space<vmem>>, vector<1x32x512xf32>
    %279 = vector.shape_cast %278 : vector<1x32x512xf32> to vector<32x512xf32>
    %cst_285 = arith.constant dense<0.000000e+00> : vector<2x512xf32>
    %280 = tpu.matmul %277, %279, %cst_285 {dimension_numbers = #tpu.dot_dimension_numbers<[1], [0], [0], [1], [0, 0, 1, 1], [], []>} : vector<2x32xf32>, vector<32x512xf32>, vector<2x512xf32> -> vector<2x512xf32>
    %281 = arith.addf %276, %280 : vector<2x512xf32>
    %c106 = arith.constant 106 : index
    %c0_286 = arith.constant 0 : index
    %282 = vector.load %arg14[%c106, %c0_286] : memref<180x64xf32, #tpu.memory_space<vmem>>, vector<2x32xf32>
    %c25 = arith.constant 25 : index
    %c0_287 = arith.constant 0 : index
    %c0_288 = arith.constant 0 : index
    %283 = vector.load %arg6[%c25, %c0_287, %c0_288] : memref<36x32x512xf32, #tpu.memory_space<vmem>>, vector<1x32x512xf32>
    %284 = vector.shape_cast %283 : vector<1x32x512xf32> to vector<32x512xf32>
    %cst_289 = arith.constant dense<0.000000e+00> : vector<2x512xf32>
    %285 = tpu.matmul %282, %284, %cst_289 {dimension_numbers = #tpu.dot_dimension_numbers<[1], [0], [0], [1], [0, 0, 1, 1], [], []>} : vector<2x32xf32>, vector<32x512xf32>, vector<2x512xf32> -> vector<2x512xf32>
    %286 = arith.addf %281, %285 : vector<2x512xf32>
    %c108 = arith.constant 108 : index
    %c0_290 = arith.constant 0 : index
    %287 = vector.load %arg14[%c108, %c0_290] : memref<180x64xf32, #tpu.memory_space<vmem>>, vector<2x32xf32>
    %c26_291 = arith.constant 26 : index
    %c0_292 = arith.constant 0 : index
    %c0_293 = arith.constant 0 : index
    %288 = vector.load %arg6[%c26_291, %c0_292, %c0_293] : memref<36x32x512xf32, #tpu.memory_space<vmem>>, vector<1x32x512xf32>
    %289 = vector.shape_cast %288 : vector<1x32x512xf32> to vector<32x512xf32>
    %cst_294 = arith.constant dense<0.000000e+00> : vector<2x512xf32>
    %290 = tpu.matmul %287, %289, %cst_294 {dimension_numbers = #tpu.dot_dimension_numbers<[1], [0], [0], [1], [0, 0, 1, 1], [], []>} : vector<2x32xf32>, vector<32x512xf32>, vector<2x512xf32> -> vector<2x512xf32>
    %291 = arith.addf %286, %290 : vector<2x512xf32>
    %c114_295 = arith.constant 114 : index
    %c0_296 = arith.constant 0 : index
    %292 = vector.load %arg14[%c114_295, %c0_296] : memref<180x64xf32, #tpu.memory_space<vmem>>, vector<2x32xf32>
    %c27 = arith.constant 27 : index
    %c0_297 = arith.constant 0 : index
    %c0_298 = arith.constant 0 : index
    %293 = vector.load %arg6[%c27, %c0_297, %c0_298] : memref<36x32x512xf32, #tpu.memory_space<vmem>>, vector<1x32x512xf32>
    %294 = vector.shape_cast %293 : vector<1x32x512xf32> to vector<32x512xf32>
    %cst_299 = arith.constant dense<0.000000e+00> : vector<2x512xf32>
    %295 = tpu.matmul %292, %294, %cst_299 {dimension_numbers = #tpu.dot_dimension_numbers<[1], [0], [0], [1], [0, 0, 1, 1], [], []>} : vector<2x32xf32>, vector<32x512xf32>, vector<2x512xf32> -> vector<2x512xf32>
    %296 = arith.addf %291, %295 : vector<2x512xf32>
    %c116 = arith.constant 116 : index
    %c0_300 = arith.constant 0 : index
    %297 = vector.load %arg14[%c116, %c0_300] : memref<180x64xf32, #tpu.memory_space<vmem>>, vector<2x32xf32>
    %c28 = arith.constant 28 : index
    %c0_301 = arith.constant 0 : index
    %c0_302 = arith.constant 0 : index
    %298 = vector.load %arg6[%c28, %c0_301, %c0_302] : memref<36x32x512xf32, #tpu.memory_space<vmem>>, vector<1x32x512xf32>
    %299 = vector.shape_cast %298 : vector<1x32x512xf32> to vector<32x512xf32>
    %cst_303 = arith.constant dense<0.000000e+00> : vector<2x512xf32>
    %300 = tpu.matmul %297, %299, %cst_303 {dimension_numbers = #tpu.dot_dimension_numbers<[1], [0], [0], [1], [0, 0, 1, 1], [], []>} : vector<2x32xf32>, vector<32x512xf32>, vector<2x512xf32> -> vector<2x512xf32>
    %301 = arith.addf %296, %300 : vector<2x512xf32>
    %c118 = arith.constant 118 : index
    %c0_304 = arith.constant 0 : index
    %302 = vector.load %arg14[%c118, %c0_304] : memref<180x64xf32, #tpu.memory_space<vmem>>, vector<2x32xf32>
    %c29 = arith.constant 29 : index
    %c0_305 = arith.constant 0 : index
    %c0_306 = arith.constant 0 : index
    %303 = vector.load %arg6[%c29, %c0_305, %c0_306] : memref<36x32x512xf32, #tpu.memory_space<vmem>>, vector<1x32x512xf32>
    %304 = vector.shape_cast %303 : vector<1x32x512xf32> to vector<32x512xf32>
    %cst_307 = arith.constant dense<0.000000e+00> : vector<2x512xf32>
    %305 = tpu.matmul %302, %304, %cst_307 {dimension_numbers = #tpu.dot_dimension_numbers<[1], [0], [0], [1], [0, 0, 1, 1], [], []>} : vector<2x32xf32>, vector<32x512xf32>, vector<2x512xf32> -> vector<2x512xf32>
    %306 = arith.addf %301, %305 : vector<2x512xf32>
    %c120 = arith.constant 120 : index
    %c0_308 = arith.constant 0 : index
    %307 = vector.load %arg14[%c120, %c0_308] : memref<180x64xf32, #tpu.memory_space<vmem>>, vector<2x32xf32>
    %c30 = arith.constant 30 : index
    %c0_309 = arith.constant 0 : index
    %c0_310 = arith.constant 0 : index
    %308 = vector.load %arg6[%c30, %c0_309, %c0_310] : memref<36x32x512xf32, #tpu.memory_space<vmem>>, vector<1x32x512xf32>
    %309 = vector.shape_cast %308 : vector<1x32x512xf32> to vector<32x512xf32>
    %cst_311 = arith.constant dense<0.000000e+00> : vector<2x512xf32>
    %310 = tpu.matmul %307, %309, %cst_311 {dimension_numbers = #tpu.dot_dimension_numbers<[1], [0], [0], [1], [0, 0, 1, 1], [], []>} : vector<2x32xf32>, vector<32x512xf32>, vector<2x512xf32> -> vector<2x512xf32>
    %311 = arith.addf %306, %310 : vector<2x512xf32>
    %c122 = arith.constant 122 : index
    %c0_312 = arith.constant 0 : index
    %312 = vector.load %arg14[%c122, %c0_312] : memref<180x64xf32, #tpu.memory_space<vmem>>, vector<2x32xf32>
    %c31 = arith.constant 31 : index
    %c0_313 = arith.constant 0 : index
    %c0_314 = arith.constant 0 : index
    %313 = vector.load %arg6[%c31, %c0_313, %c0_314] : memref<36x32x512xf32, #tpu.memory_space<vmem>>, vector<1x32x512xf32>
    %314 = vector.shape_cast %313 : vector<1x32x512xf32> to vector<32x512xf32>
    %cst_315 = arith.constant dense<0.000000e+00> : vector<2x512xf32>
    %315 = tpu.matmul %312, %314, %cst_315 {dimension_numbers = #tpu.dot_dimension_numbers<[1], [0], [0], [1], [0, 0, 1, 1], [], []>} : vector<2x32xf32>, vector<32x512xf32>, vector<2x512xf32> -> vector<2x512xf32>
    %316 = arith.addf %311, %315 : vector<2x512xf32>
    %c124 = arith.constant 124 : index
    %c0_316 = arith.constant 0 : index
    %317 = vector.load %arg14[%c124, %c0_316] : memref<180x64xf32, #tpu.memory_space<vmem>>, vector<2x32xf32>
    %c32 = arith.constant 32 : index
    %c0_317 = arith.constant 0 : index
    %c0_318 = arith.constant 0 : index
    %318 = vector.load %arg6[%c32, %c0_317, %c0_318] : memref<36x32x512xf32, #tpu.memory_space<vmem>>, vector<1x32x512xf32>
    %319 = vector.shape_cast %318 : vector<1x32x512xf32> to vector<32x512xf32>
    %cst_319 = arith.constant dense<0.000000e+00> : vector<2x512xf32>
    %320 = tpu.matmul %317, %319, %cst_319 {dimension_numbers = #tpu.dot_dimension_numbers<[1], [0], [0], [1], [0, 0, 1, 1], [], []>} : vector<2x32xf32>, vector<32x512xf32>, vector<2x512xf32> -> vector<2x512xf32>
    %321 = arith.addf %316, %320 : vector<2x512xf32>
    %c126 = arith.constant 126 : index
    %c0_320 = arith.constant 0 : index
    %322 = vector.load %arg14[%c126, %c0_320] : memref<180x64xf32, #tpu.memory_space<vmem>>, vector<2x32xf32>
    %c33 = arith.constant 33 : index
    %c0_321 = arith.constant 0 : index
    %c0_322 = arith.constant 0 : index
    %323 = vector.load %arg6[%c33, %c0_321, %c0_322] : memref<36x32x512xf32, #tpu.memory_space<vmem>>, vector<1x32x512xf32>
    %324 = vector.shape_cast %323 : vector<1x32x512xf32> to vector<32x512xf32>
    %cst_323 = arith.constant dense<0.000000e+00> : vector<2x512xf32>
    %325 = tpu.matmul %322, %324, %cst_323 {dimension_numbers = #tpu.dot_dimension_numbers<[1], [0], [0], [1], [0, 0, 1, 1], [], []>} : vector<2x32xf32>, vector<32x512xf32>, vector<2x512xf32> -> vector<2x512xf32>
    %326 = arith.addf %321, %325 : vector<2x512xf32>
    %c128 = arith.constant 128 : index
    %c0_324 = arith.constant 0 : index
    %327 = vector.load %arg14[%c128, %c0_324] : memref<180x64xf32, #tpu.memory_space<vmem>>, vector<2x32xf32>
    %c34 = arith.constant 34 : index
    %c0_325 = arith.constant 0 : index
    %c0_326 = arith.constant 0 : index
    %328 = vector.load %arg6[%c34, %c0_325, %c0_326] : memref<36x32x512xf32, #tpu.memory_space<vmem>>, vector<1x32x512xf32>
    %329 = vector.shape_cast %328 : vector<1x32x512xf32> to vector<32x512xf32>
    %cst_327 = arith.constant dense<0.000000e+00> : vector<2x512xf32>
    %330 = tpu.matmul %327, %329, %cst_327 {dimension_numbers = #tpu.dot_dimension_numbers<[1], [0], [0], [1], [0, 0, 1, 1], [], []>} : vector<2x32xf32>, vector<32x512xf32>, vector<2x512xf32> -> vector<2x512xf32>
    %331 = arith.addf %326, %330 : vector<2x512xf32>
    %c130 = arith.constant 130 : index
    %c0_328 = arith.constant 0 : index
    %332 = vector.load %arg14[%c130, %c0_328] : memref<180x64xf32, #tpu.memory_space<vmem>>, vector<2x32xf32>
    %c35 = arith.constant 35 : index
    %c0_329 = arith.constant 0 : index
    %c0_330 = arith.constant 0 : index
    %333 = vector.load %arg6[%c35, %c0_329, %c0_330] : memref<36x32x512xf32, #tpu.memory_space<vmem>>, vector<1x32x512xf32>
    %334 = vector.shape_cast %333 : vector<1x32x512xf32> to vector<32x512xf32>
    %cst_331 = arith.constant dense<0.000000e+00> : vector<2x512xf32>
    %335 = tpu.matmul %332, %334, %cst_331 {dimension_numbers = #tpu.dot_dimension_numbers<[1], [0], [0], [1], [0, 0, 1, 1], [], []>} : vector<2x32xf32>, vector<32x512xf32>, vector<2x512xf32> -> vector<2x512xf32>
    %336 = arith.addf %331, %335 : vector<2x512xf32>
    %c0_332 = arith.constant 0 : index
    %c0_333 = arith.constant 0 : index
    %337 = vector.load %arg7[%c0_332, %c0_333] : memref<1x512xf32, #tpu.memory_space<vmem>>, vector<1x512xf32>
    %338 = vector.broadcast %337 : vector<1x512xf32> to vector<2x512xf32>
    %339 = arith.addf %336, %338 : vector<2x512xf32>
    %cst_334 = arith.constant 0.000000e+00 : f32
    %340 = vector.broadcast %cst_334 : f32 to vector<2x512xf32>
    %341 = arith.maximumf %339, %340 : vector<2x512xf32>
    %342 = vector.extract_strided_slice %341 {offsets = [0, 0], sizes = [2, 256], strides = [1, 1]} : vector<2x512xf32> to vector<2x256xf32>
    %c0_335 = arith.constant 0 : index
    %c0_336 = arith.constant 0 : index
    %343 = vector.load %arg8[%c0_335, %c0_336] : memref<256x235xf32, #tpu.memory_space<vmem>>, vector<256x235xf32>
    %cst_337 = arith.constant dense<0.000000e+00> : vector<2x235xf32>
    %344 = tpu.matmul %342, %343, %cst_337 {dimension_numbers = #tpu.dot_dimension_numbers<[1], [0], [0], [1], [0, 0, 1, 1], [], []>} : vector<2x256xf32>, vector<256x235xf32>, vector<2x235xf32> -> vector<2x235xf32>
    %c0_338 = arith.constant 0 : index
    %c0_339 = arith.constant 0 : index
    %345 = vector.load %arg9[%c0_338, %c0_339] : memref<1x235xf32, #tpu.memory_space<vmem>>, vector<1x235xf32>
    %346 = vector.broadcast %345 : vector<1x235xf32> to vector<2x235xf32>
    %347 = arith.addf %344, %346 : vector<2x235xf32>
    %c0_340 = arith.constant 0 : index
    %c0_341 = arith.constant 0 : index
    %348 = vector.load %arg1[%c0_340, %c0_341] : memref<2x235xf32, #tpu.memory_space<vmem>>, vector<2x235xf32>
    %349 = math.log %348 : vector<2x235xf32>
    %cst_342 = arith.constant -9.99999968E+37 : f32
    %cst_343 = arith.constant 9.99999968E+37 : f32
    %350 = vector.broadcast %cst_342 : f32 to vector<2x235xf32>
    %351 = arith.maximumf %350, %349 : vector<2x235xf32>
    %352 = vector.broadcast %cst_343 : f32 to vector<2x235xf32>
    %353 = arith.minimumf %352, %351 : vector<2x235xf32>
    %354 = arith.addf %347, %353 : vector<2x235xf32>
    %c0_344 = arith.constant 0 : index
    %c0_345 = arith.constant 0 : index
    %355 = vector.load %arg12[%c0_344, %c0_345] : memref<2x235xf32, #tpu.memory_space<vmem>>, vector<2x235xf32>
    tpu.vector_store %arg12[%c0_344, %c0_345], %354 {strides = array<i32>} : memref<2x235xf32, #tpu.memory_space<vmem>>, vector<2x235xf32>,
    %356 = vector.extract_strided_slice %341 {offsets = [0, 256], sizes = [2, 256], strides = [1, 1]} : vector<2x512xf32> to vector<2x256xf32>
    %c0_346 = arith.constant 0 : index
    %c0_347 = arith.constant 0 : index
    %357 = vector.load %arg10[%c0_346, %c0_347] : memref<256x1xf32, #tpu.memory_space<vmem>>, vector<256x1xf32>
    %cst_348 = arith.constant dense<0.000000e+00> : vector<2x1xf32>
    %358 = tpu.matmul %356, %357, %cst_348 {dimension_numbers = #tpu.dot_dimension_numbers<[1], [0], [0], [1], [0, 0, 1, 1], [], []>} : vector<2x256xf32>, vector<256x1xf32>, vector<2x1xf32> -> vector<2x1xf32>
    %c0_349 = arith.constant 0 : index
    %c0_350 = arith.constant 0 : index
    %359 = vector.load %arg11[%c0_349, %c0_350] : memref<1x1xf32, #tpu.memory_space<vmem>>, vector<1x1xf32>
    %360 = vector.broadcast %359 : vector<1x1xf32> to vector<2x1xf32>
    %361 = arith.addf %358, %360 : vector<2x1xf32>
    %c0_351 = arith.constant 0 : index
    %c0_352 = arith.constant 0 : index
    %362 = vector.load %arg13[%c0_351, %c0_352] : memref<2x1xf32, #tpu.memory_space<vmem>>, vector<2x1xf32>
    tpu.vector_store %arg13[%c0_351, %c0_352], %361 {strides = array<i32>} : memref<2x1xf32, #tpu.memory_space<vmem>>, vector<2x1xf32>,
    return
  }
}

</mosaic_0001>

<llo_original>
// kernel: pallas_forward.1
$region0: #{pallas_forward.1}
  #allocation0 [shape = 'u32[]', space=smem, size = 0x4, offset = 0x4, fixed_abs, tag = 'smem constant byte address 0x4 - core index']
  #allocation1 [shape = 'u32[72,128]{1,0:T(1,128)}', space=vmem, size = 0x9000, scoped, tag = 'internal scratch']
  #allocation2 [shape = 'f32[180,64]{1,0:T(8,128)}', space=vmem, size = 0x17000, scoped, tag = 'scratch operand']
  #allocation3 [shape = 'f32[1,1]{1,0:T(1,128)S(1)}', space=vmem, size = 0x200, scoped, tag = 'scoped memory for pallas_forward.1']
  %s0 = inlined_call_operand.vmem [shape: f32[72,6], index: 0, kind: input, shape index: {}]
  %s1 = inlined_call_operand.hbm [shape: f32[2,235], index: 1, kind: input, shape index: {}]
  %s2 = inlined_call_operand.hbm [shape: f32[132,1], index: 2, kind: input, shape index: {}]
  %s3 = inlined_call_operand.hbm [shape: f32[9,6,64], index: 3, kind: input, shape index: {}]
  %s4 = inlined_call_operand.hbm [shape: f32[9,64,64], index: 4, kind: input, shape index: {}]
  %s5 = inlined_call_operand.vmem [shape: f32[9,64,32], index: 5, kind: input, shape index: {}]
  %s6 = inlined_call_operand.hbm [shape: f32[36,32,512], index: 6, kind: input, shape index: {}]
  %s7 = inlined_call_operand.hbm [shape: f32[1,512], index: 7, kind: input, shape index: {}]
  %s8 = inlined_call_operand.vmem [shape: f32[256,235], index: 8, kind: input, shape index: {}]
  %s9 = inlined_call_operand.hbm [shape: f32[1,235], index: 9, kind: input, shape index: {}]
  %s10 = inlined_call_operand.vmem [shape: f32[256,1], index: 10, kind: input, shape index: {}]
  %s11 = inlined_call_operand.<no memory space> [shape: f32[1,1], index: 11, kind: input, shape index: {}]
  %s12 = inlined_call_operand.hbm [shape: f32[2,235], index: 12, kind: output, shape index: {0}]
  %s13 = inlined_call_operand.vmem [shape: f32[2,1], index: 13, kind: output, shape index: {1}]
  %14 = xla_tuple %s12, %s13
  %s15 = sld [smem:[#allocation0]]
  $region94: #{pallas_forward.1} parent=0
    _
  %s17 = ssub.s32 1, %s15
  %s18 = scalar_select 0, %s17, %s15
  %v19 = vstv %s11
  %20 = vst [vmem:[#allocation3] sm:$0x1] %v19
  $region1: #{pallas_forward.1} parent=0
    #allocation4 [shape = 'u8[2048]{0}', space=vmem, size = 0x800, scoped, tag = 'input window, operand 1, single buffered']
    #allocation5 [shape = 's32[1]{0}', space=sflag, size = 0x4, scoped, tag = 'scoped memory for pallas_forward.1']
    #allocation6 [shape = 's32[1]{0}', space=sflag, size = 0x4, scoped, tag = 'scoped memory for pallas_forward.1']
    #allocation7 [shape = 'u8[69632]{0}', space=vmem, size = 0x11000, scoped, tag = 'input window, operand 2, single buffered']
    #allocation8 [shape = 's32[1]{0}', space=sflag, size = 0x4, scoped, tag = 'scoped memory for pallas_forward.1']
    #allocation9 [shape = 'u8[36864]{0}', space=vmem, size = 0x9000, scoped, tag = 'input window, operand 3, single buffered']
    #allocation10 [shape = 'u8[294912]{0}', space=vmem, size = 0x48000, scoped, tag = 'input window, operand 4, single buffered']
    #allocation11 [shape = 's32[1]{0}', space=sflag, size = 0x4, scoped, tag = 'scoped memory for pallas_forward.1']
    #allocation12 [shape = 'u8[2359296]{0}', space=vmem, size = 0x240000, scoped, tag = 'input window, operand 6, single buffered']
    #allocation13 [shape = 'u8[2048]{0}', space=vmem, size = 0x800, scoped, tag = 'input window, operand 7, single buffered']
    #allocation14 [shape = 's32[1]{0}', space=sflag, size = 0x4, scoped, tag = 'scoped memory for pallas_forward.1']
    #allocation15 [shape = 'u8[1024]{0}', space=vmem, size = 0x400, scoped, tag = 'input window, operand 9, single buffered']
    #allocation16 [shape = 'u8[2048]{0}', space=vmem, size = 0x800, scoped, tag = 'output window, operand 0, single buffered']
    %21 = vsyncpa [#allocation5], 0
    %22 = vsyncpa [#allocation8], 0
    %23 = vsyncpa [#allocation11], 0
    %24 = vsyncpa [#allocation14], 0
    %25 = vsyncpa [#allocation6], 0
    // Predicated region
    $region2: #{pallas_forward.1} parent=1 // pred_check
      _
    $region3: #{pallas_forward.1} parent=1 // pred_check_branch
      %27 = sbr.rel (0) target = $region5
    $region4: #{pallas_forward.1} parent=1 // pred_region
      _
    $region5: #{pallas_forward.1} parent=1 // pred_fallthru
      _
    // Predicated region
    $region6: #{pallas_forward.1} parent=1 // pred_check
      _
    $region7: #{pallas_forward.1} parent=1 // pred_check_branch
      %29 = sbr.rel (0) target = $region9
    $region8: #{pallas_forward.1} parent=1 // pred_region
      %31 = vsyncadd [#allocation5], 0
      %s33 = sshll.u32 %s1, 4
      %s34 = int_to_ptr.hbm [resolvable:$true] %s33
      %s35 = sshll.u32 [#allocation4], 4
      %s36 = int_to_ptr.vmem [resolvable:$true] %s35
      %38 = dma.hbm_to_vmem [thread:$0]  %s34, 64, %s36, [#allocation5]
    $region9: #{pallas_forward.1} parent=1 // pred_fallthru
      _
    // Predicated region
    $region10: #{pallas_forward.1} parent=1 // pred_check
      _
    $region11: #{pallas_forward.1} parent=1 // pred_check_branch
      %40 = sbr.rel (0) target = $region13
    $region12: #{pallas_forward.1} parent=1 // pred_region
      %42 = vsyncadd [#allocation8], 0
      %s43 = sshll.u32 %s2, 4
      %s44 = int_to_ptr.hbm [resolvable:$true] %s43
      %s45 = sshll.u32 [#allocation7], 4
      %s46 = int_to_ptr.vmem [resolvable:$true] %s45
      %51 = dma.hbm_to_vmem [thread:$0]  %s44, 2176, %s46, [#allocation8], 128, 128, 8
    $region13: #{pallas_forward.1} parent=1 // pred_fallthru
      _
    // Predicated region
    $region14: #{pallas_forward.1} parent=1 // pred_check
      _
    $region15: #{pallas_forward.1} parent=1 // pred_check_branch
      %53 = sbr.rel (0) target = $region17
    $region16: #{pallas_forward.1} parent=1 // pred_region
      %55 = vsyncadd [#allocation8], 0
      %s56 = sshll.u32 %s3, 4
      %s57 = int_to_ptr.hbm [resolvable:$true] %s56
      %s58 = sshll.u32 [#allocation9], 4
      %s59 = int_to_ptr.vmem [resolvable:$true] %s58
      %64 = dma.hbm_to_vmem [thread:$0]  %s57, 1152, %s59, [#allocation8], 128, 128, 8
    $region17: #{pallas_forward.1} parent=1 // pred_fallthru
      _
    // Predicated region
    $region18: #{pallas_forward.1} parent=1 // pred_check
      _
    $region19: #{pallas_forward.1} parent=1 // pred_check_branch
      %66 = sbr.rel (0) target = $region21
    $region20: #{pallas_forward.1} parent=1 // pred_region
      %68 = vsyncadd [#allocation11], 0
      %s69 = sshll.u32 %s4, 4
      %s70 = int_to_ptr.hbm [resolvable:$true] %s69
      %s71 = sshll.u32 [#allocation10], 4
      %s72 = int_to_ptr.vmem [resolvable:$true] %s71
      %77 = dma.hbm_to_vmem [thread:$0]  %s70, 9216, %s72, [#allocation11], 128, 128, 8
    $region21: #{pallas_forward.1} parent=1 // pred_fallthru
      _
    // Predicated region
    $region22: #{pallas_forward.1} parent=1 // pred_check
      _
    $region23: #{pallas_forward.1} parent=1 // pred_check_branch
      %79 = sbr.rel (0) target = $region25
    $region24: #{pallas_forward.1} parent=1 // pred_region
      _
    $region25: #{pallas_forward.1} parent=1 // pred_fallthru
      _
    // Predicated region
    $region26: #{pallas_forward.1} parent=1 // pred_check
      _
    $region27: #{pallas_forward.1} parent=1 // pred_check_branch
      %81 = sbr.rel (0) target = $region29
    $region28: #{pallas_forward.1} parent=1 // pred_region
      %83 = vsyncadd [#allocation11], 0
      %s84 = sshll.u32 %s6, 4
      %s85 = int_to_ptr.hbm [resolvable:$true] %s84
      %s86 = sshll.u32 [#allocation12], 4
      %s87 = int_to_ptr.vmem [resolvable:$true] %s86
      %92 = dma.hbm_to_vmem [thread:$0]  %s85, 73728, %s87, [#allocation11], 512, 512, 32
    $region29: #{pallas_forward.1} parent=1 // pred_fallthru
      _
    // Predicated region
    $region30: #{pallas_forward.1} parent=1 // pred_check
      _
    $region31: #{pallas_forward.1} parent=1 // pred_check_branch
      %94 = sbr.rel (0) target = $region33
    $region32: #{pallas_forward.1} parent=1 // pred_region
      %96 = vsyncadd [#allocation14], 0
      %s98 = sshll.u32 %s7, 4
      %s99 = int_to_ptr.hbm [resolvable:$true] %s98
      %s100 = sshll.u32 [#allocation13], 4
      %s101 = int_to_ptr.vmem [resolvable:$true] %s100
      %103 = dma.hbm_to_vmem [thread:$0]  %s99, 64, %s101, [#allocation14]
    $region33: #{pallas_forward.1} parent=1 // pred_fallthru
      _
    // Predicated region
    $region34: #{pallas_forward.1} parent=1 // pred_check
      _
    $region35: #{pallas_forward.1} parent=1 // pred_check_branch
      %105 = sbr.rel (0) target = $region37
    $region36: #{pallas_forward.1} parent=1 // pred_region
      _
    $region37: #{pallas_forward.1} parent=1 // pred_fallthru
      _
    // Predicated region
    $region38: #{pallas_forward.1} parent=1 // pred_check
      _
    $region39: #{pallas_forward.1} parent=1 // pred_check_branch
      %107 = sbr.rel (0) target = $region41
    $region40: #{pallas_forward.1} parent=1 // pred_region
      %109 = vsyncadd [#allocation14], 0
      %s111 = sshll.u32 %s9, 4
      %s112 = int_to_ptr.hbm [resolvable:$true] %s111
      %s113 = sshll.u32 [#allocation15], 4
      %s114 = int_to_ptr.vmem [resolvable:$true] %s113
      %116 = dma.hbm_to_vmem [thread:$0]  %s112, 32, %s114, [#allocation14]
    $region41: #{pallas_forward.1} parent=1 // pred_fallthru
      _
    // Predicated region
    $region42: #{pallas_forward.1} parent=1 // pred_check
      _
    $region43: #{pallas_forward.1} parent=1 // pred_check_branch
      %118 = sbr.rel (0) target = $region45
    $region44: #{pallas_forward.1} parent=1 // pred_region
      _
    $region45: #{pallas_forward.1} parent=1 // pred_fallthru
      _
    // Predicated region
    $region46: #{pallas_forward.1} parent=1 // pred_check
      _
    $region47: #{pallas_forward.1} parent=1 // pred_check_branch
      %120 = sbr.rel (0) target = $region49
    $region48: #{pallas_forward.1} parent=1 // pred_region
      _
    $region49: #{pallas_forward.1} parent=1 // pred_fallthru
      _
    // Predicated region
    $region50: #{pallas_forward.1} parent=1 // pred_check
      _
    $region51: #{pallas_forward.1} parent=1 // pred_check_branch
      %122 = sbr.rel (0) target = $region53
    $region52: #{pallas_forward.1} parent=1 // pred_region
      %124 = dma.done [#allocation5], 64
    $region53: #{pallas_forward.1} parent=1 // pred_fallthru
      _
    // Predicated region
    $region54: #{pallas_forward.1} parent=1 // pred_check
      _
    $region55: #{pallas_forward.1} parent=1 // pred_check_branch
      %126 = sbr.rel (0) target = $region57
    $region56: #{pallas_forward.1} parent=1 // pred_region
      %128 = dma.done [#allocation8], 2176
    $region57: #{pallas_forward.1} parent=1 // pred_fallthru
      _
    // Predicated region
    $region58: #{pallas_forward.1} parent=1 // pred_check
      _
    $region59: #{pallas_forward.1} parent=1 // pred_check_branch
      %130 = sbr.rel (0) target = $region61
    $region60: #{pallas_forward.1} parent=1 // pred_region
      %132 = dma.done [#allocation8], 1152
    $region61: #{pallas_forward.1} parent=1 // pred_fallthru
      _
    // Predicated region
    $region62: #{pallas_forward.1} parent=1 // pred_check
      _
    $region63: #{pallas_forward.1} parent=1 // pred_check_branch
      %134 = sbr.rel (0) target = $region65
    $region64: #{pallas_forward.1} parent=1 // pred_region
      %136 = dma.done [#allocation11], 9216
    $region65: #{pallas_forward.1} parent=1 // pred_fallthru
      _
    // Predicated region
    $region66: #{pallas_forward.1} parent=1 // pred_check
      _
    $region67: #{pallas_forward.1} parent=1 // pred_check_branch
      %138 = sbr.rel (0) target = $region69
    $region68: #{pallas_forward.1} parent=1 // pred_region
      %140 = dma.done [#allocation11], 73728
    $region69: #{pallas_forward.1} parent=1 // pred_fallthru
      _
    // Predicated region
    $region70: #{pallas_forward.1} parent=1 // pred_check
      _
    $region71: #{pallas_forward.1} parent=1 // pred_check_branch
      %142 = sbr.rel (0) target = $region73
    $region72: #{pallas_forward.1} parent=1 // pred_region
      %144 = dma.done [#allocation14], 64
    $region73: #{pallas_forward.1} parent=1 // pred_fallthru
      _
    // Predicated region
    $region74: #{pallas_forward.1} parent=1 // pred_check
      _
    $region75: #{pallas_forward.1} parent=1 // pred_check_branch
      %146 = sbr.rel (0) target = $region77
    $region76: #{pallas_forward.1} parent=1 // pred_region
      %148 = dma.done [#allocation14], 32
    $region77: #{pallas_forward.1} parent=1 // pred_fallthru
      _
    %v149 = vld [vmem:[#allocation7] sm:$0xff]
    %v150 = vld [vmem:[#allocation7 + $0x8] sm:$0xff]
    %v151 = vld [vmem:[#allocation7 + $0x10] sm:$0xff]
    %v152 = vld [vmem:[#allocation7 + $0x18] sm:$0xff]
    %v153 = vld [vmem:[#allocation7 + $0x20] sm:$0xff]
    %v154 = vld [vmem:[#allocation7 + $0x28] sm:$0xff]
    %v155 = vld [vmem:[#allocation7 + $0x30] sm:$0xff]
    %v156 = vld [vmem:[#allocation7 + $0x38] sm:$0xff]
    %v157 = vld [vmem:[#allocation7 + $0x40] sm:$0xff]
    %v158 = vld [vmem:[#allocation7 + $0x48] sm:$0xff]
    %v159 = vld [vmem:[#allocation7 + $0x50] sm:$0xff]
    %v160 = vld [vmem:[#allocation7 + $0x58] sm:$0xff]
    %v161 = vld [vmem:[#allocation7 + $0x60] sm:$0xff]
    %v162 = vld [vmem:[#allocation7 + $0x68] sm:$0xff]
    %v163 = vld [vmem:[#allocation7 + $0x70] sm:$0xff]
    %v164 = vld [vmem:[#allocation7 + $0x78] sm:$0xff]
    %v165 = vld [vmem:[#allocation7 + $0x80] sm:$0xf]
    %vm166 = vcmask 523264
    %167 = vst.msk [vmem:[#allocation2] sm:$0xff] %vm166, 0.0
    %168 = vst.msk [vmem:[#allocation2 + $0x8] sm:$0xff] %vm166, 0.0
    %169 = vst.msk [vmem:[#allocation2 + $0x10] sm:$0xff] %vm166, 0.0
    %170 = vst.msk [vmem:[#allocation2 + $0x18] sm:$0xff] %vm166, 0.0
    %171 = vst.msk [vmem:[#allocation2 + $0x20] sm:$0xff] %vm166, 0.0
    %172 = vst.msk [vmem:[#allocation2 + $0x28] sm:$0xff] %vm166, 0.0
    %173 = vst.msk [vmem:[#allocation2 + $0x30] sm:$0xff] %vm166, 0.0
    %174 = vst.msk [vmem:[#allocation2 + $0x38] sm:$0xff] %vm166, 0.0
    %175 = vst.msk [vmem:[#allocation2 + $0x40] sm:$0xff] %vm166, 0.0
    %176 = vst.msk [vmem:[#allocation2 + $0x48] sm:$0xff] %vm166, 0.0
    %177 = vst.msk [vmem:[#allocation2 + $0x50] sm:$0xff] %vm166, 0.0
    %178 = vst.msk [vmem:[#allocation2 + $0x58] sm:$0xff] %vm166, 0.0
    %179 = vst.msk [vmem:[#allocation2 + $0x60] sm:$0xff] %vm166, 0.0
    %180 = vst.msk [vmem:[#allocation2 + $0x68] sm:$0xff] %vm166, 0.0
    %181 = vst.msk [vmem:[#allocation2 + $0x70] sm:$0xff] %vm166, 0.0
    %182 = vst.msk [vmem:[#allocation2 + $0x78] sm:$0xff] %vm166, 0.0
    %183 = vst.msk [vmem:[#allocation2 + $0x80] sm:$0xff] %vm166, 0.0
    %184 = vst.msk [vmem:[#allocation2 + $0x88] sm:$0xff] %vm166, 0.0
    %185 = vst.msk [vmem:[#allocation2 + $0x90] sm:$0xff] %vm166, 0.0
    %186 = vst.msk [vmem:[#allocation2 + $0x98] sm:$0xff] %vm166, 0.0
    %187 = vst.msk [vmem:[#allocation2 + $0xa0] sm:$0xff] %vm166, 0.0
    %188 = vst.msk [vmem:[#allocation2 + $0xa8] sm:$0xff] %vm166, 0.0
    %vm189 = vcmask 519168
    %190 = vst.msk [vmem:[#allocation2 + $0xb0] sm:$0xf] %vm189, 0.0
    %v191 = vld [vmem:[%s0] sm:$0xff]
    %v192 = vld [vmem:[%s0 + $0x8] sm:$0xff]
    %v193 = vld [vmem:[%s0 + $0x10] sm:$0x3]
    %vm194 = vcmask 48128
    %195 = vst.msk [vmem:[#allocation2 + $0x30] sm:$0xff] %vm194, %v191
    %196 = vst.msk [vmem:[#allocation2 + $0x38] sm:$0xff] %vm194, %v192
    %vm197 = vcmask 41984
    %198 = vst.msk [vmem:[#allocation2 + $0x40] sm:$0x3] %vm197, %v193
    %v199 = vld [vmem:[%s0 + $0x12] sm:$0xff]
    %v200 = vld [vmem:[%s0 + $0x1a] sm:$0xff]
    %v201 = vld [vmem:[%s0 + $0x22] sm:$0x3]
    %202 = vst.msk [vmem:[#allocation2 + $0x46] sm:$0xff] %vm194, %v199
    %203 = vst.msk [vmem:[#allocation2 + $0x4e] sm:$0xff] %vm194, %v200
    %204 = vst.msk [vmem:[#allocation2 + $0x56] sm:$0x3] %vm197, %v201
    %v205 = vld [vmem:[%s0 + $0x24] sm:$0xff]
    %v206 = vld [vmem:[%s0 + $0x2c] sm:$0xff]
    %v207 = vld [vmem:[%s0 + $0x34] sm:$0x3]
    %208 = vst.msk [vmem:[#allocation2 + $0x5c] sm:$0xff] %vm194, %v205
    %209 = vst.msk [vmem:[#allocation2 + $0x64] sm:$0xff] %vm194, %v206
    %210 = vst.msk [vmem:[#allocation2 + $0x6c] sm:$0x3] %vm197, %v207
    %v211 = vld [vmem:[%s0 + $0x36] sm:$0xff]
    %v212 = vld [vmem:[%s0 + $0x3e] sm:$0xff]
    %v213 = vld [vmem:[%s0 + $0x46] sm:$0x3]
    %214 = vst.msk [vmem:[#allocation2 + $0x72] sm:$0xff] %vm194, %v211
    %215 = vst.msk [vmem:[#allocation2 + $0x7a] sm:$0xff] %vm194, %v212
    %216 = vst.msk [vmem:[#allocation2 + $0x82] sm:$0x3] %vm197, %v213
    %v217 = vld [vmem:[#allocation2] sm:$0xff]
    %v218 = vld [vmem:[#allocation2 + $0x8] sm:$0xff]
    %v219 = vld [vmem:[#allocation2 + $0x10] sm:$0xff]
    %v220 = vld [vmem:[#allocation2 + $0x18] sm:$0xff]
    %v221 = vld [vmem:[#allocation2 + $0x20] sm:$0xff]
    %v222 = vld [vmem:[#allocation2 + $0x28] sm:$0xff]
    %v223 = vld [vmem:[#allocation2 + $0x30] sm:$0xff]
    %v224 = vld [vmem:[#allocation2 + $0x38] sm:$0xff]
    %v225 = vld [vmem:[#allocation2 + $0x40] sm:$0xff]
    %v226 = vld [vmem:[#allocation2 + $0x48] sm:$0xff]
    %v227 = vld [vmem:[#allocation2 + $0x50] sm:$0xff]
    %v228 = vld [vmem:[#allocation2 + $0x58] sm:$0xff]
    %v229 = vld [vmem:[#allocation2 + $0x60] sm:$0xff]
    %v230 = vld [vmem:[#allocation2 + $0x68] sm:$0xff]
    %v231 = vld [vmem:[#allocation2 + $0x70] sm:$0xff]
    %v232 = vld [vmem:[#allocation2 + $0x78] sm:$0xff]
    %v233 = vld [vmem:[#allocation2 + $0x80] sm:$0xf]
    %v234 = vld [vmem:[#allocation9] sm:$0x3f]
    %v235 = vld [vmem:[#allocation2 + $0x2] sm:$0xff]
    %v236 = vld [vmem:[#allocation2 + $0xa] sm:$0xff]
    %v237 = vld [vmem:[#allocation2 + $0x12] sm:$0xff]
    %v238 = vld [vmem:[#allocation2 + $0x1a] sm:$0xff]
    %v239 = vld [vmem:[#allocation2 + $0x22] sm:$0xff]
    %v240 = vld [vmem:[#allocation2 + $0x2a] sm:$0xff]
    %v241 = vld [vmem:[#allocation2 + $0x32] sm:$0xff]
    %v242 = vld [vmem:[#allocation2 + $0x3a] sm:$0xff]
    %v243 = vld [vmem:[#allocation2 + $0x42] sm:$0xff]
    %v244 = vld [vmem:[#allocation2 + $0x4a] sm:$0xff]
    %v245 = vld [vmem:[#allocation2 + $0x52] sm:$0xff]
    %v246 = vld [vmem:[#allocation2 + $0x5a] sm:$0xff]
    %v247 = vld [vmem:[#allocation2 + $0x62] sm:$0xff]
    %v248 = vld [vmem:[#allocation2 + $0x6a] sm:$0xff]
    %v249 = vld [vmem:[#allocation2 + $0x72] sm:$0xff]
    %v250 = vld [vmem:[#allocation2 + $0x7a] sm:$0xff]
    %v251 = vld [vmem:[#allocation2 + $0x82] sm:$0xf]
    %s252 = scalar_lea.vmem [#allocation9], 8
    %v253 = vld [vmem:[%s252] sm:$0x3f]
    %v255 = vsel %vm194, %v235, 0
    %v258 = vsel %vm194, %v236, 0
    %v261 = vsel %vm194, %v237, 0
    %v264 = vsel %vm194, %v238, 0
    %v267 = vsel %vm194, %v239, 0
    %v270 = vsel %vm194, %v240, 0
    %v273 = vsel %vm194, %v241, 0
    %v276 = vsel %vm194, %v242, 0
    %v279 = vsel %vm194, %v243, 0
    %v282 = vsel %vm194, %v244, 0
    %v285 = vsel %vm194, %v245, 0
    %v288 = vsel %vm194, %v246, 0
    %v291 = vsel %vm194, %v247, 0
    %v294 = vsel %vm194, %v248, 0
    %v297 = vsel %vm194, %v249, 0
    %v300 = vsel %vm194, %v250, 0
    %v303 = vsel %vm194, %v251, 0
    %vm305 = vcmask 1045504
    %v307 = vsel %vm305, %v253, 0
    %309 = vmatpush.msra.mxu0 0.0
    %310 = vmatpush.msra.mxu0 0.0
    %311 = vmatpush.msra.mxu0 0.0
    %312 = vmatpush.msra.mxu0 0.0
    %313 = vmatpush.msra.mxu0 0.0
    %314 = vmatpush.msra.mxu0 0.0
    %315 = vmatpush.msra.mxu0 0.0
    %316 = vmatpush.msra.mxu0 0.0
    %317 = vmatpush.msra.mxu0 0.0
    %318 = vmatpush.msra.mxu0 0.0
    %319 = vmatpush.msra.mxu0 0.0
    %320 = vmatpush.msra.mxu0 0.0
    %321 = vmatpush.msra.mxu0 0.0
    %322 = vmatpush.msra.mxu0 0.0
    %323 = vmatpush.msra.mxu0 0.0
    %324 = vmatpush.msra.mxu0 %v307
    %325 = vmatmul.f32.gmra.mxu0 %v255
    %v326 = vpop.f32.mrf.mxu0
    %v327 = vadd.f32 0.0, %v326
    %328 = vmatmul.f32.gmra.mxu0 %v258
    %v329 = vpop.f32.mrf.mxu0
    %v330 = vadd.f32 0.0, %v329
    %331 = vmatmul.f32.gmra.mxu0 %v261
    %v332 = vpop.f32.mrf.mxu0
    %v333 = vadd.f32 0.0, %v332
    %334 = vmatmul.f32.gmra.mxu0 %v264
    %v335 = vpop.f32.mrf.mxu0
    %v336 = vadd.f32 0.0, %v335
    %337 = vmatmul.f32.gmra.mxu0 %v267
    %v338 = vpop.f32.mrf.mxu0
    %v339 = vadd.f32 0.0, %v338
    %340 = vmatmul.f32.gmra.mxu0 %v270
    %v341 = vpop.f32.mrf.mxu0
    %v342 = vadd.f32 0.0, %v341
    %343 = vmatmul.f32.gmra.mxu0 %v273
    %v344 = vpop.f32.mrf.mxu0
    %v345 = vadd.f32 0.0, %v344
    %346 = vmatmul.f32.gmra.mxu0 %v276
    %v347 = vpop.f32.mrf.mxu0
    %v348 = vadd.f32 0.0, %v347
    %349 = vmatmul.f32.gmra.mxu0 %v279
    %v350 = vpop.f32.mrf.mxu0
    %v351 = vadd.f32 0.0, %v350
    %352 = vmatmul.f32.gmra.mxu0 %v282
    %v353 = vpop.f32.mrf.mxu0
    %v354 = vadd.f32 0.0, %v353
    %355 = vmatmul.f32.gmra.mxu0 %v285
    %v356 = vpop.f32.mrf.mxu0
    %v357 = vadd.f32 0.0, %v356
    %358 = vmatmul.f32.gmra.mxu0 %v288
    %v359 = vpop.f32.mrf.mxu0
    %v360 = vadd.f32 0.0, %v359
    %361 = vmatmul.f32.gmra.mxu0 %v291
    %v362 = vpop.f32.mrf.mxu0
    %v363 = vadd.f32 0.0, %v362
    %364 = vmatmul.f32.gmra.mxu0 %v294
    %v365 = vpop.f32.mrf.mxu0
    %v366 = vadd.f32 0.0, %v365
    %367 = vmatmul.f32.gmra.mxu0 %v297
    %v368 = vpop.f32.mrf.mxu0
    %v369 = vadd.f32 0.0, %v368
    %370 = vmatmul.f32.gmra.mxu0 %v300
    %v371 = vpop.f32.mrf.mxu0
    %v372 = vadd.f32 0.0, %v371
    %373 = vmatmul.f32.gmra.mxu0 %v303
    %v374 = vpop.f32.mrf.mxu0
    %v375 = vadd.f32 0.0, %v374
    %376 = vdwg.mxu0
    %v378 = vsel %vm194, %v217, 0
    %v381 = vsel %vm194, %v218, 0
    %v384 = vsel %vm194, %v219, 0
    %v387 = vsel %vm194, %v220, 0
    %v390 = vsel %vm194, %v221, 0
    %v393 = vsel %vm194, %v222, 0
    %v396 = vsel %vm194, %v223, 0
    %v399 = vsel %vm194, %v224, 0
    %v402 = vsel %vm194, %v225, 0
    %v405 = vsel %vm194, %v226, 0
    %v408 = vsel %vm194, %v227, 0
    %v411 = vsel %vm194, %v228, 0
    %v414 = vsel %vm194, %v229, 0
    %v417 = vsel %vm194, %v230, 0
    %v420 = vsel %vm194, %v231, 0
    %v423 = vsel %vm194, %v232, 0
    %v426 = vsel %vm194, %v233, 0
    %v429 = vsel %vm305, %v234, 0
    %431 = vmatpush.msra.mxu0 0.0
    %432 = vmatpush.msra.mxu0 0.0
    %433 = vmatpush.msra.mxu0 0.0
    %434 = vmatpush.msra.mxu0 0.0
    %435 = vmatpush.msra.mxu0 0.0
    %436 = vmatpush.msra.mxu0 0.0
    %437 = vmatpush.msra.mxu0 0.0
    %438 = vmatpush.msra.mxu0 0.0
    %439 = vmatpush.msra.mxu0 0.0
    %440 = vmatpush.msra.mxu0 0.0
    %441 = vmatpush.msra.mxu0 0.0
    %442 = vmatpush.msra.mxu0 0.0
    %443 = vmatpush.msra.mxu0 0.0
    %444 = vmatpush.msra.mxu0 0.0
    %445 = vmatpush.msra.mxu0 0.0
    %446 = vmatpush.msra.mxu0 %v429
    %447 = vmatmul.f32.gmra.mxu0 %v378
    %v448 = vpop.f32.mrf.mxu0
    %v449 = vadd.f32 %v327, %v448
    %450 = vmatmul.f32.gmra.mxu0 %v381
    %v451 = vpop.f32.mrf.mxu0
    %v452 = vadd.f32 %v330, %v451
    %453 = vmatmul.f32.gmra.mxu0 %v384
    %v454 = vpop.f32.mrf.mxu0
    %v455 = vadd.f32 %v333, %v454
    %456 = vmatmul.f32.gmra.mxu0 %v387
    %v457 = vpop.f32.mrf.mxu0
    %v458 = vadd.f32 %v336, %v457
    %459 = vmatmul.f32.gmra.mxu0 %v390
    %v460 = vpop.f32.mrf.mxu0
    %v461 = vadd.f32 %v339, %v460
    %462 = vmatmul.f32.gmra.mxu0 %v393
    %v463 = vpop.f32.mrf.mxu0
    %v464 = vadd.f32 %v342, %v463
    %465 = vmatmul.f32.gmra.mxu0 %v396
    %v466 = vpop.f32.mrf.mxu0
    %v467 = vadd.f32 %v345, %v466
    %468 = vmatmul.f32.gmra.mxu0 %v399
    %v469 = vpop.f32.mrf.mxu0
    %v470 = vadd.f32 %v348, %v469
    %471 = vmatmul.f32.gmra.mxu0 %v402
    %v472 = vpop.f32.mrf.mxu0
    %v473 = vadd.f32 %v351, %v472
    %474 = vmatmul.f32.gmra.mxu0 %v405
    %v475 = vpop.f32.mrf.mxu0
    %v476 = vadd.f32 %v354, %v475
    %477 = vmatmul.f32.gmra.mxu0 %v408
    %v478 = vpop.f32.mrf.mxu0
    %v479 = vadd.f32 %v357, %v478
    %480 = vmatmul.f32.gmra.mxu0 %v411
    %v481 = vpop.f32.mrf.mxu0
    %v482 = vadd.f32 %v360, %v481
    %483 = vmatmul.f32.gmra.mxu0 %v414
    %v484 = vpop.f32.mrf.mxu0
    %v485 = vadd.f32 %v363, %v484
    %486 = vmatmul.f32.gmra.mxu0 %v417
    %v487 = vpop.f32.mrf.mxu0
    %v488 = vadd.f32 %v366, %v487
    %489 = vmatmul.f32.gmra.mxu0 %v420
    %v490 = vpop.f32.mrf.mxu0
    %v491 = vadd.f32 %v369, %v490
    %492 = vmatmul.f32.gmra.mxu0 %v423
    %v493 = vpop.f32.mrf.mxu0
    %v494 = vadd.f32 %v372, %v493
    %495 = vmatmul.f32.gmra.mxu0 %v426
    %v496 = vpop.f32.mrf.mxu0
    %v497 = vadd.f32 %v375, %v496
    %498 = vdwg.mxu0
    %v499 = vld [vmem:[#allocation2 + $0x4] sm:$0xff]
    %v500 = vld [vmem:[#allocation2 + $0xc] sm:$0xff]
    %v501 = vld [vmem:[#allocation2 + $0x14] sm:$0xff]
    %v502 = vld [vmem:[#allocation2 + $0x1c] sm:$0xff]
    %v503 = vld [vmem:[#allocation2 + $0x24] sm:$0xff]
    %v504 = vld [vmem:[#allocation2 + $0x2c] sm:$0xff]
    %v505 = vld [vmem:[#allocation2 + $0x34] sm:$0xff]
    %v506 = vld [vmem:[#allocation2 + $0x3c] sm:$0xff]
    %v507 = vld [vmem:[#allocation2 + $0x44] sm:$0xff]
    %v508 = vld [vmem:[#allocation2 + $0x4c] sm:$0xff]
    %v509 = vld [vmem:[#allocation2 + $0x54] sm:$0xff]
    %v510 = vld [vmem:[#allocation2 + $0x5c] sm:$0xff]
    %v511 = vld [vmem:[#allocation2 + $0x64] sm:$0xff]
    %v512 = vld [vmem:[#allocation2 + $0x6c] sm:$0xff]
    %v513 = vld [vmem:[#allocation2 + $0x74] sm:$0xff]
    %v514 = vld [vmem:[#allocation2 + $0x7c] sm:$0xff]
    %v515 = vld [vmem:[#allocation2 + $0x84] sm:$0xf]
    %s516 = scalar_lea.vmem [#allocation9], 16
    %v517 = vld [vmem:[%s516] sm:$0x3f]
    %v519 = vsel %vm194, %v499, 0
    %v522 = vsel %vm194, %v500, 0
    %v525 = vsel %vm194, %v501, 0
    %v528 = vsel %vm194, %v502, 0
    %v531 = vsel %vm194, %v503, 0
    %v534 = vsel %vm194, %v504, 0
    %v537 = vsel %vm194, %v505, 0
    %v540 = vsel %vm194, %v506, 0
    %v543 = vsel %vm194, %v507, 0
    %v546 = vsel %vm194, %v508, 0
    %v549 = vsel %vm194, %v509, 0
    %v552 = vsel %vm194, %v510, 0
    %v555 = vsel %vm194, %v511, 0
    %v558 = vsel %vm194, %v512, 0
    %v561 = vsel %vm194, %v513, 0
    %v564 = vsel %vm194, %v514, 0
    %v567 = vsel %vm194, %v515, 0
    %v570 = vsel %vm305, %v517, 0
    %572 = vmatpush.msra.mxu0 0.0
    %573 = vmatpush.msra.mxu0 0.0
    %574 = vmatpush.msra.mxu0 0.0
    %575 = vmatpush.msra.mxu0 0.0
    %576 = vmatpush.msra.mxu0 0.0
    %577 = vmatpush.msra.mxu0 0.0
    %578 = vmatpush.msra.mxu0 0.0
    %579 = vmatpush.msra.mxu0 0.0
    %580 = vmatpush.msra.mxu0 0.0
    %581 = vmatpush.msra.mxu0 0.0
    %582 = vmatpush.msra.mxu0 0.0
    %583 = vmatpush.msra.mxu0 0.0
    %584 = vmatpush.msra.mxu0 0.0
    %585 = vmatpush.msra.mxu0 0.0
    %586 = vmatpush.msra.mxu0 0.0
    %587 = vmatpush.msra.mxu0 %v570
    %588 = vmatmul.f32.gmra.mxu0 %v519
    %v589 = vpop.f32.mrf.mxu0
    %v590 = vadd.f32 0.0, %v589
    %591 = vmatmul.f32.gmra.mxu0 %v522
    %v592 = vpop.f32.mrf.mxu0
    %v593 = vadd.f32 0.0, %v592
    %594 = vmatmul.f32.gmra.mxu0 %v525
    %v595 = vpop.f32.mrf.mxu0
    %v596 = vadd.f32 0.0, %v595
    %597 = vmatmul.f32.gmra.mxu0 %v528
    %v598 = vpop.f32.mrf.mxu0
    %v599 = vadd.f32 0.0, %v598
    %600 = vmatmul.f32.gmra.mxu0 %v531
    %v601 = vpop.f32.mrf.mxu0
    %v602 = vadd.f32 0.0, %v601
    %603 = vmatmul.f32.gmra.mxu0 %v534
    %v604 = vpop.f32.mrf.mxu0
    %v605 = vadd.f32 0.0, %v604
    %606 = vmatmul.f32.gmra.mxu0 %v537
    %v607 = vpop.f32.mrf.mxu0
    %v608 = vadd.f32 0.0, %v607
    %609 = vmatmul.f32.gmra.mxu0 %v540
    %v610 = vpop.f32.mrf.mxu0
    %v611 = vadd.f32 0.0, %v610
    %612 = vmatmul.f32.gmra.mxu0 %v543
    %v613 = vpop.f32.mrf.mxu0
    %v614 = vadd.f32 0.0, %v613
    %615 = vmatmul.f32.gmra.mxu0 %v546
    %v616 = vpop.f32.mrf.mxu0
    %v617 = vadd.f32 0.0, %v616
    %618 = vmatmul.f32.gmra.mxu0 %v549
    %v619 = vpop.f32.mrf.mxu0
    %v620 = vadd.f32 0.0, %v619
    %621 = vmatmul.f32.gmra.mxu0 %v552
    %v622 = vpop.f32.mrf.mxu0
    %v623 = vadd.f32 0.0, %v622
    %624 = vmatmul.f32.gmra.mxu0 %v555
    %v625 = vpop.f32.mrf.mxu0
    %v626 = vadd.f32 0.0, %v625
    %627 = vmatmul.f32.gmra.mxu0 %v558
    %v628 = vpop.f32.mrf.mxu0
    %v629 = vadd.f32 0.0, %v628
    %630 = vmatmul.f32.gmra.mxu0 %v561
    %v631 = vpop.f32.mrf.mxu0
    %v632 = vadd.f32 0.0, %v631
    %633 = vmatmul.f32.gmra.mxu0 %v564
    %v634 = vpop.f32.mrf.mxu0
    %v635 = vadd.f32 0.0, %v634
    %636 = vmatmul.f32.gmra.mxu0 %v567
    %v637 = vpop.f32.mrf.mxu0
    %v638 = vadd.f32 0.0, %v637
    %639 = vdwg.mxu0
    %v640 = vadd.f32 %v449, %v590
    %v641 = vadd.f32 %v452, %v593
    %v642 = vadd.f32 %v455, %v596
    %v643 = vadd.f32 %v458, %v599
    %v644 = vadd.f32 %v461, %v602
    %v645 = vadd.f32 %v464, %v605
    %v646 = vadd.f32 %v467, %v608
    %v647 = vadd.f32 %v470, %v611
    %v648 = vadd.f32 %v473, %v614
    %v649 = vadd.f32 %v476, %v617
    %v650 = vadd.f32 %v479, %v620
    %v651 = vadd.f32 %v482, %v623
    %v652 = vadd.f32 %v485, %v626
    %v653 = vadd.f32 %v488, %v629
    %v654 = vadd.f32 %v491, %v632
    %v655 = vadd.f32 %v494, %v635
    %v656 = vadd.f32 %v497, %v638
    %v657 = vld [vmem:[#allocation2 + $0x16] sm:$0xff]
    %v658 = vld [vmem:[#allocation2 + $0x1e] sm:$0xff]
    %v659 = vld [vmem:[#allocation2 + $0x26] sm:$0xff]
    %v660 = vld [vmem:[#allocation2 + $0x2e] sm:$0xff]
    %v661 = vld [vmem:[#allocation2 + $0x36] sm:$0xff]
    %v662 = vld [vmem:[#allocation2 + $0x3e] sm:$0xff]
    %v663 = vld [vmem:[#allocation2 + $0x46] sm:$0xff]
    %v664 = vld [vmem:[#allocation2 + $0x4e] sm:$0xff]
    %v665 = vld [vmem:[#allocation2 + $0x56] sm:$0xff]
    %v666 = vld [vmem:[#allocation2 + $0x5e] sm:$0xff]
    %v667 = vld [vmem:[#allocation2 + $0x66] sm:$0xff]
    %v668 = vld [vmem:[#allocation2 + $0x6e] sm:$0xff]
    %v669 = vld [vmem:[#allocation2 + $0x76] sm:$0xff]
    %v670 = vld [vmem:[#allocation2 + $0x7e] sm:$0xff]
    %v671 = vld [vmem:[#allocation2 + $0x86] sm:$0xff]
    %v672 = vld [vmem:[#allocation2 + $0x8e] sm:$0xff]
    %v673 = vld [vmem:[#allocation2 + $0x96] sm:$0xf]
    %s674 = scalar_lea.vmem [#allocation9], 24
    %v675 = vld [vmem:[%s674] sm:$0x3f]
    %v677 = vsel %vm194, %v657, 0
    %v680 = vsel %vm194, %v658, 0
    %v683 = vsel %vm194, %v659, 0
    %v686 = vsel %vm194, %v660, 0
    %v689 = vsel %vm194, %v661, 0
    %v692 = vsel %vm194, %v662, 0
    %v695 = vsel %vm194, %v663, 0
    %v698 = vsel %vm194, %v664, 0
    %v701 = vsel %vm194, %v665, 0
    %v704 = vsel %vm194, %v666, 0
    %v707 = vsel %vm194, %v667, 0
    %v710 = vsel %vm194, %v668, 0
    %v713 = vsel %vm194, %v669, 0
    %v716 = vsel %vm194, %v670, 0
    %v719 = vsel %vm194, %v671, 0
    %v722 = vsel %vm194, %v672, 0
    %v725 = vsel %vm194, %v673, 0
    %v728 = vsel %vm305, %v675, 0
    %730 = vmatpush.msra.mxu0 0.0
    %731 = vmatpush.msra.mxu0 0.0
    %732 = vmatpush.msra.mxu0 0.0
    %733 = vmatpush.msra.mxu0 0.0
    %734 = vmatpush.msra.mxu0 0.0
    %735 = vmatpush.msra.mxu0 0.0
    %736 = vmatpush.msra.mxu0 0.0
    %737 = vmatpush.msra.mxu0 0.0
    %738 = vmatpush.msra.mxu0 0.0
    %739 = vmatpush.msra.mxu0 0.0
    %740 = vmatpush.msra.mxu0 0.0
    %741 = vmatpush.msra.mxu0 0.0
    %742 = vmatpush.msra.mxu0 0.0
    %743 = vmatpush.msra.mxu0 0.0
    %744 = vmatpush.msra.mxu0 0.0
    %745 = vmatpush.msra.mxu0 %v728
    %746 = vmatmul.f32.gmra.mxu0 %v677
    %v747 = vpop.f32.mrf.mxu0
    %v748 = vadd.f32 0.0, %v747
    %749 = vmatmul.f32.gmra.mxu0 %v680
    %v750 = vpop.f32.mrf.mxu0
    %v751 = vadd.f32 0.0, %v750
    %752 = vmatmul.f32.gmra.mxu0 %v683
    %v753 = vpop.f32.mrf.mxu0
    %v754 = vadd.f32 0.0, %v753
    %755 = vmatmul.f32.gmra.mxu0 %v686
    %v756 = vpop.f32.mrf.mxu0
    %v757 = vadd.f32 0.0, %v756
    %758 = vmatmul.f32.gmra.mxu0 %v689
    %v759 = vpop.f32.mrf.mxu0
    %v760 = vadd.f32 0.0, %v759
    %761 = vmatmul.f32.gmra.mxu0 %v692
    %v762 = vpop.f32.mrf.mxu0
    %v763 = vadd.f32 0.0, %v762
    %764 = vmatmul.f32.gmra.mxu0 %v695
    %v765 = vpop.f32.mrf.mxu0
    %v766 = vadd.f32 0.0, %v765
    %767 = vmatmul.f32.gmra.mxu0 %v698
    %v768 = vpop.f32.mrf.mxu0
    %v769 = vadd.f32 0.0, %v768
    %770 = vmatmul.f32.gmra.mxu0 %v701
    %v771 = vpop.f32.mrf.mxu0
    %v772 = vadd.f32 0.0, %v771
    %773 = vmatmul.f32.gmra.mxu0 %v704
    %v774 = vpop.f32.mrf.mxu0
    %v775 = vadd.f32 0.0, %v774
    %776 = vmatmul.f32.gmra.mxu0 %v707
    %v777 = vpop.f32.mrf.mxu0
    %v778 = vadd.f32 0.0, %v777
    %779 = vmatmul.f32.gmra.mxu0 %v710
    %v780 = vpop.f32.mrf.mxu0
    %v781 = vadd.f32 0.0, %v780
    %782 = vmatmul.f32.gmra.mxu0 %v713
    %v783 = vpop.f32.mrf.mxu0
    %v784 = vadd.f32 0.0, %v783
    %785 = vmatmul.f32.gmra.mxu0 %v716
    %v786 = vpop.f32.mrf.mxu0
    %v787 = vadd.f32 0.0, %v786
    %788 = vmatmul.f32.gmra.mxu0 %v719
    %v789 = vpop.f32.mrf.mxu0
    %v790 = vadd.f32 0.0, %v789
    %791 = vmatmul.f32.gmra.mxu0 %v722
    %v792 = vpop.f32.mrf.mxu0
    %v793 = vadd.f32 0.0, %v792
    %794 = vmatmul.f32.gmra.mxu0 %v725
    %v795 = vpop.f32.mrf.mxu0
    %v796 = vadd.f32 0.0, %v795
    %797 = vdwg.mxu0
    %v798 = vadd.f32 %v640, %v748
    %v799 = vadd.f32 %v641, %v751
    %v800 = vadd.f32 %v642, %v754
    %v801 = vadd.f32 %v643, %v757
    %v802 = vadd.f32 %v644, %v760
    %v803 = vadd.f32 %v645, %v763
    %v804 = vadd.f32 %v646, %v766
    %v805 = vadd.f32 %v647, %v769
    %v806 = vadd.f32 %v648, %v772
    %v807 = vadd.f32 %v649, %v775
    %v808 = vadd.f32 %v650, %v778
    %v809 = vadd.f32 %v651, %v781
    %v810 = vadd.f32 %v652, %v784
    %v811 = vadd.f32 %v653, %v787
    %v812 = vadd.f32 %v654, %v790
    %v813 = vadd.f32 %v655, %v793
    %v814 = vadd.f32 %v656, %v796
    %v815 = vld [vmem:[#allocation2 + $0x18] sm:$0xff]
    %v816 = vld [vmem:[#allocation2 + $0x20] sm:$0xff]
    %v817 = vld [vmem:[#allocation2 + $0x28] sm:$0xff]
    %v818 = vld [vmem:[#allocation2 + $0x30] sm:$0xff]
    %v819 = vld [vmem:[#allocation2 + $0x38] sm:$0xff]
    %v820 = vld [vmem:[#allocation2 + $0x40] sm:$0xff]
    %v821 = vld [vmem:[#allocation2 + $0x48] sm:$0xff]
    %v822 = vld [vmem:[#allocation2 + $0x50] sm:$0xff]
    %v823 = vld [vmem:[#allocation2 + $0x58] sm:$0xff]
    %v824 = vld [vmem:[#allocation2 + $0x60] sm:$0xff]
    %v825 = vld [vmem:[#allocation2 + $0x68] sm:$0xff]
    %v826 = vld [vmem:[#allocation2 + $0x70] sm:$0xff]
    %v827 = vld [vmem:[#allocation2 + $0x78] sm:$0xff]
    %v828 = vld [vmem:[#allocation2 + $0x80] sm:$0xff]
    %v829 = vld [vmem:[#allocation2 + $0x88] sm:$0xff]
    %v830 = vld [vmem:[#allocation2 + $0x90] sm:$0xff]
    %v831 = vld [vmem:[#allocation2 + $0x98] sm:$0xf]
    %s832 = scalar_lea.vmem [#allocation9], 32
    %v833 = vld [vmem:[%s832] sm:$0x3f]
    %v835 = vsel %vm194, %v815, 0
    %v838 = vsel %vm194, %v816, 0
    %v841 = vsel %vm194, %v817, 0
    %v844 = vsel %vm194, %v818, 0
    %v847 = vsel %vm194, %v819, 0
    %v850 = vsel %vm194, %v820, 0
    %v853 = vsel %vm194, %v821, 0
    %v856 = vsel %vm194, %v822, 0
    %v859 = vsel %vm194, %v823, 0
    %v862 = vsel %vm194, %v824, 0
    %v865 = vsel %vm194, %v825, 0
    %v868 = vsel %vm194, %v826, 0
    %v871 = vsel %vm194, %v827, 0
    %v874 = vsel %vm194, %v828, 0
    %v877 = vsel %vm194, %v829, 0
    %v880 = vsel %vm194, %v830, 0
    %v883 = vsel %vm194, %v831, 0
    %v886 = vsel %vm305, %v833, 0
    %888 = vmatpush.msra.mxu0 0.0
    %889 = vmatpush.msra.mxu0 0.0
    %890 = vmatpush.msra.mxu0 0.0
    %891 = vmatpush.msra.mxu0 0.0
    %892 = vmatpush.msra.mxu0 0.0
    %893 = vmatpush.msra.mxu0 0.0
    %894 = vmatpush.msra.mxu0 0.0
    %895 = vmatpush.msra.mxu0 0.0
    %896 = vmatpush.msra.mxu0 0.0
    %897 = vmatpush.msra.mxu0 0.0
    %898 = vmatpush.msra.mxu0 0.0
    %899 = vmatpush.msra.mxu0 0.0
    %900 = vmatpush.msra.mxu0 0.0
    %901 = vmatpush.msra.mxu0 0.0
    %902 = vmatpush.msra.mxu0 0.0
    %903 = vmatpush.msra.mxu0 %v886
    %904 = vmatmul.f32.gmra.mxu0 %v835
    %v905 = vpop.f32.mrf.mxu0
    %v906 = vadd.f32 0.0, %v905
    %907 = vmatmul.f32.gmra.mxu0 %v838
    %v908 = vpop.f32.mrf.mxu0
    %v909 = vadd.f32 0.0, %v908
    %910 = vmatmul.f32.gmra.mxu0 %v841
    %v911 = vpop.f32.mrf.mxu0
    %v912 = vadd.f32 0.0, %v911
    %913 = vmatmul.f32.gmra.mxu0 %v844
    %v914 = vpop.f32.mrf.mxu0
    %v915 = vadd.f32 0.0, %v914
    %916 = vmatmul.f32.gmra.mxu0 %v847
    %v917 = vpop.f32.mrf.mxu0
    %v918 = vadd.f32 0.0, %v917
    %919 = vmatmul.f32.gmra.mxu0 %v850
    %v920 = vpop.f32.mrf.mxu0
    %v921 = vadd.f32 0.0, %v920
    %922 = vmatmul.f32.gmra.mxu0 %v853
    %v923 = vpop.f32.mrf.mxu0
    %v924 = vadd.f32 0.0, %v923
    %925 = vmatmul.f32.gmra.mxu0 %v856
    %v926 = vpop.f32.mrf.mxu0
    %v927 = vadd.f32 0.0, %v926
    %928 = vmatmul.f32.gmra.mxu0 %v859
    %v929 = vpop.f32.mrf.mxu0
    %v930 = vadd.f32 0.0, %v929
    %931 = vmatmul.f32.gmra.mxu0 %v862
    %v932 = vpop.f32.mrf.mxu0
    %v933 = vadd.f32 0.0, %v932
    %934 = vmatmul.f32.gmra.mxu0 %v865
    %v935 = vpop.f32.mrf.mxu0
    %v936 = vadd.f32 0.0, %v935
    %937 = vmatmul.f32.gmra.mxu0 %v868
    %v938 = vpop.f32.mrf.mxu0
    %v939 = vadd.f32 0.0, %v938
    %940 = vmatmul.f32.gmra.mxu0 %v871
    %v941 = vpop.f32.mrf.mxu0
    %v942 = vadd.f32 0.0, %v941
    %943 = vmatmul.f32.gmra.mxu0 %v874
    %v944 = vpop.f32.mrf.mxu0
    %v945 = vadd.f32 0.0, %v944
    %946 = vmatmul.f32.gmra.mxu0 %v877
    %v947 = vpop.f32.mrf.mxu0
    %v948 = vadd.f32 0.0, %v947
    %949 = vmatmul.f32.gmra.mxu0 %v880
    %v950 = vpop.f32.mrf.mxu0
    %v951 = vadd.f32 0.0, %v950
    %952 = vmatmul.f32.gmra.mxu0 %v883
    %v953 = vpop.f32.mrf.mxu0
    %v954 = vadd.f32 0.0, %v953
    %955 = vdwg.mxu0
    %v956 = vadd.f32 %v798, %v906
    %v957 = vadd.f32 %v799, %v909
    %v958 = vadd.f32 %v800, %v912
    %v959 = vadd.f32 %v801, %v915
    %v960 = vadd.f32 %v802, %v918
    %v961 = vadd.f32 %v803, %v921
    %v962 = vadd.f32 %v804, %v924
    %v963 = vadd.f32 %v805, %v927
    %v964 = vadd.f32 %v806, %v930
    %v965 = vadd.f32 %v807, %v933
    %v966 = vadd.f32 %v808, %v936
    %v967 = vadd.f32 %v809, %v939
    %v968 = vadd.f32 %v810, %v942
    %v969 = vadd.f32 %v811, %v945
    %v970 = vadd.f32 %v812, %v948
    %v971 = vadd.f32 %v813, %v951
    %v972 = vadd.f32 %v814, %v954
    %v973 = vld [vmem:[#allocation2 + $0x1a] sm:$0xff]
    %v974 = vld [vmem:[#allocation2 + $0x22] sm:$0xff]
    %v975 = vld [vmem:[#allocation2 + $0x2a] sm:$0xff]
    %v976 = vld [vmem:[#allocation2 + $0x32] sm:$0xff]
    %v977 = vld [vmem:[#allocation2 + $0x3a] sm:$0xff]
    %v978 = vld [vmem:[#allocation2 + $0x42] sm:$0xff]
    %v979 = vld [vmem:[#allocation2 + $0x4a] sm:$0xff]
    %v980 = vld [vmem:[#allocation2 + $0x52] sm:$0xff]
    %v981 = vld [vmem:[#allocation2 + $0x5a] sm:$0xff]
    %v982 = vld [vmem:[#allocation2 + $0x62] sm:$0xff]
    %v983 = vld [vmem:[#allocation2 + $0x6a] sm:$0xff]
    %v984 = vld [vmem:[#allocation2 + $0x72] sm:$0xff]
    %v985 = vld [vmem:[#allocation2 + $0x7a] sm:$0xff]
    %v986 = vld [vmem:[#allocation2 + $0x82] sm:$0xff]
    %v987 = vld [vmem:[#allocation2 + $0x8a] sm:$0xff]
    %v988 = vld [vmem:[#allocation2 + $0x92] sm:$0xff]
    %v989 = vld [vmem:[#allocation2 + $0x9a] sm:$0xf]
    %s990 = scalar_lea.vmem [#allocation9], 40
    %v991 = vld [vmem:[%s990] sm:$0x3f]
    %v993 = vsel %vm194, %v973, 0
    %v996 = vsel %vm194, %v974, 0
    %v999 = vsel %vm194, %v975, 0
    %v1002 = vsel %vm194, %v976, 0
    %v1005 = vsel %vm194, %v977, 0
    %v1008 = vsel %vm194, %v978, 0
    %v1011 = vsel %vm194, %v979, 0
    %v1014 = vsel %vm194, %v980, 0
    %v1017 = vsel %vm194, %v981, 0
    %v1020 = vsel %vm194, %v982, 0
    %v1023 = vsel %vm194, %v983, 0
    %v1026 = vsel %vm194, %v984, 0
    %v1029 = vsel %vm194, %v985, 0
    %v1032 = vsel %vm194, %v986, 0
    %v1035 = vsel %vm194, %v987, 0
    %v1038 = vsel %vm194, %v988, 0
    %v1041 = vsel %vm194, %v989, 0
    %v1044 = vsel %vm305, %v991, 0
    %1046 = vmatpush.msra.mxu0 0.0
    %1047 = vmatpush.msra.mxu0 0.0
    %1048 = vmatpush.msra.mxu0 0.0
    %1049 = vmatpush.msra.mxu0 0.0
    %1050 = vmatpush.msra.mxu0 0.0
    %1051 = vmatpush.msra.mxu0 0.0
    %1052 = vmatpush.msra.mxu0 0.0
    %1053 = vmatpush.msra.mxu0 0.0
    %1054 = vmatpush.msra.mxu0 0.0
    %1055 = vmatpush.msra.mxu0 0.0
    %1056 = vmatpush.msra.mxu0 0.0
    %1057 = vmatpush.msra.mxu0 0.0
    %1058 = vmatpush.msra.mxu0 0.0
    %1059 = vmatpush.msra.mxu0 0.0
    %1060 = vmatpush.msra.mxu0 0.0
    %1061 = vmatpush.msra.mxu0 %v1044
    %1062 = vmatmul.f32.gmra.mxu0 %v993
    %v1063 = vpop.f32.mrf.mxu0
    %v1064 = vadd.f32 0.0, %v1063
    %1065 = vmatmul.f32.gmra.mxu0 %v996
    %v1066 = vpop.f32.mrf.mxu0
    %v1067 = vadd.f32 0.0, %v1066
    %1068 = vmatmul.f32.gmra.mxu0 %v999
    %v1069 = vpop.f32.mrf.mxu0
    %v1070 = vadd.f32 0.0, %v1069
    %1071 = vmatmul.f32.gmra.mxu0 %v1002
    %v1072 = vpop.f32.mrf.mxu0
    %v1073 = vadd.f32 0.0, %v1072
    %1074 = vmatmul.f32.gmra.mxu0 %v1005
    %v1075 = vpop.f32.mrf.mxu0
    %v1076 = vadd.f32 0.0, %v1075
    %1077 = vmatmul.f32.gmra.mxu0 %v1008
    %v1078 = vpop.f32.mrf.mxu0
    %v1079 = vadd.f32 0.0, %v1078
    %1080 = vmatmul.f32.gmra.mxu0 %v1011
    %v1081 = vpop.f32.mrf.mxu0
    %v1082 = vadd.f32 0.0, %v1081
    %1083 = vmatmul.f32.gmra.mxu0 %v1014
    %v1084 = vpop.f32.mrf.mxu0
    %v1085 = vadd.f32 0.0, %v1084
    %1086 = vmatmul.f32.gmra.mxu0 %v1017
    %v1087 = vpop.f32.mrf.mxu0
    %v1088 = vadd.f32 0.0, %v1087
    %1089 = vmatmul.f32.gmra.mxu0 %v1020
    %v1090 = vpop.f32.mrf.mxu0
    %v1091 = vadd.f32 0.0, %v1090
    %1092 = vmatmul.f32.gmra.mxu0 %v1023
    %v1093 = vpop.f32.mrf.mxu0
    %v1094 = vadd.f32 0.0, %v1093
    %1095 = vmatmul.f32.gmra.mxu0 %v1026
    %v1096 = vpop.f32.mrf.mxu0
    %v1097 = vadd.f32 0.0, %v1096
    %1098 = vmatmul.f32.gmra.mxu0 %v1029
    %v1099 = vpop.f32.mrf.mxu0
    %v1100 = vadd.f32 0.0, %v1099
    %1101 = vmatmul.f32.gmra.mxu0 %v1032
    %v1102 = vpop.f32.mrf.mxu0
    %v1103 = vadd.f32 0.0, %v1102
    %1104 = vmatmul.f32.gmra.mxu0 %v1035
    %v1105 = vpop.f32.mrf.mxu0
    %v1106 = vadd.f32 0.0, %v1105
    %1107 = vmatmul.f32.gmra.mxu0 %v1038
    %v1108 = vpop.f32.mrf.mxu0
    %v1109 = vadd.f32 0.0, %v1108
    %1110 = vmatmul.f32.gmra.mxu0 %v1041
    %v1111 = vpop.f32.mrf.mxu0
    %v1112 = vadd.f32 0.0, %v1111
    %1113 = vdwg.mxu0
    %v1114 = vadd.f32 %v956, %v1064
    %v1115 = vadd.f32 %v957, %v1067
    %v1116 = vadd.f32 %v958, %v1070
    %v1117 = vadd.f32 %v959, %v1073
    %v1118 = vadd.f32 %v960, %v1076
    %v1119 = vadd.f32 %v961, %v1079
    %v1120 = vadd.f32 %v962, %v1082
    %v1121 = vadd.f32 %v963, %v1085
    %v1122 = vadd.f32 %v964, %v1088
    %v1123 = vadd.f32 %v965, %v1091
    %v1124 = vadd.f32 %v966, %v1094
    %v1125 = vadd.f32 %v967, %v1097
    %v1126 = vadd.f32 %v968, %v1100
    %v1127 = vadd.f32 %v969, %v1103
    %v1128 = vadd.f32 %v970, %v1106
    %v1129 = vadd.f32 %v971, %v1109
    %v1130 = vadd.f32 %v972, %v1112
    %v1131 = vld [vmem:[#allocation2 + $0x2c] sm:$0xff]
    %v1132 = vld [vmem:[#allocation2 + $0x34] sm:$0xff]
    %v1133 = vld [vmem:[#allocation2 + $0x3c] sm:$0xff]
    %v1134 = vld [vmem:[#allocation2 + $0x44] sm:$0xff]
    %v1135 = vld [vmem:[#allocation2 + $0x4c] sm:$0xff]
    %v1136 = vld [vmem:[#allocation2 + $0x54] sm:$0xff]
    %v1137 = vld [vmem:[#allocation2 + $0x5c] sm:$0xff]
    %v1138 = vld [vmem:[#allocation2 + $0x64] sm:$0xff]
    %v1139 = vld [vmem:[#allocation2 + $0x6c] sm:$0xff]
    %v1140 = vld [vmem:[#allocation2 + $0x74] sm:$0xff]
    %v1141 = vld [vmem:[#allocation2 + $0x7c] sm:$0xff]
    %v1142 = vld [vmem:[#allocation2 + $0x84] sm:$0xff]
    %v1143 = vld [vmem:[#allocation2 + $0x8c] sm:$0xff]
    %v1144 = vld [vmem:[#allocation2 + $0x94] sm:$0xff]
    %v1145 = vld [vmem:[#allocation2 + $0x9c] sm:$0xff]
    %v1146 = vld [vmem:[#allocation2 + $0xa4] sm:$0xff]
    %v1147 = vld [vmem:[#allocation2 + $0xac] sm:$0xf]
    %s1148 = scalar_lea.vmem [#allocation9], 48
    %v1149 = vld [vmem:[%s1148] sm:$0x3f]
    %v1151 = vsel %vm194, %v1131, 0
    %v1154 = vsel %vm194, %v1132, 0
    %v1157 = vsel %vm194, %v1133, 0
    %v1160 = vsel %vm194, %v1134, 0
    %v1163 = vsel %vm194, %v1135, 0
    %v1166 = vsel %vm194, %v1136, 0
    %v1169 = vsel %vm194, %v1137, 0
    %v1172 = vsel %vm194, %v1138, 0
    %v1175 = vsel %vm194, %v1139, 0
    %v1178 = vsel %vm194, %v1140, 0
    %v1181 = vsel %vm194, %v1141, 0
    %v1184 = vsel %vm194, %v1142, 0
    %v1187 = vsel %vm194, %v1143, 0
    %v1190 = vsel %vm194, %v1144, 0
    %v1193 = vsel %vm194, %v1145, 0
    %v1196 = vsel %vm194, %v1146, 0
    %v1199 = vsel %vm194, %v1147, 0
    %v1202 = vsel %vm305, %v1149, 0
    %1204 = vmatpush.msra.mxu0 0.0
    %1205 = vmatpush.msra.mxu0 0.0
    %1206 = vmatpush.msra.mxu0 0.0
    %1207 = vmatpush.msra.mxu0 0.0
    %1208 = vmatpush.msra.mxu0 0.0
    %1209 = vmatpush.msra.mxu0 0.0
    %1210 = vmatpush.msra.mxu0 0.0
    %1211 = vmatpush.msra.mxu0 0.0
    %1212 = vmatpush.msra.mxu0 0.0
    %1213 = vmatpush.msra.mxu0 0.0
    %1214 = vmatpush.msra.mxu0 0.0
    %1215 = vmatpush.msra.mxu0 0.0
    %1216 = vmatpush.msra.mxu0 0.0
    %1217 = vmatpush.msra.mxu0 0.0
    %1218 = vmatpush.msra.mxu0 0.0
    %1219 = vmatpush.msra.mxu0 %v1202
    %1220 = vmatmul.f32.gmra.mxu0 %v1151
    %v1221 = vpop.f32.mrf.mxu0
    %v1222 = vadd.f32 0.0, %v1221
    %1223 = vmatmul.f32.gmra.mxu0 %v1154
    %v1224 = vpop.f32.mrf.mxu0
    %v1225 = vadd.f32 0.0, %v1224
    %1226 = vmatmul.f32.gmra.mxu0 %v1157
    %v1227 = vpop.f32.mrf.mxu0
    %v1228 = vadd.f32 0.0, %v1227
    %1229 = vmatmul.f32.gmra.mxu0 %v1160
    %v1230 = vpop.f32.mrf.mxu0
    %v1231 = vadd.f32 0.0, %v1230
    %1232 = vmatmul.f32.gmra.mxu0 %v1163
    %v1233 = vpop.f32.mrf.mxu0
    %v1234 = vadd.f32 0.0, %v1233
    %1235 = vmatmul.f32.gmra.mxu0 %v1166
    %v1236 = vpop.f32.mrf.mxu0
    %v1237 = vadd.f32 0.0, %v1236
    %1238 = vmatmul.f32.gmra.mxu0 %v1169
    %v1239 = vpop.f32.mrf.mxu0
    %v1240 = vadd.f32 0.0, %v1239
    %1241 = vmatmul.f32.gmra.mxu0 %v1172
    %v1242 = vpop.f32.mrf.mxu0
    %v1243 = vadd.f32 0.0, %v1242
    %1244 = vmatmul.f32.gmra.mxu0 %v1175
    %v1245 = vpop.f32.mrf.mxu0
    %v1246 = vadd.f32 0.0, %v1245
    %1247 = vmatmul.f32.gmra.mxu0 %v1178
    %v1248 = vpop.f32.mrf.mxu0
    %v1249 = vadd.f32 0.0, %v1248
    %1250 = vmatmul.f32.gmra.mxu0 %v1181
    %v1251 = vpop.f32.mrf.mxu0
    %v1252 = vadd.f32 0.0, %v1251
    %1253 = vmatmul.f32.gmra.mxu0 %v1184
    %v1254 = vpop.f32.mrf.mxu0
    %v1255 = vadd.f32 0.0, %v1254
    %1256 = vmatmul.f32.gmra.mxu0 %v1187
    %v1257 = vpop.f32.mrf.mxu0
    %v1258 = vadd.f32 0.0, %v1257
    %1259 = vmatmul.f32.gmra.mxu0 %v1190
    %v1260 = vpop.f32.mrf.mxu0
    %v1261 = vadd.f32 0.0, %v1260
    %1262 = vmatmul.f32.gmra.mxu0 %v1193
    %v1263 = vpop.f32.mrf.mxu0
    %v1264 = vadd.f32 0.0, %v1263
    %1265 = vmatmul.f32.gmra.mxu0 %v1196
    %v1266 = vpop.f32.mrf.mxu0
    %v1267 = vadd.f32 0.0, %v1266
    %1268 = vmatmul.f32.gmra.mxu0 %v1199
    %v1269 = vpop.f32.mrf.mxu0
    %v1270 = vadd.f32 0.0, %v1269
    %1271 = vdwg.mxu0
    %v1272 = vadd.f32 %v1114, %v1222
    %v1273 = vadd.f32 %v1115, %v1225
    %v1274 = vadd.f32 %v1116, %v1228
    %v1275 = vadd.f32 %v1117, %v1231
    %v1276 = vadd.f32 %v1118, %v1234
    %v1277 = vadd.f32 %v1119, %v1237
    %v1278 = vadd.f32 %v1120, %v1240
    %v1279 = vadd.f32 %v1121, %v1243
    %v1280 = vadd.f32 %v1122, %v1246
    %v1281 = vadd.f32 %v1123, %v1249
    %v1282 = vadd.f32 %v1124, %v1252
    %v1283 = vadd.f32 %v1125, %v1255
    %v1284 = vadd.f32 %v1126, %v1258
    %v1285 = vadd.f32 %v1127, %v1261
    %v1286 = vadd.f32 %v1128, %v1264
    %v1287 = vadd.f32 %v1129, %v1267
    %v1288 = vadd.f32 %v1130, %v1270
    %v1289 = vld [vmem:[#allocation2 + $0x2e] sm:$0xff]
    %v1290 = vld [vmem:[#allocation2 + $0x36] sm:$0xff]
    %v1291 = vld [vmem:[#allocation2 + $0x3e] sm:$0xff]
    %v1292 = vld [vmem:[#allocation2 + $0x46] sm:$0xff]
    %v1293 = vld [vmem:[#allocation2 + $0x4e] sm:$0xff]
    %v1294 = vld [vmem:[#allocation2 + $0x56] sm:$0xff]
    %v1295 = vld [vmem:[#allocation2 + $0x5e] sm:$0xff]
    %v1296 = vld [vmem:[#allocation2 + $0x66] sm:$0xff]
    %v1297 = vld [vmem:[#allocation2 + $0x6e] sm:$0xff]
    %v1298 = vld [vmem:[#allocation2 + $0x76] sm:$0xff]
    %v1299 = vld [vmem:[#allocation2 + $0x7e] sm:$0xff]
    %v1300 = vld [vmem:[#allocation2 + $0x86] sm:$0xff]
    %v1301 = vld [vmem:[#allocation2 + $0x8e] sm:$0xff]
    %v1302 = vld [vmem:[#allocation2 + $0x96] sm:$0xff]
    %v1303 = vld [vmem:[#allocation2 + $0x9e] sm:$0xff]
    %v1304 = vld [vmem:[#allocation2 + $0xa6] sm:$0xff]
    %v1305 = vld [vmem:[#allocation2 + $0xae] sm:$0xf]
    %s1306 = scalar_lea.vmem [#allocation9], 56
    %v1307 = vld [vmem:[%s1306] sm:$0x3f]
    %v1309 = vsel %vm194, %v1289, 0
    %v1312 = vsel %vm194, %v1290, 0
    %v1315 = vsel %vm194, %v1291, 0
    %v1318 = vsel %vm194, %v1292, 0
    %v1321 = vsel %vm194, %v1293, 0
    %v1324 = vsel %vm194, %v1294, 0
    %v1327 = vsel %vm194, %v1295, 0
    %v1330 = vsel %vm194, %v1296, 0
    %v1333 = vsel %vm194, %v1297, 0
    %v1336 = vsel %vm194, %v1298, 0
    %v1339 = vsel %vm194, %v1299, 0
    %v1342 = vsel %vm194, %v1300, 0
    %v1345 = vsel %vm194, %v1301, 0
    %v1348 = vsel %vm194, %v1302, 0
    %v1351 = vsel %vm194, %v1303, 0
    %v1354 = vsel %vm194, %v1304, 0
    %v1357 = vsel %vm194, %v1305, 0
    %v1360 = vsel %vm305, %v1307, 0
    %1362 = vmatpush.msra.mxu0 0.0
    %1363 = vmatpush.msra.mxu0 0.0
    %1364 = vmatpush.msra.mxu0 0.0
    %1365 = vmatpush.msra.mxu0 0.0
    %1366 = vmatpush.msra.mxu0 0.0
    %1367 = vmatpush.msra.mxu0 0.0
    %1368 = vmatpush.msra.mxu0 0.0
    %1369 = vmatpush.msra.mxu0 0.0
    %1370 = vmatpush.msra.mxu0 0.0
    %1371 = vmatpush.msra.mxu0 0.0
    %1372 = vmatpush.msra.mxu0 0.0
    %1373 = vmatpush.msra.mxu0 0.0
    %1374 = vmatpush.msra.mxu0 0.0
    %1375 = vmatpush.msra.mxu0 0.0
    %1376 = vmatpush.msra.mxu0 0.0
    %1377 = vmatpush.msra.mxu0 %v1360
    %1378 = vmatmul.f32.gmra.mxu0 %v1309
    %v1379 = vpop.f32.mrf.mxu0
    %v1380 = vadd.f32 0.0, %v1379
    %1381 = vmatmul.f32.gmra.mxu0 %v1312
    %v1382 = vpop.f32.mrf.mxu0
    %v1383 = vadd.f32 0.0, %v1382
    %1384 = vmatmul.f32.gmra.mxu0 %v1315
    %v1385 = vpop.f32.mrf.mxu0
    %v1386 = vadd.f32 0.0, %v1385
    %1387 = vmatmul.f32.gmra.mxu0 %v1318
    %v1388 = vpop.f32.mrf.mxu0
    %v1389 = vadd.f32 0.0, %v1388
    %1390 = vmatmul.f32.gmra.mxu0 %v1321
    %v1391 = vpop.f32.mrf.mxu0
    %v1392 = vadd.f32 0.0, %v1391
    %1393 = vmatmul.f32.gmra.mxu0 %v1324
    %v1394 = vpop.f32.mrf.mxu0
    %v1395 = vadd.f32 0.0, %v1394
    %1396 = vmatmul.f32.gmra.mxu0 %v1327
    %v1397 = vpop.f32.mrf.mxu0
    %v1398 = vadd.f32 0.0, %v1397
    %1399 = vmatmul.f32.gmra.mxu0 %v1330
    %v1400 = vpop.f32.mrf.mxu0
    %v1401 = vadd.f32 0.0, %v1400
    %1402 = vmatmul.f32.gmra.mxu0 %v1333
    %v1403 = vpop.f32.mrf.mxu0
    %v1404 = vadd.f32 0.0, %v1403
    %1405 = vmatmul.f32.gmra.mxu0 %v1336
    %v1406 = vpop.f32.mrf.mxu0
    %v1407 = vadd.f32 0.0, %v1406
    %1408 = vmatmul.f32.gmra.mxu0 %v1339
    %v1409 = vpop.f32.mrf.mxu0
    %v1410 = vadd.f32 0.0, %v1409
    %1411 = vmatmul.f32.gmra.mxu0 %v1342
    %v1412 = vpop.f32.mrf.mxu0
    %v1413 = vadd.f32 0.0, %v1412
    %1414 = vmatmul.f32.gmra.mxu0 %v1345
    %v1415 = vpop.f32.mrf.mxu0
    %v1416 = vadd.f32 0.0, %v1415
    %1417 = vmatmul.f32.gmra.mxu0 %v1348
    %v1418 = vpop.f32.mrf.mxu0
    %v1419 = vadd.f32 0.0, %v1418
    %1420 = vmatmul.f32.gmra.mxu0 %v1351
    %v1421 = vpop.f32.mrf.mxu0
    %v1422 = vadd.f32 0.0, %v1421
    %1423 = vmatmul.f32.gmra.mxu0 %v1354
    %v1424 = vpop.f32.mrf.mxu0
    %v1425 = vadd.f32 0.0, %v1424
    %1426 = vmatmul.f32.gmra.mxu0 %v1357
    %v1427 = vpop.f32.mrf.mxu0
    %v1428 = vadd.f32 0.0, %v1427
    %1429 = vdwg.mxu0
    %v1430 = vadd.f32 %v1272, %v1380
    %v1431 = vadd.f32 %v1273, %v1383
    %v1432 = vadd.f32 %v1274, %v1386
    %v1433 = vadd.f32 %v1275, %v1389
    %v1434 = vadd.f32 %v1276, %v1392
    %v1435 = vadd.f32 %v1277, %v1395
    %v1436 = vadd.f32 %v1278, %v1398
    %v1437 = vadd.f32 %v1279, %v1401
    %v1438 = vadd.f32 %v1280, %v1404
    %v1439 = vadd.f32 %v1281, %v1407
    %v1440 = vadd.f32 %v1282, %v1410
    %v1441 = vadd.f32 %v1283, %v1413
    %v1442 = vadd.f32 %v1284, %v1416
    %v1443 = vadd.f32 %v1285, %v1419
    %v1444 = vadd.f32 %v1286, %v1422
    %v1445 = vadd.f32 %v1287, %v1425
    %v1446 = vadd.f32 %v1288, %v1428
    %v1447 = vld [vmem:[#allocation2 + $0x30] sm:$0xff]
    %v1448 = vld [vmem:[#allocation2 + $0x38] sm:$0xff]
    %v1449 = vld [vmem:[#allocation2 + $0x40] sm:$0xff]
    %v1450 = vld [vmem:[#allocation2 + $0x48] sm:$0xff]
    %v1451 = vld [vmem:[#allocation2 + $0x50] sm:$0xff]
    %v1452 = vld [vmem:[#allocation2 + $0x58] sm:$0xff]
    %v1453 = vld [vmem:[#allocation2 + $0x60] sm:$0xff]
    %v1454 = vld [vmem:[#allocation2 + $0x68] sm:$0xff]
    %v1455 = vld [vmem:[#allocation2 + $0x70] sm:$0xff]
    %v1456 = vld [vmem:[#allocation2 + $0x78] sm:$0xff]
    %v1457 = vld [vmem:[#allocation2 + $0x80] sm:$0xff]
    %v1458 = vld [vmem:[#allocation2 + $0x88] sm:$0xff]
    %v1459 = vld [vmem:[#allocation2 + $0x90] sm:$0xff]
    %v1460 = vld [vmem:[#allocation2 + $0x98] sm:$0xff]
    %v1461 = vld [vmem:[#allocation2 + $0xa0] sm:$0xff]
    %v1462 = vld [vmem:[#allocation2 + $0xa8] sm:$0xff]
    %v1463 = vld [vmem:[#allocation2 + $0xb0] sm:$0xf]
    %s1464 = scalar_lea.vmem [#allocation9], 64
    %v1465 = vld [vmem:[%s1464] sm:$0x3f]
    %v1467 = vsel %vm194, %v1447, 0
    %v1470 = vsel %vm194, %v1448, 0
    %v1473 = vsel %vm194, %v1449, 0
    %v1476 = vsel %vm194, %v1450, 0
    %v1479 = vsel %vm194, %v1451, 0
    %v1482 = vsel %vm194, %v1452, 0
    %v1485 = vsel %vm194, %v1453, 0
    %v1488 = vsel %vm194, %v1454, 0
    %v1491 = vsel %vm194, %v1455, 0
    %v1494 = vsel %vm194, %v1456, 0
    %v1497 = vsel %vm194, %v1457, 0
    %v1500 = vsel %vm194, %v1458, 0
    %v1503 = vsel %vm194, %v1459, 0
    %v1506 = vsel %vm194, %v1460, 0
    %v1509 = vsel %vm194, %v1461, 0
    %v1512 = vsel %vm194, %v1462, 0
    %v1515 = vsel %vm194, %v1463, 0
    %v1518 = vsel %vm305, %v1465, 0
    %1520 = vmatpush.msra.mxu0 0.0
    %1521 = vmatpush.msra.mxu0 0.0
    %1522 = vmatpush.msra.mxu0 0.0
    %1523 = vmatpush.msra.mxu0 0.0
    %1524 = vmatpush.msra.mxu0 0.0
    %1525 = vmatpush.msra.mxu0 0.0
    %1526 = vmatpush.msra.mxu0 0.0
    %1527 = vmatpush.msra.mxu0 0.0
    %1528 = vmatpush.msra.mxu0 0.0
    %1529 = vmatpush.msra.mxu0 0.0
    %1530 = vmatpush.msra.mxu0 0.0
    %1531 = vmatpush.msra.mxu0 0.0
    %1532 = vmatpush.msra.mxu0 0.0
    %1533 = vmatpush.msra.mxu0 0.0
    %1534 = vmatpush.msra.mxu0 0.0
    %1535 = vmatpush.msra.mxu0 %v1518
    %1536 = vmatmul.f32.gmra.mxu0 %v1467
    %v1537 = vpop.f32.mrf.mxu0
    %v1538 = vadd.f32 0.0, %v1537
    %1539 = vmatmul.f32.gmra.mxu0 %v1470
    %v1540 = vpop.f32.mrf.mxu0
    %v1541 = vadd.f32 0.0, %v1540
    %1542 = vmatmul.f32.gmra.mxu0 %v1473
    %v1543 = vpop.f32.mrf.mxu0
    %v1544 = vadd.f32 0.0, %v1543
    %1545 = vmatmul.f32.gmra.mxu0 %v1476
    %v1546 = vpop.f32.mrf.mxu0
    %v1547 = vadd.f32 0.0, %v1546
    %1548 = vmatmul.f32.gmra.mxu0 %v1479
    %v1549 = vpop.f32.mrf.mxu0
    %v1550 = vadd.f32 0.0, %v1549
    %1551 = vmatmul.f32.gmra.mxu0 %v1482
    %v1552 = vpop.f32.mrf.mxu0
    %v1553 = vadd.f32 0.0, %v1552
    %1554 = vmatmul.f32.gmra.mxu0 %v1485
    %v1555 = vpop.f32.mrf.mxu0
    %v1556 = vadd.f32 0.0, %v1555
    %1557 = vmatmul.f32.gmra.mxu0 %v1488
    %v1558 = vpop.f32.mrf.mxu0
    %v1559 = vadd.f32 0.0, %v1558
    %1560 = vmatmul.f32.gmra.mxu0 %v1491
    %v1561 = vpop.f32.mrf.mxu0
    %v1562 = vadd.f32 0.0, %v1561
    %1563 = vmatmul.f32.gmra.mxu0 %v1494
    %v1564 = vpop.f32.mrf.mxu0
    %v1565 = vadd.f32 0.0, %v1564
    %1566 = vmatmul.f32.gmra.mxu0 %v1497
    %v1567 = vpop.f32.mrf.mxu0
    %v1568 = vadd.f32 0.0, %v1567
    %1569 = vmatmul.f32.gmra.mxu0 %v1500
    %v1570 = vpop.f32.mrf.mxu0
    %v1571 = vadd.f32 0.0, %v1570
    %1572 = vmatmul.f32.gmra.mxu0 %v1503
    %v1573 = vpop.f32.mrf.mxu0
    %v1574 = vadd.f32 0.0, %v1573
    %1575 = vmatmul.f32.gmra.mxu0 %v1506
    %v1576 = vpop.f32.mrf.mxu0
    %v1577 = vadd.f32 0.0, %v1576
    %1578 = vmatmul.f32.gmra.mxu0 %v1509
    %v1579 = vpop.f32.mrf.mxu0
    %v1580 = vadd.f32 0.0, %v1579
    %1581 = vmatmul.f32.gmra.mxu0 %v1512
    %v1582 = vpop.f32.mrf.mxu0
    %v1583 = vadd.f32 0.0, %v1582
    %1584 = vmatmul.f32.gmra.mxu0 %v1515
    %v1585 = vpop.f32.mrf.mxu0
    %v1586 = vadd.f32 0.0, %v1585
    %1587 = vdwg.mxu0
    %v1588 = vadd.f32 %v1430, %v1538
    %v1589 = vadd.f32 %v1431, %v1541
    %v1590 = vadd.f32 %v1432, %v1544
    %v1591 = vadd.f32 %v1433, %v1547
    %v1592 = vadd.f32 %v1434, %v1550
    %v1593 = vadd.f32 %v1435, %v1553
    %v1594 = vadd.f32 %v1436, %v1556
    %v1595 = vadd.f32 %v1437, %v1559
    %v1596 = vadd.f32 %v1438, %v1562
    %v1597 = vadd.f32 %v1439, %v1565
    %v1598 = vadd.f32 %v1440, %v1568
    %v1599 = vadd.f32 %v1441, %v1571
    %v1600 = vadd.f32 %v1442, %v1574
    %v1601 = vadd.f32 %v1443, %v1577
    %v1602 = vadd.f32 %v1444, %v1580
    %v1603 = vadd.f32 %v1445, %v1583
    %v1604 = vadd.f32 %v1446, %v1586
    %v1605 = vmax.f32 %v1588, 0.0
    %v1606 = vmax.f32 %v1589, 0.0
    %v1607 = vmax.f32 %v1590, 0.0
    %v1608 = vmax.f32 %v1591, 0.0
    %v1609 = vmax.f32 %v1592, 0.0
    %v1610 = vmax.f32 %v1593, 0.0
    %v1611 = vmax.f32 %v1594, 0.0
    %v1612 = vmax.f32 %v1595, 0.0
    %v1613 = vmax.f32 %v1596, 0.0
    %v1614 = vmax.f32 %v1597, 0.0
    %v1615 = vmax.f32 %v1598, 0.0
    %v1616 = vmax.f32 %v1599, 0.0
    %v1617 = vmax.f32 %v1600, 0.0
    %v1618 = vmax.f32 %v1601, 0.0
    %v1619 = vmax.f32 %v1602, 0.0
    %v1620 = vmax.f32 %v1603, 0.0
    %v1621 = vmax.f32 %v1604, 0.0
    %1623 = vset.pattern.permute.xlu0 0
    %1624 = vperm.xlu0 %1623, %v149
    %v1625 = vpop.permute.xlu0 %1624
    %1628 = vset.pattern.permute.xlu0 0
    %1629 = vperm.xlu0 %1628, %v150
    %v1630 = vpop.permute.xlu0 %1629
    %1633 = vset.pattern.permute.xlu0 0
    %1634 = vperm.xlu0 %1633, %v151
    %v1635 = vpop.permute.xlu0 %1634
    %1638 = vset.pattern.permute.xlu0 0
    %1639 = vperm.xlu0 %1638, %v152
    %v1640 = vpop.permute.xlu0 %1639
    %1643 = vset.pattern.permute.xlu0 0
    %1644 = vperm.xlu0 %1643, %v153
    %v1645 = vpop.permute.xlu0 %1644
    %1648 = vset.pattern.permute.xlu0 0
    %1649 = vperm.xlu0 %1648, %v154
    %v1650 = vpop.permute.xlu0 %1649
    %1653 = vset.pattern.permute.xlu0 0
    %1654 = vperm.xlu0 %1653, %v155
    %v1655 = vpop.permute.xlu0 %1654
    %1658 = vset.pattern.permute.xlu0 0
    %1659 = vperm.xlu0 %1658, %v156
    %v1660 = vpop.permute.xlu0 %1659
    %1663 = vset.pattern.permute.xlu0 0
    %1664 = vperm.xlu0 %1663, %v157
    %v1665 = vpop.permute.xlu0 %1664
    %1668 = vset.pattern.permute.xlu0 0
    %1669 = vperm.xlu0 %1668, %v158
    %v1670 = vpop.permute.xlu0 %1669
    %1673 = vset.pattern.permute.xlu0 0
    %1674 = vperm.xlu0 %1673, %v159
    %v1675 = vpop.permute.xlu0 %1674
    %1678 = vset.pattern.permute.xlu0 0
    %1679 = vperm.xlu0 %1678, %v160
    %v1680 = vpop.permute.xlu0 %1679
    %1683 = vset.pattern.permute.xlu0 0
    %1684 = vperm.xlu0 %1683, %v161
    %v1685 = vpop.permute.xlu0 %1684
    %1688 = vset.pattern.permute.xlu0 0
    %1689 = vperm.xlu0 %1688, %v162
    %v1690 = vpop.permute.xlu0 %1689
    %1693 = vset.pattern.permute.xlu0 0
    %1694 = vperm.xlu0 %1693, %v163
    %v1695 = vpop.permute.xlu0 %1694
    %1698 = vset.pattern.permute.xlu0 0
    %1699 = vperm.xlu0 %1698, %v164
    %v1700 = vpop.permute.xlu0 %1699
    %1703 = vset.pattern.permute.xlu0 0
    %1704 = vperm.xlu0 %1703, %v165
    %v1705 = vpop.permute.xlu0 %1704
    %v1707 = vmul.f32 %v1605, %v1625
    %v1708 = vmul.f32 %v1606, %v1630
    %v1709 = vmul.f32 %v1607, %v1635
    %v1710 = vmul.f32 %v1608, %v1640
    %v1711 = vmul.f32 %v1609, %v1645
    %v1712 = vmul.f32 %v1610, %v1650
    %v1713 = vmul.f32 %v1611, %v1655
    %v1714 = vmul.f32 %v1612, %v1660
    %v1715 = vmul.f32 %v1613, %v1665
    %v1716 = vmul.f32 %v1614, %v1670
    %v1717 = vmul.f32 %v1615, %v1675
    %v1718 = vmul.f32 %v1616, %v1680
    %v1719 = vmul.f32 %v1617, %v1685
    %v1720 = vmul.f32 %v1618, %v1690
    %v1721 = vmul.f32 %v1619, %v1695
    %v1722 = vmul.f32 %v1620, %v1700
    %v1723 = vmul.f32 %v1621, %v1705
    %1724 = vst.msk [vmem:[#allocation2 + $0x18] sm:$0xff] %vm166, %v1707
    %1725 = vst.msk [vmem:[#allocation2 + $0x20] sm:$0xff] %vm166, %v1708
    %1726 = vst.msk [vmem:[#allocation2 + $0x28] sm:$0xff] %vm166, %v1709
    %1727 = vst.msk [vmem:[#allocation2 + $0x30] sm:$0xff] %vm166, %v1710
    %1728 = vst.msk [vmem:[#allocation2 + $0x38] sm:$0xff] %vm166, %v1711
    %1729 = vst.msk [vmem:[#allocation2 + $0x40] sm:$0xff] %vm166, %v1712
    %1730 = vst.msk [vmem:[#allocation2 + $0x48] sm:$0xff] %vm166, %v1713
    %1731 = vst.msk [vmem:[#allocation2 + $0x50] sm:$0xff] %vm166, %v1714
    %1732 = vst.msk [vmem:[#allocation2 + $0x58] sm:$0xff] %vm166, %v1715
    %1733 = vst.msk [vmem:[#allocation2 + $0x60] sm:$0xff] %vm166, %v1716
    %1734 = vst.msk [vmem:[#allocation2 + $0x68] sm:$0xff] %vm166, %v1717
    %1735 = vst.msk [vmem:[#allocation2 + $0x70] sm:$0xff] %vm166, %v1718
    %1736 = vst.msk [vmem:[#allocation2 + $0x78] sm:$0xff] %vm166, %v1719
    %1737 = vst.msk [vmem:[#allocation2 + $0x80] sm:$0xff] %vm166, %v1720
    %1738 = vst.msk [vmem:[#allocation2 + $0x88] sm:$0xff] %vm166, %v1721
    %1739 = vst.msk [vmem:[#allocation2 + $0x90] sm:$0xff] %vm166, %v1722
    %1740 = vst.msk [vmem:[#allocation2 + $0x98] sm:$0xf] %vm189, %v1723
    %v1741 = vld [vmem:[#allocation2] sm:$0xff]
    %v1742 = vld [vmem:[#allocation2 + $0x8] sm:$0xff]
    %v1743 = vld [vmem:[#allocation2 + $0x10] sm:$0xff]
    %v1744 = vld [vmem:[#allocation2 + $0x18] sm:$0xff]
    %v1745 = vld [vmem:[#allocation2 + $0x20] sm:$0xff]
    %v1746 = vld [vmem:[#allocation2 + $0x28] sm:$0xff]
    %v1747 = vld [vmem:[#allocation2 + $0x30] sm:$0xff]
    %v1748 = vld [vmem:[#allocation2 + $0x38] sm:$0xff]
    %v1749 = vld [vmem:[#allocation2 + $0x40] sm:$0xff]
    %v1750 = vld [vmem:[#allocation2 + $0x48] sm:$0xff]
    %v1751 = vld [vmem:[#allocation2 + $0x50] sm:$0xff]
    %v1752 = vld [vmem:[#allocation2 + $0x58] sm:$0xff]
    %v1753 = vld [vmem:[#allocation2 + $0x60] sm:$0xff]
    %v1754 = vld [vmem:[#allocation2 + $0x68] sm:$0xff]
    %v1755 = vld [vmem:[#allocation2 + $0x70] sm:$0xff]
    %v1756 = vld [vmem:[#allocation2 + $0x78] sm:$0xff]
    %v1757 = vld [vmem:[#allocation2 + $0x80] sm:$0xf]
    %v1758 = vld [vmem:[#allocation10] sm:$0xff]
    %v1759 = vld [vmem:[#allocation10 + $0x8] sm:$0xff]
    %v1760 = vld [vmem:[#allocation10 + $0x10] sm:$0xff]
    %v1761 = vld [vmem:[#allocation10 + $0x18] sm:$0xff]
    %v1762 = vld [vmem:[#allocation10 + $0x20] sm:$0xff]
    %v1763 = vld [vmem:[#allocation10 + $0x28] sm:$0xff]
    %v1764 = vld [vmem:[#allocation10 + $0x30] sm:$0xff]
    %v1765 = vld [vmem:[#allocation10 + $0x38] sm:$0xff]
    %v1766 = vld [vmem:[#allocation2 + $0x2] sm:$0xff]
    %v1767 = vld [vmem:[#allocation2 + $0xa] sm:$0xff]
    %v1768 = vld [vmem:[#allocation2 + $0x12] sm:$0xff]
    %v1769 = vld [vmem:[#allocation2 + $0x1a] sm:$0xff]
    %v1770 = vld [vmem:[#allocation2 + $0x22] sm:$0xff]
    %v1771 = vld [vmem:[#allocation2 + $0x2a] sm:$0xff]
    %v1772 = vld [vmem:[#allocation2 + $0x32] sm:$0xff]
    %v1773 = vld [vmem:[#allocation2 + $0x3a] sm:$0xff]
    %v1774 = vld [vmem:[#allocation2 + $0x42] sm:$0xff]
    %v1775 = vld [vmem:[#allocation2 + $0x4a] sm:$0xff]
    %v1776 = vld [vmem:[#allocation2 + $0x52] sm:$0xff]
    %v1777 = vld [vmem:[#allocation2 + $0x5a] sm:$0xff]
    %v1778 = vld [vmem:[#allocation2 + $0x62] sm:$0xff]
    %v1779 = vld [vmem:[#allocation2 + $0x6a] sm:$0xff]
    %v1780 = vld [vmem:[#allocation2 + $0x72] sm:$0xff]
    %v1781 = vld [vmem:[#allocation2 + $0x7a] sm:$0xff]
    %v1782 = vld [vmem:[#allocation2 + $0x82] sm:$0xf]
    %s1783 = scalar_lea.vmem [#allocation10], 64
    %v1784 = vld [vmem:[%s1783] sm:$0xff]
    %v1785 = vld [vmem:[%s1783 + $0x8] sm:$0xff]
    %v1786 = vld [vmem:[%s1783 + $0x10] sm:$0xff]
    %v1787 = vld [vmem:[%s1783 + $0x18] sm:$0xff]
    %v1788 = vld [vmem:[%s1783 + $0x20] sm:$0xff]
    %v1789 = vld [vmem:[%s1783 + $0x28] sm:$0xff]
    %v1790 = vld [vmem:[%s1783 + $0x30] sm:$0xff]
    %v1791 = vld [vmem:[%s1783 + $0x38] sm:$0xff]
    %v1793 = vsel %vm166, %v1766, 0
    %v1796 = vsel %vm166, %v1767, 0
    %v1799 = vsel %vm166, %v1768, 0
    %v1802 = vsel %vm166, %v1769, 0
    %v1805 = vsel %vm166, %v1770, 0
    %v1808 = vsel %vm166, %v1771, 0
    %v1811 = vsel %vm166, %v1772, 0
    %v1814 = vsel %vm166, %v1773, 0
    %v1817 = vsel %vm166, %v1774, 0
    %v1820 = vsel %vm166, %v1775, 0
    %v1823 = vsel %vm166, %v1776, 0
    %v1826 = vsel %vm166, %v1777, 0
    %v1829 = vsel %vm166, %v1778, 0
    %v1832 = vsel %vm166, %v1779, 0
    %v1835 = vsel %vm166, %v1780, 0
    %v1838 = vsel %vm166, %v1781, 0
    %v1841 = vsel %vm166, %v1782, 0
    %1843 = vmatpush.msra.mxu0 0.0
    %1844 = vmatpush.msra.mxu0 0.0
    %1845 = vmatpush.msra.mxu0 0.0
    %1846 = vmatpush.msra.mxu0 0.0
    %1847 = vmatpush.msra.mxu0 0.0
    %1848 = vmatpush.msra.mxu0 0.0
    %1849 = vmatpush.msra.mxu0 0.0
    %1850 = vmatpush.msra.mxu0 0.0
    %1851 = vmatpush.msra.mxu0 %v1791
    %1852 = vmatpush.msra.mxu0 %v1790
    %1853 = vmatpush.msra.mxu0 %v1789
    %1854 = vmatpush.msra.mxu0 %v1788
    %1855 = vmatpush.msra.mxu0 %v1787
    %1856 = vmatpush.msra.mxu0 %v1786
    %1857 = vmatpush.msra.mxu0 %v1785
    %1858 = vmatpush.msra.mxu0 %v1784
    %1859 = vmatmul.f32.gmra.mxu0 %v1793
    %v1860 = vpop.f32.mrf.mxu0
    %v1861 = vadd.f32 0.0, %v1860
    %1862 = vmatmul.f32.gmra.mxu0 %v1796
    %v1863 = vpop.f32.mrf.mxu0
    %v1864 = vadd.f32 0.0, %v1863
    %1865 = vmatmul.f32.gmra.mxu0 %v1799
    %v1866 = vpop.f32.mrf.mxu0
    %v1867 = vadd.f32 0.0, %v1866
    %1868 = vmatmul.f32.gmra.mxu0 %v1802
    %v1869 = vpop.f32.mrf.mxu0
    %v1870 = vadd.f32 0.0, %v1869
    %1871 = vmatmul.f32.gmra.mxu0 %v1805
    %v1872 = vpop.f32.mrf.mxu0
    %v1873 = vadd.f32 0.0, %v1872
    %1874 = vmatmul.f32.gmra.mxu0 %v1808
    %v1875 = vpop.f32.mrf.mxu0
    %v1876 = vadd.f32 0.0, %v1875
    %1877 = vmatmul.f32.gmra.mxu0 %v1811
    %v1878 = vpop.f32.mrf.mxu0
    %v1879 = vadd.f32 0.0, %v1878
    %1880 = vmatmul.f32.gmra.mxu0 %v1814
    %v1881 = vpop.f32.mrf.mxu0
    %v1882 = vadd.f32 0.0, %v1881
    %1883 = vmatmul.f32.gmra.mxu0 %v1817
    %v1884 = vpop.f32.mrf.mxu0
    %v1885 = vadd.f32 0.0, %v1884
    %1886 = vmatmul.f32.gmra.mxu0 %v1820
    %v1887 = vpop.f32.mrf.mxu0
    %v1888 = vadd.f32 0.0, %v1887
    %1889 = vmatmul.f32.gmra.mxu0 %v1823
    %v1890 = vpop.f32.mrf.mxu0
    %v1891 = vadd.f32 0.0, %v1890
    %1892 = vmatmul.f32.gmra.mxu0 %v1826
    %v1893 = vpop.f32.mrf.mxu0
    %v1894 = vadd.f32 0.0, %v1893
    %1895 = vmatmul.f32.gmra.mxu0 %v1829
    %v1896 = vpop.f32.mrf.mxu0
    %v1897 = vadd.f32 0.0, %v1896
    %1898 = vmatmul.f32.gmra.mxu0 %v1832
    %v1899 = vpop.f32.mrf.mxu0
    %v1900 = vadd.f32 0.0, %v1899
    %1901 = vmatmul.f32.gmra.mxu0 %v1835
    %v1902 = vpop.f32.mrf.mxu0
    %v1903 = vadd.f32 0.0, %v1902
    %1904 = vmatmul.f32.gmra.mxu0 %v1838
    %v1905 = vpop.f32.mrf.mxu0
    %v1906 = vadd.f32 0.0, %v1905
    %1907 = vmatmul.f32.gmra.mxu0 %v1841
    %v1908 = vpop.f32.mrf.mxu0
    %v1909 = vadd.f32 0.0, %v1908
    %1910 = vdwg.mxu0
    %v1912 = vsel %vm166, %v1741, 0
    %v1915 = vsel %vm166, %v1742, 0
    %v1918 = vsel %vm166, %v1743, 0
    %v1921 = vsel %vm166, %v1744, 0
    %v1924 = vsel %vm166, %v1745, 0
    %v1927 = vsel %vm166, %v1746, 0
    %v1930 = vsel %vm166, %v1747, 0
    %v1933 = vsel %vm166, %v1748, 0
    %v1936 = vsel %vm166, %v1749, 0
    %v1939 = vsel %vm166, %v1750, 0
    %v1942 = vsel %vm166, %v1751, 0
    %v1945 = vsel %vm166, %v1752, 0
    %v1948 = vsel %vm166, %v1753, 0
    %v1951 = vsel %vm166, %v1754, 0
    %v1954 = vsel %vm166, %v1755, 0
    %v1957 = vsel %vm166, %v1756, 0
    %v1960 = vsel %vm166, %v1757, 0
    %1962 = vmatpush.msra.mxu0 0.0
    %1963 = vmatpush.msra.mxu0 0.0
    %1964 = vmatpush.msra.mxu0 0.0
    %1965 = vmatpush.msra.mxu0 0.0
    %1966 = vmatpush.msra.mxu0 0.0
    %1967 = vmatpush.msra.mxu0 0.0
    %1968 = vmatpush.msra.mxu0 0.0
    %1969 = vmatpush.msra.mxu0 0.0
    %1970 = vmatpush.msra.mxu0 %v1765
    %1971 = vmatpush.msra.mxu0 %v1764
    %1972 = vmatpush.msra.mxu0 %v1763
    %1973 = vmatpush.msra.mxu0 %v1762
    %1974 = vmatpush.msra.mxu0 %v1761
    %1975 = vmatpush.msra.mxu0 %v1760
    %1976 = vmatpush.msra.mxu0 %v1759
    %1977 = vmatpush.msra.mxu0 %v1758
    %1978 = vmatmul.f32.gmra.mxu0 %v1912
    %v1979 = vpop.f32.mrf.mxu0
    %v1980 = vadd.f32 %v1861, %v1979
    %1981 = vmatmul.f32.gmra.mxu0 %v1915
    %v1982 = vpop.f32.mrf.mxu0
    %v1983 = vadd.f32 %v1864, %v1982
    %1984 = vmatmul.f32.gmra.mxu0 %v1918
    %v1985 = vpop.f32.mrf.mxu0
    %v1986 = vadd.f32 %v1867, %v1985
    %1987 = vmatmul.f32.gmra.mxu0 %v1921
    %v1988 = vpop.f32.mrf.mxu0
    %v1989 = vadd.f32 %v1870, %v1988
    %1990 = vmatmul.f32.gmra.mxu0 %v1924
    %v1991 = vpop.f32.mrf.mxu0
    %v1992 = vadd.f32 %v1873, %v1991
    %1993 = vmatmul.f32.gmra.mxu0 %v1927
    %v1994 = vpop.f32.mrf.mxu0
    %v1995 = vadd.f32 %v1876, %v1994
    %1996 = vmatmul.f32.gmra.mxu0 %v1930
    %v1997 = vpop.f32.mrf.mxu0
    %v1998 = vadd.f32 %v1879, %v1997
    %1999 = vmatmul.f32.gmra.mxu0 %v1933
    %v2000 = vpop.f32.mrf.mxu0
    %v2001 = vadd.f32 %v1882, %v2000
    %2002 = vmatmul.f32.gmra.mxu0 %v1936
    %v2003 = vpop.f32.mrf.mxu0
    %v2004 = vadd.f32 %v1885, %v2003
    %2005 = vmatmul.f32.gmra.mxu0 %v1939
    %v2006 = vpop.f32.mrf.mxu0
    %v2007 = vadd.f32 %v1888, %v2006
    %2008 = vmatmul.f32.gmra.mxu0 %v1942
    %v2009 = vpop.f32.mrf.mxu0
    %v2010 = vadd.f32 %v1891, %v2009
    %2011 = vmatmul.f32.gmra.mxu0 %v1945
    %v2012 = vpop.f32.mrf.mxu0
    %v2013 = vadd.f32 %v1894, %v2012
    %2014 = vmatmul.f32.gmra.mxu0 %v1948
    %v2015 = vpop.f32.mrf.mxu0
    %v2016 = vadd.f32 %v1897, %v2015
    %2017 = vmatmul.f32.gmra.mxu0 %v1951
    %v2018 = vpop.f32.mrf.mxu0
    %v2019 = vadd.f32 %v1900, %v2018
    %2020 = vmatmul.f32.gmra.mxu0 %v1954
    %v2021 = vpop.f32.mrf.mxu0
    %v2022 = vadd.f32 %v1903, %v2021
    %2023 = vmatmul.f32.gmra.mxu0 %v1957
    %v2024 = vpop.f32.mrf.mxu0
    %v2025 = vadd.f32 %v1906, %v2024
    %2026 = vmatmul.f32.gmra.mxu0 %v1960
    %v2027 = vpop.f32.mrf.mxu0
    %v2028 = vadd.f32 %v1909, %v2027
    %2029 = vdwg.mxu0
    %v2030 = vld [vmem:[#allocation2 + $0x4] sm:$0xff]
    %v2031 = vld [vmem:[#allocation2 + $0xc] sm:$0xff]
    %v2032 = vld [vmem:[#allocation2 + $0x14] sm:$0xff]
    %v2033 = vld [vmem:[#allocation2 + $0x1c] sm:$0xff]
    %v2034 = vld [vmem:[#allocation2 + $0x24] sm:$0xff]
    %v2035 = vld [vmem:[#allocation2 + $0x2c] sm:$0xff]
    %v2036 = vld [vmem:[#allocation2 + $0x34] sm:$0xff]
    %v2037 = vld [vmem:[#allocation2 + $0x3c] sm:$0xff]
    %v2038 = vld [vmem:[#allocation2 + $0x44] sm:$0xff]
    %v2039 = vld [vmem:[#allocation2 + $0x4c] sm:$0xff]
    %v2040 = vld [vmem:[#allocation2 + $0x54] sm:$0xff]
    %v2041 = vld [vmem:[#allocation2 + $0x5c] sm:$0xff]
    %v2042 = vld [vmem:[#allocation2 + $0x64] sm:$0xff]
    %v2043 = vld [vmem:[#allocation2 + $0x6c] sm:$0xff]
    %v2044 = vld [vmem:[#allocation2 + $0x74] sm:$0xff]
    %v2045 = vld [vmem:[#allocation2 + $0x7c] sm:$0xff]
    %v2046 = vld [vmem:[#allocation2 + $0x84] sm:$0xf]
    %s2047 = scalar_lea.vmem [#allocation10], 128
    %v2048 = vld [vmem:[%s2047] sm:$0xff]
    %v2049 = vld [vmem:[%s2047 + $0x8] sm:$0xff]
    %v2050 = vld [vmem:[%s2047 + $0x10] sm:$0xff]
    %v2051 = vld [vmem:[%s2047 + $0x18] sm:$0xff]
    %v2052 = vld [vmem:[%s2047 + $0x20] sm:$0xff]
    %v2053 = vld [vmem:[%s2047 + $0x28] sm:$0xff]
    %v2054 = vld [vmem:[%s2047 + $0x30] sm:$0xff]
    %v2055 = vld [vmem:[%s2047 + $0x38] sm:$0xff]
    %v2057 = vsel %vm166, %v2030, 0
    %v2060 = vsel %vm166, %v2031, 0
    %v2063 = vsel %vm166, %v2032, 0
    %v2066 = vsel %vm166, %v2033, 0
    %v2069 = vsel %vm166, %v2034, 0
    %v2072 = vsel %vm166, %v2035, 0
    %v2075 = vsel %vm166, %v2036, 0
    %v2078 = vsel %vm166, %v2037, 0
    %v2081 = vsel %vm166, %v2038, 0
    %v2084 = vsel %vm166, %v2039, 0
    %v2087 = vsel %vm166, %v2040, 0
    %v2090 = vsel %vm166, %v2041, 0
    %v2093 = vsel %vm166, %v2042, 0
    %v2096 = vsel %vm166, %v2043, 0
    %v2099 = vsel %vm166, %v2044, 0
    %v2102 = vsel %vm166, %v2045, 0
    %v2105 = vsel %vm166, %v2046, 0
    %2107 = vmatpush.msra.mxu0 0.0
    %2108 = vmatpush.msra.mxu0 0.0
    %2109 = vmatpush.msra.mxu0 0.0
    %2110 = vmatpush.msra.mxu0 0.0
    %2111 = vmatpush.msra.mxu0 0.0
    %2112 = vmatpush.msra.mxu0 0.0
    %2113 = vmatpush.msra.mxu0 0.0
    %2114 = vmatpush.msra.mxu0 0.0
    %2115 = vmatpush.msra.mxu0 %v2055
    %2116 = vmatpush.msra.mxu0 %v2054
    %2117 = vmatpush.msra.mxu0 %v2053
    %2118 = vmatpush.msra.mxu0 %v2052
    %2119 = vmatpush.msra.mxu0 %v2051
    %2120 = vmatpush.msra.mxu0 %v2050
    %2121 = vmatpush.msra.mxu0 %v2049
    %2122 = vmatpush.msra.mxu0 %v2048
    %2123 = vmatmul.f32.gmra.mxu0 %v2057
    %v2124 = vpop.f32.mrf.mxu0
    %v2125 = vadd.f32 0.0, %v2124
    %2126 = vmatmul.f32.gmra.mxu0 %v2060
    %v2127 = vpop.f32.mrf.mxu0
    %v2128 = vadd.f32 0.0, %v2127
    %2129 = vmatmul.f32.gmra.mxu0 %v2063
    %v2130 = vpop.f32.mrf.mxu0
    %v2131 = vadd.f32 0.0, %v2130
    %2132 = vmatmul.f32.gmra.mxu0 %v2066
    %v2133 = vpop.f32.mrf.mxu0
    %v2134 = vadd.f32 0.0, %v2133
    %2135 = vmatmul.f32.gmra.mxu0 %v2069
    %v2136 = vpop.f32.mrf.mxu0
    %v2137 = vadd.f32 0.0, %v2136
    %2138 = vmatmul.f32.gmra.mxu0 %v2072
    %v2139 = vpop.f32.mrf.mxu0
    %v2140 = vadd.f32 0.0, %v2139
    %2141 = vmatmul.f32.gmra.mxu0 %v2075
    %v2142 = vpop.f32.mrf.mxu0
    %v2143 = vadd.f32 0.0, %v2142
    %2144 = vmatmul.f32.gmra.mxu0 %v2078
    %v2145 = vpop.f32.mrf.mxu0
    %v2146 = vadd.f32 0.0, %v2145
    %2147 = vmatmul.f32.gmra.mxu0 %v2081
    %v2148 = vpop.f32.mrf.mxu0
    %v2149 = vadd.f32 0.0, %v2148
    %2150 = vmatmul.f32.gmra.mxu0 %v2084
    %v2151 = vpop.f32.mrf.mxu0
    %v2152 = vadd.f32 0.0, %v2151
    %2153 = vmatmul.f32.gmra.mxu0 %v2087
    %v2154 = vpop.f32.mrf.mxu0
    %v2155 = vadd.f32 0.0, %v2154
    %2156 = vmatmul.f32.gmra.mxu0 %v2090
    %v2157 = vpop.f32.mrf.mxu0
    %v2158 = vadd.f32 0.0, %v2157
    %2159 = vmatmul.f32.gmra.mxu0 %v2093
    %v2160 = vpop.f32.mrf.mxu0
    %v2161 = vadd.f32 0.0, %v2160
    %2162 = vmatmul.f32.gmra.mxu0 %v2096
    %v2163 = vpop.f32.mrf.mxu0
    %v2164 = vadd.f32 0.0, %v2163
    %2165 = vmatmul.f32.gmra.mxu0 %v2099
    %v2166 = vpop.f32.mrf.mxu0
    %v2167 = vadd.f32 0.0, %v2166
    %2168 = vmatmul.f32.gmra.mxu0 %v2102
    %v2169 = vpop.f32.mrf.mxu0
    %v2170 = vadd.f32 0.0, %v2169
    %2171 = vmatmul.f32.gmra.mxu0 %v2105
    %v2172 = vpop.f32.mrf.mxu0
    %v2173 = vadd.f32 0.0, %v2172
    %2174 = vdwg.mxu0
    %v2175 = vadd.f32 %v1980, %v2125
    %v2176 = vadd.f32 %v1983, %v2128
    %v2177 = vadd.f32 %v1986, %v2131
    %v2178 = vadd.f32 %v1989, %v2134
    %v2179 = vadd.f32 %v1992, %v2137
    %v2180 = vadd.f32 %v1995, %v2140
    %v2181 = vadd.f32 %v1998, %v2143
    %v2182 = vadd.f32 %v2001, %v2146
    %v2183 = vadd.f32 %v2004, %v2149
    %v2184 = vadd.f32 %v2007, %v2152
    %v2185 = vadd.f32 %v2010, %v2155
    %v2186 = vadd.f32 %v2013, %v2158
    %v2187 = vadd.f32 %v2016, %v2161
    %v2188 = vadd.f32 %v2019, %v2164
    %v2189 = vadd.f32 %v2022, %v2167
    %v2190 = vadd.f32 %v2025, %v2170
    %v2191 = vadd.f32 %v2028, %v2173
    %v2192 = vld [vmem:[#allocation2 + $0x16] sm:$0xff]
    %v2193 = vld [vmem:[#allocation2 + $0x1e] sm:$0xff]
    %v2194 = vld [vmem:[#allocation2 + $0x26] sm:$0xff]
    %v2195 = vld [vmem:[#allocation2 + $0x2e] sm:$0xff]
    %v2196 = vld [vmem:[#allocation2 + $0x36] sm:$0xff]
    %v2197 = vld [vmem:[#allocation2 + $0x3e] sm:$0xff]
    %v2198 = vld [vmem:[#allocation2 + $0x46] sm:$0xff]
    %v2199 = vld [vmem:[#allocation2 + $0x4e] sm:$0xff]
    %v2200 = vld [vmem:[#allocation2 + $0x56] sm:$0xff]
    %v2201 = vld [vmem:[#allocation2 + $0x5e] sm:$0xff]
    %v2202 = vld [vmem:[#allocation2 + $0x66] sm:$0xff]
    %v2203 = vld [vmem:[#allocation2 + $0x6e] sm:$0xff]
    %v2204 = vld [vmem:[#allocation2 + $0x76] sm:$0xff]
    %v2205 = vld [vmem:[#allocation2 + $0x7e] sm:$0xff]
    %v2206 = vld [vmem:[#allocation2 + $0x86] sm:$0xff]
    %v2207 = vld [vmem:[#allocation2 + $0x8e] sm:$0xff]
    %v2208 = vld [vmem:[#allocation2 + $0x96] sm:$0xf]
    %s2209 = scalar_lea.vmem [#allocation10], 192
    %v2210 = vld [vmem:[%s2209] sm:$0xff]
    %v2211 = vld [vmem:[%s2209 + $0x8] sm:$0xff]
    %v2212 = vld [vmem:[%s2209 + $0x10] sm:$0xff]
    %v2213 = vld [vmem:[%s2209 + $0x18] sm:$0xff]
    %v2214 = vld [vmem:[%s2209 + $0x20] sm:$0xff]
    %v2215 = vld [vmem:[%s2209 + $0x28] sm:$0xff]
    %v2216 = vld [vmem:[%s2209 + $0x30] sm:$0xff]
    %v2217 = vld [vmem:[%s2209 + $0x38] sm:$0xff]
    %v2219 = vsel %vm166, %v2192, 0
    %v2222 = vsel %vm166, %v2193, 0
    %v2225 = vsel %vm166, %v2194, 0
    %v2228 = vsel %vm166, %v2195, 0
    %v2231 = vsel %vm166, %v2196, 0
    %v2234 = vsel %vm166, %v2197, 0
    %v2237 = vsel %vm166, %v2198, 0
    %v2240 = vsel %vm166, %v2199, 0
    %v2243 = vsel %vm166, %v2200, 0
    %v2246 = vsel %vm166, %v2201, 0
    %v2249 = vsel %vm166, %v2202, 0
    %v2252 = vsel %vm166, %v2203, 0
    %v2255 = vsel %vm166, %v2204, 0
    %v2258 = vsel %vm166, %v2205, 0
    %v2261 = vsel %vm166, %v2206, 0
    %v2264 = vsel %vm166, %v2207, 0
    %v2267 = vsel %vm166, %v2208, 0
    %2269 = vmatpush.msra.mxu0 0.0
    %2270 = vmatpush.msra.mxu0 0.0
    %2271 = vmatpush.msra.mxu0 0.0
    %2272 = vmatpush.msra.mxu0 0.0
    %2273 = vmatpush.msra.mxu0 0.0
    %2274 = vmatpush.msra.mxu0 0.0
    %2275 = vmatpush.msra.mxu0 0.0
    %2276 = vmatpush.msra.mxu0 0.0
    %2277 = vmatpush.msra.mxu0 %v2217
    %2278 = vmatpush.msra.mxu0 %v2216
    %2279 = vmatpush.msra.mxu0 %v2215
    %2280 = vmatpush.msra.mxu0 %v2214
    %2281 = vmatpush.msra.mxu0 %v2213
    %2282 = vmatpush.msra.mxu0 %v2212
    %2283 = vmatpush.msra.mxu0 %v2211
    %2284 = vmatpush.msra.mxu0 %v2210
    %2285 = vmatmul.f32.gmra.mxu0 %v2219
    %v2286 = vpop.f32.mrf.mxu0
    %v2287 = vadd.f32 0.0, %v2286
    %2288 = vmatmul.f32.gmra.mxu0 %v2222
    %v2289 = vpop.f32.mrf.mxu0
    %v2290 = vadd.f32 0.0, %v2289
    %2291 = vmatmul.f32.gmra.mxu0 %v2225
    %v2292 = vpop.f32.mrf.mxu0
    %v2293 = vadd.f32 0.0, %v2292
    %2294 = vmatmul.f32.gmra.mxu0 %v2228
    %v2295 = vpop.f32.mrf.mxu0
    %v2296 = vadd.f32 0.0, %v2295
    %2297 = vmatmul.f32.gmra.mxu0 %v2231
    %v2298 = vpop.f32.mrf.mxu0
    %v2299 = vadd.f32 0.0, %v2298
    %2300 = vmatmul.f32.gmra.mxu0 %v2234
    %v2301 = vpop.f32.mrf.mxu0
    %v2302 = vadd.f32 0.0, %v2301
    %2303 = vmatmul.f32.gmra.mxu0 %v2237
    %v2304 = vpop.f32.mrf.mxu0
    %v2305 = vadd.f32 0.0, %v2304
    %2306 = vmatmul.f32.gmra.mxu0 %v2240
    %v2307 = vpop.f32.mrf.mxu0
    %v2308 = vadd.f32 0.0, %v2307
    %2309 = vmatmul.f32.gmra.mxu0 %v2243
    %v2310 = vpop.f32.mrf.mxu0
    %v2311 = vadd.f32 0.0, %v2310
    %2312 = vmatmul.f32.gmra.mxu0 %v2246
    %v2313 = vpop.f32.mrf.mxu0
    %v2314 = vadd.f32 0.0, %v2313
    %2315 = vmatmul.f32.gmra.mxu0 %v2249
    %v2316 = vpop.f32.mrf.mxu0
    %v2317 = vadd.f32 0.0, %v2316
    %2318 = vmatmul.f32.gmra.mxu0 %v2252
    %v2319 = vpop.f32.mrf.mxu0
    %v2320 = vadd.f32 0.0, %v2319
    %2321 = vmatmul.f32.gmra.mxu0 %v2255
    %v2322 = vpop.f32.mrf.mxu0
    %v2323 = vadd.f32 0.0, %v2322
    %2324 = vmatmul.f32.gmra.mxu0 %v2258
    %v2325 = vpop.f32.mrf.mxu0
    %v2326 = vadd.f32 0.0, %v2325
    %2327 = vmatmul.f32.gmra.mxu0 %v2261
    %v2328 = vpop.f32.mrf.mxu0
    %v2329 = vadd.f32 0.0, %v2328
    %2330 = vmatmul.f32.gmra.mxu0 %v2264
    %v2331 = vpop.f32.mrf.mxu0
    %v2332 = vadd.f32 0.0, %v2331
    %2333 = vmatmul.f32.gmra.mxu0 %v2267
    %v2334 = vpop.f32.mrf.mxu0
    %v2335 = vadd.f32 0.0, %v2334
    %2336 = vdwg.mxu0
    %v2337 = vadd.f32 %v2175, %v2287
    %v2338 = vadd.f32 %v2176, %v2290
    %v2339 = vadd.f32 %v2177, %v2293
    %v2340 = vadd.f32 %v2178, %v2296
    %v2341 = vadd.f32 %v2179, %v2299
    %v2342 = vadd.f32 %v2180, %v2302
    %v2343 = vadd.f32 %v2181, %v2305
    %v2344 = vadd.f32 %v2182, %v2308
    %v2345 = vadd.f32 %v2183, %v2311
    %v2346 = vadd.f32 %v2184, %v2314
    %v2347 = vadd.f32 %v2185, %v2317
    %v2348 = vadd.f32 %v2186, %v2320
    %v2349 = vadd.f32 %v2187, %v2323
    %v2350 = vadd.f32 %v2188, %v2326
    %v2351 = vadd.f32 %v2189, %v2329
    %v2352 = vadd.f32 %v2190, %v2332
    %v2353 = vadd.f32 %v2191, %v2335
    %v2354 = vld [vmem:[#allocation2 + $0x18] sm:$0xff]
    %v2355 = vld [vmem:[#allocation2 + $0x20] sm:$0xff]
    %v2356 = vld [vmem:[#allocation2 + $0x28] sm:$0xff]
    %v2357 = vld [vmem:[#allocation2 + $0x30] sm:$0xff]
    %v2358 = vld [vmem:[#allocation2 + $0x38] sm:$0xff]
    %v2359 = vld [vmem:[#allocation2 + $0x40] sm:$0xff]
    %v2360 = vld [vmem:[#allocation2 + $0x48] sm:$0xff]
    %v2361 = vld [vmem:[#allocation2 + $0x50] sm:$0xff]
    %v2362 = vld [vmem:[#allocation2 + $0x58] sm:$0xff]
    %v2363 = vld [vmem:[#allocation2 + $0x60] sm:$0xff]
    %v2364 = vld [vmem:[#allocation2 + $0x68] sm:$0xff]
    %v2365 = vld [vmem:[#allocation2 + $0x70] sm:$0xff]
    %v2366 = vld [vmem:[#allocation2 + $0x78] sm:$0xff]
    %v2367 = vld [vmem:[#allocation2 + $0x80] sm:$0xff]
    %v2368 = vld [vmem:[#allocation2 + $0x88] sm:$0xff]
    %v2369 = vld [vmem:[#allocation2 + $0x90] sm:$0xff]
    %v2370 = vld [vmem:[#allocation2 + $0x98] sm:$0xf]
    %s2371 = scalar_lea.vmem [#allocation10], 256
    %v2372 = vld [vmem:[%s2371] sm:$0xff]
    %v2373 = vld [vmem:[%s2371 + $0x8] sm:$0xff]
    %v2374 = vld [vmem:[%s2371 + $0x10] sm:$0xff]
    %v2375 = vld [vmem:[%s2371 + $0x18] sm:$0xff]
    %v2376 = vld [vmem:[%s2371 + $0x20] sm:$0xff]
    %v2377 = vld [vmem:[%s2371 + $0x28] sm:$0xff]
    %v2378 = vld [vmem:[%s2371 + $0x30] sm:$0xff]
    %v2379 = vld [vmem:[%s2371 + $0x38] sm:$0xff]
    %v2381 = vsel %vm166, %v2354, 0
    %v2384 = vsel %vm166, %v2355, 0
    %v2387 = vsel %vm166, %v2356, 0
    %v2390 = vsel %vm166, %v2357, 0
    %v2393 = vsel %vm166, %v2358, 0
    %v2396 = vsel %vm166, %v2359, 0
    %v2399 = vsel %vm166, %v2360, 0
    %v2402 = vsel %vm166, %v2361, 0
    %v2405 = vsel %vm166, %v2362, 0
    %v2408 = vsel %vm166, %v2363, 0
    %v2411 = vsel %vm166, %v2364, 0
    %v2414 = vsel %vm166, %v2365, 0
    %v2417 = vsel %vm166, %v2366, 0
    %v2420 = vsel %vm166, %v2367, 0
    %v2423 = vsel %vm166, %v2368, 0
    %v2426 = vsel %vm166, %v2369, 0
    %v2429 = vsel %vm166, %v2370, 0
    %2431 = vmatpush.msra.mxu0 0.0
    %2432 = vmatpush.msra.mxu0 0.0
    %2433 = vmatpush.msra.mxu0 0.0
    %2434 = vmatpush.msra.mxu0 0.0
    %2435 = vmatpush.msra.mxu0 0.0
    %2436 = vmatpush.msra.mxu0 0.0
    %2437 = vmatpush.msra.mxu0 0.0
    %2438 = vmatpush.msra.mxu0 0.0
    %2439 = vmatpush.msra.mxu0 %v2379
    %2440 = vmatpush.msra.mxu0 %v2378
    %2441 = vmatpush.msra.mxu0 %v2377
    %2442 = vmatpush.msra.mxu0 %v2376
    %2443 = vmatpush.msra.mxu0 %v2375
    %2444 = vmatpush.msra.mxu0 %v2374
    %2445 = vmatpush.msra.mxu0 %v2373
    %2446 = vmatpush.msra.mxu0 %v2372
    %2447 = vmatmul.f32.gmra.mxu0 %v2381
    %v2448 = vpop.f32.mrf.mxu0
    %v2449 = vadd.f32 0.0, %v2448
    %2450 = vmatmul.f32.gmra.mxu0 %v2384
    %v2451 = vpop.f32.mrf.mxu0
    %v2452 = vadd.f32 0.0, %v2451
    %2453 = vmatmul.f32.gmra.mxu0 %v2387
    %v2454 = vpop.f32.mrf.mxu0
    %v2455 = vadd.f32 0.0, %v2454
    %2456 = vmatmul.f32.gmra.mxu0 %v2390
    %v2457 = vpop.f32.mrf.mxu0
    %v2458 = vadd.f32 0.0, %v2457
    %2459 = vmatmul.f32.gmra.mxu0 %v2393
    %v2460 = vpop.f32.mrf.mxu0
    %v2461 = vadd.f32 0.0, %v2460
    %2462 = vmatmul.f32.gmra.mxu0 %v2396
    %v2463 = vpop.f32.mrf.mxu0
    %v2464 = vadd.f32 0.0, %v2463
    %2465 = vmatmul.f32.gmra.mxu0 %v2399
    %v2466 = vpop.f32.mrf.mxu0
    %v2467 = vadd.f32 0.0, %v2466
    %2468 = vmatmul.f32.gmra.mxu0 %v2402
    %v2469 = vpop.f32.mrf.mxu0
    %v2470 = vadd.f32 0.0, %v2469
    %2471 = vmatmul.f32.gmra.mxu0 %v2405
    %v2472 = vpop.f32.mrf.mxu0
    %v2473 = vadd.f32 0.0, %v2472
    %2474 = vmatmul.f32.gmra.mxu0 %v2408
    %v2475 = vpop.f32.mrf.mxu0
    %v2476 = vadd.f32 0.0, %v2475
    %2477 = vmatmul.f32.gmra.mxu0 %v2411
    %v2478 = vpop.f32.mrf.mxu0
    %v2479 = vadd.f32 0.0, %v2478
    %2480 = vmatmul.f32.gmra.mxu0 %v2414
    %v2481 = vpop.f32.mrf.mxu0
    %v2482 = vadd.f32 0.0, %v2481
    %2483 = vmatmul.f32.gmra.mxu0 %v2417
    %v2484 = vpop.f32.mrf.mxu0
    %v2485 = vadd.f32 0.0, %v2484
    %2486 = vmatmul.f32.gmra.mxu0 %v2420
    %v2487 = vpop.f32.mrf.mxu0
    %v2488 = vadd.f32 0.0, %v2487
    %2489 = vmatmul.f32.gmra.mxu0 %v2423
    %v2490 = vpop.f32.mrf.mxu0
    %v2491 = vadd.f32 0.0, %v2490
    %2492 = vmatmul.f32.gmra.mxu0 %v2426
    %v2493 = vpop.f32.mrf.mxu0
    %v2494 = vadd.f32 0.0, %v2493
    %2495 = vmatmul.f32.gmra.mxu0 %v2429
    %v2496 = vpop.f32.mrf.mxu0
    %v2497 = vadd.f32 0.0, %v2496
    %2498 = vdwg.mxu0
    %v2499 = vadd.f32 %v2337, %v2449
    %v2500 = vadd.f32 %v2338, %v2452
    %v2501 = vadd.f32 %v2339, %v2455
    %v2502 = vadd.f32 %v2340, %v2458
    %v2503 = vadd.f32 %v2341, %v2461
    %v2504 = vadd.f32 %v2342, %v2464
    %v2505 = vadd.f32 %v2343, %v2467
    %v2506 = vadd.f32 %v2344, %v2470
    %v2507 = vadd.f32 %v2345, %v2473
    %v2508 = vadd.f32 %v2346, %v2476
    %v2509 = vadd.f32 %v2347, %v2479
    %v2510 = vadd.f32 %v2348, %v2482
    %v2511 = vadd.f32 %v2349, %v2485
    %v2512 = vadd.f32 %v2350, %v2488
    %v2513 = vadd.f32 %v2351, %v2491
    %v2514 = vadd.f32 %v2352, %v2494
    %v2515 = vadd.f32 %v2353, %v2497
    %v2516 = vld [vmem:[#allocation2 + $0x1a] sm:$0xff]
    %v2517 = vld [vmem:[#allocation2 + $0x22] sm:$0xff]
    %v2518 = vld [vmem:[#allocation2 + $0x2a] sm:$0xff]
    %v2519 = vld [vmem:[#allocation2 + $0x32] sm:$0xff]
    %v2520 = vld [vmem:[#allocation2 + $0x3a] sm:$0xff]
    %v2521 = vld [vmem:[#allocation2 + $0x42] sm:$0xff]
    %v2522 = vld [vmem:[#allocation2 + $0x4a] sm:$0xff]
    %v2523 = vld [vmem:[#allocation2 + $0x52] sm:$0xff]
    %v2524 = vld [vmem:[#allocation2 + $0x5a] sm:$0xff]
    %v2525 = vld [vmem:[#allocation2 + $0x62] sm:$0xff]
    %v2526 = vld [vmem:[#allocation2 + $0x6a] sm:$0xff]
    %v2527 = vld [vmem:[#allocation2 + $0x72] sm:$0xff]
    %v2528 = vld [vmem:[#allocation2 + $0x7a] sm:$0xff]
    %v2529 = vld [vmem:[#allocation2 + $0x82] sm:$0xff]
    %v2530 = vld [vmem:[#allocation2 + $0x8a] sm:$0xff]
    %v2531 = vld [vmem:[#allocation2 + $0x92] sm:$0xff]
    %v2532 = vld [vmem:[#allocation2 + $0x9a] sm:$0xf]
    %s2533 = scalar_lea.vmem [#allocation10], 320
    %v2534 = vld [vmem:[%s2533] sm:$0xff]
    %v2535 = vld [vmem:[%s2533 + $0x8] sm:$0xff]
    %v2536 = vld [vmem:[%s2533 + $0x10] sm:$0xff]
    %v2537 = vld [vmem:[%s2533 + $0x18] sm:$0xff]
    %v2538 = vld [vmem:[%s2533 + $0x20] sm:$0xff]
    %v2539 = vld [vmem:[%s2533 + $0x28] sm:$0xff]
    %v2540 = vld [vmem:[%s2533 + $0x30] sm:$0xff]
    %v2541 = vld [vmem:[%s2533 + $0x38] sm:$0xff]
    %v2543 = vsel %vm166, %v2516, 0
    %v2546 = vsel %vm166, %v2517, 0
    %v2549 = vsel %vm166, %v2518, 0
    %v2552 = vsel %vm166, %v2519, 0
    %v2555 = vsel %vm166, %v2520, 0
    %v2558 = vsel %vm166, %v2521, 0
    %v2561 = vsel %vm166, %v2522, 0
    %v2564 = vsel %vm166, %v2523, 0
    %v2567 = vsel %vm166, %v2524, 0
    %v2570 = vsel %vm166, %v2525, 0
    %v2573 = vsel %vm166, %v2526, 0
    %v2576 = vsel %vm166, %v2527, 0
    %v2579 = vsel %vm166, %v2528, 0
    %v2582 = vsel %vm166, %v2529, 0
    %v2585 = vsel %vm166, %v2530, 0
    %v2588 = vsel %vm166, %v2531, 0
    %v2591 = vsel %vm166, %v2532, 0
    %2593 = vmatpush.msra.mxu0 0.0
    %2594 = vmatpush.msra.mxu0 0.0
    %2595 = vmatpush.msra.mxu0 0.0
    %2596 = vmatpush.msra.mxu0 0.0
    %2597 = vmatpush.msra.mxu0 0.0
    %2598 = vmatpush.msra.mxu0 0.0
    %2599 = vmatpush.msra.mxu0 0.0
    %2600 = vmatpush.msra.mxu0 0.0
    %2601 = vmatpush.msra.mxu0 %v2541
    %2602 = vmatpush.msra.mxu0 %v2540
    %2603 = vmatpush.msra.mxu0 %v2539
    %2604 = vmatpush.msra.mxu0 %v2538
    %2605 = vmatpush.msra.mxu0 %v2537
    %2606 = vmatpush.msra.mxu0 %v2536
    %2607 = vmatpush.msra.mxu0 %v2535
    %2608 = vmatpush.msra.mxu0 %v2534
    %2609 = vmatmul.f32.gmra.mxu0 %v2543
    %v2610 = vpop.f32.mrf.mxu0
    %v2611 = vadd.f32 0.0, %v2610
    %2612 = vmatmul.f32.gmra.mxu0 %v2546
    %v2613 = vpop.f32.mrf.mxu0
    %v2614 = vadd.f32 0.0, %v2613
    %2615 = vmatmul.f32.gmra.mxu0 %v2549
    %v2616 = vpop.f32.mrf.mxu0
    %v2617 = vadd.f32 0.0, %v2616
    %2618 = vmatmul.f32.gmra.mxu0 %v2552
    %v2619 = vpop.f32.mrf.mxu0
    %v2620 = vadd.f32 0.0, %v2619
    %2621 = vmatmul.f32.gmra.mxu0 %v2555
    %v2622 = vpop.f32.mrf.mxu0
    %v2623 = vadd.f32 0.0, %v2622
    %2624 = vmatmul.f32.gmra.mxu0 %v2558
    %v2625 = vpop.f32.mrf.mxu0
    %v2626 = vadd.f32 0.0, %v2625
    %2627 = vmatmul.f32.gmra.mxu0 %v2561
    %v2628 = vpop.f32.mrf.mxu0
    %v2629 = vadd.f32 0.0, %v2628
    %2630 = vmatmul.f32.gmra.mxu0 %v2564
    %v2631 = vpop.f32.mrf.mxu0
    %v2632 = vadd.f32 0.0, %v2631
    %2633 = vmatmul.f32.gmra.mxu0 %v2567
    %v2634 = vpop.f32.mrf.mxu0
    %v2635 = vadd.f32 0.0, %v2634
    %2636 = vmatmul.f32.gmra.mxu0 %v2570
    %v2637 = vpop.f32.mrf.mxu0
    %v2638 = vadd.f32 0.0, %v2637
    %2639 = vmatmul.f32.gmra.mxu0 %v2573
    %v2640 = vpop.f32.mrf.mxu0
    %v2641 = vadd.f32 0.0, %v2640
    %2642 = vmatmul.f32.gmra.mxu0 %v2576
    %v2643 = vpop.f32.mrf.mxu0
    %v2644 = vadd.f32 0.0, %v2643
    %2645 = vmatmul.f32.gmra.mxu0 %v2579
    %v2646 = vpop.f32.mrf.mxu0
    %v2647 = vadd.f32 0.0, %v2646
    %2648 = vmatmul.f32.gmra.mxu0 %v2582
    %v2649 = vpop.f32.mrf.mxu0
    %v2650 = vadd.f32 0.0, %v2649
    %2651 = vmatmul.f32.gmra.mxu0 %v2585
    %v2652 = vpop.f32.mrf.mxu0
    %v2653 = vadd.f32 0.0, %v2652
    %2654 = vmatmul.f32.gmra.mxu0 %v2588
    %v2655 = vpop.f32.mrf.mxu0
    %v2656 = vadd.f32 0.0, %v2655
    %2657 = vmatmul.f32.gmra.mxu0 %v2591
    %v2658 = vpop.f32.mrf.mxu0
    %v2659 = vadd.f32 0.0, %v2658
    %2660 = vdwg.mxu0
    %v2661 = vadd.f32 %v2499, %v2611
    %v2662 = vadd.f32 %v2500, %v2614
    %v2663 = vadd.f32 %v2501, %v2617
    %v2664 = vadd.f32 %v2502, %v2620
    %v2665 = vadd.f32 %v2503, %v2623
    %v2666 = vadd.f32 %v2504, %v2626
    %v2667 = vadd.f32 %v2505, %v2629
    %v2668 = vadd.f32 %v2506, %v2632
    %v2669 = vadd.f32 %v2507, %v2635
    %v2670 = vadd.f32 %v2508, %v2638
    %v2671 = vadd.f32 %v2509, %v2641
    %v2672 = vadd.f32 %v2510, %v2644
    %v2673 = vadd.f32 %v2511, %v2647
    %v2674 = vadd.f32 %v2512, %v2650
    %v2675 = vadd.f32 %v2513, %v2653
    %v2676 = vadd.f32 %v2514, %v2656
    %v2677 = vadd.f32 %v2515, %v2659
    %v2678 = vld [vmem:[#allocation2 + $0x2c] sm:$0xff]
    %v2679 = vld [vmem:[#allocation2 + $0x34] sm:$0xff]
    %v2680 = vld [vmem:[#allocation2 + $0x3c] sm:$0xff]
    %v2681 = vld [vmem:[#allocation2 + $0x44] sm:$0xff]
    %v2682 = vld [vmem:[#allocation2 + $0x4c] sm:$0xff]
    %v2683 = vld [vmem:[#allocation2 + $0x54] sm:$0xff]
    %v2684 = vld [vmem:[#allocation2 + $0x5c] sm:$0xff]
    %v2685 = vld [vmem:[#allocation2 + $0x64] sm:$0xff]
    %v2686 = vld [vmem:[#allocation2 + $0x6c] sm:$0xff]
    %v2687 = vld [vmem:[#allocation2 + $0x74] sm:$0xff]
    %v2688 = vld [vmem:[#allocation2 + $0x7c] sm:$0xff]
    %v2689 = vld [vmem:[#allocation2 + $0x84] sm:$0xff]
    %v2690 = vld [vmem:[#allocation2 + $0x8c] sm:$0xff]
    %v2691 = vld [vmem:[#allocation2 + $0x94] sm:$0xff]
    %v2692 = vld [vmem:[#allocation2 + $0x9c] sm:$0xff]
    %v2693 = vld [vmem:[#allocation2 + $0xa4] sm:$0xff]
    %v2694 = vld [vmem:[#allocation2 + $0xac] sm:$0xf]
    %s2695 = scalar_lea.vmem [#allocation10], 384
    %v2696 = vld [vmem:[%s2695] sm:$0xff]
    %v2697 = vld [vmem:[%s2695 + $0x8] sm:$0xff]
    %v2698 = vld [vmem:[%s2695 + $0x10] sm:$0xff]
    %v2699 = vld [vmem:[%s2695 + $0x18] sm:$0xff]
    %v2700 = vld [vmem:[%s2695 + $0x20] sm:$0xff]
    %v2701 = vld [vmem:[%s2695 + $0x28] sm:$0xff]
    %v2702 = vld [vmem:[%s2695 + $0x30] sm:$0xff]
    %v2703 = vld [vmem:[%s2695 + $0x38] sm:$0xff]
    %v2705 = vsel %vm166, %v2678, 0
    %v2708 = vsel %vm166, %v2679, 0
    %v2711 = vsel %vm166, %v2680, 0
    %v2714 = vsel %vm166, %v2681, 0
    %v2717 = vsel %vm166, %v2682, 0
    %v2720 = vsel %vm166, %v2683, 0
    %v2723 = vsel %vm166, %v2684, 0
    %v2726 = vsel %vm166, %v2685, 0
    %v2729 = vsel %vm166, %v2686, 0
    %v2732 = vsel %vm166, %v2687, 0
    %v2735 = vsel %vm166, %v2688, 0
    %v2738 = vsel %vm166, %v2689, 0
    %v2741 = vsel %vm166, %v2690, 0
    %v2744 = vsel %vm166, %v2691, 0
    %v2747 = vsel %vm166, %v2692, 0
    %v2750 = vsel %vm166, %v2693, 0
    %v2753 = vsel %vm166, %v2694, 0
    %2755 = vmatpush.msra.mxu0 0.0
    %2756 = vmatpush.msra.mxu0 0.0
    %2757 = vmatpush.msra.mxu0 0.0
    %2758 = vmatpush.msra.mxu0 0.0
    %2759 = vmatpush.msra.mxu0 0.0
    %2760 = vmatpush.msra.mxu0 0.0
    %2761 = vmatpush.msra.mxu0 0.0
    %2762 = vmatpush.msra.mxu0 0.0
    %2763 = vmatpush.msra.mxu0 %v2703
    %2764 = vmatpush.msra.mxu0 %v2702
    %2765 = vmatpush.msra.mxu0 %v2701
    %2766 = vmatpush.msra.mxu0 %v2700
    %2767 = vmatpush.msra.mxu0 %v2699
    %2768 = vmatpush.msra.mxu0 %v2698
    %2769 = vmatpush.msra.mxu0 %v2697
    %2770 = vmatpush.msra.mxu0 %v2696
    %2771 = vmatmul.f32.gmra.mxu0 %v2705
    %v2772 = vpop.f32.mrf.mxu0
    %v2773 = vadd.f32 0.0, %v2772
    %2774 = vmatmul.f32.gmra.mxu0 %v2708
    %v2775 = vpop.f32.mrf.mxu0
    %v2776 = vadd.f32 0.0, %v2775
    %2777 = vmatmul.f32.gmra.mxu0 %v2711
    %v2778 = vpop.f32.mrf.mxu0
    %v2779 = vadd.f32 0.0, %v2778
    %2780 = vmatmul.f32.gmra.mxu0 %v2714
    %v2781 = vpop.f32.mrf.mxu0
    %v2782 = vadd.f32 0.0, %v2781
    %2783 = vmatmul.f32.gmra.mxu0 %v2717
    %v2784 = vpop.f32.mrf.mxu0
    %v2785 = vadd.f32 0.0, %v2784
    %2786 = vmatmul.f32.gmra.mxu0 %v2720
    %v2787 = vpop.f32.mrf.mxu0
    %v2788 = vadd.f32 0.0, %v2787
    %2789 = vmatmul.f32.gmra.mxu0 %v2723
    %v2790 = vpop.f32.mrf.mxu0
    %v2791 = vadd.f32 0.0, %v2790
    %2792 = vmatmul.f32.gmra.mxu0 %v2726
    %v2793 = vpop.f32.mrf.mxu0
    %v2794 = vadd.f32 0.0, %v2793
    %2795 = vmatmul.f32.gmra.mxu0 %v2729
    %v2796 = vpop.f32.mrf.mxu0
    %v2797 = vadd.f32 0.0, %v2796
    %2798 = vmatmul.f32.gmra.mxu0 %v2732
    %v2799 = vpop.f32.mrf.mxu0
    %v2800 = vadd.f32 0.0, %v2799
    %2801 = vmatmul.f32.gmra.mxu0 %v2735
    %v2802 = vpop.f32.mrf.mxu0
    %v2803 = vadd.f32 0.0, %v2802
    %2804 = vmatmul.f32.gmra.mxu0 %v2738
    %v2805 = vpop.f32.mrf.mxu0
    %v2806 = vadd.f32 0.0, %v2805
    %2807 = vmatmul.f32.gmra.mxu0 %v2741
    %v2808 = vpop.f32.mrf.mxu0
    %v2809 = vadd.f32 0.0, %v2808
    %2810 = vmatmul.f32.gmra.mxu0 %v2744
    %v2811 = vpop.f32.mrf.mxu0
    %v2812 = vadd.f32 0.0, %v2811
    %2813 = vmatmul.f32.gmra.mxu0 %v2747
    %v2814 = vpop.f32.mrf.mxu0
    %v2815 = vadd.f32 0.0, %v2814
    %2816 = vmatmul.f32.gmra.mxu0 %v2750
    %v2817 = vpop.f32.mrf.mxu0
    %v2818 = vadd.f32 0.0, %v2817
    %2819 = vmatmul.f32.gmra.mxu0 %v2753
    %v2820 = vpop.f32.mrf.mxu0
    %v2821 = vadd.f32 0.0, %v2820
    %2822 = vdwg.mxu0
    %v2823 = vadd.f32 %v2661, %v2773
    %v2824 = vadd.f32 %v2662, %v2776
    %v2825 = vadd.f32 %v2663, %v2779
    %v2826 = vadd.f32 %v2664, %v2782
    %v2827 = vadd.f32 %v2665, %v2785
    %v2828 = vadd.f32 %v2666, %v2788
    %v2829 = vadd.f32 %v2667, %v2791
    %v2830 = vadd.f32 %v2668, %v2794
    %v2831 = vadd.f32 %v2669, %v2797
    %v2832 = vadd.f32 %v2670, %v2800
    %v2833 = vadd.f32 %v2671, %v2803
    %v2834 = vadd.f32 %v2672, %v2806
    %v2835 = vadd.f32 %v2673, %v2809
    %v2836 = vadd.f32 %v2674, %v2812
    %v2837 = vadd.f32 %v2675, %v2815
    %v2838 = vadd.f32 %v2676, %v2818
    %v2839 = vadd.f32 %v2677, %v2821
    %v2840 = vld [vmem:[#allocation2 + $0x2e] sm:$0xff]
    %v2841 = vld [vmem:[#allocation2 + $0x36] sm:$0xff]
    %v2842 = vld [vmem:[#allocation2 + $0x3e] sm:$0xff]
    %v2843 = vld [vmem:[#allocation2 + $0x46] sm:$0xff]
    %v2844 = vld [vmem:[#allocation2 + $0x4e] sm:$0xff]
    %v2845 = vld [vmem:[#allocation2 + $0x56] sm:$0xff]
    %v2846 = vld [vmem:[#allocation2 + $0x5e] sm:$0xff]
    %v2847 = vld [vmem:[#allocation2 + $0x66] sm:$0xff]
    %v2848 = vld [vmem:[#allocation2 + $0x6e] sm:$0xff]
    %v2849 = vld [vmem:[#allocation2 + $0x76] sm:$0xff]
    %v2850 = vld [vmem:[#allocation2 + $0x7e] sm:$0xff]
    %v2851 = vld [vmem:[#allocation2 + $0x86] sm:$0xff]
    %v2852 = vld [vmem:[#allocation2 + $0x8e] sm:$0xff]
    %v2853 = vld [vmem:[#allocation2 + $0x96] sm:$0xff]
    %v2854 = vld [vmem:[#allocation2 + $0x9e] sm:$0xff]
    %v2855 = vld [vmem:[#allocation2 + $0xa6] sm:$0xff]
    %v2856 = vld [vmem:[#allocation2 + $0xae] sm:$0xf]
    %s2857 = scalar_lea.vmem [#allocation10], 448
    %v2858 = vld [vmem:[%s2857] sm:$0xff]
    %v2859 = vld [vmem:[%s2857 + $0x8] sm:$0xff]
    %v2860 = vld [vmem:[%s2857 + $0x10] sm:$0xff]
    %v2861 = vld [vmem:[%s2857 + $0x18] sm:$0xff]
    %v2862 = vld [vmem:[%s2857 + $0x20] sm:$0xff]
    %v2863 = vld [vmem:[%s2857 + $0x28] sm:$0xff]
    %v2864 = vld [vmem:[%s2857 + $0x30] sm:$0xff]
    %v2865 = vld [vmem:[%s2857 + $0x38] sm:$0xff]
    %v2867 = vsel %vm166, %v2840, 0
    %v2870 = vsel %vm166, %v2841, 0
    %v2873 = vsel %vm166, %v2842, 0
    %v2876 = vsel %vm166, %v2843, 0
    %v2879 = vsel %vm166, %v2844, 0
    %v2882 = vsel %vm166, %v2845, 0
    %v2885 = vsel %vm166, %v2846, 0
    %v2888 = vsel %vm166, %v2847, 0
    %v2891 = vsel %vm166, %v2848, 0
    %v2894 = vsel %vm166, %v2849, 0
    %v2897 = vsel %vm166, %v2850, 0
    %v2900 = vsel %vm166, %v2851, 0
    %v2903 = vsel %vm166, %v2852, 0
    %v2906 = vsel %vm166, %v2853, 0
    %v2909 = vsel %vm166, %v2854, 0
    %v2912 = vsel %vm166, %v2855, 0
    %v2915 = vsel %vm166, %v2856, 0
    %2917 = vmatpush.msra.mxu0 0.0
    %2918 = vmatpush.msra.mxu0 0.0
    %2919 = vmatpush.msra.mxu0 0.0
    %2920 = vmatpush.msra.mxu0 0.0
    %2921 = vmatpush.msra.mxu0 0.0
    %2922 = vmatpush.msra.mxu0 0.0
    %2923 = vmatpush.msra.mxu0 0.0
    %2924 = vmatpush.msra.mxu0 0.0
    %2925 = vmatpush.msra.mxu0 %v2865
    %2926 = vmatpush.msra.mxu0 %v2864
    %2927 = vmatpush.msra.mxu0 %v2863
    %2928 = vmatpush.msra.mxu0 %v2862
    %2929 = vmatpush.msra.mxu0 %v2861
    %2930 = vmatpush.msra.mxu0 %v2860
    %2931 = vmatpush.msra.mxu0 %v2859
    %2932 = vmatpush.msra.mxu0 %v2858
    %2933 = vmatmul.f32.gmra.mxu0 %v2867
    %v2934 = vpop.f32.mrf.mxu0
    %v2935 = vadd.f32 0.0, %v2934
    %2936 = vmatmul.f32.gmra.mxu0 %v2870
    %v2937 = vpop.f32.mrf.mxu0
    %v2938 = vadd.f32 0.0, %v2937
    %2939 = vmatmul.f32.gmra.mxu0 %v2873
    %v2940 = vpop.f32.mrf.mxu0
    %v2941 = vadd.f32 0.0, %v2940
    %2942 = vmatmul.f32.gmra.mxu0 %v2876
    %v2943 = vpop.f32.mrf.mxu0
    %v2944 = vadd.f32 0.0, %v2943
    %2945 = vmatmul.f32.gmra.mxu0 %v2879
    %v2946 = vpop.f32.mrf.mxu0
    %v2947 = vadd.f32 0.0, %v2946
    %2948 = vmatmul.f32.gmra.mxu0 %v2882
    %v2949 = vpop.f32.mrf.mxu0
    %v2950 = vadd.f32 0.0, %v2949
    %2951 = vmatmul.f32.gmra.mxu0 %v2885
    %v2952 = vpop.f32.mrf.mxu0
    %v2953 = vadd.f32 0.0, %v2952
    %2954 = vmatmul.f32.gmra.mxu0 %v2888
    %v2955 = vpop.f32.mrf.mxu0
    %v2956 = vadd.f32 0.0, %v2955
    %2957 = vmatmul.f32.gmra.mxu0 %v2891
    %v2958 = vpop.f32.mrf.mxu0
    %v2959 = vadd.f32 0.0, %v2958
    %2960 = vmatmul.f32.gmra.mxu0 %v2894
    %v2961 = vpop.f32.mrf.mxu0
    %v2962 = vadd.f32 0.0, %v2961
    %2963 = vmatmul.f32.gmra.mxu0 %v2897
    %v2964 = vpop.f32.mrf.mxu0
    %v2965 = vadd.f32 0.0, %v2964
    %2966 = vmatmul.f32.gmra.mxu0 %v2900
    %v2967 = vpop.f32.mrf.mxu0
    %v2968 = vadd.f32 0.0, %v2967
    %2969 = vmatmul.f32.gmra.mxu0 %v2903
    %v2970 = vpop.f32.mrf.mxu0
    %v2971 = vadd.f32 0.0, %v2970
    %2972 = vmatmul.f32.gmra.mxu0 %v2906
    %v2973 = vpop.f32.mrf.mxu0
    %v2974 = vadd.f32 0.0, %v2973
    %2975 = vmatmul.f32.gmra.mxu0 %v2909
    %v2976 = vpop.f32.mrf.mxu0
    %v2977 = vadd.f32 0.0, %v2976
    %2978 = vmatmul.f32.gmra.mxu0 %v2912
    %v2979 = vpop.f32.mrf.mxu0
    %v2980 = vadd.f32 0.0, %v2979
    %2981 = vmatmul.f32.gmra.mxu0 %v2915
    %v2982 = vpop.f32.mrf.mxu0
    %v2983 = vadd.f32 0.0, %v2982
    %2984 = vdwg.mxu0
    %v2985 = vadd.f32 %v2823, %v2935
    %v2986 = vadd.f32 %v2824, %v2938
    %v2987 = vadd.f32 %v2825, %v2941
    %v2988 = vadd.f32 %v2826, %v2944
    %v2989 = vadd.f32 %v2827, %v2947
    %v2990 = vadd.f32 %v2828, %v2950
    %v2991 = vadd.f32 %v2829, %v2953
    %v2992 = vadd.f32 %v2830, %v2956
    %v2993 = vadd.f32 %v2831, %v2959
    %v2994 = vadd.f32 %v2832, %v2962
    %v2995 = vadd.f32 %v2833, %v2965
    %v2996 = vadd.f32 %v2834, %v2968
    %v2997 = vadd.f32 %v2835, %v2971
    %v2998 = vadd.f32 %v2836, %v2974
    %v2999 = vadd.f32 %v2837, %v2977
    %v3000 = vadd.f32 %v2838, %v2980
    %v3001 = vadd.f32 %v2839, %v2983
    %v3002 = vld [vmem:[#allocation2 + $0x30] sm:$0xff]
    %v3003 = vld [vmem:[#allocation2 + $0x38] sm:$0xff]
    %v3004 = vld [vmem:[#allocation2 + $0x40] sm:$0xff]
    %v3005 = vld [vmem:[#allocation2 + $0x48] sm:$0xff]
    %v3006 = vld [vmem:[#allocation2 + $0x50] sm:$0xff]
    %v3007 = vld [vmem:[#allocation2 + $0x58] sm:$0xff]
    %v3008 = vld [vmem:[#allocation2 + $0x60] sm:$0xff]
    %v3009 = vld [vmem:[#allocation2 + $0x68] sm:$0xff]
    %v3010 = vld [vmem:[#allocation2 + $0x70] sm:$0xff]
    %v3011 = vld [vmem:[#allocation2 + $0x78] sm:$0xff]
    %v3012 = vld [vmem:[#allocation2 + $0x80] sm:$0xff]
    %v3013 = vld [vmem:[#allocation2 + $0x88] sm:$0xff]
    %v3014 = vld [vmem:[#allocation2 + $0x90] sm:$0xff]
    %v3015 = vld [vmem:[#allocation2 + $0x98] sm:$0xff]
    %v3016 = vld [vmem:[#allocation2 + $0xa0] sm:$0xff]
    %v3017 = vld [vmem:[#allocation2 + $0xa8] sm:$0xff]
    %v3018 = vld [vmem:[#allocation2 + $0xb0] sm:$0xf]
    %s3019 = scalar_lea.vmem [#allocation10], 512
    %v3020 = vld [vmem:[%s3019] sm:$0xff]
    %v3021 = vld [vmem:[%s3019 + $0x8] sm:$0xff]
    %v3022 = vld [vmem:[%s3019 + $0x10] sm:$0xff]
    %v3023 = vld [vmem:[%s3019 + $0x18] sm:$0xff]
    %v3024 = vld [vmem:[%s3019 + $0x20] sm:$0xff]
    %v3025 = vld [vmem:[%s3019 + $0x28] sm:$0xff]
    %v3026 = vld [vmem:[%s3019 + $0x30] sm:$0xff]
    %v3027 = vld [vmem:[%s3019 + $0x38] sm:$0xff]
    %v3029 = vsel %vm166, %v3002, 0
    %v3032 = vsel %vm166, %v3003, 0
    %v3035 = vsel %vm166, %v3004, 0
    %v3038 = vsel %vm166, %v3005, 0
    %v3041 = vsel %vm166, %v3006, 0
    %v3044 = vsel %vm166, %v3007, 0
    %v3047 = vsel %vm166, %v3008, 0
    %v3050 = vsel %vm166, %v3009, 0
    %v3053 = vsel %vm166, %v3010, 0
    %v3056 = vsel %vm166, %v3011, 0
    %v3059 = vsel %vm166, %v3012, 0
    %v3062 = vsel %vm166, %v3013, 0
    %v3065 = vsel %vm166, %v3014, 0
    %v3068 = vsel %vm166, %v3015, 0
    %v3071 = vsel %vm166, %v3016, 0
    %v3074 = vsel %vm166, %v3017, 0
    %v3077 = vsel %vm166, %v3018, 0
    %3079 = vmatpush.msra.mxu0 0.0
    %3080 = vmatpush.msra.mxu0 0.0
    %3081 = vmatpush.msra.mxu0 0.0
    %3082 = vmatpush.msra.mxu0 0.0
    %3083 = vmatpush.msra.mxu0 0.0
    %3084 = vmatpush.msra.mxu0 0.0
    %3085 = vmatpush.msra.mxu0 0.0
    %3086 = vmatpush.msra.mxu0 0.0
    %3087 = vmatpush.msra.mxu0 %v3027
    %3088 = vmatpush.msra.mxu0 %v3026
    %3089 = vmatpush.msra.mxu0 %v3025
    %3090 = vmatpush.msra.mxu0 %v3024
    %3091 = vmatpush.msra.mxu0 %v3023
    %3092 = vmatpush.msra.mxu0 %v3022
    %3093 = vmatpush.msra.mxu0 %v3021
    %3094 = vmatpush.msra.mxu0 %v3020
    %3095 = vmatmul.f32.gmra.mxu0 %v3029
    %v3096 = vpop.f32.mrf.mxu0
    %v3097 = vadd.f32 0.0, %v3096
    %3098 = vmatmul.f32.gmra.mxu0 %v3032
    %v3099 = vpop.f32.mrf.mxu0
    %v3100 = vadd.f32 0.0, %v3099
    %3101 = vmatmul.f32.gmra.mxu0 %v3035
    %v3102 = vpop.f32.mrf.mxu0
    %v3103 = vadd.f32 0.0, %v3102
    %3104 = vmatmul.f32.gmra.mxu0 %v3038
    %v3105 = vpop.f32.mrf.mxu0
    %v3106 = vadd.f32 0.0, %v3105
    %3107 = vmatmul.f32.gmra.mxu0 %v3041
    %v3108 = vpop.f32.mrf.mxu0
    %v3109 = vadd.f32 0.0, %v3108
    %3110 = vmatmul.f32.gmra.mxu0 %v3044
    %v3111 = vpop.f32.mrf.mxu0
    %v3112 = vadd.f32 0.0, %v3111
    %3113 = vmatmul.f32.gmra.mxu0 %v3047
    %v3114 = vpop.f32.mrf.mxu0
    %v3115 = vadd.f32 0.0, %v3114
    %3116 = vmatmul.f32.gmra.mxu0 %v3050
    %v3117 = vpop.f32.mrf.mxu0
    %v3118 = vadd.f32 0.0, %v3117
    %3119 = vmatmul.f32.gmra.mxu0 %v3053
    %v3120 = vpop.f32.mrf.mxu0
    %v3121 = vadd.f32 0.0, %v3120
    %3122 = vmatmul.f32.gmra.mxu0 %v3056
    %v3123 = vpop.f32.mrf.mxu0
    %v3124 = vadd.f32 0.0, %v3123
    %3125 = vmatmul.f32.gmra.mxu0 %v3059
    %v3126 = vpop.f32.mrf.mxu0
    %v3127 = vadd.f32 0.0, %v3126
    %3128 = vmatmul.f32.gmra.mxu0 %v3062
    %v3129 = vpop.f32.mrf.mxu0
    %v3130 = vadd.f32 0.0, %v3129
    %3131 = vmatmul.f32.gmra.mxu0 %v3065
    %v3132 = vpop.f32.mrf.mxu0
    %v3133 = vadd.f32 0.0, %v3132
    %3134 = vmatmul.f32.gmra.mxu0 %v3068
    %v3135 = vpop.f32.mrf.mxu0
    %v3136 = vadd.f32 0.0, %v3135
    %3137 = vmatmul.f32.gmra.mxu0 %v3071
    %v3138 = vpop.f32.mrf.mxu0
    %v3139 = vadd.f32 0.0, %v3138
    %3140 = vmatmul.f32.gmra.mxu0 %v3074
    %v3141 = vpop.f32.mrf.mxu0
    %v3142 = vadd.f32 0.0, %v3141
    %3143 = vmatmul.f32.gmra.mxu0 %v3077
    %v3144 = vpop.f32.mrf.mxu0
    %v3145 = vadd.f32 0.0, %v3144
    %3146 = vdwg.mxu0
    %v3147 = vadd.f32 %v2985, %v3097
    %v3148 = vadd.f32 %v2986, %v3100
    %v3149 = vadd.f32 %v2987, %v3103
    %v3150 = vadd.f32 %v2988, %v3106
    %v3151 = vadd.f32 %v2989, %v3109
    %v3152 = vadd.f32 %v2990, %v3112
    %v3153 = vadd.f32 %v2991, %v3115
    %v3154 = vadd.f32 %v2992, %v3118
    %v3155 = vadd.f32 %v2993, %v3121
    %v3156 = vadd.f32 %v2994, %v3124
    %v3157 = vadd.f32 %v2995, %v3127
    %v3158 = vadd.f32 %v2996, %v3130
    %v3159 = vadd.f32 %v2997, %v3133
    %v3160 = vadd.f32 %v2998, %v3136
    %v3161 = vadd.f32 %v2999, %v3139
    %v3162 = vadd.f32 %v3000, %v3142
    %v3163 = vadd.f32 %v3001, %v3145
    %v3164 = vmax.f32 %v3147, 0.0
    %v3165 = vmax.f32 %v3148, 0.0
    %v3166 = vmax.f32 %v3149, 0.0
    %v3167 = vmax.f32 %v3150, 0.0
    %v3168 = vmax.f32 %v3151, 0.0
    %v3169 = vmax.f32 %v3152, 0.0
    %v3170 = vmax.f32 %v3153, 0.0
    %v3171 = vmax.f32 %v3154, 0.0
    %v3172 = vmax.f32 %v3155, 0.0
    %v3173 = vmax.f32 %v3156, 0.0
    %v3174 = vmax.f32 %v3157, 0.0
    %v3175 = vmax.f32 %v3158, 0.0
    %v3176 = vmax.f32 %v3159, 0.0
    %v3177 = vmax.f32 %v3160, 0.0
    %v3178 = vmax.f32 %v3161, 0.0
    %v3179 = vmax.f32 %v3162, 0.0
    %v3180 = vmax.f32 %v3163, 0.0
    %v3181 = vmul.f32 %v3164, %v1625
    %v3182 = vmul.f32 %v3165, %v1630
    %v3183 = vmul.f32 %v3166, %v1635
    %v3184 = vmul.f32 %v3167, %v1640
    %v3185 = vmul.f32 %v3168, %v1645
    %v3186 = vmul.f32 %v3169, %v1650
    %v3187 = vmul.f32 %v3170, %v1655
    %v3188 = vmul.f32 %v3171, %v1660
    %v3189 = vmul.f32 %v3172, %v1665
    %v3190 = vmul.f32 %v3173, %v1670
    %v3191 = vmul.f32 %v3174, %v1675
    %v3192 = vmul.f32 %v3175, %v1680
    %v3193 = vmul.f32 %v3176, %v1685
    %v3194 = vmul.f32 %v3177, %v1690
    %v3195 = vmul.f32 %v3178, %v1695
    %v3196 = vmul.f32 %v3179, %v1700
    %v3197 = vmul.f32 %v3180, %v1705
    %3198 = vst.msk [vmem:[#allocation2 + $0x18] sm:$0xff] %vm166, %v3181
    %3199 = vst.msk [vmem:[#allocation2 + $0x20] sm:$0xff] %vm166, %v3182
    %3200 = vst.msk [vmem:[#allocation2 + $0x28] sm:$0xff] %vm166, %v3183
    %3201 = vst.msk [vmem:[#allocation2 + $0x30] sm:$0xff] %vm166, %v3184
    %3202 = vst.msk [vmem:[#allocation2 + $0x38] sm:$0xff] %vm166, %v3185
    %3203 = vst.msk [vmem:[#allocation2 + $0x40] sm:$0xff] %vm166, %v3186
    %3204 = vst.msk [vmem:[#allocation2 + $0x48] sm:$0xff] %vm166, %v3187
    %3205 = vst.msk [vmem:[#allocation2 + $0x50] sm:$0xff] %vm166, %v3188
    %3206 = vst.msk [vmem:[#allocation2 + $0x58] sm:$0xff] %vm166, %v3189
    %3207 = vst.msk [vmem:[#allocation2 + $0x60] sm:$0xff] %vm166, %v3190
    %3208 = vst.msk [vmem:[#allocation2 + $0x68] sm:$0xff] %vm166, %v3191
    %3209 = vst.msk [vmem:[#allocation2 + $0x70] sm:$0xff] %vm166, %v3192
    %3210 = vst.msk [vmem:[#allocation2 + $0x78] sm:$0xff] %vm166, %v3193
    %3211 = vst.msk [vmem:[#allocation2 + $0x80] sm:$0xff] %vm166, %v3194
    %3212 = vst.msk [vmem:[#allocation2 + $0x88] sm:$0xff] %vm166, %v3195
    %3213 = vst.msk [vmem:[#allocation2 + $0x90] sm:$0xff] %vm166, %v3196
    %3214 = vst.msk [vmem:[#allocation2 + $0x98] sm:$0xf] %vm189, %v3197
    %v3215 = vld [vmem:[#allocation2] sm:$0xff]
    %v3216 = vld [vmem:[#allocation2 + $0x8] sm:$0xff]
    %v3217 = vld [vmem:[#allocation2 + $0x10] sm:$0xff]
    %v3218 = vld [vmem:[#allocation2 + $0x18] sm:$0xff]
    %v3219 = vld [vmem:[#allocation2 + $0x20] sm:$0xff]
    %v3220 = vld [vmem:[#allocation2 + $0x28] sm:$0xff]
    %v3221 = vld [vmem:[#allocation2 + $0x30] sm:$0xff]
    %v3222 = vld [vmem:[#allocation2 + $0x38] sm:$0xff]
    %v3223 = vld [vmem:[#allocation2 + $0x40] sm:$0xff]
    %v3224 = vld [vmem:[#allocation2 + $0x48] sm:$0xff]
    %v3225 = vld [vmem:[#allocation2 + $0x50] sm:$0xff]
    %v3226 = vld [vmem:[#allocation2 + $0x58] sm:$0xff]
    %v3227 = vld [vmem:[#allocation2 + $0x60] sm:$0xff]
    %v3228 = vld [vmem:[#allocation2 + $0x68] sm:$0xff]
    %v3229 = vld [vmem:[#allocation2 + $0x70] sm:$0xff]
    %v3230 = vld [vmem:[#allocation2 + $0x78] sm:$0xff]
    %v3231 = vld [vmem:[#allocation2 + $0x80] sm:$0xf]
    %v3232 = vld [vmem:[%s5] sm:$0xff]
    %v3233 = vld [vmem:[%s5 + $0x8] sm:$0xff]
    %v3234 = vld [vmem:[%s5 + $0x10] sm:$0xff]
    %v3235 = vld [vmem:[%s5 + $0x18] sm:$0xff]
    %v3236 = vld [vmem:[%s5 + $0x20] sm:$0xff]
    %v3237 = vld [vmem:[%s5 + $0x28] sm:$0xff]
    %v3238 = vld [vmem:[%s5 + $0x30] sm:$0xff]
    %v3239 = vld [vmem:[%s5 + $0x38] sm:$0xff]
    %v3240 = vld [vmem:[#allocation2 + $0x2] sm:$0xff]
    %v3241 = vld [vmem:[#allocation2 + $0xa] sm:$0xff]
    %v3242 = vld [vmem:[#allocation2 + $0x12] sm:$0xff]
    %v3243 = vld [vmem:[#allocation2 + $0x1a] sm:$0xff]
    %v3244 = vld [vmem:[#allocation2 + $0x22] sm:$0xff]
    %v3245 = vld [vmem:[#allocation2 + $0x2a] sm:$0xff]
    %v3246 = vld [vmem:[#allocation2 + $0x32] sm:$0xff]
    %v3247 = vld [vmem:[#allocation2 + $0x3a] sm:$0xff]
    %v3248 = vld [vmem:[#allocation2 + $0x42] sm:$0xff]
    %v3249 = vld [vmem:[#allocation2 + $0x4a] sm:$0xff]
    %v3250 = vld [vmem:[#allocation2 + $0x52] sm:$0xff]
    %v3251 = vld [vmem:[#allocation2 + $0x5a] sm:$0xff]
    %v3252 = vld [vmem:[#allocation2 + $0x62] sm:$0xff]
    %v3253 = vld [vmem:[#allocation2 + $0x6a] sm:$0xff]
    %v3254 = vld [vmem:[#allocation2 + $0x72] sm:$0xff]
    %v3255 = vld [vmem:[#allocation2 + $0x7a] sm:$0xff]
    %v3256 = vld [vmem:[#allocation2 + $0x82] sm:$0xf]
    %s3257 = scalar_lea.vmem %s5, 64
    %v3258 = vld [vmem:[%s3257] sm:$0xff]
    %v3259 = vld [vmem:[%s3257 + $0x8] sm:$0xff]
    %v3260 = vld [vmem:[%s3257 + $0x10] sm:$0xff]
    %v3261 = vld [vmem:[%s3257 + $0x18] sm:$0xff]
    %v3262 = vld [vmem:[%s3257 + $0x20] sm:$0xff]
    %v3263 = vld [vmem:[%s3257 + $0x28] sm:$0xff]
    %v3264 = vld [vmem:[%s3257 + $0x30] sm:$0xff]
    %v3265 = vld [vmem:[%s3257 + $0x38] sm:$0xff]
    %v3267 = vsel %vm166, %v3240, 0
    %v3270 = vsel %vm166, %v3241, 0
    %v3273 = vsel %vm166, %v3242, 0
    %v3276 = vsel %vm166, %v3243, 0
    %v3279 = vsel %vm166, %v3244, 0
    %v3282 = vsel %vm166, %v3245, 0
    %v3285 = vsel %vm166, %v3246, 0
    %v3288 = vsel %vm166, %v3247, 0
    %v3291 = vsel %vm166, %v3248, 0
    %v3294 = vsel %vm166, %v3249, 0
    %v3297 = vsel %vm166, %v3250, 0
    %v3300 = vsel %vm166, %v3251, 0
    %v3303 = vsel %vm166, %v3252, 0
    %v3306 = vsel %vm166, %v3253, 0
    %v3309 = vsel %vm166, %v3254, 0
    %v3312 = vsel %vm166, %v3255, 0
    %v3315 = vsel %vm166, %v3256, 0
    %3317 = vmatpush.msra.mxu0 0.0
    %3318 = vmatpush.msra.mxu0 0.0
    %3319 = vmatpush.msra.mxu0 0.0
    %3320 = vmatpush.msra.mxu0 0.0
    %3321 = vmatpush.msra.mxu0 0.0
    %3322 = vmatpush.msra.mxu0 0.0
    %3323 = vmatpush.msra.mxu0 0.0
    %3324 = vmatpush.msra.mxu0 0.0
    %3325 = vmatpush.msra.mxu0 %v3265
    %3326 = vmatpush.msra.mxu0 %v3264
    %3327 = vmatpush.msra.mxu0 %v3263
    %3328 = vmatpush.msra.mxu0 %v3262
    %3329 = vmatpush.msra.mxu0 %v3261
    %3330 = vmatpush.msra.mxu0 %v3260
    %3331 = vmatpush.msra.mxu0 %v3259
    %3332 = vmatpush.msra.mxu0 %v3258
    %3333 = vmatmul.f32.gmra.mxu0 %v3267
    %v3334 = vpop.f32.mrf.mxu0
    %v3335 = vadd.f32 0.0, %v3334
    %3336 = vmatmul.f32.gmra.mxu0 %v3270
    %v3337 = vpop.f32.mrf.mxu0
    %v3338 = vadd.f32 0.0, %v3337
    %3339 = vmatmul.f32.gmra.mxu0 %v3273
    %v3340 = vpop.f32.mrf.mxu0
    %v3341 = vadd.f32 0.0, %v3340
    %3342 = vmatmul.f32.gmra.mxu0 %v3276
    %v3343 = vpop.f32.mrf.mxu0
    %v3344 = vadd.f32 0.0, %v3343
    %3345 = vmatmul.f32.gmra.mxu0 %v3279
    %v3346 = vpop.f32.mrf.mxu0
    %v3347 = vadd.f32 0.0, %v3346
    %3348 = vmatmul.f32.gmra.mxu0 %v3282
    %v3349 = vpop.f32.mrf.mxu0
    %v3350 = vadd.f32 0.0, %v3349
    %3351 = vmatmul.f32.gmra.mxu0 %v3285
    %v3352 = vpop.f32.mrf.mxu0
    %v3353 = vadd.f32 0.0, %v3352
    %3354 = vmatmul.f32.gmra.mxu0 %v3288
    %v3355 = vpop.f32.mrf.mxu0
    %v3356 = vadd.f32 0.0, %v3355
    %3357 = vmatmul.f32.gmra.mxu0 %v3291
    %v3358 = vpop.f32.mrf.mxu0
    %v3359 = vadd.f32 0.0, %v3358
    %3360 = vmatmul.f32.gmra.mxu0 %v3294
    %v3361 = vpop.f32.mrf.mxu0
    %v3362 = vadd.f32 0.0, %v3361
    %3363 = vmatmul.f32.gmra.mxu0 %v3297
    %v3364 = vpop.f32.mrf.mxu0
    %v3365 = vadd.f32 0.0, %v3364
    %3366 = vmatmul.f32.gmra.mxu0 %v3300
    %v3367 = vpop.f32.mrf.mxu0
    %v3368 = vadd.f32 0.0, %v3367
    %3369 = vmatmul.f32.gmra.mxu0 %v3303
    %v3370 = vpop.f32.mrf.mxu0
    %v3371 = vadd.f32 0.0, %v3370
    %3372 = vmatmul.f32.gmra.mxu0 %v3306
    %v3373 = vpop.f32.mrf.mxu0
    %v3374 = vadd.f32 0.0, %v3373
    %3375 = vmatmul.f32.gmra.mxu0 %v3309
    %v3376 = vpop.f32.mrf.mxu0
    %v3377 = vadd.f32 0.0, %v3376
    %3378 = vmatmul.f32.gmra.mxu0 %v3312
    %v3379 = vpop.f32.mrf.mxu0
    %v3380 = vadd.f32 0.0, %v3379
    %3381 = vmatmul.f32.gmra.mxu0 %v3315
    %v3382 = vpop.f32.mrf.mxu0
    %v3383 = vadd.f32 0.0, %v3382
    %3384 = vdwg.mxu0
    %v3386 = vsel %vm166, %v3215, 0
    %v3389 = vsel %vm166, %v3216, 0
    %v3392 = vsel %vm166, %v3217, 0
    %v3395 = vsel %vm166, %v3218, 0
    %v3398 = vsel %vm166, %v3219, 0
    %v3401 = vsel %vm166, %v3220, 0
    %v3404 = vsel %vm166, %v3221, 0
    %v3407 = vsel %vm166, %v3222, 0
    %v3410 = vsel %vm166, %v3223, 0
    %v3413 = vsel %vm166, %v3224, 0
    %v3416 = vsel %vm166, %v3225, 0
    %v3419 = vsel %vm166, %v3226, 0
    %v3422 = vsel %vm166, %v3227, 0
    %v3425 = vsel %vm166, %v3228, 0
    %v3428 = vsel %vm166, %v3229, 0
    %v3431 = vsel %vm166, %v3230, 0
    %v3434 = vsel %vm166, %v3231, 0
    %3436 = vmatpush.msra.mxu0 0.0
    %3437 = vmatpush.msra.mxu0 0.0
    %3438 = vmatpush.msra.mxu0 0.0
    %3439 = vmatpush.msra.mxu0 0.0
    %3440 = vmatpush.msra.mxu0 0.0
    %3441 = vmatpush.msra.mxu0 0.0
    %3442 = vmatpush.msra.mxu0 0.0
    %3443 = vmatpush.msra.mxu0 0.0
    %3444 = vmatpush.msra.mxu0 %v3239
    %3445 = vmatpush.msra.mxu0 %v3238
    %3446 = vmatpush.msra.mxu0 %v3237
    %3447 = vmatpush.msra.mxu0 %v3236
    %3448 = vmatpush.msra.mxu0 %v3235
    %3449 = vmatpush.msra.mxu0 %v3234
    %3450 = vmatpush.msra.mxu0 %v3233
    %3451 = vmatpush.msra.mxu0 %v3232
    %3452 = vmatmul.f32.gmra.mxu0 %v3386
    %v3453 = vpop.f32.mrf.mxu0
    %v3454 = vadd.f32 %v3335, %v3453
    %3455 = vmatmul.f32.gmra.mxu0 %v3389
    %v3456 = vpop.f32.mrf.mxu0
    %v3457 = vadd.f32 %v3338, %v3456
    %3458 = vmatmul.f32.gmra.mxu0 %v3392
    %v3459 = vpop.f32.mrf.mxu0
    %v3460 = vadd.f32 %v3341, %v3459
    %3461 = vmatmul.f32.gmra.mxu0 %v3395
    %v3462 = vpop.f32.mrf.mxu0
    %v3463 = vadd.f32 %v3344, %v3462
    %3464 = vmatmul.f32.gmra.mxu0 %v3398
    %v3465 = vpop.f32.mrf.mxu0
    %v3466 = vadd.f32 %v3347, %v3465
    %3467 = vmatmul.f32.gmra.mxu0 %v3401
    %v3468 = vpop.f32.mrf.mxu0
    %v3469 = vadd.f32 %v3350, %v3468
    %3470 = vmatmul.f32.gmra.mxu0 %v3404
    %v3471 = vpop.f32.mrf.mxu0
    %v3472 = vadd.f32 %v3353, %v3471
    %3473 = vmatmul.f32.gmra.mxu0 %v3407
    %v3474 = vpop.f32.mrf.mxu0
    %v3475 = vadd.f32 %v3356, %v3474
    %3476 = vmatmul.f32.gmra.mxu0 %v3410
    %v3477 = vpop.f32.mrf.mxu0
    %v3478 = vadd.f32 %v3359, %v3477
    %3479 = vmatmul.f32.gmra.mxu0 %v3413
    %v3480 = vpop.f32.mrf.mxu0
    %v3481 = vadd.f32 %v3362, %v3480
    %3482 = vmatmul.f32.gmra.mxu0 %v3416
    %v3483 = vpop.f32.mrf.mxu0
    %v3484 = vadd.f32 %v3365, %v3483
    %3485 = vmatmul.f32.gmra.mxu0 %v3419
    %v3486 = vpop.f32.mrf.mxu0
    %v3487 = vadd.f32 %v3368, %v3486
    %3488 = vmatmul.f32.gmra.mxu0 %v3422
    %v3489 = vpop.f32.mrf.mxu0
    %v3490 = vadd.f32 %v3371, %v3489
    %3491 = vmatmul.f32.gmra.mxu0 %v3425
    %v3492 = vpop.f32.mrf.mxu0
    %v3493 = vadd.f32 %v3374, %v3492
    %3494 = vmatmul.f32.gmra.mxu0 %v3428
    %v3495 = vpop.f32.mrf.mxu0
    %v3496 = vadd.f32 %v3377, %v3495
    %3497 = vmatmul.f32.gmra.mxu0 %v3431
    %v3498 = vpop.f32.mrf.mxu0
    %v3499 = vadd.f32 %v3380, %v3498
    %3500 = vmatmul.f32.gmra.mxu0 %v3434
    %v3501 = vpop.f32.mrf.mxu0
    %v3502 = vadd.f32 %v3383, %v3501
    %3503 = vdwg.mxu0
    %v3504 = vld [vmem:[#allocation2 + $0x4] sm:$0xff]
    %v3505 = vld [vmem:[#allocation2 + $0xc] sm:$0xff]
    %v3506 = vld [vmem:[#allocation2 + $0x14] sm:$0xff]
    %v3507 = vld [vmem:[#allocation2 + $0x1c] sm:$0xff]
    %v3508 = vld [vmem:[#allocation2 + $0x24] sm:$0xff]
    %v3509 = vld [vmem:[#allocation2 + $0x2c] sm:$0xff]
    %v3510 = vld [vmem:[#allocation2 + $0x34] sm:$0xff]
    %v3511 = vld [vmem:[#allocation2 + $0x3c] sm:$0xff]
    %v3512 = vld [vmem:[#allocation2 + $0x44] sm:$0xff]
    %v3513 = vld [vmem:[#allocation2 + $0x4c] sm:$0xff]
    %v3514 = vld [vmem:[#allocation2 + $0x54] sm:$0xff]
    %v3515 = vld [vmem:[#allocation2 + $0x5c] sm:$0xff]
    %v3516 = vld [vmem:[#allocation2 + $0x64] sm:$0xff]
    %v3517 = vld [vmem:[#allocation2 + $0x6c] sm:$0xff]
    %v3518 = vld [vmem:[#allocation2 + $0x74] sm:$0xff]
    %v3519 = vld [vmem:[#allocation2 + $0x7c] sm:$0xff]
    %v3520 = vld [vmem:[#allocation2 + $0x84] sm:$0xf]
    %s3521 = scalar_lea.vmem %s5, 128
    %v3522 = vld [vmem:[%s3521] sm:$0xff]
    %v3523 = vld [vmem:[%s3521 + $0x8] sm:$0xff]
    %v3524 = vld [vmem:[%s3521 + $0x10] sm:$0xff]
    %v3525 = vld [vmem:[%s3521 + $0x18] sm:$0xff]
    %v3526 = vld [vmem:[%s3521 + $0x20] sm:$0xff]
    %v3527 = vld [vmem:[%s3521 + $0x28] sm:$0xff]
    %v3528 = vld [vmem:[%s3521 + $0x30] sm:$0xff]
    %v3529 = vld [vmem:[%s3521 + $0x38] sm:$0xff]
    %v3531 = vsel %vm166, %v3504, 0
    %v3534 = vsel %vm166, %v3505, 0
    %v3537 = vsel %vm166, %v3506, 0
    %v3540 = vsel %vm166, %v3507, 0
    %v3543 = vsel %vm166, %v3508, 0
    %v3546 = vsel %vm166, %v3509, 0
    %v3549 = vsel %vm166, %v3510, 0
    %v3552 = vsel %vm166, %v3511, 0
    %v3555 = vsel %vm166, %v3512, 0
    %v3558 = vsel %vm166, %v3513, 0
    %v3561 = vsel %vm166, %v3514, 0
    %v3564 = vsel %vm166, %v3515, 0
    %v3567 = vsel %vm166, %v3516, 0
    %v3570 = vsel %vm166, %v3517, 0
    %v3573 = vsel %vm166, %v3518, 0
    %v3576 = vsel %vm166, %v3519, 0
    %v3579 = vsel %vm166, %v3520, 0
    %3581 = vmatpush.msra.mxu0 0.0
    %3582 = vmatpush.msra.mxu0 0.0
    %3583 = vmatpush.msra.mxu0 0.0
    %3584 = vmatpush.msra.mxu0 0.0
    %3585 = vmatpush.msra.mxu0 0.0
    %3586 = vmatpush.msra.mxu0 0.0
    %3587 = vmatpush.msra.mxu0 0.0
    %3588 = vmatpush.msra.mxu0 0.0
    %3589 = vmatpush.msra.mxu0 %v3529
    %3590 = vmatpush.msra.mxu0 %v3528
    %3591 = vmatpush.msra.mxu0 %v3527
    %3592 = vmatpush.msra.mxu0 %v3526
    %3593 = vmatpush.msra.mxu0 %v3525
    %3594 = vmatpush.msra.mxu0 %v3524
    %3595 = vmatpush.msra.mxu0 %v3523
    %3596 = vmatpush.msra.mxu0 %v3522
    %3597 = vmatmul.f32.gmra.mxu0 %v3531
    %v3598 = vpop.f32.mrf.mxu0
    %v3599 = vadd.f32 0.0, %v3598
    %3600 = vmatmul.f32.gmra.mxu0 %v3534
    %v3601 = vpop.f32.mrf.mxu0
    %v3602 = vadd.f32 0.0, %v3601
    %3603 = vmatmul.f32.gmra.mxu0 %v3537
    %v3604 = vpop.f32.mrf.mxu0
    %v3605 = vadd.f32 0.0, %v3604
    %3606 = vmatmul.f32.gmra.mxu0 %v3540
    %v3607 = vpop.f32.mrf.mxu0
    %v3608 = vadd.f32 0.0, %v3607
    %3609 = vmatmul.f32.gmra.mxu0 %v3543
    %v3610 = vpop.f32.mrf.mxu0
    %v3611 = vadd.f32 0.0, %v3610
    %3612 = vmatmul.f32.gmra.mxu0 %v3546
    %v3613 = vpop.f32.mrf.mxu0
    %v3614 = vadd.f32 0.0, %v3613
    %3615 = vmatmul.f32.gmra.mxu0 %v3549
    %v3616 = vpop.f32.mrf.mxu0
    %v3617 = vadd.f32 0.0, %v3616
    %3618 = vmatmul.f32.gmra.mxu0 %v3552
    %v3619 = vpop.f32.mrf.mxu0
    %v3620 = vadd.f32 0.0, %v3619
    %3621 = vmatmul.f32.gmra.mxu0 %v3555
    %v3622 = vpop.f32.mrf.mxu0
    %v3623 = vadd.f32 0.0, %v3622
    %3624 = vmatmul.f32.gmra.mxu0 %v3558
    %v3625 = vpop.f32.mrf.mxu0
    %v3626 = vadd.f32 0.0, %v3625
    %3627 = vmatmul.f32.gmra.mxu0 %v3561
    %v3628 = vpop.f32.mrf.mxu0
    %v3629 = vadd.f32 0.0, %v3628
    %3630 = vmatmul.f32.gmra.mxu0 %v3564
    %v3631 = vpop.f32.mrf.mxu0
    %v3632 = vadd.f32 0.0, %v3631
    %3633 = vmatmul.f32.gmra.mxu0 %v3567
    %v3634 = vpop.f32.mrf.mxu0
    %v3635 = vadd.f32 0.0, %v3634
    %3636 = vmatmul.f32.gmra.mxu0 %v3570
    %v3637 = vpop.f32.mrf.mxu0
    %v3638 = vadd.f32 0.0, %v3637
    %3639 = vmatmul.f32.gmra.mxu0 %v3573
    %v3640 = vpop.f32.mrf.mxu0
    %v3641 = vadd.f32 0.0, %v3640
    %3642 = vmatmul.f32.gmra.mxu0 %v3576
    %v3643 = vpop.f32.mrf.mxu0
    %v3644 = vadd.f32 0.0, %v3643
    %3645 = vmatmul.f32.gmra.mxu0 %v3579
    %v3646 = vpop.f32.mrf.mxu0
    %v3647 = vadd.f32 0.0, %v3646
    %3648 = vdwg.mxu0
    %v3649 = vadd.f32 %v3454, %v3599
    %v3650 = vadd.f32 %v3457, %v3602
    %v3651 = vadd.f32 %v3460, %v3605
    %v3652 = vadd.f32 %v3463, %v3608
    %v3653 = vadd.f32 %v3466, %v3611
    %v3654 = vadd.f32 %v3469, %v3614
    %v3655 = vadd.f32 %v3472, %v3617
    %v3656 = vadd.f32 %v3475, %v3620
    %v3657 = vadd.f32 %v3478, %v3623
    %v3658 = vadd.f32 %v3481, %v3626
    %v3659 = vadd.f32 %v3484, %v3629
    %v3660 = vadd.f32 %v3487, %v3632
    %v3661 = vadd.f32 %v3490, %v3635
    %v3662 = vadd.f32 %v3493, %v3638
    %v3663 = vadd.f32 %v3496, %v3641
    %v3664 = vadd.f32 %v3499, %v3644
    %v3665 = vadd.f32 %v3502, %v3647
    %v3666 = vld [vmem:[#allocation2 + $0x16] sm:$0xff]
    %v3667 = vld [vmem:[#allocation2 + $0x1e] sm:$0xff]
    %v3668 = vld [vmem:[#allocation2 + $0x26] sm:$0xff]
    %v3669 = vld [vmem:[#allocation2 + $0x2e] sm:$0xff]
    %v3670 = vld [vmem:[#allocation2 + $0x36] sm:$0xff]
    %v3671 = vld [vmem:[#allocation2 + $0x3e] sm:$0xff]
    %v3672 = vld [vmem:[#allocation2 + $0x46] sm:$0xff]
    %v3673 = vld [vmem:[#allocation2 + $0x4e] sm:$0xff]
    %v3674 = vld [vmem:[#allocation2 + $0x56] sm:$0xff]
    %v3675 = vld [vmem:[#allocation2 + $0x5e] sm:$0xff]
    %v3676 = vld [vmem:[#allocation2 + $0x66] sm:$0xff]
    %v3677 = vld [vmem:[#allocation2 + $0x6e] sm:$0xff]
    %v3678 = vld [vmem:[#allocation2 + $0x76] sm:$0xff]
    %v3679 = vld [vmem:[#allocation2 + $0x7e] sm:$0xff]
    %v3680 = vld [vmem:[#allocation2 + $0x86] sm:$0xff]
    %v3681 = vld [vmem:[#allocation2 + $0x8e] sm:$0xff]
    %v3682 = vld [vmem:[#allocation2 + $0x96] sm:$0xf]
    %s3683 = scalar_lea.vmem %s5, 192
    %v3684 = vld [vmem:[%s3683] sm:$0xff]
    %v3685 = vld [vmem:[%s3683 + $0x8] sm:$0xff]
    %v3686 = vld [vmem:[%s3683 + $0x10] sm:$0xff]
    %v3687 = vld [vmem:[%s3683 + $0x18] sm:$0xff]
    %v3688 = vld [vmem:[%s3683 + $0x20] sm:$0xff]
    %v3689 = vld [vmem:[%s3683 + $0x28] sm:$0xff]
    %v3690 = vld [vmem:[%s3683 + $0x30] sm:$0xff]
    %v3691 = vld [vmem:[%s3683 + $0x38] sm:$0xff]
    %v3693 = vsel %vm166, %v3666, 0
    %v3696 = vsel %vm166, %v3667, 0
    %v3699 = vsel %vm166, %v3668, 0
    %v3702 = vsel %vm166, %v3669, 0
    %v3705 = vsel %vm166, %v3670, 0
    %v3708 = vsel %vm166, %v3671, 0
    %v3711 = vsel %vm166, %v3672, 0
    %v3714 = vsel %vm166, %v3673, 0
    %v3717 = vsel %vm166, %v3674, 0
    %v3720 = vsel %vm166, %v3675, 0
    %v3723 = vsel %vm166, %v3676, 0
    %v3726 = vsel %vm166, %v3677, 0
    %v3729 = vsel %vm166, %v3678, 0
    %v3732 = vsel %vm166, %v3679, 0
    %v3735 = vsel %vm166, %v3680, 0
    %v3738 = vsel %vm166, %v3681, 0
    %v3741 = vsel %vm166, %v3682, 0
    %3743 = vmatpush.msra.mxu0 0.0
    %3744 = vmatpush.msra.mxu0 0.0
    %3745 = vmatpush.msra.mxu0 0.0
    %3746 = vmatpush.msra.mxu0 0.0
    %3747 = vmatpush.msra.mxu0 0.0
    %3748 = vmatpush.msra.mxu0 0.0
    %3749 = vmatpush.msra.mxu0 0.0
    %3750 = vmatpush.msra.mxu0 0.0
    %3751 = vmatpush.msra.mxu0 %v3691
    %3752 = vmatpush.msra.mxu0 %v3690
    %3753 = vmatpush.msra.mxu0 %v3689
    %3754 = vmatpush.msra.mxu0 %v3688
    %3755 = vmatpush.msra.mxu0 %v3687
    %3756 = vmatpush.msra.mxu0 %v3686
    %3757 = vmatpush.msra.mxu0 %v3685
    %3758 = vmatpush.msra.mxu0 %v3684
    %3759 = vmatmul.f32.gmra.mxu0 %v3693
    %v3760 = vpop.f32.mrf.mxu0
    %v3761 = vadd.f32 0.0, %v3760
    %3762 = vmatmul.f32.gmra.mxu0 %v3696
    %v3763 = vpop.f32.mrf.mxu0
    %v3764 = vadd.f32 0.0, %v3763
    %3765 = vmatmul.f32.gmra.mxu0 %v3699
    %v3766 = vpop.f32.mrf.mxu0
    %v3767 = vadd.f32 0.0, %v3766
    %3768 = vmatmul.f32.gmra.mxu0 %v3702
    %v3769 = vpop.f32.mrf.mxu0
    %v3770 = vadd.f32 0.0, %v3769
    %3771 = vmatmul.f32.gmra.mxu0 %v3705
    %v3772 = vpop.f32.mrf.mxu0
    %v3773 = vadd.f32 0.0, %v3772
    %3774 = vmatmul.f32.gmra.mxu0 %v3708
    %v3775 = vpop.f32.mrf.mxu0
    %v3776 = vadd.f32 0.0, %v3775
    %3777 = vmatmul.f32.gmra.mxu0 %v3711
    %v3778 = vpop.f32.mrf.mxu0
    %v3779 = vadd.f32 0.0, %v3778
    %3780 = vmatmul.f32.gmra.mxu0 %v3714
    %v3781 = vpop.f32.mrf.mxu0
    %v3782 = vadd.f32 0.0, %v3781
    %3783 = vmatmul.f32.gmra.mxu0 %v3717
    %v3784 = vpop.f32.mrf.mxu0
    %v3785 = vadd.f32 0.0, %v3784
    %3786 = vmatmul.f32.gmra.mxu0 %v3720
    %v3787 = vpop.f32.mrf.mxu0
    %v3788 = vadd.f32 0.0, %v3787
    %3789 = vmatmul.f32.gmra.mxu0 %v3723
    %v3790 = vpop.f32.mrf.mxu0
    %v3791 = vadd.f32 0.0, %v3790
    %3792 = vmatmul.f32.gmra.mxu0 %v3726
    %v3793 = vpop.f32.mrf.mxu0
    %v3794 = vadd.f32 0.0, %v3793
    %3795 = vmatmul.f32.gmra.mxu0 %v3729
    %v3796 = vpop.f32.mrf.mxu0
    %v3797 = vadd.f32 0.0, %v3796
    %3798 = vmatmul.f32.gmra.mxu0 %v3732
    %v3799 = vpop.f32.mrf.mxu0
    %v3800 = vadd.f32 0.0, %v3799
    %3801 = vmatmul.f32.gmra.mxu0 %v3735
    %v3802 = vpop.f32.mrf.mxu0
    %v3803 = vadd.f32 0.0, %v3802
    %3804 = vmatmul.f32.gmra.mxu0 %v3738
    %v3805 = vpop.f32.mrf.mxu0
    %v3806 = vadd.f32 0.0, %v3805
    %3807 = vmatmul.f32.gmra.mxu0 %v3741
    %v3808 = vpop.f32.mrf.mxu0
    %v3809 = vadd.f32 0.0, %v3808
    %3810 = vdwg.mxu0
    %v3811 = vadd.f32 %v3649, %v3761
    %v3812 = vadd.f32 %v3650, %v3764
    %v3813 = vadd.f32 %v3651, %v3767
    %v3814 = vadd.f32 %v3652, %v3770
    %v3815 = vadd.f32 %v3653, %v3773
    %v3816 = vadd.f32 %v3654, %v3776
    %v3817 = vadd.f32 %v3655, %v3779
    %v3818 = vadd.f32 %v3656, %v3782
    %v3819 = vadd.f32 %v3657, %v3785
    %v3820 = vadd.f32 %v3658, %v3788
    %v3821 = vadd.f32 %v3659, %v3791
    %v3822 = vadd.f32 %v3660, %v3794
    %v3823 = vadd.f32 %v3661, %v3797
    %v3824 = vadd.f32 %v3662, %v3800
    %v3825 = vadd.f32 %v3663, %v3803
    %v3826 = vadd.f32 %v3664, %v3806
    %v3827 = vadd.f32 %v3665, %v3809
    %v3828 = vld [vmem:[#allocation2 + $0x18] sm:$0xff]
    %v3829 = vld [vmem:[#allocation2 + $0x20] sm:$0xff]
    %v3830 = vld [vmem:[#allocation2 + $0x28] sm:$0xff]
    %v3831 = vld [vmem:[#allocation2 + $0x30] sm:$0xff]
    %v3832 = vld [vmem:[#allocation2 + $0x38] sm:$0xff]
    %v3833 = vld [vmem:[#allocation2 + $0x40] sm:$0xff]
    %v3834 = vld [vmem:[#allocation2 + $0x48] sm:$0xff]
    %v3835 = vld [vmem:[#allocation2 + $0x50] sm:$0xff]
    %v3836 = vld [vmem:[#allocation2 + $0x58] sm:$0xff]
    %v3837 = vld [vmem:[#allocation2 + $0x60] sm:$0xff]
    %v3838 = vld [vmem:[#allocation2 + $0x68] sm:$0xff]
    %v3839 = vld [vmem:[#allocation2 + $0x70] sm:$0xff]
    %v3840 = vld [vmem:[#allocation2 + $0x78] sm:$0xff]
    %v3841 = vld [vmem:[#allocation2 + $0x80] sm:$0xff]
    %v3842 = vld [vmem:[#allocation2 + $0x88] sm:$0xff]
    %v3843 = vld [vmem:[#allocation2 + $0x90] sm:$0xff]
    %v3844 = vld [vmem:[#allocation2 + $0x98] sm:$0xf]
    %s3845 = scalar_lea.vmem %s5, 256
    %v3846 = vld [vmem:[%s3845] sm:$0xff]
    %v3847 = vld [vmem:[%s3845 + $0x8] sm:$0xff]
    %v3848 = vld [vmem:[%s3845 + $0x10] sm:$0xff]
    %v3849 = vld [vmem:[%s3845 + $0x18] sm:$0xff]
    %v3850 = vld [vmem:[%s3845 + $0x20] sm:$0xff]
    %v3851 = vld [vmem:[%s3845 + $0x28] sm:$0xff]
    %v3852 = vld [vmem:[%s3845 + $0x30] sm:$0xff]
    %v3853 = vld [vmem:[%s3845 + $0x38] sm:$0xff]
    %v3855 = vsel %vm166, %v3828, 0
    %v3858 = vsel %vm166, %v3829, 0
    %v3861 = vsel %vm166, %v3830, 0
    %v3864 = vsel %vm166, %v3831, 0
    %v3867 = vsel %vm166, %v3832, 0
    %v3870 = vsel %vm166, %v3833, 0
    %v3873 = vsel %vm166, %v3834, 0
    %v3876 = vsel %vm166, %v3835, 0
    %v3879 = vsel %vm166, %v3836, 0
    %v3882 = vsel %vm166, %v3837, 0
    %v3885 = vsel %vm166, %v3838, 0
    %v3888 = vsel %vm166, %v3839, 0
    %v3891 = vsel %vm166, %v3840, 0
    %v3894 = vsel %vm166, %v3841, 0
    %v3897 = vsel %vm166, %v3842, 0
    %v3900 = vsel %vm166, %v3843, 0
    %v3903 = vsel %vm166, %v3844, 0
    %3905 = vmatpush.msra.mxu0 0.0
    %3906 = vmatpush.msra.mxu0 0.0
    %3907 = vmatpush.msra.mxu0 0.0
    %3908 = vmatpush.msra.mxu0 0.0
    %3909 = vmatpush.msra.mxu0 0.0
    %3910 = vmatpush.msra.mxu0 0.0
    %3911 = vmatpush.msra.mxu0 0.0
    %3912 = vmatpush.msra.mxu0 0.0
    %3913 = vmatpush.msra.mxu0 %v3853
    %3914 = vmatpush.msra.mxu0 %v3852
    %3915 = vmatpush.msra.mxu0 %v3851
    %3916 = vmatpush.msra.mxu0 %v3850
    %3917 = vmatpush.msra.mxu0 %v3849
    %3918 = vmatpush.msra.mxu0 %v3848
    %3919 = vmatpush.msra.mxu0 %v3847
    %3920 = vmatpush.msra.mxu0 %v3846
    %3921 = vmatmul.f32.gmra.mxu0 %v3855
    %v3922 = vpop.f32.mrf.mxu0
    %v3923 = vadd.f32 0.0, %v3922
    %3924 = vmatmul.f32.gmra.mxu0 %v3858
    %v3925 = vpop.f32.mrf.mxu0
    %v3926 = vadd.f32 0.0, %v3925
    %3927 = vmatmul.f32.gmra.mxu0 %v3861
    %v3928 = vpop.f32.mrf.mxu0
    %v3929 = vadd.f32 0.0, %v3928
    %3930 = vmatmul.f32.gmra.mxu0 %v3864
    %v3931 = vpop.f32.mrf.mxu0
    %v3932 = vadd.f32 0.0, %v3931
    %3933 = vmatmul.f32.gmra.mxu0 %v3867
    %v3934 = vpop.f32.mrf.mxu0
    %v3935 = vadd.f32 0.0, %v3934
    %3936 = vmatmul.f32.gmra.mxu0 %v3870
    %v3937 = vpop.f32.mrf.mxu0
    %v3938 = vadd.f32 0.0, %v3937
    %3939 = vmatmul.f32.gmra.mxu0 %v3873
    %v3940 = vpop.f32.mrf.mxu0
    %v3941 = vadd.f32 0.0, %v3940
    %3942 = vmatmul.f32.gmra.mxu0 %v3876
    %v3943 = vpop.f32.mrf.mxu0
    %v3944 = vadd.f32 0.0, %v3943
    %3945 = vmatmul.f32.gmra.mxu0 %v3879
    %v3946 = vpop.f32.mrf.mxu0
    %v3947 = vadd.f32 0.0, %v3946
    %3948 = vmatmul.f32.gmra.mxu0 %v3882
    %v3949 = vpop.f32.mrf.mxu0
    %v3950 = vadd.f32 0.0, %v3949
    %3951 = vmatmul.f32.gmra.mxu0 %v3885
    %v3952 = vpop.f32.mrf.mxu0
    %v3953 = vadd.f32 0.0, %v3952
    %3954 = vmatmul.f32.gmra.mxu0 %v3888
    %v3955 = vpop.f32.mrf.mxu0
    %v3956 = vadd.f32 0.0, %v3955
    %3957 = vmatmul.f32.gmra.mxu0 %v3891
    %v3958 = vpop.f32.mrf.mxu0
    %v3959 = vadd.f32 0.0, %v3958
    %3960 = vmatmul.f32.gmra.mxu0 %v3894
    %v3961 = vpop.f32.mrf.mxu0
    %v3962 = vadd.f32 0.0, %v3961
    %3963 = vmatmul.f32.gmra.mxu0 %v3897
    %v3964 = vpop.f32.mrf.mxu0
    %v3965 = vadd.f32 0.0, %v3964
    %3966 = vmatmul.f32.gmra.mxu0 %v3900
    %v3967 = vpop.f32.mrf.mxu0
    %v3968 = vadd.f32 0.0, %v3967
    %3969 = vmatmul.f32.gmra.mxu0 %v3903
    %v3970 = vpop.f32.mrf.mxu0
    %v3971 = vadd.f32 0.0, %v3970
    %3972 = vdwg.mxu0
    %v3973 = vadd.f32 %v3811, %v3923
    %v3974 = vadd.f32 %v3812, %v3926
    %v3975 = vadd.f32 %v3813, %v3929
    %v3976 = vadd.f32 %v3814, %v3932
    %v3977 = vadd.f32 %v3815, %v3935
    %v3978 = vadd.f32 %v3816, %v3938
    %v3979 = vadd.f32 %v3817, %v3941
    %v3980 = vadd.f32 %v3818, %v3944
    %v3981 = vadd.f32 %v3819, %v3947
    %v3982 = vadd.f32 %v3820, %v3950
    %v3983 = vadd.f32 %v3821, %v3953
    %v3984 = vadd.f32 %v3822, %v3956
    %v3985 = vadd.f32 %v3823, %v3959
    %v3986 = vadd.f32 %v3824, %v3962
    %v3987 = vadd.f32 %v3825, %v3965
    %v3988 = vadd.f32 %v3826, %v3968
    %v3989 = vadd.f32 %v3827, %v3971
    %v3990 = vld [vmem:[#allocation2 + $0x1a] sm:$0xff]
    %v3991 = vld [vmem:[#allocation2 + $0x22] sm:$0xff]
    %v3992 = vld [vmem:[#allocation2 + $0x2a] sm:$0xff]
    %v3993 = vld [vmem:[#allocation2 + $0x32] sm:$0xff]
    %v3994 = vld [vmem:[#allocation2 + $0x3a] sm:$0xff]
    %v3995 = vld [vmem:[#allocation2 + $0x42] sm:$0xff]
    %v3996 = vld [vmem:[#allocation2 + $0x4a] sm:$0xff]
    %v3997 = vld [vmem:[#allocation2 + $0x52] sm:$0xff]
    %v3998 = vld [vmem:[#allocation2 + $0x5a] sm:$0xff]
    %v3999 = vld [vmem:[#allocation2 + $0x62] sm:$0xff]
    %v4000 = vld [vmem:[#allocation2 + $0x6a] sm:$0xff]
    %v4001 = vld [vmem:[#allocation2 + $0x72] sm:$0xff]
    %v4002 = vld [vmem:[#allocation2 + $0x7a] sm:$0xff]
    %v4003 = vld [vmem:[#allocation2 + $0x82] sm:$0xff]
    %v4004 = vld [vmem:[#allocation2 + $0x8a] sm:$0xff]
    %v4005 = vld [vmem:[#allocation2 + $0x92] sm:$0xff]
    %v4006 = vld [vmem:[#allocation2 + $0x9a] sm:$0xf]
    %s4007 = scalar_lea.vmem %s5, 320
    %v4008 = vld [vmem:[%s4007] sm:$0xff]
    %v4009 = vld [vmem:[%s4007 + $0x8] sm:$0xff]
    %v4010 = vld [vmem:[%s4007 + $0x10] sm:$0xff]
    %v4011 = vld [vmem:[%s4007 + $0x18] sm:$0xff]
    %v4012 = vld [vmem:[%s4007 + $0x20] sm:$0xff]
    %v4013 = vld [vmem:[%s4007 + $0x28] sm:$0xff]
    %v4014 = vld [vmem:[%s4007 + $0x30] sm:$0xff]
    %v4015 = vld [vmem:[%s4007 + $0x38] sm:$0xff]
    %v4017 = vsel %vm166, %v3990, 0
    %v4020 = vsel %vm166, %v3991, 0
    %v4023 = vsel %vm166, %v3992, 0
    %v4026 = vsel %vm166, %v3993, 0
    %v4029 = vsel %vm166, %v3994, 0
    %v4032 = vsel %vm166, %v3995, 0
    %v4035 = vsel %vm166, %v3996, 0
    %v4038 = vsel %vm166, %v3997, 0
    %v4041 = vsel %vm166, %v3998, 0
    %v4044 = vsel %vm166, %v3999, 0
    %v4047 = vsel %vm166, %v4000, 0
    %v4050 = vsel %vm166, %v4001, 0
    %v4053 = vsel %vm166, %v4002, 0
    %v4056 = vsel %vm166, %v4003, 0
    %v4059 = vsel %vm166, %v4004, 0
    %v4062 = vsel %vm166, %v4005, 0
    %v4065 = vsel %vm166, %v4006, 0
    %4067 = vmatpush.msra.mxu0 0.0
    %4068 = vmatpush.msra.mxu0 0.0
    %4069 = vmatpush.msra.mxu0 0.0
    %4070 = vmatpush.msra.mxu0 0.0
    %4071 = vmatpush.msra.mxu0 0.0
    %4072 = vmatpush.msra.mxu0 0.0
    %4073 = vmatpush.msra.mxu0 0.0
    %4074 = vmatpush.msra.mxu0 0.0
    %4075 = vmatpush.msra.mxu0 %v4015
    %4076 = vmatpush.msra.mxu0 %v4014
    %4077 = vmatpush.msra.mxu0 %v4013
    %4078 = vmatpush.msra.mxu0 %v4012
    %4079 = vmatpush.msra.mxu0 %v4011
    %4080 = vmatpush.msra.mxu0 %v4010
    %4081 = vmatpush.msra.mxu0 %v4009
    %4082 = vmatpush.msra.mxu0 %v4008
    %4083 = vmatmul.f32.gmra.mxu0 %v4017
    %v4084 = vpop.f32.mrf.mxu0
    %v4085 = vadd.f32 0.0, %v4084
    %4086 = vmatmul.f32.gmra.mxu0 %v4020
    %v4087 = vpop.f32.mrf.mxu0
    %v4088 = vadd.f32 0.0, %v4087
    %4089 = vmatmul.f32.gmra.mxu0 %v4023
    %v4090 = vpop.f32.mrf.mxu0
    %v4091 = vadd.f32 0.0, %v4090
    %4092 = vmatmul.f32.gmra.mxu0 %v4026
    %v4093 = vpop.f32.mrf.mxu0
    %v4094 = vadd.f32 0.0, %v4093
    %4095 = vmatmul.f32.gmra.mxu0 %v4029
    %v4096 = vpop.f32.mrf.mxu0
    %v4097 = vadd.f32 0.0, %v4096
    %4098 = vmatmul.f32.gmra.mxu0 %v4032
    %v4099 = vpop.f32.mrf.mxu0
    %v4100 = vadd.f32 0.0, %v4099
    %4101 = vmatmul.f32.gmra.mxu0 %v4035
    %v4102 = vpop.f32.mrf.mxu0
    %v4103 = vadd.f32 0.0, %v4102
    %4104 = vmatmul.f32.gmra.mxu0 %v4038
    %v4105 = vpop.f32.mrf.mxu0
    %v4106 = vadd.f32 0.0, %v4105
    %4107 = vmatmul.f32.gmra.mxu0 %v4041
    %v4108 = vpop.f32.mrf.mxu0
    %v4109 = vadd.f32 0.0, %v4108
    %4110 = vmatmul.f32.gmra.mxu0 %v4044
    %v4111 = vpop.f32.mrf.mxu0
    %v4112 = vadd.f32 0.0, %v4111
    %4113 = vmatmul.f32.gmra.mxu0 %v4047
    %v4114 = vpop.f32.mrf.mxu0
    %v4115 = vadd.f32 0.0, %v4114
    %4116 = vmatmul.f32.gmra.mxu0 %v4050
    %v4117 = vpop.f32.mrf.mxu0
    %v4118 = vadd.f32 0.0, %v4117
    %4119 = vmatmul.f32.gmra.mxu0 %v4053
    %v4120 = vpop.f32.mrf.mxu0
    %v4121 = vadd.f32 0.0, %v4120
    %4122 = vmatmul.f32.gmra.mxu0 %v4056
    %v4123 = vpop.f32.mrf.mxu0
    %v4124 = vadd.f32 0.0, %v4123
    %4125 = vmatmul.f32.gmra.mxu0 %v4059
    %v4126 = vpop.f32.mrf.mxu0
    %v4127 = vadd.f32 0.0, %v4126
    %4128 = vmatmul.f32.gmra.mxu0 %v4062
    %v4129 = vpop.f32.mrf.mxu0
    %v4130 = vadd.f32 0.0, %v4129
    %4131 = vmatmul.f32.gmra.mxu0 %v4065
    %v4132 = vpop.f32.mrf.mxu0
    %v4133 = vadd.f32 0.0, %v4132
    %4134 = vdwg.mxu0
    %v4135 = vadd.f32 %v3973, %v4085
    %v4136 = vadd.f32 %v3974, %v4088
    %v4137 = vadd.f32 %v3975, %v4091
    %v4138 = vadd.f32 %v3976, %v4094
    %v4139 = vadd.f32 %v3977, %v4097
    %v4140 = vadd.f32 %v3978, %v4100
    %v4141 = vadd.f32 %v3979, %v4103
    %v4142 = vadd.f32 %v3980, %v4106
    %v4143 = vadd.f32 %v3981, %v4109
    %v4144 = vadd.f32 %v3982, %v4112
    %v4145 = vadd.f32 %v3983, %v4115
    %v4146 = vadd.f32 %v3984, %v4118
    %v4147 = vadd.f32 %v3985, %v4121
    %v4148 = vadd.f32 %v3986, %v4124
    %v4149 = vadd.f32 %v3987, %v4127
    %v4150 = vadd.f32 %v3988, %v4130
    %v4151 = vadd.f32 %v3989, %v4133
    %v4152 = vld [vmem:[#allocation2 + $0x2c] sm:$0xff]
    %v4153 = vld [vmem:[#allocation2 + $0x34] sm:$0xff]
    %v4154 = vld [vmem:[#allocation2 + $0x3c] sm:$0xff]
    %v4155 = vld [vmem:[#allocation2 + $0x44] sm:$0xff]
    %v4156 = vld [vmem:[#allocation2 + $0x4c] sm:$0xff]
    %v4157 = vld [vmem:[#allocation2 + $0x54] sm:$0xff]
    %v4158 = vld [vmem:[#allocation2 + $0x5c] sm:$0xff]
    %v4159 = vld [vmem:[#allocation2 + $0x64] sm:$0xff]
    %v4160 = vld [vmem:[#allocation2 + $0x6c] sm:$0xff]
    %v4161 = vld [vmem:[#allocation2 + $0x74] sm:$0xff]
    %v4162 = vld [vmem:[#allocation2 + $0x7c] sm:$0xff]
    %v4163 = vld [vmem:[#allocation2 + $0x84] sm:$0xff]
    %v4164 = vld [vmem:[#allocation2 + $0x8c] sm:$0xff]
    %v4165 = vld [vmem:[#allocation2 + $0x94] sm:$0xff]
    %v4166 = vld [vmem:[#allocation2 + $0x9c] sm:$0xff]
    %v4167 = vld [vmem:[#allocation2 + $0xa4] sm:$0xff]
    %v4168 = vld [vmem:[#allocation2 + $0xac] sm:$0xf]
    %s4169 = scalar_lea.vmem %s5, 384
    %v4170 = vld [vmem:[%s4169] sm:$0xff]
    %v4171 = vld [vmem:[%s4169 + $0x8] sm:$0xff]
    %v4172 = vld [vmem:[%s4169 + $0x10] sm:$0xff]
    %v4173 = vld [vmem:[%s4169 + $0x18] sm:$0xff]
    %v4174 = vld [vmem:[%s4169 + $0x20] sm:$0xff]
    %v4175 = vld [vmem:[%s4169 + $0x28] sm:$0xff]
    %v4176 = vld [vmem:[%s4169 + $0x30] sm:$0xff]
    %v4177 = vld [vmem:[%s4169 + $0x38] sm:$0xff]
    %v4179 = vsel %vm166, %v4152, 0
    %v4182 = vsel %vm166, %v4153, 0
    %v4185 = vsel %vm166, %v4154, 0
    %v4188 = vsel %vm166, %v4155, 0
    %v4191 = vsel %vm166, %v4156, 0
    %v4194 = vsel %vm166, %v4157, 0
    %v4197 = vsel %vm166, %v4158, 0
    %v4200 = vsel %vm166, %v4159, 0
    %v4203 = vsel %vm166, %v4160, 0
    %v4206 = vsel %vm166, %v4161, 0
    %v4209 = vsel %vm166, %v4162, 0
    %v4212 = vsel %vm166, %v4163, 0
    %v4215 = vsel %vm166, %v4164, 0
    %v4218 = vsel %vm166, %v4165, 0
    %v4221 = vsel %vm166, %v4166, 0
    %v4224 = vsel %vm166, %v4167, 0
    %v4227 = vsel %vm166, %v4168, 0
    %4229 = vmatpush.msra.mxu0 0.0
    %4230 = vmatpush.msra.mxu0 0.0
    %4231 = vmatpush.msra.mxu0 0.0
    %4232 = vmatpush.msra.mxu0 0.0
    %4233 = vmatpush.msra.mxu0 0.0
    %4234 = vmatpush.msra.mxu0 0.0
    %4235 = vmatpush.msra.mxu0 0.0
    %4236 = vmatpush.msra.mxu0 0.0
    %4237 = vmatpush.msra.mxu0 %v4177
    %4238 = vmatpush.msra.mxu0 %v4176
    %4239 = vmatpush.msra.mxu0 %v4175
    %4240 = vmatpush.msra.mxu0 %v4174
    %4241 = vmatpush.msra.mxu0 %v4173
    %4242 = vmatpush.msra.mxu0 %v4172
    %4243 = vmatpush.msra.mxu0 %v4171
    %4244 = vmatpush.msra.mxu0 %v4170
    %4245 = vmatmul.f32.gmra.mxu0 %v4179
    %v4246 = vpop.f32.mrf.mxu0
    %v4247 = vadd.f32 0.0, %v4246
    %4248 = vmatmul.f32.gmra.mxu0 %v4182
    %v4249 = vpop.f32.mrf.mxu0
    %v4250 = vadd.f32 0.0, %v4249
    %4251 = vmatmul.f32.gmra.mxu0 %v4185
    %v4252 = vpop.f32.mrf.mxu0
    %v4253 = vadd.f32 0.0, %v4252
    %4254 = vmatmul.f32.gmra.mxu0 %v4188
    %v4255 = vpop.f32.mrf.mxu0
    %v4256 = vadd.f32 0.0, %v4255
    %4257 = vmatmul.f32.gmra.mxu0 %v4191
    %v4258 = vpop.f32.mrf.mxu0
    %v4259 = vadd.f32 0.0, %v4258
    %4260 = vmatmul.f32.gmra.mxu0 %v4194
    %v4261 = vpop.f32.mrf.mxu0
    %v4262 = vadd.f32 0.0, %v4261
    %4263 = vmatmul.f32.gmra.mxu0 %v4197
    %v4264 = vpop.f32.mrf.mxu0
    %v4265 = vadd.f32 0.0, %v4264
    %4266 = vmatmul.f32.gmra.mxu0 %v4200
    %v4267 = vpop.f32.mrf.mxu0
    %v4268 = vadd.f32 0.0, %v4267
    %4269 = vmatmul.f32.gmra.mxu0 %v4203
    %v4270 = vpop.f32.mrf.mxu0
    %v4271 = vadd.f32 0.0, %v4270
    %4272 = vmatmul.f32.gmra.mxu0 %v4206
    %v4273 = vpop.f32.mrf.mxu0
    %v4274 = vadd.f32 0.0, %v4273
    %4275 = vmatmul.f32.gmra.mxu0 %v4209
    %v4276 = vpop.f32.mrf.mxu0
    %v4277 = vadd.f32 0.0, %v4276
    %4278 = vmatmul.f32.gmra.mxu0 %v4212
    %v4279 = vpop.f32.mrf.mxu0
    %v4280 = vadd.f32 0.0, %v4279
    %4281 = vmatmul.f32.gmra.mxu0 %v4215
    %v4282 = vpop.f32.mrf.mxu0
    %v4283 = vadd.f32 0.0, %v4282
    %4284 = vmatmul.f32.gmra.mxu0 %v4218
    %v4285 = vpop.f32.mrf.mxu0
    %v4286 = vadd.f32 0.0, %v4285
    %4287 = vmatmul.f32.gmra.mxu0 %v4221
    %v4288 = vpop.f32.mrf.mxu0
    %v4289 = vadd.f32 0.0, %v4288
    %4290 = vmatmul.f32.gmra.mxu0 %v4224
    %v4291 = vpop.f32.mrf.mxu0
    %v4292 = vadd.f32 0.0, %v4291
    %4293 = vmatmul.f32.gmra.mxu0 %v4227
    %v4294 = vpop.f32.mrf.mxu0
    %v4295 = vadd.f32 0.0, %v4294
    %4296 = vdwg.mxu0
    %v4297 = vadd.f32 %v4135, %v4247
    %v4298 = vadd.f32 %v4136, %v4250
    %v4299 = vadd.f32 %v4137, %v4253
    %v4300 = vadd.f32 %v4138, %v4256
    %v4301 = vadd.f32 %v4139, %v4259
    %v4302 = vadd.f32 %v4140, %v4262
    %v4303 = vadd.f32 %v4141, %v4265
    %v4304 = vadd.f32 %v4142, %v4268
    %v4305 = vadd.f32 %v4143, %v4271
    %v4306 = vadd.f32 %v4144, %v4274
    %v4307 = vadd.f32 %v4145, %v4277
    %v4308 = vadd.f32 %v4146, %v4280
    %v4309 = vadd.f32 %v4147, %v4283
    %v4310 = vadd.f32 %v4148, %v4286
    %v4311 = vadd.f32 %v4149, %v4289
    %v4312 = vadd.f32 %v4150, %v4292
    %v4313 = vadd.f32 %v4151, %v4295
    %v4314 = vld [vmem:[#allocation2 + $0x2e] sm:$0xff]
    %v4315 = vld [vmem:[#allocation2 + $0x36] sm:$0xff]
    %v4316 = vld [vmem:[#allocation2 + $0x3e] sm:$0xff]
    %v4317 = vld [vmem:[#allocation2 + $0x46] sm:$0xff]
    %v4318 = vld [vmem:[#allocation2 + $0x4e] sm:$0xff]
    %v4319 = vld [vmem:[#allocation2 + $0x56] sm:$0xff]
    %v4320 = vld [vmem:[#allocation2 + $0x5e] sm:$0xff]
    %v4321 = vld [vmem:[#allocation2 + $0x66] sm:$0xff]
    %v4322 = vld [vmem:[#allocation2 + $0x6e] sm:$0xff]
    %v4323 = vld [vmem:[#allocation2 + $0x76] sm:$0xff]
    %v4324 = vld [vmem:[#allocation2 + $0x7e] sm:$0xff]
    %v4325 = vld [vmem:[#allocation2 + $0x86] sm:$0xff]
    %v4326 = vld [vmem:[#allocation2 + $0x8e] sm:$0xff]
    %v4327 = vld [vmem:[#allocation2 + $0x96] sm:$0xff]
    %v4328 = vld [vmem:[#allocation2 + $0x9e] sm:$0xff]
    %v4329 = vld [vmem:[#allocation2 + $0xa6] sm:$0xff]
    %v4330 = vld [vmem:[#allocation2 + $0xae] sm:$0xf]
    %s4331 = scalar_lea.vmem %s5, 448
    %v4332 = vld [vmem:[%s4331] sm:$0xff]
    %v4333 = vld [vmem:[%s4331 + $0x8] sm:$0xff]
    %v4334 = vld [vmem:[%s4331 + $0x10] sm:$0xff]
    %v4335 = vld [vmem:[%s4331 + $0x18] sm:$0xff]
    %v4336 = vld [vmem:[%s4331 + $0x20] sm:$0xff]
    %v4337 = vld [vmem:[%s4331 + $0x28] sm:$0xff]
    %v4338 = vld [vmem:[%s4331 + $0x30] sm:$0xff]
    %v4339 = vld [vmem:[%s4331 + $0x38] sm:$0xff]
    %v4341 = vsel %vm166, %v4314, 0
    %v4344 = vsel %vm166, %v4315, 0
    %v4347 = vsel %vm166, %v4316, 0
    %v4350 = vsel %vm166, %v4317, 0
    %v4353 = vsel %vm166, %v4318, 0
    %v4356 = vsel %vm166, %v4319, 0
    %v4359 = vsel %vm166, %v4320, 0
    %v4362 = vsel %vm166, %v4321, 0
    %v4365 = vsel %vm166, %v4322, 0
    %v4368 = vsel %vm166, %v4323, 0
    %v4371 = vsel %vm166, %v4324, 0
    %v4374 = vsel %vm166, %v4325, 0
    %v4377 = vsel %vm166, %v4326, 0
    %v4380 = vsel %vm166, %v4327, 0
    %v4383 = vsel %vm166, %v4328, 0
    %v4386 = vsel %vm166, %v4329, 0
    %v4389 = vsel %vm166, %v4330, 0
    %4391 = vmatpush.msra.mxu0 0.0
    %4392 = vmatpush.msra.mxu0 0.0
    %4393 = vmatpush.msra.mxu0 0.0
    %4394 = vmatpush.msra.mxu0 0.0
    %4395 = vmatpush.msra.mxu0 0.0
    %4396 = vmatpush.msra.mxu0 0.0
    %4397 = vmatpush.msra.mxu0 0.0
    %4398 = vmatpush.msra.mxu0 0.0
    %4399 = vmatpush.msra.mxu0 %v4339
    %4400 = vmatpush.msra.mxu0 %v4338
    %4401 = vmatpush.msra.mxu0 %v4337
    %4402 = vmatpush.msra.mxu0 %v4336
    %4403 = vmatpush.msra.mxu0 %v4335
    %4404 = vmatpush.msra.mxu0 %v4334
    %4405 = vmatpush.msra.mxu0 %v4333
    %4406 = vmatpush.msra.mxu0 %v4332
    %4407 = vmatmul.f32.gmra.mxu0 %v4341
    %v4408 = vpop.f32.mrf.mxu0
    %v4409 = vadd.f32 0.0, %v4408
    %4410 = vmatmul.f32.gmra.mxu0 %v4344
    %v4411 = vpop.f32.mrf.mxu0
    %v4412 = vadd.f32 0.0, %v4411
    %4413 = vmatmul.f32.gmra.mxu0 %v4347
    %v4414 = vpop.f32.mrf.mxu0
    %v4415 = vadd.f32 0.0, %v4414
    %4416 = vmatmul.f32.gmra.mxu0 %v4350
    %v4417 = vpop.f32.mrf.mxu0
    %v4418 = vadd.f32 0.0, %v4417
    %4419 = vmatmul.f32.gmra.mxu0 %v4353
    %v4420 = vpop.f32.mrf.mxu0
    %v4421 = vadd.f32 0.0, %v4420
    %4422 = vmatmul.f32.gmra.mxu0 %v4356
    %v4423 = vpop.f32.mrf.mxu0
    %v4424 = vadd.f32 0.0, %v4423
    %4425 = vmatmul.f32.gmra.mxu0 %v4359
    %v4426 = vpop.f32.mrf.mxu0
    %v4427 = vadd.f32 0.0, %v4426
    %4428 = vmatmul.f32.gmra.mxu0 %v4362
    %v4429 = vpop.f32.mrf.mxu0
    %v4430 = vadd.f32 0.0, %v4429
    %4431 = vmatmul.f32.gmra.mxu0 %v4365
    %v4432 = vpop.f32.mrf.mxu0
    %v4433 = vadd.f32 0.0, %v4432
    %4434 = vmatmul.f32.gmra.mxu0 %v4368
    %v4435 = vpop.f32.mrf.mxu0
    %v4436 = vadd.f32 0.0, %v4435
    %4437 = vmatmul.f32.gmra.mxu0 %v4371
    %v4438 = vpop.f32.mrf.mxu0
    %v4439 = vadd.f32 0.0, %v4438
    %4440 = vmatmul.f32.gmra.mxu0 %v4374
    %v4441 = vpop.f32.mrf.mxu0
    %v4442 = vadd.f32 0.0, %v4441
    %4443 = vmatmul.f32.gmra.mxu0 %v4377
    %v4444 = vpop.f32.mrf.mxu0
    %v4445 = vadd.f32 0.0, %v4444
    %4446 = vmatmul.f32.gmra.mxu0 %v4380
    %v4447 = vpop.f32.mrf.mxu0
    %v4448 = vadd.f32 0.0, %v4447
    %4449 = vmatmul.f32.gmra.mxu0 %v4383
    %v4450 = vpop.f32.mrf.mxu0
    %v4451 = vadd.f32 0.0, %v4450
    %4452 = vmatmul.f32.gmra.mxu0 %v4386
    %v4453 = vpop.f32.mrf.mxu0
    %v4454 = vadd.f32 0.0, %v4453
    %4455 = vmatmul.f32.gmra.mxu0 %v4389
    %v4456 = vpop.f32.mrf.mxu0
    %v4457 = vadd.f32 0.0, %v4456
    %4458 = vdwg.mxu0
    %v4459 = vadd.f32 %v4297, %v4409
    %v4460 = vadd.f32 %v4298, %v4412
    %v4461 = vadd.f32 %v4299, %v4415
    %v4462 = vadd.f32 %v4300, %v4418
    %v4463 = vadd.f32 %v4301, %v4421
    %v4464 = vadd.f32 %v4302, %v4424
    %v4465 = vadd.f32 %v4303, %v4427
    %v4466 = vadd.f32 %v4304, %v4430
    %v4467 = vadd.f32 %v4305, %v4433
    %v4468 = vadd.f32 %v4306, %v4436
    %v4469 = vadd.f32 %v4307, %v4439
    %v4470 = vadd.f32 %v4308, %v4442
    %v4471 = vadd.f32 %v4309, %v4445
    %v4472 = vadd.f32 %v4310, %v4448
    %v4473 = vadd.f32 %v4311, %v4451
    %v4474 = vadd.f32 %v4312, %v4454
    %v4475 = vadd.f32 %v4313, %v4457
    %v4476 = vld [vmem:[#allocation2 + $0x30] sm:$0xff]
    %v4477 = vld [vmem:[#allocation2 + $0x38] sm:$0xff]
    %v4478 = vld [vmem:[#allocation2 + $0x40] sm:$0xff]
    %v4479 = vld [vmem:[#allocation2 + $0x48] sm:$0xff]
    %v4480 = vld [vmem:[#allocation2 + $0x50] sm:$0xff]
    %v4481 = vld [vmem:[#allocation2 + $0x58] sm:$0xff]
    %v4482 = vld [vmem:[#allocation2 + $0x60] sm:$0xff]
    %v4483 = vld [vmem:[#allocation2 + $0x68] sm:$0xff]
    %v4484 = vld [vmem:[#allocation2 + $0x70] sm:$0xff]
    %v4485 = vld [vmem:[#allocation2 + $0x78] sm:$0xff]
    %v4486 = vld [vmem:[#allocation2 + $0x80] sm:$0xff]
    %v4487 = vld [vmem:[#allocation2 + $0x88] sm:$0xff]
    %v4488 = vld [vmem:[#allocation2 + $0x90] sm:$0xff]
    %v4489 = vld [vmem:[#allocation2 + $0x98] sm:$0xff]
    %v4490 = vld [vmem:[#allocation2 + $0xa0] sm:$0xff]
    %v4491 = vld [vmem:[#allocation2 + $0xa8] sm:$0xff]
    %v4492 = vld [vmem:[#allocation2 + $0xb0] sm:$0xf]
    %s4493 = scalar_lea.vmem %s5, 512
    %v4494 = vld [vmem:[%s4493] sm:$0xff]
    %v4495 = vld [vmem:[%s4493 + $0x8] sm:$0xff]
    %v4496 = vld [vmem:[%s4493 + $0x10] sm:$0xff]
    %v4497 = vld [vmem:[%s4493 + $0x18] sm:$0xff]
    %v4498 = vld [vmem:[%s4493 + $0x20] sm:$0xff]
    %v4499 = vld [vmem:[%s4493 + $0x28] sm:$0xff]
    %v4500 = vld [vmem:[%s4493 + $0x30] sm:$0xff]
    %v4501 = vld [vmem:[%s4493 + $0x38] sm:$0xff]
    %v4503 = vsel %vm166, %v4476, 0
    %v4506 = vsel %vm166, %v4477, 0
    %v4509 = vsel %vm166, %v4478, 0
    %v4512 = vsel %vm166, %v4479, 0
    %v4515 = vsel %vm166, %v4480, 0
    %v4518 = vsel %vm166, %v4481, 0
    %v4521 = vsel %vm166, %v4482, 0
    %v4524 = vsel %vm166, %v4483, 0
    %v4527 = vsel %vm166, %v4484, 0
    %v4530 = vsel %vm166, %v4485, 0
    %v4533 = vsel %vm166, %v4486, 0
    %v4536 = vsel %vm166, %v4487, 0
    %v4539 = vsel %vm166, %v4488, 0
    %v4542 = vsel %vm166, %v4489, 0
    %v4545 = vsel %vm166, %v4490, 0
    %v4548 = vsel %vm166, %v4491, 0
    %v4551 = vsel %vm166, %v4492, 0
    %4553 = vmatpush.msra.mxu0 0.0
    %4554 = vmatpush.msra.mxu0 0.0
    %4555 = vmatpush.msra.mxu0 0.0
    %4556 = vmatpush.msra.mxu0 0.0
    %4557 = vmatpush.msra.mxu0 0.0
    %4558 = vmatpush.msra.mxu0 0.0
    %4559 = vmatpush.msra.mxu0 0.0
    %4560 = vmatpush.msra.mxu0 0.0
    %4561 = vmatpush.msra.mxu0 %v4501
    %4562 = vmatpush.msra.mxu0 %v4500
    %4563 = vmatpush.msra.mxu0 %v4499
    %4564 = vmatpush.msra.mxu0 %v4498
    %4565 = vmatpush.msra.mxu0 %v4497
    %4566 = vmatpush.msra.mxu0 %v4496
    %4567 = vmatpush.msra.mxu0 %v4495
    %4568 = vmatpush.msra.mxu0 %v4494
    %4569 = vmatmul.f32.gmra.mxu0 %v4503
    %v4570 = vpop.f32.mrf.mxu0
    %v4571 = vadd.f32 0.0, %v4570
    %4572 = vmatmul.f32.gmra.mxu0 %v4506
    %v4573 = vpop.f32.mrf.mxu0
    %v4574 = vadd.f32 0.0, %v4573
    %4575 = vmatmul.f32.gmra.mxu0 %v4509
    %v4576 = vpop.f32.mrf.mxu0
    %v4577 = vadd.f32 0.0, %v4576
    %4578 = vmatmul.f32.gmra.mxu0 %v4512
    %v4579 = vpop.f32.mrf.mxu0
    %v4580 = vadd.f32 0.0, %v4579
    %4581 = vmatmul.f32.gmra.mxu0 %v4515
    %v4582 = vpop.f32.mrf.mxu0
    %v4583 = vadd.f32 0.0, %v4582
    %4584 = vmatmul.f32.gmra.mxu0 %v4518
    %v4585 = vpop.f32.mrf.mxu0
    %v4586 = vadd.f32 0.0, %v4585
    %4587 = vmatmul.f32.gmra.mxu0 %v4521
    %v4588 = vpop.f32.mrf.mxu0
    %v4589 = vadd.f32 0.0, %v4588
    %4590 = vmatmul.f32.gmra.mxu0 %v4524
    %v4591 = vpop.f32.mrf.mxu0
    %v4592 = vadd.f32 0.0, %v4591
    %4593 = vmatmul.f32.gmra.mxu0 %v4527
    %v4594 = vpop.f32.mrf.mxu0
    %v4595 = vadd.f32 0.0, %v4594
    %4596 = vmatmul.f32.gmra.mxu0 %v4530
    %v4597 = vpop.f32.mrf.mxu0
    %v4598 = vadd.f32 0.0, %v4597
    %4599 = vmatmul.f32.gmra.mxu0 %v4533
    %v4600 = vpop.f32.mrf.mxu0
    %v4601 = vadd.f32 0.0, %v4600
    %4602 = vmatmul.f32.gmra.mxu0 %v4536
    %v4603 = vpop.f32.mrf.mxu0
    %v4604 = vadd.f32 0.0, %v4603
    %4605 = vmatmul.f32.gmra.mxu0 %v4539
    %v4606 = vpop.f32.mrf.mxu0
    %v4607 = vadd.f32 0.0, %v4606
    %4608 = vmatmul.f32.gmra.mxu0 %v4542
    %v4609 = vpop.f32.mrf.mxu0
    %v4610 = vadd.f32 0.0, %v4609
    %4611 = vmatmul.f32.gmra.mxu0 %v4545
    %v4612 = vpop.f32.mrf.mxu0
    %v4613 = vadd.f32 0.0, %v4612
    %4614 = vmatmul.f32.gmra.mxu0 %v4548
    %v4615 = vpop.f32.mrf.mxu0
    %v4616 = vadd.f32 0.0, %v4615
    %4617 = vmatmul.f32.gmra.mxu0 %v4551
    %v4618 = vpop.f32.mrf.mxu0
    %v4619 = vadd.f32 0.0, %v4618
    %4620 = vdwg.mxu0
    %v4621 = vadd.f32 %v4459, %v4571
    %v4622 = vadd.f32 %v4460, %v4574
    %v4623 = vadd.f32 %v4461, %v4577
    %v4624 = vadd.f32 %v4462, %v4580
    %v4625 = vadd.f32 %v4463, %v4583
    %v4626 = vadd.f32 %v4464, %v4586
    %v4627 = vadd.f32 %v4465, %v4589
    %v4628 = vadd.f32 %v4466, %v4592
    %v4629 = vadd.f32 %v4467, %v4595
    %v4630 = vadd.f32 %v4468, %v4598
    %v4631 = vadd.f32 %v4469, %v4601
    %v4632 = vadd.f32 %v4470, %v4604
    %v4633 = vadd.f32 %v4471, %v4607
    %v4634 = vadd.f32 %v4472, %v4610
    %v4635 = vadd.f32 %v4473, %v4613
    %v4636 = vadd.f32 %v4474, %v4616
    %v4637 = vadd.f32 %v4475, %v4619
    %v4638 = vmax.f32 %v4621, 0.0
    %v4639 = vmax.f32 %v4622, 0.0
    %v4640 = vmax.f32 %v4623, 0.0
    %v4641 = vmax.f32 %v4624, 0.0
    %v4642 = vmax.f32 %v4625, 0.0
    %v4643 = vmax.f32 %v4626, 0.0
    %v4644 = vmax.f32 %v4627, 0.0
    %v4645 = vmax.f32 %v4628, 0.0
    %v4646 = vmax.f32 %v4629, 0.0
    %v4647 = vmax.f32 %v4630, 0.0
    %v4648 = vmax.f32 %v4631, 0.0
    %v4649 = vmax.f32 %v4632, 0.0
    %v4650 = vmax.f32 %v4633, 0.0
    %v4651 = vmax.f32 %v4634, 0.0
    %v4652 = vmax.f32 %v4635, 0.0
    %v4653 = vmax.f32 %v4636, 0.0
    %v4654 = vmax.f32 %v4637, 0.0
    %v4655 = vmul.f32 %v4638, %v1625
    %v4656 = vmul.f32 %v4639, %v1630
    %v4657 = vmul.f32 %v4640, %v1635
    %v4658 = vmul.f32 %v4641, %v1640
    %v4659 = vmul.f32 %v4642, %v1645
    %v4660 = vmul.f32 %v4643, %v1650
    %v4661 = vmul.f32 %v4644, %v1655
    %v4662 = vmul.f32 %v4645, %v1660
    %v4663 = vmul.f32 %v4646, %v1665
    %v4664 = vmul.f32 %v4647, %v1670
    %v4665 = vmul.f32 %v4648, %v1675
    %v4666 = vmul.f32 %v4649, %v1680
    %v4667 = vmul.f32 %v4650, %v1685
    %v4668 = vmul.f32 %v4651, %v1690
    %v4669 = vmul.f32 %v4652, %v1695
    %v4670 = vmul.f32 %v4653, %v1700
    %v4671 = vmul.f32 %v4654, %v1705
    %vm4672 = vcmask 261120
    %4673 = vst.msk [vmem:[#allocation2 + $0x18] sm:$0xff] %vm4672, %v4655
    %4674 = vst.msk [vmem:[#allocation2 + $0x20] sm:$0xff] %vm4672, %v4656
    %4675 = vst.msk [vmem:[#allocation2 + $0x28] sm:$0xff] %vm4672, %v4657
    %4676 = vst.msk [vmem:[#allocation2 + $0x30] sm:$0xff] %vm4672, %v4658
    %4677 = vst.msk [vmem:[#allocation2 + $0x38] sm:$0xff] %vm4672, %v4659
    %4678 = vst.msk [vmem:[#allocation2 + $0x40] sm:$0xff] %vm4672, %v4660
    %4679 = vst.msk [vmem:[#allocation2 + $0x48] sm:$0xff] %vm4672, %v4661
    %4680 = vst.msk [vmem:[#allocation2 + $0x50] sm:$0xff] %vm4672, %v4662
    %4681 = vst.msk [vmem:[#allocation2 + $0x58] sm:$0xff] %vm4672, %v4663
    %4682 = vst.msk [vmem:[#allocation2 + $0x60] sm:$0xff] %vm4672, %v4664
    %4683 = vst.msk [vmem:[#allocation2 + $0x68] sm:$0xff] %vm4672, %v4665
    %4684 = vst.msk [vmem:[#allocation2 + $0x70] sm:$0xff] %vm4672, %v4666
    %4685 = vst.msk [vmem:[#allocation2 + $0x78] sm:$0xff] %vm4672, %v4667
    %4686 = vst.msk [vmem:[#allocation2 + $0x80] sm:$0xff] %vm4672, %v4668
    %4687 = vst.msk [vmem:[#allocation2 + $0x88] sm:$0xff] %vm4672, %v4669
    %4688 = vst.msk [vmem:[#allocation2 + $0x90] sm:$0xff] %vm4672, %v4670
    %vm4689 = vcmask 257024
    %4690 = vst.msk [vmem:[#allocation2 + $0x98] sm:$0xf] %vm4689, %v4671
    %v4691 = vld [vmem:[#allocation2 + $0x30] sm:$0x3]
    %v4692 = vld [vmem:[#allocation12] sm:$0xff]
    %v4693 = vld [vmem:[#allocation12 + $0x8] sm:$0xff]
    %v4694 = vld [vmem:[#allocation12 + $0x10] sm:$0xff]
    %v4695 = vld [vmem:[#allocation12 + $0x18] sm:$0xff]
    %v4696 = vld [vmem:[#allocation12 + $0x20] sm:$0xff]
    %v4697 = vld [vmem:[#allocation12 + $0x28] sm:$0xff]
    %v4698 = vld [vmem:[#allocation12 + $0x30] sm:$0xff]
    %v4699 = vld [vmem:[#allocation12 + $0x38] sm:$0xff]
    %v4700 = vld [vmem:[#allocation12 + $0x40] sm:$0xff]
    %v4701 = vld [vmem:[#allocation12 + $0x48] sm:$0xff]
    %v4702 = vld [vmem:[#allocation12 + $0x50] sm:$0xff]
    %v4703 = vld [vmem:[#allocation12 + $0x58] sm:$0xff]
    %v4704 = vld [vmem:[#allocation12 + $0x60] sm:$0xff]
    %v4705 = vld [vmem:[#allocation12 + $0x68] sm:$0xff]
    %v4706 = vld [vmem:[#allocation12 + $0x70] sm:$0xff]
    %v4707 = vld [vmem:[#allocation12 + $0x78] sm:$0xff]
    %v4708 = vld [vmem:[#allocation2 + $0x32] sm:$0x3]
    %s4709 = scalar_lea.vmem [#allocation12], 128
    %v4710 = vld [vmem:[%s4709] sm:$0xff]
    %v4711 = vld [vmem:[%s4709 + $0x8] sm:$0xff]
    %v4712 = vld [vmem:[%s4709 + $0x10] sm:$0xff]
    %v4713 = vld [vmem:[%s4709 + $0x18] sm:$0xff]
    %v4714 = vld [vmem:[%s4709 + $0x20] sm:$0xff]
    %v4715 = vld [vmem:[%s4709 + $0x28] sm:$0xff]
    %v4716 = vld [vmem:[%s4709 + $0x30] sm:$0xff]
    %v4717 = vld [vmem:[%s4709 + $0x38] sm:$0xff]
    %v4718 = vld [vmem:[%s4709 + $0x40] sm:$0xff]
    %v4719 = vld [vmem:[%s4709 + $0x48] sm:$0xff]
    %v4720 = vld [vmem:[%s4709 + $0x50] sm:$0xff]
    %v4721 = vld [vmem:[%s4709 + $0x58] sm:$0xff]
    %v4722 = vld [vmem:[%s4709 + $0x60] sm:$0xff]
    %v4723 = vld [vmem:[%s4709 + $0x68] sm:$0xff]
    %v4724 = vld [vmem:[%s4709 + $0x70] sm:$0xff]
    %v4725 = vld [vmem:[%s4709 + $0x78] sm:$0xff]
    %v4727 = vsel %vm4672, %v4708, 0
    %4729 = vmatpush.msra.mxu0 0.0
    %4730 = vmatpush.msra.mxu0 0.0
    %4731 = vmatpush.msra.mxu0 0.0
    %4732 = vmatpush.msra.mxu0 0.0
    %4733 = vmatpush.msra.mxu0 0.0
    %4734 = vmatpush.msra.mxu0 0.0
    %4735 = vmatpush.msra.mxu0 0.0
    %4736 = vmatpush.msra.mxu0 0.0
    %4737 = vmatpush.msra.mxu0 0.0
    %4738 = vmatpush.msra.mxu0 0.0
    %4739 = vmatpush.msra.mxu0 0.0
    %4740 = vmatpush.msra.mxu0 0.0
    %4741 = vmatpush.msra.mxu0 %v4722
    %4742 = vmatpush.msra.mxu0 %v4718
    %4743 = vmatpush.msra.mxu0 %v4714
    %4744 = vmatpush.msra.mxu0 %v4710
    %4745 = vmatmul.f32.gmra.mxu0 %v4727
    %v4746 = vpop.f32.mrf.mxu0
    %v4747 = vadd.f32 0.0, %v4746
    %4748 = vdwg.mxu0
    %4749 = vmatpush.msra.mxu0 0.0
    %4750 = vmatpush.msra.mxu0 0.0
    %4751 = vmatpush.msra.mxu0 0.0
    %4752 = vmatpush.msra.mxu0 0.0
    %4753 = vmatpush.msra.mxu0 0.0
    %4754 = vmatpush.msra.mxu0 0.0
    %4755 = vmatpush.msra.mxu0 0.0
    %4756 = vmatpush.msra.mxu0 0.0
    %4757 = vmatpush.msra.mxu0 0.0
    %4758 = vmatpush.msra.mxu0 0.0
    %4759 = vmatpush.msra.mxu0 0.0
    %4760 = vmatpush.msra.mxu0 0.0
    %4761 = vmatpush.msra.mxu0 %v4723
    %4762 = vmatpush.msra.mxu0 %v4719
    %4763 = vmatpush.msra.mxu0 %v4715
    %4764 = vmatpush.msra.mxu0 %v4711
    %4765 = vmatmul.f32.gmra.mxu0 %v4727
    %v4766 = vpop.f32.mrf.mxu0
    %v4767 = vadd.f32 0.0, %v4766
    %4768 = vdwg.mxu0
    %4769 = vmatpush.msra.mxu0 0.0
    %4770 = vmatpush.msra.mxu0 0.0
    %4771 = vmatpush.msra.mxu0 0.0
    %4772 = vmatpush.msra.mxu0 0.0
    %4773 = vmatpush.msra.mxu0 0.0
    %4774 = vmatpush.msra.mxu0 0.0
    %4775 = vmatpush.msra.mxu0 0.0
    %4776 = vmatpush.msra.mxu0 0.0
    %4777 = vmatpush.msra.mxu0 0.0
    %4778 = vmatpush.msra.mxu0 0.0
    %4779 = vmatpush.msra.mxu0 0.0
    %4780 = vmatpush.msra.mxu0 0.0
    %4781 = vmatpush.msra.mxu0 %v4724
    %4782 = vmatpush.msra.mxu0 %v4720
    %4783 = vmatpush.msra.mxu0 %v4716
    %4784 = vmatpush.msra.mxu0 %v4712
    %4785 = vmatmul.f32.gmra.mxu0 %v4727
    %v4786 = vpop.f32.mrf.mxu0
    %v4787 = vadd.f32 0.0, %v4786
    %4788 = vdwg.mxu0
    %4789 = vmatpush.msra.mxu0 0.0
    %4790 = vmatpush.msra.mxu0 0.0
    %4791 = vmatpush.msra.mxu0 0.0
    %4792 = vmatpush.msra.mxu0 0.0
    %4793 = vmatpush.msra.mxu0 0.0
    %4794 = vmatpush.msra.mxu0 0.0
    %4795 = vmatpush.msra.mxu0 0.0
    %4796 = vmatpush.msra.mxu0 0.0
    %4797 = vmatpush.msra.mxu0 0.0
    %4798 = vmatpush.msra.mxu0 0.0
    %4799 = vmatpush.msra.mxu0 0.0
    %4800 = vmatpush.msra.mxu0 0.0
    %4801 = vmatpush.msra.mxu0 %v4725
    %4802 = vmatpush.msra.mxu0 %v4721
    %4803 = vmatpush.msra.mxu0 %v4717
    %4804 = vmatpush.msra.mxu0 %v4713
    %4805 = vmatmul.f32.gmra.mxu0 %v4727
    %v4806 = vpop.f32.mrf.mxu0
    %v4807 = vadd.f32 0.0, %v4806
    %4808 = vdwg.mxu0
    %v4810 = vsel %vm4672, %v4691, 0
    %4812 = vmatpush.msra.mxu0 0.0
    %4813 = vmatpush.msra.mxu0 0.0
    %4814 = vmatpush.msra.mxu0 0.0
    %4815 = vmatpush.msra.mxu0 0.0
    %4816 = vmatpush.msra.mxu0 0.0
    %4817 = vmatpush.msra.mxu0 0.0
    %4818 = vmatpush.msra.mxu0 0.0
    %4819 = vmatpush.msra.mxu0 0.0
    %4820 = vmatpush.msra.mxu0 0.0
    %4821 = vmatpush.msra.mxu0 0.0
    %4822 = vmatpush.msra.mxu0 0.0
    %4823 = vmatpush.msra.mxu0 0.0
    %4824 = vmatpush.msra.mxu0 %v4704
    %4825 = vmatpush.msra.mxu0 %v4700
    %4826 = vmatpush.msra.mxu0 %v4696
    %4827 = vmatpush.msra.mxu0 %v4692
    %4828 = vmatmul.f32.gmra.mxu0 %v4810
    %v4829 = vpop.f32.mrf.mxu0
    %v4830 = vadd.f32 %v4747, %v4829
    %4831 = vdwg.mxu0
    %4832 = vmatpush.msra.mxu0 0.0
    %4833 = vmatpush.msra.mxu0 0.0
    %4834 = vmatpush.msra.mxu0 0.0
    %4835 = vmatpush.msra.mxu0 0.0
    %4836 = vmatpush.msra.mxu0 0.0
    %4837 = vmatpush.msra.mxu0 0.0
    %4838 = vmatpush.msra.mxu0 0.0
    %4839 = vmatpush.msra.mxu0 0.0
    %4840 = vmatpush.msra.mxu0 0.0
    %4841 = vmatpush.msra.mxu0 0.0
    %4842 = vmatpush.msra.mxu0 0.0
    %4843 = vmatpush.msra.mxu0 0.0
    %4844 = vmatpush.msra.mxu0 %v4705
    %4845 = vmatpush.msra.mxu0 %v4701
    %4846 = vmatpush.msra.mxu0 %v4697
    %4847 = vmatpush.msra.mxu0 %v4693
    %4848 = vmatmul.f32.gmra.mxu0 %v4810
    %v4849 = vpop.f32.mrf.mxu0
    %v4850 = vadd.f32 %v4767, %v4849
    %4851 = vdwg.mxu0
    %4852 = vmatpush.msra.mxu0 0.0
    %4853 = vmatpush.msra.mxu0 0.0
    %4854 = vmatpush.msra.mxu0 0.0
    %4855 = vmatpush.msra.mxu0 0.0
    %4856 = vmatpush.msra.mxu0 0.0
    %4857 = vmatpush.msra.mxu0 0.0
    %4858 = vmatpush.msra.mxu0 0.0
    %4859 = vmatpush.msra.mxu0 0.0
    %4860 = vmatpush.msra.mxu0 0.0
    %4861 = vmatpush.msra.mxu0 0.0
    %4862 = vmatpush.msra.mxu0 0.0
    %4863 = vmatpush.msra.mxu0 0.0
    %4864 = vmatpush.msra.mxu0 %v4706
    %4865 = vmatpush.msra.mxu0 %v4702
    %4866 = vmatpush.msra.mxu0 %v4698
    %4867 = vmatpush.msra.mxu0 %v4694
    %4868 = vmatmul.f32.gmra.mxu0 %v4810
    %v4869 = vpop.f32.mrf.mxu0
    %v4870 = vadd.f32 %v4787, %v4869
    %4871 = vdwg.mxu0
    %4872 = vmatpush.msra.mxu0 0.0
    %4873 = vmatpush.msra.mxu0 0.0
    %4874 = vmatpush.msra.mxu0 0.0
    %4875 = vmatpush.msra.mxu0 0.0
    %4876 = vmatpush.msra.mxu0 0.0
    %4877 = vmatpush.msra.mxu0 0.0
    %4878 = vmatpush.msra.mxu0 0.0
    %4879 = vmatpush.msra.mxu0 0.0
    %4880 = vmatpush.msra.mxu0 0.0
    %4881 = vmatpush.msra.mxu0 0.0
    %4882 = vmatpush.msra.mxu0 0.0
    %4883 = vmatpush.msra.mxu0 0.0
    %4884 = vmatpush.msra.mxu0 %v4707
    %4885 = vmatpush.msra.mxu0 %v4703
    %4886 = vmatpush.msra.mxu0 %v4699
    %4887 = vmatpush.msra.mxu0 %v4695
    %4888 = vmatmul.f32.gmra.mxu0 %v4810
    %v4889 = vpop.f32.mrf.mxu0
    %v4890 = vadd.f32 %v4807, %v4889
    %4891 = vdwg.mxu0
    %v4892 = vld [vmem:[#allocation2 + $0x34] sm:$0x3]
    %s4893 = scalar_lea.vmem [#allocation12], 256
    %v4894 = vld [vmem:[%s4893] sm:$0xff]
    %v4895 = vld [vmem:[%s4893 + $0x8] sm:$0xff]
    %v4896 = vld [vmem:[%s4893 + $0x10] sm:$0xff]
    %v4897 = vld [vmem:[%s4893 + $0x18] sm:$0xff]
    %v4898 = vld [vmem:[%s4893 + $0x20] sm:$0xff]
    %v4899 = vld [vmem:[%s4893 + $0x28] sm:$0xff]
    %v4900 = vld [vmem:[%s4893 + $0x30] sm:$0xff]
    %v4901 = vld [vmem:[%s4893 + $0x38] sm:$0xff]
    %v4902 = vld [vmem:[%s4893 + $0x40] sm:$0xff]
    %v4903 = vld [vmem:[%s4893 + $0x48] sm:$0xff]
    %v4904 = vld [vmem:[%s4893 + $0x50] sm:$0xff]
    %v4905 = vld [vmem:[%s4893 + $0x58] sm:$0xff]
    %v4906 = vld [vmem:[%s4893 + $0x60] sm:$0xff]
    %v4907 = vld [vmem:[%s4893 + $0x68] sm:$0xff]
    %v4908 = vld [vmem:[%s4893 + $0x70] sm:$0xff]
    %v4909 = vld [vmem:[%s4893 + $0x78] sm:$0xff]
    %v4911 = vsel %vm4672, %v4892, 0
    %4913 = vmatpush.msra.mxu0 0.0
    %4914 = vmatpush.msra.mxu0 0.0
    %4915 = vmatpush.msra.mxu0 0.0
    %4916 = vmatpush.msra.mxu0 0.0
    %4917 = vmatpush.msra.mxu0 0.0
    %4918 = vmatpush.msra.mxu0 0.0
    %4919 = vmatpush.msra.mxu0 0.0
    %4920 = vmatpush.msra.mxu0 0.0
    %4921 = vmatpush.msra.mxu0 0.0
    %4922 = vmatpush.msra.mxu0 0.0
    %4923 = vmatpush.msra.mxu0 0.0
    %4924 = vmatpush.msra.mxu0 0.0
    %4925 = vmatpush.msra.mxu0 %v4906
    %4926 = vmatpush.msra.mxu0 %v4902
    %4927 = vmatpush.msra.mxu0 %v4898
    %4928 = vmatpush.msra.mxu0 %v4894
    %4929 = vmatmul.f32.gmra.mxu0 %v4911
    %v4930 = vpop.f32.mrf.mxu0
    %v4931 = vadd.f32 0.0, %v4930
    %4932 = vdwg.mxu0
    %4933 = vmatpush.msra.mxu0 0.0
    %4934 = vmatpush.msra.mxu0 0.0
    %4935 = vmatpush.msra.mxu0 0.0
    %4936 = vmatpush.msra.mxu0 0.0
    %4937 = vmatpush.msra.mxu0 0.0
    %4938 = vmatpush.msra.mxu0 0.0
    %4939 = vmatpush.msra.mxu0 0.0
    %4940 = vmatpush.msra.mxu0 0.0
    %4941 = vmatpush.msra.mxu0 0.0
    %4942 = vmatpush.msra.mxu0 0.0
    %4943 = vmatpush.msra.mxu0 0.0
    %4944 = vmatpush.msra.mxu0 0.0
    %4945 = vmatpush.msra.mxu0 %v4907
    %4946 = vmatpush.msra.mxu0 %v4903
    %4947 = vmatpush.msra.mxu0 %v4899
    %4948 = vmatpush.msra.mxu0 %v4895
    %4949 = vmatmul.f32.gmra.mxu0 %v4911
    %v4950 = vpop.f32.mrf.mxu0
    %v4951 = vadd.f32 0.0, %v4950
    %4952 = vdwg.mxu0
    %4953 = vmatpush.msra.mxu0 0.0
    %4954 = vmatpush.msra.mxu0 0.0
    %4955 = vmatpush.msra.mxu0 0.0
    %4956 = vmatpush.msra.mxu0 0.0
    %4957 = vmatpush.msra.mxu0 0.0
    %4958 = vmatpush.msra.mxu0 0.0
    %4959 = vmatpush.msra.mxu0 0.0
    %4960 = vmatpush.msra.mxu0 0.0
    %4961 = vmatpush.msra.mxu0 0.0
    %4962 = vmatpush.msra.mxu0 0.0
    %4963 = vmatpush.msra.mxu0 0.0
    %4964 = vmatpush.msra.mxu0 0.0
    %4965 = vmatpush.msra.mxu0 %v4908
    %4966 = vmatpush.msra.mxu0 %v4904
    %4967 = vmatpush.msra.mxu0 %v4900
    %4968 = vmatpush.msra.mxu0 %v4896
    %4969 = vmatmul.f32.gmra.mxu0 %v4911
    %v4970 = vpop.f32.mrf.mxu0
    %v4971 = vadd.f32 0.0, %v4970
    %4972 = vdwg.mxu0
    %4973 = vmatpush.msra.mxu0 0.0
    %4974 = vmatpush.msra.mxu0 0.0
    %4975 = vmatpush.msra.mxu0 0.0
    %4976 = vmatpush.msra.mxu0 0.0
    %4977 = vmatpush.msra.mxu0 0.0
    %4978 = vmatpush.msra.mxu0 0.0
    %4979 = vmatpush.msra.mxu0 0.0
    %4980 = vmatpush.msra.mxu0 0.0
    %4981 = vmatpush.msra.mxu0 0.0
    %4982 = vmatpush.msra.mxu0 0.0
    %4983 = vmatpush.msra.mxu0 0.0
    %4984 = vmatpush.msra.mxu0 0.0
    %4985 = vmatpush.msra.mxu0 %v4909
    %4986 = vmatpush.msra.mxu0 %v4905
    %4987 = vmatpush.msra.mxu0 %v4901
    %4988 = vmatpush.msra.mxu0 %v4897
    %4989 = vmatmul.f32.gmra.mxu0 %v4911
    %v4990 = vpop.f32.mrf.mxu0
    %v4991 = vadd.f32 0.0, %v4990
    %4992 = vdwg.mxu0
    %v4993 = vadd.f32 %v4830, %v4931
    %v4994 = vadd.f32 %v4850, %v4951
    %v4995 = vadd.f32 %v4870, %v4971
    %v4996 = vadd.f32 %v4890, %v4991
    %v4997 = vld [vmem:[#allocation2 + $0x36] sm:$0x3]
    %s4998 = scalar_lea.vmem [#allocation12], 384
    %v4999 = vld [vmem:[%s4998] sm:$0xff]
    %v5000 = vld [vmem:[%s4998 + $0x8] sm:$0xff]
    %v5001 = vld [vmem:[%s4998 + $0x10] sm:$0xff]
    %v5002 = vld [vmem:[%s4998 + $0x18] sm:$0xff]
    %v5003 = vld [vmem:[%s4998 + $0x20] sm:$0xff]
    %v5004 = vld [vmem:[%s4998 + $0x28] sm:$0xff]
    %v5005 = vld [vmem:[%s4998 + $0x30] sm:$0xff]
    %v5006 = vld [vmem:[%s4998 + $0x38] sm:$0xff]
    %v5007 = vld [vmem:[%s4998 + $0x40] sm:$0xff]
    %v5008 = vld [vmem:[%s4998 + $0x48] sm:$0xff]
    %v5009 = vld [vmem:[%s4998 + $0x50] sm:$0xff]
    %v5010 = vld [vmem:[%s4998 + $0x58] sm:$0xff]
    %v5011 = vld [vmem:[%s4998 + $0x60] sm:$0xff]
    %v5012 = vld [vmem:[%s4998 + $0x68] sm:$0xff]
    %v5013 = vld [vmem:[%s4998 + $0x70] sm:$0xff]
    %v5014 = vld [vmem:[%s4998 + $0x78] sm:$0xff]
    %v5016 = vsel %vm4672, %v4997, 0
    %5018 = vmatpush.msra.mxu0 0.0
    %5019 = vmatpush.msra.mxu0 0.0
    %5020 = vmatpush.msra.mxu0 0.0
    %5021 = vmatpush.msra.mxu0 0.0
    %5022 = vmatpush.msra.mxu0 0.0
    %5023 = vmatpush.msra.mxu0 0.0
    %5024 = vmatpush.msra.mxu0 0.0
    %5025 = vmatpush.msra.mxu0 0.0
    %5026 = vmatpush.msra.mxu0 0.0
    %5027 = vmatpush.msra.mxu0 0.0
    %5028 = vmatpush.msra.mxu0 0.0
    %5029 = vmatpush.msra.mxu0 0.0
    %5030 = vmatpush.msra.mxu0 %v5011
    %5031 = vmatpush.msra.mxu0 %v5007
    %5032 = vmatpush.msra.mxu0 %v5003
    %5033 = vmatpush.msra.mxu0 %v4999
    %5034 = vmatmul.f32.gmra.mxu0 %v5016
    %v5035 = vpop.f32.mrf.mxu0
    %v5036 = vadd.f32 0.0, %v5035
    %5037 = vdwg.mxu0
    %5038 = vmatpush.msra.mxu0 0.0
    %5039 = vmatpush.msra.mxu0 0.0
    %5040 = vmatpush.msra.mxu0 0.0
    %5041 = vmatpush.msra.mxu0 0.0
    %5042 = vmatpush.msra.mxu0 0.0
    %5043 = vmatpush.msra.mxu0 0.0
    %5044 = vmatpush.msra.mxu0 0.0
    %5045 = vmatpush.msra.mxu0 0.0
    %5046 = vmatpush.msra.mxu0 0.0
    %5047 = vmatpush.msra.mxu0 0.0
    %5048 = vmatpush.msra.mxu0 0.0
    %5049 = vmatpush.msra.mxu0 0.0
    %5050 = vmatpush.msra.mxu0 %v5012
    %5051 = vmatpush.msra.mxu0 %v5008
    %5052 = vmatpush.msra.mxu0 %v5004
    %5053 = vmatpush.msra.mxu0 %v5000
    %5054 = vmatmul.f32.gmra.mxu0 %v5016
    %v5055 = vpop.f32.mrf.mxu0
    %v5056 = vadd.f32 0.0, %v5055
    %5057 = vdwg.mxu0
    %5058 = vmatpush.msra.mxu0 0.0
    %5059 = vmatpush.msra.mxu0 0.0
    %5060 = vmatpush.msra.mxu0 0.0
    %5061 = vmatpush.msra.mxu0 0.0
    %5062 = vmatpush.msra.mxu0 0.0
    %5063 = vmatpush.msra.mxu0 0.0
    %5064 = vmatpush.msra.mxu0 0.0
    %5065 = vmatpush.msra.mxu0 0.0
    %5066 = vmatpush.msra.mxu0 0.0
    %5067 = vmatpush.msra.mxu0 0.0
    %5068 = vmatpush.msra.mxu0 0.0
    %5069 = vmatpush.msra.mxu0 0.0
    %5070 = vmatpush.msra.mxu0 %v5013
    %5071 = vmatpush.msra.mxu0 %v5009
    %5072 = vmatpush.msra.mxu0 %v5005
    %5073 = vmatpush.msra.mxu0 %v5001
    %5074 = vmatmul.f32.gmra.mxu0 %v5016
    %v5075 = vpop.f32.mrf.mxu0
    %v5076 = vadd.f32 0.0, %v5075
    %5077 = vdwg.mxu0
    %5078 = vmatpush.msra.mxu0 0.0
    %5079 = vmatpush.msra.mxu0 0.0
    %5080 = vmatpush.msra.mxu0 0.0
    %5081 = vmatpush.msra.mxu0 0.0
    %5082 = vmatpush.msra.mxu0 0.0
    %5083 = vmatpush.msra.mxu0 0.0
    %5084 = vmatpush.msra.mxu0 0.0
    %5085 = vmatpush.msra.mxu0 0.0
    %5086 = vmatpush.msra.mxu0 0.0
    %5087 = vmatpush.msra.mxu0 0.0
    %5088 = vmatpush.msra.mxu0 0.0
    %5089 = vmatpush.msra.mxu0 0.0
    %5090 = vmatpush.msra.mxu0 %v5014
    %5091 = vmatpush.msra.mxu0 %v5010
    %5092 = vmatpush.msra.mxu0 %v5006
    %5093 = vmatpush.msra.mxu0 %v5002
    %5094 = vmatmul.f32.gmra.mxu0 %v5016
    %v5095 = vpop.f32.mrf.mxu0
    %v5096 = vadd.f32 0.0, %v5095
    %5097 = vdwg.mxu0
    %v5098 = vadd.f32 %v4993, %v5036
    %v5099 = vadd.f32 %v4994, %v5056
    %v5100 = vadd.f32 %v4995, %v5076
    %v5101 = vadd.f32 %v4996, %v5096
    %v5102 = vld [vmem:[#allocation2 + $0x38] sm:$0x3]
    %s5103 = scalar_lea.vmem [#allocation12], 512
    %v5104 = vld [vmem:[%s5103] sm:$0xff]
    %v5105 = vld [vmem:[%s5103 + $0x8] sm:$0xff]
    %v5106 = vld [vmem:[%s5103 + $0x10] sm:$0xff]
    %v5107 = vld [vmem:[%s5103 + $0x18] sm:$0xff]
    %v5108 = vld [vmem:[%s5103 + $0x20] sm:$0xff]
    %v5109 = vld [vmem:[%s5103 + $0x28] sm:$0xff]
    %v5110 = vld [vmem:[%s5103 + $0x30] sm:$0xff]
    %v5111 = vld [vmem:[%s5103 + $0x38] sm:$0xff]
    %v5112 = vld [vmem:[%s5103 + $0x40] sm:$0xff]
    %v5113 = vld [vmem:[%s5103 + $0x48] sm:$0xff]
    %v5114 = vld [vmem:[%s5103 + $0x50] sm:$0xff]
    %v5115 = vld [vmem:[%s5103 + $0x58] sm:$0xff]
    %v5116 = vld [vmem:[%s5103 + $0x60] sm:$0xff]
    %v5117 = vld [vmem:[%s5103 + $0x68] sm:$0xff]
    %v5118 = vld [vmem:[%s5103 + $0x70] sm:$0xff]
    %v5119 = vld [vmem:[%s5103 + $0x78] sm:$0xff]
    %v5121 = vsel %vm4672, %v5102, 0
    %5123 = vmatpush.msra.mxu0 0.0
    %5124 = vmatpush.msra.mxu0 0.0
    %5125 = vmatpush.msra.mxu0 0.0
    %5126 = vmatpush.msra.mxu0 0.0
    %5127 = vmatpush.msra.mxu0 0.0
    %5128 = vmatpush.msra.mxu0 0.0
    %5129 = vmatpush.msra.mxu0 0.0
    %5130 = vmatpush.msra.mxu0 0.0
    %5131 = vmatpush.msra.mxu0 0.0
    %5132 = vmatpush.msra.mxu0 0.0
    %5133 = vmatpush.msra.mxu0 0.0
    %5134 = vmatpush.msra.mxu0 0.0
    %5135 = vmatpush.msra.mxu0 %v5116
    %5136 = vmatpush.msra.mxu0 %v5112
    %5137 = vmatpush.msra.mxu0 %v5108
    %5138 = vmatpush.msra.mxu0 %v5104
    %5139 = vmatmul.f32.gmra.mxu0 %v5121
    %v5140 = vpop.f32.mrf.mxu0
    %v5141 = vadd.f32 0.0, %v5140
    %5142 = vdwg.mxu0
    %5143 = vmatpush.msra.mxu0 0.0
    %5144 = vmatpush.msra.mxu0 0.0
    %5145 = vmatpush.msra.mxu0 0.0
    %5146 = vmatpush.msra.mxu0 0.0
    %5147 = vmatpush.msra.mxu0 0.0
    %5148 = vmatpush.msra.mxu0 0.0
    %5149 = vmatpush.msra.mxu0 0.0
    %5150 = vmatpush.msra.mxu0 0.0
    %5151 = vmatpush.msra.mxu0 0.0
    %5152 = vmatpush.msra.mxu0 0.0
    %5153 = vmatpush.msra.mxu0 0.0
    %5154 = vmatpush.msra.mxu0 0.0
    %5155 = vmatpush.msra.mxu0 %v5117
    %5156 = vmatpush.msra.mxu0 %v5113
    %5157 = vmatpush.msra.mxu0 %v5109
    %5158 = vmatpush.msra.mxu0 %v5105
    %5159 = vmatmul.f32.gmra.mxu0 %v5121
    %v5160 = vpop.f32.mrf.mxu0
    %v5161 = vadd.f32 0.0, %v5160
    %5162 = vdwg.mxu0
    %5163 = vmatpush.msra.mxu0 0.0
    %5164 = vmatpush.msra.mxu0 0.0
    %5165 = vmatpush.msra.mxu0 0.0
    %5166 = vmatpush.msra.mxu0 0.0
    %5167 = vmatpush.msra.mxu0 0.0
    %5168 = vmatpush.msra.mxu0 0.0
    %5169 = vmatpush.msra.mxu0 0.0
    %5170 = vmatpush.msra.mxu0 0.0
    %5171 = vmatpush.msra.mxu0 0.0
    %5172 = vmatpush.msra.mxu0 0.0
    %5173 = vmatpush.msra.mxu0 0.0
    %5174 = vmatpush.msra.mxu0 0.0
    %5175 = vmatpush.msra.mxu0 %v5118
    %5176 = vmatpush.msra.mxu0 %v5114
    %5177 = vmatpush.msra.mxu0 %v5110
    %5178 = vmatpush.msra.mxu0 %v5106
    %5179 = vmatmul.f32.gmra.mxu0 %v5121
    %v5180 = vpop.f32.mrf.mxu0
    %v5181 = vadd.f32 0.0, %v5180
    %5182 = vdwg.mxu0
    %5183 = vmatpush.msra.mxu0 0.0
    %5184 = vmatpush.msra.mxu0 0.0
    %5185 = vmatpush.msra.mxu0 0.0
    %5186 = vmatpush.msra.mxu0 0.0
    %5187 = vmatpush.msra.mxu0 0.0
    %5188 = vmatpush.msra.mxu0 0.0
    %5189 = vmatpush.msra.mxu0 0.0
    %5190 = vmatpush.msra.mxu0 0.0
    %5191 = vmatpush.msra.mxu0 0.0
    %5192 = vmatpush.msra.mxu0 0.0
    %5193 = vmatpush.msra.mxu0 0.0
    %5194 = vmatpush.msra.mxu0 0.0
    %5195 = vmatpush.msra.mxu0 %v5119
    %5196 = vmatpush.msra.mxu0 %v5115
    %5197 = vmatpush.msra.mxu0 %v5111
    %5198 = vmatpush.msra.mxu0 %v5107
    %5199 = vmatmul.f32.gmra.mxu0 %v5121
    %v5200 = vpop.f32.mrf.mxu0
    %v5201 = vadd.f32 0.0, %v5200
    %5202 = vdwg.mxu0
    %v5203 = vadd.f32 %v5098, %v5141
    %v5204 = vadd.f32 %v5099, %v5161
    %v5205 = vadd.f32 %v5100, %v5181
    %v5206 = vadd.f32 %v5101, %v5201
    %v5207 = vld [vmem:[#allocation2 + $0x3a] sm:$0x3]
    %s5208 = scalar_lea.vmem [#allocation12], 640
    %v5209 = vld [vmem:[%s5208] sm:$0xff]
    %v5210 = vld [vmem:[%s5208 + $0x8] sm:$0xff]
    %v5211 = vld [vmem:[%s5208 + $0x10] sm:$0xff]
    %v5212 = vld [vmem:[%s5208 + $0x18] sm:$0xff]
    %v5213 = vld [vmem:[%s5208 + $0x20] sm:$0xff]
    %v5214 = vld [vmem:[%s5208 + $0x28] sm:$0xff]
    %v5215 = vld [vmem:[%s5208 + $0x30] sm:$0xff]
    %v5216 = vld [vmem:[%s5208 + $0x38] sm:$0xff]
    %v5217 = vld [vmem:[%s5208 + $0x40] sm:$0xff]
    %v5218 = vld [vmem:[%s5208 + $0x48] sm:$0xff]
    %v5219 = vld [vmem:[%s5208 + $0x50] sm:$0xff]
    %v5220 = vld [vmem:[%s5208 + $0x58] sm:$0xff]
    %v5221 = vld [vmem:[%s5208 + $0x60] sm:$0xff]
    %v5222 = vld [vmem:[%s5208 + $0x68] sm:$0xff]
    %v5223 = vld [vmem:[%s5208 + $0x70] sm:$0xff]
    %v5224 = vld [vmem:[%s5208 + $0x78] sm:$0xff]
    %v5226 = vsel %vm4672, %v5207, 0
    %5228 = vmatpush.msra.mxu0 0.0
    %5229 = vmatpush.msra.mxu0 0.0
    %5230 = vmatpush.msra.mxu0 0.0
    %5231 = vmatpush.msra.mxu0 0.0
    %5232 = vmatpush.msra.mxu0 0.0
    %5233 = vmatpush.msra.mxu0 0.0
    %5234 = vmatpush.msra.mxu0 0.0
    %5235 = vmatpush.msra.mxu0 0.0
    %5236 = vmatpush.msra.mxu0 0.0
    %5237 = vmatpush.msra.mxu0 0.0
    %5238 = vmatpush.msra.mxu0 0.0
    %5239 = vmatpush.msra.mxu0 0.0
    %5240 = vmatpush.msra.mxu0 %v5221
    %5241 = vmatpush.msra.mxu0 %v5217
    %5242 = vmatpush.msra.mxu0 %v5213
    %5243 = vmatpush.msra.mxu0 %v5209
    %5244 = vmatmul.f32.gmra.mxu0 %v5226
    %v5245 = vpop.f32.mrf.mxu0
    %v5246 = vadd.f32 0.0, %v5245
    %5247 = vdwg.mxu0
    %5248 = vmatpush.msra.mxu0 0.0
    %5249 = vmatpush.msra.mxu0 0.0
    %5250 = vmatpush.msra.mxu0 0.0
    %5251 = vmatpush.msra.mxu0 0.0
    %5252 = vmatpush.msra.mxu0 0.0
    %5253 = vmatpush.msra.mxu0 0.0
    %5254 = vmatpush.msra.mxu0 0.0
    %5255 = vmatpush.msra.mxu0 0.0
    %5256 = vmatpush.msra.mxu0 0.0
    %5257 = vmatpush.msra.mxu0 0.0
    %5258 = vmatpush.msra.mxu0 0.0
    %5259 = vmatpush.msra.mxu0 0.0
    %5260 = vmatpush.msra.mxu0 %v5222
    %5261 = vmatpush.msra.mxu0 %v5218
    %5262 = vmatpush.msra.mxu0 %v5214
    %5263 = vmatpush.msra.mxu0 %v5210
    %5264 = vmatmul.f32.gmra.mxu0 %v5226
    %v5265 = vpop.f32.mrf.mxu0
    %v5266 = vadd.f32 0.0, %v5265
    %5267 = vdwg.mxu0
    %5268 = vmatpush.msra.mxu0 0.0
    %5269 = vmatpush.msra.mxu0 0.0
    %5270 = vmatpush.msra.mxu0 0.0
    %5271 = vmatpush.msra.mxu0 0.0
    %5272 = vmatpush.msra.mxu0 0.0
    %5273 = vmatpush.msra.mxu0 0.0
    %5274 = vmatpush.msra.mxu0 0.0
    %5275 = vmatpush.msra.mxu0 0.0
    %5276 = vmatpush.msra.mxu0 0.0
    %5277 = vmatpush.msra.mxu0 0.0
    %5278 = vmatpush.msra.mxu0 0.0
    %5279 = vmatpush.msra.mxu0 0.0
    %5280 = vmatpush.msra.mxu0 %v5223
    %5281 = vmatpush.msra.mxu0 %v5219
    %5282 = vmatpush.msra.mxu0 %v5215
    %5283 = vmatpush.msra.mxu0 %v5211
    %5284 = vmatmul.f32.gmra.mxu0 %v5226
    %v5285 = vpop.f32.mrf.mxu0
    %v5286 = vadd.f32 0.0, %v5285
    %5287 = vdwg.mxu0
    %5288 = vmatpush.msra.mxu0 0.0
    %5289 = vmatpush.msra.mxu0 0.0
    %5290 = vmatpush.msra.mxu0 0.0
    %5291 = vmatpush.msra.mxu0 0.0
    %5292 = vmatpush.msra.mxu0 0.0
    %5293 = vmatpush.msra.mxu0 0.0
    %5294 = vmatpush.msra.mxu0 0.0
    %5295 = vmatpush.msra.mxu0 0.0
    %5296 = vmatpush.msra.mxu0 0.0
    %5297 = vmatpush.msra.mxu0 0.0
    %5298 = vmatpush.msra.mxu0 0.0
    %5299 = vmatpush.msra.mxu0 0.0
    %5300 = vmatpush.msra.mxu0 %v5224
    %5301 = vmatpush.msra.mxu0 %v5220
    %5302 = vmatpush.msra.mxu0 %v5216
    %5303 = vmatpush.msra.mxu0 %v5212
    %5304 = vmatmul.f32.gmra.mxu0 %v5226
    %v5305 = vpop.f32.mrf.mxu0
    %v5306 = vadd.f32 0.0, %v5305
    %5307 = vdwg.mxu0
    %v5308 = vadd.f32 %v5203, %v5246
    %v5309 = vadd.f32 %v5204, %v5266
    %v5310 = vadd.f32 %v5205, %v5286
    %v5311 = vadd.f32 %v5206, %v5306
    %v5312 = vld [vmem:[#allocation2 + $0x3c] sm:$0x3]
    %s5313 = scalar_lea.vmem [#allocation12], 768
    %v5314 = vld [vmem:[%s5313] sm:$0xff]
    %v5315 = vld [vmem:[%s5313 + $0x8] sm:$0xff]
    %v5316 = vld [vmem:[%s5313 + $0x10] sm:$0xff]
    %v5317 = vld [vmem:[%s5313 + $0x18] sm:$0xff]
    %v5318 = vld [vmem:[%s5313 + $0x20] sm:$0xff]
    %v5319 = vld [vmem:[%s5313 + $0x28] sm:$0xff]
    %v5320 = vld [vmem:[%s5313 + $0x30] sm:$0xff]
    %v5321 = vld [vmem:[%s5313 + $0x38] sm:$0xff]
    %v5322 = vld [vmem:[%s5313 + $0x40] sm:$0xff]
    %v5323 = vld [vmem:[%s5313 + $0x48] sm:$0xff]
    %v5324 = vld [vmem:[%s5313 + $0x50] sm:$0xff]
    %v5325 = vld [vmem:[%s5313 + $0x58] sm:$0xff]
    %v5326 = vld [vmem:[%s5313 + $0x60] sm:$0xff]
    %v5327 = vld [vmem:[%s5313 + $0x68] sm:$0xff]
    %v5328 = vld [vmem:[%s5313 + $0x70] sm:$0xff]
    %v5329 = vld [vmem:[%s5313 + $0x78] sm:$0xff]
    %v5331 = vsel %vm4672, %v5312, 0
    %5333 = vmatpush.msra.mxu0 0.0
    %5334 = vmatpush.msra.mxu0 0.0
    %5335 = vmatpush.msra.mxu0 0.0
    %5336 = vmatpush.msra.mxu0 0.0
    %5337 = vmatpush.msra.mxu0 0.0
    %5338 = vmatpush.msra.mxu0 0.0
    %5339 = vmatpush.msra.mxu0 0.0
    %5340 = vmatpush.msra.mxu0 0.0
    %5341 = vmatpush.msra.mxu0 0.0
    %5342 = vmatpush.msra.mxu0 0.0
    %5343 = vmatpush.msra.mxu0 0.0
    %5344 = vmatpush.msra.mxu0 0.0
    %5345 = vmatpush.msra.mxu0 %v5326
    %5346 = vmatpush.msra.mxu0 %v5322
    %5347 = vmatpush.msra.mxu0 %v5318
    %5348 = vmatpush.msra.mxu0 %v5314
    %5349 = vmatmul.f32.gmra.mxu0 %v5331
    %v5350 = vpop.f32.mrf.mxu0
    %v5351 = vadd.f32 0.0, %v5350
    %5352 = vdwg.mxu0
    %5353 = vmatpush.msra.mxu0 0.0
    %5354 = vmatpush.msra.mxu0 0.0
    %5355 = vmatpush.msra.mxu0 0.0
    %5356 = vmatpush.msra.mxu0 0.0
    %5357 = vmatpush.msra.mxu0 0.0
    %5358 = vmatpush.msra.mxu0 0.0
    %5359 = vmatpush.msra.mxu0 0.0
    %5360 = vmatpush.msra.mxu0 0.0
    %5361 = vmatpush.msra.mxu0 0.0
    %5362 = vmatpush.msra.mxu0 0.0
    %5363 = vmatpush.msra.mxu0 0.0
    %5364 = vmatpush.msra.mxu0 0.0
    %5365 = vmatpush.msra.mxu0 %v5327
    %5366 = vmatpush.msra.mxu0 %v5323
    %5367 = vmatpush.msra.mxu0 %v5319
    %5368 = vmatpush.msra.mxu0 %v5315
    %5369 = vmatmul.f32.gmra.mxu0 %v5331
    %v5370 = vpop.f32.mrf.mxu0
    %v5371 = vadd.f32 0.0, %v5370
    %5372 = vdwg.mxu0
    %5373 = vmatpush.msra.mxu0 0.0
    %5374 = vmatpush.msra.mxu0 0.0
    %5375 = vmatpush.msra.mxu0 0.0
    %5376 = vmatpush.msra.mxu0 0.0
    %5377 = vmatpush.msra.mxu0 0.0
    %5378 = vmatpush.msra.mxu0 0.0
    %5379 = vmatpush.msra.mxu0 0.0
    %5380 = vmatpush.msra.mxu0 0.0
    %5381 = vmatpush.msra.mxu0 0.0
    %5382 = vmatpush.msra.mxu0 0.0
    %5383 = vmatpush.msra.mxu0 0.0
    %5384 = vmatpush.msra.mxu0 0.0
    %5385 = vmatpush.msra.mxu0 %v5328
    %5386 = vmatpush.msra.mxu0 %v5324
    %5387 = vmatpush.msra.mxu0 %v5320
    %5388 = vmatpush.msra.mxu0 %v5316
    %5389 = vmatmul.f32.gmra.mxu0 %v5331
    %v5390 = vpop.f32.mrf.mxu0
    %v5391 = vadd.f32 0.0, %v5390
    %5392 = vdwg.mxu0
    %5393 = vmatpush.msra.mxu0 0.0
    %5394 = vmatpush.msra.mxu0 0.0
    %5395 = vmatpush.msra.mxu0 0.0
    %5396 = vmatpush.msra.mxu0 0.0
    %5397 = vmatpush.msra.mxu0 0.0
    %5398 = vmatpush.msra.mxu0 0.0
    %5399 = vmatpush.msra.mxu0 0.0
    %5400 = vmatpush.msra.mxu0 0.0
    %5401 = vmatpush.msra.mxu0 0.0
    %5402 = vmatpush.msra.mxu0 0.0
    %5403 = vmatpush.msra.mxu0 0.0
    %5404 = vmatpush.msra.mxu0 0.0
    %5405 = vmatpush.msra.mxu0 %v5329
    %5406 = vmatpush.msra.mxu0 %v5325
    %5407 = vmatpush.msra.mxu0 %v5321
    %5408 = vmatpush.msra.mxu0 %v5317
    %5409 = vmatmul.f32.gmra.mxu0 %v5331
    %v5410 = vpop.f32.mrf.mxu0
    %v5411 = vadd.f32 0.0, %v5410
    %5412 = vdwg.mxu0
    %v5413 = vadd.f32 %v5308, %v5351
    %v5414 = vadd.f32 %v5309, %v5371
    %v5415 = vadd.f32 %v5310, %v5391
    %v5416 = vadd.f32 %v5311, %v5411
    %v5417 = vld [vmem:[#allocation2 + $0x3e] sm:$0x3]
    %s5418 = scalar_lea.vmem [#allocation12], 896
    %v5419 = vld [vmem:[%s5418] sm:$0xff]
    %v5420 = vld [vmem:[%s5418 + $0x8] sm:$0xff]
    %v5421 = vld [vmem:[%s5418 + $0x10] sm:$0xff]
    %v5422 = vld [vmem:[%s5418 + $0x18] sm:$0xff]
    %v5423 = vld [vmem:[%s5418 + $0x20] sm:$0xff]
    %v5424 = vld [vmem:[%s5418 + $0x28] sm:$0xff]
    %v5425 = vld [vmem:[%s5418 + $0x30] sm:$0xff]
    %v5426 = vld [vmem:[%s5418 + $0x38] sm:$0xff]
    %v5427 = vld [vmem:[%s5418 + $0x40] sm:$0xff]
    %v5428 = vld [vmem:[%s5418 + $0x48] sm:$0xff]
    %v5429 = vld [vmem:[%s5418 + $0x50] sm:$0xff]
    %v5430 = vld [vmem:[%s5418 + $0x58] sm:$0xff]
    %v5431 = vld [vmem:[%s5418 + $0x60] sm:$0xff]
    %v5432 = vld [vmem:[%s5418 + $0x68] sm:$0xff]
    %v5433 = vld [vmem:[%s5418 + $0x70] sm:$0xff]
    %v5434 = vld [vmem:[%s5418 + $0x78] sm:$0xff]
    %v5436 = vsel %vm4672, %v5417, 0
    %5438 = vmatpush.msra.mxu0 0.0
    %5439 = vmatpush.msra.mxu0 0.0
    %5440 = vmatpush.msra.mxu0 0.0
    %5441 = vmatpush.msra.mxu0 0.0
    %5442 = vmatpush.msra.mxu0 0.0
    %5443 = vmatpush.msra.mxu0 0.0
    %5444 = vmatpush.msra.mxu0 0.0
    %5445 = vmatpush.msra.mxu0 0.0
    %5446 = vmatpush.msra.mxu0 0.0
    %5447 = vmatpush.msra.mxu0 0.0
    %5448 = vmatpush.msra.mxu0 0.0
    %5449 = vmatpush.msra.mxu0 0.0
    %5450 = vmatpush.msra.mxu0 %v5431
    %5451 = vmatpush.msra.mxu0 %v5427
    %5452 = vmatpush.msra.mxu0 %v5423
    %5453 = vmatpush.msra.mxu0 %v5419
    %5454 = vmatmul.f32.gmra.mxu0 %v5436
    %v5455 = vpop.f32.mrf.mxu0
    %v5456 = vadd.f32 0.0, %v5455
    %5457 = vdwg.mxu0
    %5458 = vmatpush.msra.mxu0 0.0
    %5459 = vmatpush.msra.mxu0 0.0
    %5460 = vmatpush.msra.mxu0 0.0
    %5461 = vmatpush.msra.mxu0 0.0
    %5462 = vmatpush.msra.mxu0 0.0
    %5463 = vmatpush.msra.mxu0 0.0
    %5464 = vmatpush.msra.mxu0 0.0
    %5465 = vmatpush.msra.mxu0 0.0
    %5466 = vmatpush.msra.mxu0 0.0
    %5467 = vmatpush.msra.mxu0 0.0
    %5468 = vmatpush.msra.mxu0 0.0
    %5469 = vmatpush.msra.mxu0 0.0
    %5470 = vmatpush.msra.mxu0 %v5432
    %5471 = vmatpush.msra.mxu0 %v5428
    %5472 = vmatpush.msra.mxu0 %v5424
    %5473 = vmatpush.msra.mxu0 %v5420
    %5474 = vmatmul.f32.gmra.mxu0 %v5436
    %v5475 = vpop.f32.mrf.mxu0
    %v5476 = vadd.f32 0.0, %v5475
    %5477 = vdwg.mxu0
    %5478 = vmatpush.msra.mxu0 0.0
    %5479 = vmatpush.msra.mxu0 0.0
    %5480 = vmatpush.msra.mxu0 0.0
    %5481 = vmatpush.msra.mxu0 0.0
    %5482 = vmatpush.msra.mxu0 0.0
    %5483 = vmatpush.msra.mxu0 0.0
    %5484 = vmatpush.msra.mxu0 0.0
    %5485 = vmatpush.msra.mxu0 0.0
    %5486 = vmatpush.msra.mxu0 0.0
    %5487 = vmatpush.msra.mxu0 0.0
    %5488 = vmatpush.msra.mxu0 0.0
    %5489 = vmatpush.msra.mxu0 0.0
    %5490 = vmatpush.msra.mxu0 %v5433
    %5491 = vmatpush.msra.mxu0 %v5429
    %5492 = vmatpush.msra.mxu0 %v5425
    %5493 = vmatpush.msra.mxu0 %v5421
    %5494 = vmatmul.f32.gmra.mxu0 %v5436
    %v5495 = vpop.f32.mrf.mxu0
    %v5496 = vadd.f32 0.0, %v5495
    %5497 = vdwg.mxu0
    %5498 = vmatpush.msra.mxu0 0.0
    %5499 = vmatpush.msra.mxu0 0.0
    %5500 = vmatpush.msra.mxu0 0.0
    %5501 = vmatpush.msra.mxu0 0.0
    %5502 = vmatpush.msra.mxu0 0.0
    %5503 = vmatpush.msra.mxu0 0.0
    %5504 = vmatpush.msra.mxu0 0.0
    %5505 = vmatpush.msra.mxu0 0.0
    %5506 = vmatpush.msra.mxu0 0.0
    %5507 = vmatpush.msra.mxu0 0.0
    %5508 = vmatpush.msra.mxu0 0.0
    %5509 = vmatpush.msra.mxu0 0.0
    %5510 = vmatpush.msra.mxu0 %v5434
    %5511 = vmatpush.msra.mxu0 %v5430
    %5512 = vmatpush.msra.mxu0 %v5426
    %5513 = vmatpush.msra.mxu0 %v5422
    %5514 = vmatmul.f32.gmra.mxu0 %v5436
    %v5515 = vpop.f32.mrf.mxu0
    %v5516 = vadd.f32 0.0, %v5515
    %5517 = vdwg.mxu0
    %v5518 = vadd.f32 %v5413, %v5456
    %v5519 = vadd.f32 %v5414, %v5476
    %v5520 = vadd.f32 %v5415, %v5496
    %v5521 = vadd.f32 %v5416, %v5516
    %v5522 = vld [vmem:[#allocation2 + $0x40] sm:$0x3]
    %s5523 = scalar_lea.vmem [#allocation12], 1024
    %v5524 = vld [vmem:[%s5523] sm:$0xff]
    %v5525 = vld [vmem:[%s5523 + $0x8] sm:$0xff]
    %v5526 = vld [vmem:[%s5523 + $0x10] sm:$0xff]
    %v5527 = vld [vmem:[%s5523 + $0x18] sm:$0xff]
    %v5528 = vld [vmem:[%s5523 + $0x20] sm:$0xff]
    %v5529 = vld [vmem:[%s5523 + $0x28] sm:$0xff]
    %v5530 = vld [vmem:[%s5523 + $0x30] sm:$0xff]
    %v5531 = vld [vmem:[%s5523 + $0x38] sm:$0xff]
    %v5532 = vld [vmem:[%s5523 + $0x40] sm:$0xff]
    %v5533 = vld [vmem:[%s5523 + $0x48] sm:$0xff]
    %v5534 = vld [vmem:[%s5523 + $0x50] sm:$0xff]
    %v5535 = vld [vmem:[%s5523 + $0x58] sm:$0xff]
    %v5536 = vld [vmem:[%s5523 + $0x60] sm:$0xff]
    %v5537 = vld [vmem:[%s5523 + $0x68] sm:$0xff]
    %v5538 = vld [vmem:[%s5523 + $0x70] sm:$0xff]
    %v5539 = vld [vmem:[%s5523 + $0x78] sm:$0xff]
    %v5541 = vsel %vm4672, %v5522, 0
    %5543 = vmatpush.msra.mxu0 0.0
    %5544 = vmatpush.msra.mxu0 0.0
    %5545 = vmatpush.msra.mxu0 0.0
    %5546 = vmatpush.msra.mxu0 0.0
    %5547 = vmatpush.msra.mxu0 0.0
    %5548 = vmatpush.msra.mxu0 0.0
    %5549 = vmatpush.msra.mxu0 0.0
    %5550 = vmatpush.msra.mxu0 0.0
    %5551 = vmatpush.msra.mxu0 0.0
    %5552 = vmatpush.msra.mxu0 0.0
    %5553 = vmatpush.msra.mxu0 0.0
    %5554 = vmatpush.msra.mxu0 0.0
    %5555 = vmatpush.msra.mxu0 %v5536
    %5556 = vmatpush.msra.mxu0 %v5532
    %5557 = vmatpush.msra.mxu0 %v5528
    %5558 = vmatpush.msra.mxu0 %v5524
    %5559 = vmatmul.f32.gmra.mxu0 %v5541
    %v5560 = vpop.f32.mrf.mxu0
    %v5561 = vadd.f32 0.0, %v5560
    %5562 = vdwg.mxu0
    %5563 = vmatpush.msra.mxu0 0.0
    %5564 = vmatpush.msra.mxu0 0.0
    %5565 = vmatpush.msra.mxu0 0.0
    %5566 = vmatpush.msra.mxu0 0.0
    %5567 = vmatpush.msra.mxu0 0.0
    %5568 = vmatpush.msra.mxu0 0.0
    %5569 = vmatpush.msra.mxu0 0.0
    %5570 = vmatpush.msra.mxu0 0.0
    %5571 = vmatpush.msra.mxu0 0.0
    %5572 = vmatpush.msra.mxu0 0.0
    %5573 = vmatpush.msra.mxu0 0.0
    %5574 = vmatpush.msra.mxu0 0.0
    %5575 = vmatpush.msra.mxu0 %v5537
    %5576 = vmatpush.msra.mxu0 %v5533
    %5577 = vmatpush.msra.mxu0 %v5529
    %5578 = vmatpush.msra.mxu0 %v5525
    %5579 = vmatmul.f32.gmra.mxu0 %v5541
    %v5580 = vpop.f32.mrf.mxu0
    %v5581 = vadd.f32 0.0, %v5580
    %5582 = vdwg.mxu0
    %5583 = vmatpush.msra.mxu0 0.0
    %5584 = vmatpush.msra.mxu0 0.0
    %5585 = vmatpush.msra.mxu0 0.0
    %5586 = vmatpush.msra.mxu0 0.0
    %5587 = vmatpush.msra.mxu0 0.0
    %5588 = vmatpush.msra.mxu0 0.0
    %5589 = vmatpush.msra.mxu0 0.0
    %5590 = vmatpush.msra.mxu0 0.0
    %5591 = vmatpush.msra.mxu0 0.0
    %5592 = vmatpush.msra.mxu0 0.0
    %5593 = vmatpush.msra.mxu0 0.0
    %5594 = vmatpush.msra.mxu0 0.0
    %5595 = vmatpush.msra.mxu0 %v5538
    %5596 = vmatpush.msra.mxu0 %v5534
    %5597 = vmatpush.msra.mxu0 %v5530
    %5598 = vmatpush.msra.mxu0 %v5526
    %5599 = vmatmul.f32.gmra.mxu0 %v5541
    %v5600 = vpop.f32.mrf.mxu0
    %v5601 = vadd.f32 0.0, %v5600
    %5602 = vdwg.mxu0
    %5603 = vmatpush.msra.mxu0 0.0
    %5604 = vmatpush.msra.mxu0 0.0
    %5605 = vmatpush.msra.mxu0 0.0
    %5606 = vmatpush.msra.mxu0 0.0
    %5607 = vmatpush.msra.mxu0 0.0
    %5608 = vmatpush.msra.mxu0 0.0
    %5609 = vmatpush.msra.mxu0 0.0
    %5610 = vmatpush.msra.mxu0 0.0
    %5611 = vmatpush.msra.mxu0 0.0
    %5612 = vmatpush.msra.mxu0 0.0
    %5613 = vmatpush.msra.mxu0 0.0
    %5614 = vmatpush.msra.mxu0 0.0
    %5615 = vmatpush.msra.mxu0 %v5539
    %5616 = vmatpush.msra.mxu0 %v5535
    %5617 = vmatpush.msra.mxu0 %v5531
    %5618 = vmatpush.msra.mxu0 %v5527
    %5619 = vmatmul.f32.gmra.mxu0 %v5541
    %v5620 = vpop.f32.mrf.mxu0
    %v5621 = vadd.f32 0.0, %v5620
    %5622 = vdwg.mxu0
    %v5623 = vadd.f32 %v5518, %v5561
    %v5624 = vadd.f32 %v5519, %v5581
    %v5625 = vadd.f32 %v5520, %v5601
    %v5626 = vadd.f32 %v5521, %v5621
    %v5627 = vld [vmem:[#allocation2 + $0x46] sm:$0x3]
    %s5628 = scalar_lea.vmem [#allocation12], 1152
    %v5629 = vld [vmem:[%s5628] sm:$0xff]
    %v5630 = vld [vmem:[%s5628 + $0x8] sm:$0xff]
    %v5631 = vld [vmem:[%s5628 + $0x10] sm:$0xff]
    %v5632 = vld [vmem:[%s5628 + $0x18] sm:$0xff]
    %v5633 = vld [vmem:[%s5628 + $0x20] sm:$0xff]
    %v5634 = vld [vmem:[%s5628 + $0x28] sm:$0xff]
    %v5635 = vld [vmem:[%s5628 + $0x30] sm:$0xff]
    %v5636 = vld [vmem:[%s5628 + $0x38] sm:$0xff]
    %v5637 = vld [vmem:[%s5628 + $0x40] sm:$0xff]
    %v5638 = vld [vmem:[%s5628 + $0x48] sm:$0xff]
    %v5639 = vld [vmem:[%s5628 + $0x50] sm:$0xff]
    %v5640 = vld [vmem:[%s5628 + $0x58] sm:$0xff]
    %v5641 = vld [vmem:[%s5628 + $0x60] sm:$0xff]
    %v5642 = vld [vmem:[%s5628 + $0x68] sm:$0xff]
    %v5643 = vld [vmem:[%s5628 + $0x70] sm:$0xff]
    %v5644 = vld [vmem:[%s5628 + $0x78] sm:$0xff]
    %v5646 = vsel %vm4672, %v5627, 0
    %5648 = vmatpush.msra.mxu0 0.0
    %5649 = vmatpush.msra.mxu0 0.0
    %5650 = vmatpush.msra.mxu0 0.0
    %5651 = vmatpush.msra.mxu0 0.0
    %5652 = vmatpush.msra.mxu0 0.0
    %5653 = vmatpush.msra.mxu0 0.0
    %5654 = vmatpush.msra.mxu0 0.0
    %5655 = vmatpush.msra.mxu0 0.0
    %5656 = vmatpush.msra.mxu0 0.0
    %5657 = vmatpush.msra.mxu0 0.0
    %5658 = vmatpush.msra.mxu0 0.0
    %5659 = vmatpush.msra.mxu0 0.0
    %5660 = vmatpush.msra.mxu0 %v5641
    %5661 = vmatpush.msra.mxu0 %v5637
    %5662 = vmatpush.msra.mxu0 %v5633
    %5663 = vmatpush.msra.mxu0 %v5629
    %5664 = vmatmul.f32.gmra.mxu0 %v5646
    %v5665 = vpop.f32.mrf.mxu0
    %v5666 = vadd.f32 0.0, %v5665
    %5667 = vdwg.mxu0
    %5668 = vmatpush.msra.mxu0 0.0
    %5669 = vmatpush.msra.mxu0 0.0
    %5670 = vmatpush.msra.mxu0 0.0
    %5671 = vmatpush.msra.mxu0 0.0
    %5672 = vmatpush.msra.mxu0 0.0
    %5673 = vmatpush.msra.mxu0 0.0
    %5674 = vmatpush.msra.mxu0 0.0
    %5675 = vmatpush.msra.mxu0 0.0
    %5676 = vmatpush.msra.mxu0 0.0
    %5677 = vmatpush.msra.mxu0 0.0
    %5678 = vmatpush.msra.mxu0 0.0
    %5679 = vmatpush.msra.mxu0 0.0
    %5680 = vmatpush.msra.mxu0 %v5642
    %5681 = vmatpush.msra.mxu0 %v5638
    %5682 = vmatpush.msra.mxu0 %v5634
    %5683 = vmatpush.msra.mxu0 %v5630
    %5684 = vmatmul.f32.gmra.mxu0 %v5646
    %v5685 = vpop.f32.mrf.mxu0
    %v5686 = vadd.f32 0.0, %v5685
    %5687 = vdwg.mxu0
    %5688 = vmatpush.msra.mxu0 0.0
    %5689 = vmatpush.msra.mxu0 0.0
    %5690 = vmatpush.msra.mxu0 0.0
    %5691 = vmatpush.msra.mxu0 0.0
    %5692 = vmatpush.msra.mxu0 0.0
    %5693 = vmatpush.msra.mxu0 0.0
    %5694 = vmatpush.msra.mxu0 0.0
    %5695 = vmatpush.msra.mxu0 0.0
    %5696 = vmatpush.msra.mxu0 0.0
    %5697 = vmatpush.msra.mxu0 0.0
    %5698 = vmatpush.msra.mxu0 0.0
    %5699 = vmatpush.msra.mxu0 0.0
    %5700 = vmatpush.msra.mxu0 %v5643
    %5701 = vmatpush.msra.mxu0 %v5639
    %5702 = vmatpush.msra.mxu0 %v5635
    %5703 = vmatpush.msra.mxu0 %v5631
    %5704 = vmatmul.f32.gmra.mxu0 %v5646
    %v5705 = vpop.f32.mrf.mxu0
    %v5706 = vadd.f32 0.0, %v5705
    %5707 = vdwg.mxu0
    %5708 = vmatpush.msra.mxu0 0.0
    %5709 = vmatpush.msra.mxu0 0.0
    %5710 = vmatpush.msra.mxu0 0.0
    %5711 = vmatpush.msra.mxu0 0.0
    %5712 = vmatpush.msra.mxu0 0.0
    %5713 = vmatpush.msra.mxu0 0.0
    %5714 = vmatpush.msra.mxu0 0.0
    %5715 = vmatpush.msra.mxu0 0.0
    %5716 = vmatpush.msra.mxu0 0.0
    %5717 = vmatpush.msra.mxu0 0.0
    %5718 = vmatpush.msra.mxu0 0.0
    %5719 = vmatpush.msra.mxu0 0.0
    %5720 = vmatpush.msra.mxu0 %v5644
    %5721 = vmatpush.msra.mxu0 %v5640
    %5722 = vmatpush.msra.mxu0 %v5636
    %5723 = vmatpush.msra.mxu0 %v5632
    %5724 = vmatmul.f32.gmra.mxu0 %v5646
    %v5725 = vpop.f32.mrf.mxu0
    %v5726 = vadd.f32 0.0, %v5725
    %5727 = vdwg.mxu0
    %v5728 = vadd.f32 %v5623, %v5666
    %v5729 = vadd.f32 %v5624, %v5686
    %v5730 = vadd.f32 %v5625, %v5706
    %v5731 = vadd.f32 %v5626, %v5726
    %v5732 = vld [vmem:[#allocation2 + $0x48] sm:$0x3]
    %s5733 = scalar_lea.vmem [#allocation12], 1280
    %v5734 = vld [vmem:[%s5733] sm:$0xff]
    %v5735 = vld [vmem:[%s5733 + $0x8] sm:$0xff]
    %v5736 = vld [vmem:[%s5733 + $0x10] sm:$0xff]
    %v5737 = vld [vmem:[%s5733 + $0x18] sm:$0xff]
    %v5738 = vld [vmem:[%s5733 + $0x20] sm:$0xff]
    %v5739 = vld [vmem:[%s5733 + $0x28] sm:$0xff]
    %v5740 = vld [vmem:[%s5733 + $0x30] sm:$0xff]
    %v5741 = vld [vmem:[%s5733 + $0x38] sm:$0xff]
    %v5742 = vld [vmem:[%s5733 + $0x40] sm:$0xff]
    %v5743 = vld [vmem:[%s5733 + $0x48] sm:$0xff]
    %v5744 = vld [vmem:[%s5733 + $0x50] sm:$0xff]
    %v5745 = vld [vmem:[%s5733 + $0x58] sm:$0xff]
    %v5746 = vld [vmem:[%s5733 + $0x60] sm:$0xff]
    %v5747 = vld [vmem:[%s5733 + $0x68] sm:$0xff]
    %v5748 = vld [vmem:[%s5733 + $0x70] sm:$0xff]
    %v5749 = vld [vmem:[%s5733 + $0x78] sm:$0xff]
    %v5751 = vsel %vm4672, %v5732, 0
    %5753 = vmatpush.msra.mxu0 0.0
    %5754 = vmatpush.msra.mxu0 0.0
    %5755 = vmatpush.msra.mxu0 0.0
    %5756 = vmatpush.msra.mxu0 0.0
    %5757 = vmatpush.msra.mxu0 0.0
    %5758 = vmatpush.msra.mxu0 0.0
    %5759 = vmatpush.msra.mxu0 0.0
    %5760 = vmatpush.msra.mxu0 0.0
    %5761 = vmatpush.msra.mxu0 0.0
    %5762 = vmatpush.msra.mxu0 0.0
    %5763 = vmatpush.msra.mxu0 0.0
    %5764 = vmatpush.msra.mxu0 0.0
    %5765 = vmatpush.msra.mxu0 %v5746
    %5766 = vmatpush.msra.mxu0 %v5742
    %5767 = vmatpush.msra.mxu0 %v5738
    %5768 = vmatpush.msra.mxu0 %v5734
    %5769 = vmatmul.f32.gmra.mxu0 %v5751
    %v5770 = vpop.f32.mrf.mxu0
    %v5771 = vadd.f32 0.0, %v5770
    %5772 = vdwg.mxu0
    %5773 = vmatpush.msra.mxu0 0.0
    %5774 = vmatpush.msra.mxu0 0.0
    %5775 = vmatpush.msra.mxu0 0.0
    %5776 = vmatpush.msra.mxu0 0.0
    %5777 = vmatpush.msra.mxu0 0.0
    %5778 = vmatpush.msra.mxu0 0.0
    %5779 = vmatpush.msra.mxu0 0.0
    %5780 = vmatpush.msra.mxu0 0.0
    %5781 = vmatpush.msra.mxu0 0.0
    %5782 = vmatpush.msra.mxu0 0.0
    %5783 = vmatpush.msra.mxu0 0.0
    %5784 = vmatpush.msra.mxu0 0.0
    %5785 = vmatpush.msra.mxu0 %v5747
    %5786 = vmatpush.msra.mxu0 %v5743
    %5787 = vmatpush.msra.mxu0 %v5739
    %5788 = vmatpush.msra.mxu0 %v5735
    %5789 = vmatmul.f32.gmra.mxu0 %v5751
    %v5790 = vpop.f32.mrf.mxu0
    %v5791 = vadd.f32 0.0, %v5790
    %5792 = vdwg.mxu0
    %5793 = vmatpush.msra.mxu0 0.0
    %5794 = vmatpush.msra.mxu0 0.0
    %5795 = vmatpush.msra.mxu0 0.0
    %5796 = vmatpush.msra.mxu0 0.0
    %5797 = vmatpush.msra.mxu0 0.0
    %5798 = vmatpush.msra.mxu0 0.0
    %5799 = vmatpush.msra.mxu0 0.0
    %5800 = vmatpush.msra.mxu0 0.0
    %5801 = vmatpush.msra.mxu0 0.0
    %5802 = vmatpush.msra.mxu0 0.0
    %5803 = vmatpush.msra.mxu0 0.0
    %5804 = vmatpush.msra.mxu0 0.0
    %5805 = vmatpush.msra.mxu0 %v5748
    %5806 = vmatpush.msra.mxu0 %v5744
    %5807 = vmatpush.msra.mxu0 %v5740
    %5808 = vmatpush.msra.mxu0 %v5736
    %5809 = vmatmul.f32.gmra.mxu0 %v5751
    %v5810 = vpop.f32.mrf.mxu0
    %v5811 = vadd.f32 0.0, %v5810
    %5812 = vdwg.mxu0
    %5813 = vmatpush.msra.mxu0 0.0
    %5814 = vmatpush.msra.mxu0 0.0
    %5815 = vmatpush.msra.mxu0 0.0
    %5816 = vmatpush.msra.mxu0 0.0
    %5817 = vmatpush.msra.mxu0 0.0
    %5818 = vmatpush.msra.mxu0 0.0
    %5819 = vmatpush.msra.mxu0 0.0
    %5820 = vmatpush.msra.mxu0 0.0
    %5821 = vmatpush.msra.mxu0 0.0
    %5822 = vmatpush.msra.mxu0 0.0
    %5823 = vmatpush.msra.mxu0 0.0
    %5824 = vmatpush.msra.mxu0 0.0
    %5825 = vmatpush.msra.mxu0 %v5749
    %5826 = vmatpush.msra.mxu0 %v5745
    %5827 = vmatpush.msra.mxu0 %v5741
    %5828 = vmatpush.msra.mxu0 %v5737
    %5829 = vmatmul.f32.gmra.mxu0 %v5751
    %v5830 = vpop.f32.mrf.mxu0
    %v5831 = vadd.f32 0.0, %v5830
    %5832 = vdwg.mxu0
    %v5833 = vadd.f32 %v5728, %v5771
    %v5834 = vadd.f32 %v5729, %v5791
    %v5835 = vadd.f32 %v5730, %v5811
    %v5836 = vadd.f32 %v5731, %v5831
    %v5837 = vld [vmem:[#allocation2 + $0x4a] sm:$0x3]
    %s5838 = scalar_lea.vmem [#allocation12], 1408
    %v5839 = vld [vmem:[%s5838] sm:$0xff]
    %v5840 = vld [vmem:[%s5838 + $0x8] sm:$0xff]
    %v5841 = vld [vmem:[%s5838 + $0x10] sm:$0xff]
    %v5842 = vld [vmem:[%s5838 + $0x18] sm:$0xff]
    %v5843 = vld [vmem:[%s5838 + $0x20] sm:$0xff]
    %v5844 = vld [vmem:[%s5838 + $0x28] sm:$0xff]
    %v5845 = vld [vmem:[%s5838 + $0x30] sm:$0xff]
    %v5846 = vld [vmem:[%s5838 + $0x38] sm:$0xff]
    %v5847 = vld [vmem:[%s5838 + $0x40] sm:$0xff]
    %v5848 = vld [vmem:[%s5838 + $0x48] sm:$0xff]
    %v5849 = vld [vmem:[%s5838 + $0x50] sm:$0xff]
    %v5850 = vld [vmem:[%s5838 + $0x58] sm:$0xff]
    %v5851 = vld [vmem:[%s5838 + $0x60] sm:$0xff]
    %v5852 = vld [vmem:[%s5838 + $0x68] sm:$0xff]
    %v5853 = vld [vmem:[%s5838 + $0x70] sm:$0xff]
    %v5854 = vld [vmem:[%s5838 + $0x78] sm:$0xff]
    %v5856 = vsel %vm4672, %v5837, 0
    %5858 = vmatpush.msra.mxu0 0.0
    %5859 = vmatpush.msra.mxu0 0.0
    %5860 = vmatpush.msra.mxu0 0.0
    %5861 = vmatpush.msra.mxu0 0.0
    %5862 = vmatpush.msra.mxu0 0.0
    %5863 = vmatpush.msra.mxu0 0.0
    %5864 = vmatpush.msra.mxu0 0.0
    %5865 = vmatpush.msra.mxu0 0.0
    %5866 = vmatpush.msra.mxu0 0.0
    %5867 = vmatpush.msra.mxu0 0.0
    %5868 = vmatpush.msra.mxu0 0.0
    %5869 = vmatpush.msra.mxu0 0.0
    %5870 = vmatpush.msra.mxu0 %v5851
    %5871 = vmatpush.msra.mxu0 %v5847
    %5872 = vmatpush.msra.mxu0 %v5843
    %5873 = vmatpush.msra.mxu0 %v5839
    %5874 = vmatmul.f32.gmra.mxu0 %v5856
    %v5875 = vpop.f32.mrf.mxu0
    %v5876 = vadd.f32 0.0, %v5875
    %5877 = vdwg.mxu0
    %5878 = vmatpush.msra.mxu0 0.0
    %5879 = vmatpush.msra.mxu0 0.0
    %5880 = vmatpush.msra.mxu0 0.0
    %5881 = vmatpush.msra.mxu0 0.0
    %5882 = vmatpush.msra.mxu0 0.0
    %5883 = vmatpush.msra.mxu0 0.0
    %5884 = vmatpush.msra.mxu0 0.0
    %5885 = vmatpush.msra.mxu0 0.0
    %5886 = vmatpush.msra.mxu0 0.0
    %5887 = vmatpush.msra.mxu0 0.0
    %5888 = vmatpush.msra.mxu0 0.0
    %5889 = vmatpush.msra.mxu0 0.0
    %5890 = vmatpush.msra.mxu0 %v5852
    %5891 = vmatpush.msra.mxu0 %v5848
    %5892 = vmatpush.msra.mxu0 %v5844
    %5893 = vmatpush.msra.mxu0 %v5840
    %5894 = vmatmul.f32.gmra.mxu0 %v5856
    %v5895 = vpop.f32.mrf.mxu0
    %v5896 = vadd.f32 0.0, %v5895
    %5897 = vdwg.mxu0
    %5898 = vmatpush.msra.mxu0 0.0
    %5899 = vmatpush.msra.mxu0 0.0
    %5900 = vmatpush.msra.mxu0 0.0
    %5901 = vmatpush.msra.mxu0 0.0
    %5902 = vmatpush.msra.mxu0 0.0
    %5903 = vmatpush.msra.mxu0 0.0
    %5904 = vmatpush.msra.mxu0 0.0
    %5905 = vmatpush.msra.mxu0 0.0
    %5906 = vmatpush.msra.mxu0 0.0
    %5907 = vmatpush.msra.mxu0 0.0
    %5908 = vmatpush.msra.mxu0 0.0
    %5909 = vmatpush.msra.mxu0 0.0
    %5910 = vmatpush.msra.mxu0 %v5853
    %5911 = vmatpush.msra.mxu0 %v5849
    %5912 = vmatpush.msra.mxu0 %v5845
    %5913 = vmatpush.msra.mxu0 %v5841
    %5914 = vmatmul.f32.gmra.mxu0 %v5856
    %v5915 = vpop.f32.mrf.mxu0
    %v5916 = vadd.f32 0.0, %v5915
    %5917 = vdwg.mxu0
    %5918 = vmatpush.msra.mxu0 0.0
    %5919 = vmatpush.msra.mxu0 0.0
    %5920 = vmatpush.msra.mxu0 0.0
    %5921 = vmatpush.msra.mxu0 0.0
    %5922 = vmatpush.msra.mxu0 0.0
    %5923 = vmatpush.msra.mxu0 0.0
    %5924 = vmatpush.msra.mxu0 0.0
    %5925 = vmatpush.msra.mxu0 0.0
    %5926 = vmatpush.msra.mxu0 0.0
    %5927 = vmatpush.msra.mxu0 0.0
    %5928 = vmatpush.msra.mxu0 0.0
    %5929 = vmatpush.msra.mxu0 0.0
    %5930 = vmatpush.msra.mxu0 %v5854
    %5931 = vmatpush.msra.mxu0 %v5850
    %5932 = vmatpush.msra.mxu0 %v5846
    %5933 = vmatpush.msra.mxu0 %v5842
    %5934 = vmatmul.f32.gmra.mxu0 %v5856
    %v5935 = vpop.f32.mrf.mxu0
    %v5936 = vadd.f32 0.0, %v5935
    %5937 = vdwg.mxu0
    %v5938 = vadd.f32 %v5833, %v5876
    %v5939 = vadd.f32 %v5834, %v5896
    %v5940 = vadd.f32 %v5835, %v5916
    %v5941 = vadd.f32 %v5836, %v5936
    %v5942 = vld [vmem:[#allocation2 + $0x4c] sm:$0x3]
    %s5943 = scalar_lea.vmem [#allocation12], 1536
    %v5944 = vld [vmem:[%s5943] sm:$0xff]
    %v5945 = vld [vmem:[%s5943 + $0x8] sm:$0xff]
    %v5946 = vld [vmem:[%s5943 + $0x10] sm:$0xff]
    %v5947 = vld [vmem:[%s5943 + $0x18] sm:$0xff]
    %v5948 = vld [vmem:[%s5943 + $0x20] sm:$0xff]
    %v5949 = vld [vmem:[%s5943 + $0x28] sm:$0xff]
    %v5950 = vld [vmem:[%s5943 + $0x30] sm:$0xff]
    %v5951 = vld [vmem:[%s5943 + $0x38] sm:$0xff]
    %v5952 = vld [vmem:[%s5943 + $0x40] sm:$0xff]
    %v5953 = vld [vmem:[%s5943 + $0x48] sm:$0xff]
    %v5954 = vld [vmem:[%s5943 + $0x50] sm:$0xff]
    %v5955 = vld [vmem:[%s5943 + $0x58] sm:$0xff]
    %v5956 = vld [vmem:[%s5943 + $0x60] sm:$0xff]
    %v5957 = vld [vmem:[%s5943 + $0x68] sm:$0xff]
    %v5958 = vld [vmem:[%s5943 + $0x70] sm:$0xff]
    %v5959 = vld [vmem:[%s5943 + $0x78] sm:$0xff]
    %v5961 = vsel %vm4672, %v5942, 0
    %5963 = vmatpush.msra.mxu0 0.0
    %5964 = vmatpush.msra.mxu0 0.0
    %5965 = vmatpush.msra.mxu0 0.0
    %5966 = vmatpush.msra.mxu0 0.0
    %5967 = vmatpush.msra.mxu0 0.0
    %5968 = vmatpush.msra.mxu0 0.0
    %5969 = vmatpush.msra.mxu0 0.0
    %5970 = vmatpush.msra.mxu0 0.0
    %5971 = vmatpush.msra.mxu0 0.0
    %5972 = vmatpush.msra.mxu0 0.0
    %5973 = vmatpush.msra.mxu0 0.0
    %5974 = vmatpush.msra.mxu0 0.0
    %5975 = vmatpush.msra.mxu0 %v5956
    %5976 = vmatpush.msra.mxu0 %v5952
    %5977 = vmatpush.msra.mxu0 %v5948
    %5978 = vmatpush.msra.mxu0 %v5944
    %5979 = vmatmul.f32.gmra.mxu0 %v5961
    %v5980 = vpop.f32.mrf.mxu0
    %v5981 = vadd.f32 0.0, %v5980
    %5982 = vdwg.mxu0
    %5983 = vmatpush.msra.mxu0 0.0
    %5984 = vmatpush.msra.mxu0 0.0
    %5985 = vmatpush.msra.mxu0 0.0
    %5986 = vmatpush.msra.mxu0 0.0
    %5987 = vmatpush.msra.mxu0 0.0
    %5988 = vmatpush.msra.mxu0 0.0
    %5989 = vmatpush.msra.mxu0 0.0
    %5990 = vmatpush.msra.mxu0 0.0
    %5991 = vmatpush.msra.mxu0 0.0
    %5992 = vmatpush.msra.mxu0 0.0
    %5993 = vmatpush.msra.mxu0 0.0
    %5994 = vmatpush.msra.mxu0 0.0
    %5995 = vmatpush.msra.mxu0 %v5957
    %5996 = vmatpush.msra.mxu0 %v5953
    %5997 = vmatpush.msra.mxu0 %v5949
    %5998 = vmatpush.msra.mxu0 %v5945
    %5999 = vmatmul.f32.gmra.mxu0 %v5961
    %v6000 = vpop.f32.mrf.mxu0
    %v6001 = vadd.f32 0.0, %v6000
    %6002 = vdwg.mxu0
    %6003 = vmatpush.msra.mxu0 0.0
    %6004 = vmatpush.msra.mxu0 0.0
    %6005 = vmatpush.msra.mxu0 0.0
    %6006 = vmatpush.msra.mxu0 0.0
    %6007 = vmatpush.msra.mxu0 0.0
    %6008 = vmatpush.msra.mxu0 0.0
    %6009 = vmatpush.msra.mxu0 0.0
    %6010 = vmatpush.msra.mxu0 0.0
    %6011 = vmatpush.msra.mxu0 0.0
    %6012 = vmatpush.msra.mxu0 0.0
    %6013 = vmatpush.msra.mxu0 0.0
    %6014 = vmatpush.msra.mxu0 0.0
    %6015 = vmatpush.msra.mxu0 %v5958
    %6016 = vmatpush.msra.mxu0 %v5954
    %6017 = vmatpush.msra.mxu0 %v5950
    %6018 = vmatpush.msra.mxu0 %v5946
    %6019 = vmatmul.f32.gmra.mxu0 %v5961
    %v6020 = vpop.f32.mrf.mxu0
    %v6021 = vadd.f32 0.0, %v6020
    %6022 = vdwg.mxu0
    %6023 = vmatpush.msra.mxu0 0.0
    %6024 = vmatpush.msra.mxu0 0.0
    %6025 = vmatpush.msra.mxu0 0.0
    %6026 = vmatpush.msra.mxu0 0.0
    %6027 = vmatpush.msra.mxu0 0.0
    %6028 = vmatpush.msra.mxu0 0.0
    %6029 = vmatpush.msra.mxu0 0.0
    %6030 = vmatpush.msra.mxu0 0.0
    %6031 = vmatpush.msra.mxu0 0.0
    %6032 = vmatpush.msra.mxu0 0.0
    %6033 = vmatpush.msra.mxu0 0.0
    %6034 = vmatpush.msra.mxu0 0.0
    %6035 = vmatpush.msra.mxu0 %v5959
    %6036 = vmatpush.msra.mxu0 %v5955
    %6037 = vmatpush.msra.mxu0 %v5951
    %6038 = vmatpush.msra.mxu0 %v5947
    %6039 = vmatmul.f32.gmra.mxu0 %v5961
    %v6040 = vpop.f32.mrf.mxu0
    %v6041 = vadd.f32 0.0, %v6040
    %6042 = vdwg.mxu0
    %v6043 = vadd.f32 %v5938, %v5981
    %v6044 = vadd.f32 %v5939, %v6001
    %v6045 = vadd.f32 %v5940, %v6021
    %v6046 = vadd.f32 %v5941, %v6041
    %v6047 = vld [vmem:[#allocation2 + $0x4e] sm:$0x3]
    %s6048 = scalar_lea.vmem [#allocation12], 1664
    %v6049 = vld [vmem:[%s6048] sm:$0xff]
    %v6050 = vld [vmem:[%s6048 + $0x8] sm:$0xff]
    %v6051 = vld [vmem:[%s6048 + $0x10] sm:$0xff]
    %v6052 = vld [vmem:[%s6048 + $0x18] sm:$0xff]
    %v6053 = vld [vmem:[%s6048 + $0x20] sm:$0xff]
    %v6054 = vld [vmem:[%s6048 + $0x28] sm:$0xff]
    %v6055 = vld [vmem:[%s6048 + $0x30] sm:$0xff]
    %v6056 = vld [vmem:[%s6048 + $0x38] sm:$0xff]
    %v6057 = vld [vmem:[%s6048 + $0x40] sm:$0xff]
    %v6058 = vld [vmem:[%s6048 + $0x48] sm:$0xff]
    %v6059 = vld [vmem:[%s6048 + $0x50] sm:$0xff]
    %v6060 = vld [vmem:[%s6048 + $0x58] sm:$0xff]
    %v6061 = vld [vmem:[%s6048 + $0x60] sm:$0xff]
    %v6062 = vld [vmem:[%s6048 + $0x68] sm:$0xff]
    %v6063 = vld [vmem:[%s6048 + $0x70] sm:$0xff]
    %v6064 = vld [vmem:[%s6048 + $0x78] sm:$0xff]
    %v6066 = vsel %vm4672, %v6047, 0
    %6068 = vmatpush.msra.mxu0 0.0
    %6069 = vmatpush.msra.mxu0 0.0
    %6070 = vmatpush.msra.mxu0 0.0
    %6071 = vmatpush.msra.mxu0 0.0
    %6072 = vmatpush.msra.mxu0 0.0
    %6073 = vmatpush.msra.mxu0 0.0
    %6074 = vmatpush.msra.mxu0 0.0
    %6075 = vmatpush.msra.mxu0 0.0
    %6076 = vmatpush.msra.mxu0 0.0
    %6077 = vmatpush.msra.mxu0 0.0
    %6078 = vmatpush.msra.mxu0 0.0
    %6079 = vmatpush.msra.mxu0 0.0
    %6080 = vmatpush.msra.mxu0 %v6061
    %6081 = vmatpush.msra.mxu0 %v6057
    %6082 = vmatpush.msra.mxu0 %v6053
    %6083 = vmatpush.msra.mxu0 %v6049
    %6084 = vmatmul.f32.gmra.mxu0 %v6066
    %v6085 = vpop.f32.mrf.mxu0
    %v6086 = vadd.f32 0.0, %v6085
    %6087 = vdwg.mxu0
    %6088 = vmatpush.msra.mxu0 0.0
    %6089 = vmatpush.msra.mxu0 0.0
    %6090 = vmatpush.msra.mxu0 0.0
    %6091 = vmatpush.msra.mxu0 0.0
    %6092 = vmatpush.msra.mxu0 0.0
    %6093 = vmatpush.msra.mxu0 0.0
    %6094 = vmatpush.msra.mxu0 0.0
    %6095 = vmatpush.msra.mxu0 0.0
    %6096 = vmatpush.msra.mxu0 0.0
    %6097 = vmatpush.msra.mxu0 0.0
    %6098 = vmatpush.msra.mxu0 0.0
    %6099 = vmatpush.msra.mxu0 0.0
    %6100 = vmatpush.msra.mxu0 %v6062
    %6101 = vmatpush.msra.mxu0 %v6058
    %6102 = vmatpush.msra.mxu0 %v6054
    %6103 = vmatpush.msra.mxu0 %v6050
    %6104 = vmatmul.f32.gmra.mxu0 %v6066
    %v6105 = vpop.f32.mrf.mxu0
    %v6106 = vadd.f32 0.0, %v6105
    %6107 = vdwg.mxu0
    %6108 = vmatpush.msra.mxu0 0.0
    %6109 = vmatpush.msra.mxu0 0.0
    %6110 = vmatpush.msra.mxu0 0.0
    %6111 = vmatpush.msra.mxu0 0.0
    %6112 = vmatpush.msra.mxu0 0.0
    %6113 = vmatpush.msra.mxu0 0.0
    %6114 = vmatpush.msra.mxu0 0.0
    %6115 = vmatpush.msra.mxu0 0.0
    %6116 = vmatpush.msra.mxu0 0.0
    %6117 = vmatpush.msra.mxu0 0.0
    %6118 = vmatpush.msra.mxu0 0.0
    %6119 = vmatpush.msra.mxu0 0.0
    %6120 = vmatpush.msra.mxu0 %v6063
    %6121 = vmatpush.msra.mxu0 %v6059
    %6122 = vmatpush.msra.mxu0 %v6055
    %6123 = vmatpush.msra.mxu0 %v6051
    %6124 = vmatmul.f32.gmra.mxu0 %v6066
    %v6125 = vpop.f32.mrf.mxu0
    %v6126 = vadd.f32 0.0, %v6125
    %6127 = vdwg.mxu0
    %6128 = vmatpush.msra.mxu0 0.0
    %6129 = vmatpush.msra.mxu0 0.0
    %6130 = vmatpush.msra.mxu0 0.0
    %6131 = vmatpush.msra.mxu0 0.0
    %6132 = vmatpush.msra.mxu0 0.0
    %6133 = vmatpush.msra.mxu0 0.0
    %6134 = vmatpush.msra.mxu0 0.0
    %6135 = vmatpush.msra.mxu0 0.0
    %6136 = vmatpush.msra.mxu0 0.0
    %6137 = vmatpush.msra.mxu0 0.0
    %6138 = vmatpush.msra.mxu0 0.0
    %6139 = vmatpush.msra.mxu0 0.0
    %6140 = vmatpush.msra.mxu0 %v6064
    %6141 = vmatpush.msra.mxu0 %v6060
    %6142 = vmatpush.msra.mxu0 %v6056
    %6143 = vmatpush.msra.mxu0 %v6052
    %6144 = vmatmul.f32.gmra.mxu0 %v6066
    %v6145 = vpop.f32.mrf.mxu0
    %v6146 = vadd.f32 0.0, %v6145
    %6147 = vdwg.mxu0
    %v6148 = vadd.f32 %v6043, %v6086
    %v6149 = vadd.f32 %v6044, %v6106
    %v6150 = vadd.f32 %v6045, %v6126
    %v6151 = vadd.f32 %v6046, %v6146
    %v6152 = vld [vmem:[#allocation2 + $0x50] sm:$0x3]
    %s6153 = scalar_lea.vmem [#allocation12], 1792
    %v6154 = vld [vmem:[%s6153] sm:$0xff]
    %v6155 = vld [vmem:[%s6153 + $0x8] sm:$0xff]
    %v6156 = vld [vmem:[%s6153 + $0x10] sm:$0xff]
    %v6157 = vld [vmem:[%s6153 + $0x18] sm:$0xff]
    %v6158 = vld [vmem:[%s6153 + $0x20] sm:$0xff]
    %v6159 = vld [vmem:[%s6153 + $0x28] sm:$0xff]
    %v6160 = vld [vmem:[%s6153 + $0x30] sm:$0xff]
    %v6161 = vld [vmem:[%s6153 + $0x38] sm:$0xff]
    %v6162 = vld [vmem:[%s6153 + $0x40] sm:$0xff]
    %v6163 = vld [vmem:[%s6153 + $0x48] sm:$0xff]
    %v6164 = vld [vmem:[%s6153 + $0x50] sm:$0xff]
    %v6165 = vld [vmem:[%s6153 + $0x58] sm:$0xff]
    %v6166 = vld [vmem:[%s6153 + $0x60] sm:$0xff]
    %v6167 = vld [vmem:[%s6153 + $0x68] sm:$0xff]
    %v6168 = vld [vmem:[%s6153 + $0x70] sm:$0xff]
    %v6169 = vld [vmem:[%s6153 + $0x78] sm:$0xff]
    %v6171 = vsel %vm4672, %v6152, 0
    %6173 = vmatpush.msra.mxu0 0.0
    %6174 = vmatpush.msra.mxu0 0.0
    %6175 = vmatpush.msra.mxu0 0.0
    %6176 = vmatpush.msra.mxu0 0.0
    %6177 = vmatpush.msra.mxu0 0.0
    %6178 = vmatpush.msra.mxu0 0.0
    %6179 = vmatpush.msra.mxu0 0.0
    %6180 = vmatpush.msra.mxu0 0.0
    %6181 = vmatpush.msra.mxu0 0.0
    %6182 = vmatpush.msra.mxu0 0.0
    %6183 = vmatpush.msra.mxu0 0.0
    %6184 = vmatpush.msra.mxu0 0.0
    %6185 = vmatpush.msra.mxu0 %v6166
    %6186 = vmatpush.msra.mxu0 %v6162
    %6187 = vmatpush.msra.mxu0 %v6158
    %6188 = vmatpush.msra.mxu0 %v6154
    %6189 = vmatmul.f32.gmra.mxu0 %v6171
    %v6190 = vpop.f32.mrf.mxu0
    %v6191 = vadd.f32 0.0, %v6190
    %6192 = vdwg.mxu0
    %6193 = vmatpush.msra.mxu0 0.0
    %6194 = vmatpush.msra.mxu0 0.0
    %6195 = vmatpush.msra.mxu0 0.0
    %6196 = vmatpush.msra.mxu0 0.0
    %6197 = vmatpush.msra.mxu0 0.0
    %6198 = vmatpush.msra.mxu0 0.0
    %6199 = vmatpush.msra.mxu0 0.0
    %6200 = vmatpush.msra.mxu0 0.0
    %6201 = vmatpush.msra.mxu0 0.0
    %6202 = vmatpush.msra.mxu0 0.0
    %6203 = vmatpush.msra.mxu0 0.0
    %6204 = vmatpush.msra.mxu0 0.0
    %6205 = vmatpush.msra.mxu0 %v6167
    %6206 = vmatpush.msra.mxu0 %v6163
    %6207 = vmatpush.msra.mxu0 %v6159
    %6208 = vmatpush.msra.mxu0 %v6155
    %6209 = vmatmul.f32.gmra.mxu0 %v6171
    %v6210 = vpop.f32.mrf.mxu0
    %v6211 = vadd.f32 0.0, %v6210
    %6212 = vdwg.mxu0
    %6213 = vmatpush.msra.mxu0 0.0
    %6214 = vmatpush.msra.mxu0 0.0
    %6215 = vmatpush.msra.mxu0 0.0
    %6216 = vmatpush.msra.mxu0 0.0
    %6217 = vmatpush.msra.mxu0 0.0
    %6218 = vmatpush.msra.mxu0 0.0
    %6219 = vmatpush.msra.mxu0 0.0
    %6220 = vmatpush.msra.mxu0 0.0
    %6221 = vmatpush.msra.mxu0 0.0
    %6222 = vmatpush.msra.mxu0 0.0
    %6223 = vmatpush.msra.mxu0 0.0
    %6224 = vmatpush.msra.mxu0 0.0
    %6225 = vmatpush.msra.mxu0 %v6168
    %6226 = vmatpush.msra.mxu0 %v6164
    %6227 = vmatpush.msra.mxu0 %v6160
    %6228 = vmatpush.msra.mxu0 %v6156
    %6229 = vmatmul.f32.gmra.mxu0 %v6171
    %v6230 = vpop.f32.mrf.mxu0
    %v6231 = vadd.f32 0.0, %v6230
    %6232 = vdwg.mxu0
    %6233 = vmatpush.msra.mxu0 0.0
    %6234 = vmatpush.msra.mxu0 0.0
    %6235 = vmatpush.msra.mxu0 0.0
    %6236 = vmatpush.msra.mxu0 0.0
    %6237 = vmatpush.msra.mxu0 0.0
    %6238 = vmatpush.msra.mxu0 0.0
    %6239 = vmatpush.msra.mxu0 0.0
    %6240 = vmatpush.msra.mxu0 0.0
    %6241 = vmatpush.msra.mxu0 0.0
    %6242 = vmatpush.msra.mxu0 0.0
    %6243 = vmatpush.msra.mxu0 0.0
    %6244 = vmatpush.msra.mxu0 0.0
    %6245 = vmatpush.msra.mxu0 %v6169
    %6246 = vmatpush.msra.mxu0 %v6165
    %6247 = vmatpush.msra.mxu0 %v6161
    %6248 = vmatpush.msra.mxu0 %v6157
    %6249 = vmatmul.f32.gmra.mxu0 %v6171
    %v6250 = vpop.f32.mrf.mxu0
    %v6251 = vadd.f32 0.0, %v6250
    %6252 = vdwg.mxu0
    %v6253 = vadd.f32 %v6148, %v6191
    %v6254 = vadd.f32 %v6149, %v6211
    %v6255 = vadd.f32 %v6150, %v6231
    %v6256 = vadd.f32 %v6151, %v6251
    %v6257 = vld [vmem:[#allocation2 + $0x52] sm:$0x3]
    %s6258 = scalar_lea.vmem [#allocation12], 1920
    %v6259 = vld [vmem:[%s6258] sm:$0xff]
    %v6260 = vld [vmem:[%s6258 + $0x8] sm:$0xff]
    %v6261 = vld [vmem:[%s6258 + $0x10] sm:$0xff]
    %v6262 = vld [vmem:[%s6258 + $0x18] sm:$0xff]
    %v6263 = vld [vmem:[%s6258 + $0x20] sm:$0xff]
    %v6264 = vld [vmem:[%s6258 + $0x28] sm:$0xff]
    %v6265 = vld [vmem:[%s6258 + $0x30] sm:$0xff]
    %v6266 = vld [vmem:[%s6258 + $0x38] sm:$0xff]
    %v6267 = vld [vmem:[%s6258 + $0x40] sm:$0xff]
    %v6268 = vld [vmem:[%s6258 + $0x48] sm:$0xff]
    %v6269 = vld [vmem:[%s6258 + $0x50] sm:$0xff]
    %v6270 = vld [vmem:[%s6258 + $0x58] sm:$0xff]
    %v6271 = vld [vmem:[%s6258 + $0x60] sm:$0xff]
    %v6272 = vld [vmem:[%s6258 + $0x68] sm:$0xff]
    %v6273 = vld [vmem:[%s6258 + $0x70] sm:$0xff]
    %v6274 = vld [vmem:[%s6258 + $0x78] sm:$0xff]
    %v6276 = vsel %vm4672, %v6257, 0
    %6278 = vmatpush.msra.mxu0 0.0
    %6279 = vmatpush.msra.mxu0 0.0
    %6280 = vmatpush.msra.mxu0 0.0
    %6281 = vmatpush.msra.mxu0 0.0
    %6282 = vmatpush.msra.mxu0 0.0
    %6283 = vmatpush.msra.mxu0 0.0
    %6284 = vmatpush.msra.mxu0 0.0
    %6285 = vmatpush.msra.mxu0 0.0
    %6286 = vmatpush.msra.mxu0 0.0
    %6287 = vmatpush.msra.mxu0 0.0
    %6288 = vmatpush.msra.mxu0 0.0
    %6289 = vmatpush.msra.mxu0 0.0
    %6290 = vmatpush.msra.mxu0 %v6271
    %6291 = vmatpush.msra.mxu0 %v6267
    %6292 = vmatpush.msra.mxu0 %v6263
    %6293 = vmatpush.msra.mxu0 %v6259
    %6294 = vmatmul.f32.gmra.mxu0 %v6276
    %v6295 = vpop.f32.mrf.mxu0
    %v6296 = vadd.f32 0.0, %v6295
    %6297 = vdwg.mxu0
    %6298 = vmatpush.msra.mxu0 0.0
    %6299 = vmatpush.msra.mxu0 0.0
    %6300 = vmatpush.msra.mxu0 0.0
    %6301 = vmatpush.msra.mxu0 0.0
    %6302 = vmatpush.msra.mxu0 0.0
    %6303 = vmatpush.msra.mxu0 0.0
    %6304 = vmatpush.msra.mxu0 0.0
    %6305 = vmatpush.msra.mxu0 0.0
    %6306 = vmatpush.msra.mxu0 0.0
    %6307 = vmatpush.msra.mxu0 0.0
    %6308 = vmatpush.msra.mxu0 0.0
    %6309 = vmatpush.msra.mxu0 0.0
    %6310 = vmatpush.msra.mxu0 %v6272
    %6311 = vmatpush.msra.mxu0 %v6268
    %6312 = vmatpush.msra.mxu0 %v6264
    %6313 = vmatpush.msra.mxu0 %v6260
    %6314 = vmatmul.f32.gmra.mxu0 %v6276
    %v6315 = vpop.f32.mrf.mxu0
    %v6316 = vadd.f32 0.0, %v6315
    %6317 = vdwg.mxu0
    %6318 = vmatpush.msra.mxu0 0.0
    %6319 = vmatpush.msra.mxu0 0.0
    %6320 = vmatpush.msra.mxu0 0.0
    %6321 = vmatpush.msra.mxu0 0.0
    %6322 = vmatpush.msra.mxu0 0.0
    %6323 = vmatpush.msra.mxu0 0.0
    %6324 = vmatpush.msra.mxu0 0.0
    %6325 = vmatpush.msra.mxu0 0.0
    %6326 = vmatpush.msra.mxu0 0.0
    %6327 = vmatpush.msra.mxu0 0.0
    %6328 = vmatpush.msra.mxu0 0.0
    %6329 = vmatpush.msra.mxu0 0.0
    %6330 = vmatpush.msra.mxu0 %v6273
    %6331 = vmatpush.msra.mxu0 %v6269
    %6332 = vmatpush.msra.mxu0 %v6265
    %6333 = vmatpush.msra.mxu0 %v6261
    %6334 = vmatmul.f32.gmra.mxu0 %v6276
    %v6335 = vpop.f32.mrf.mxu0
    %v6336 = vadd.f32 0.0, %v6335
    %6337 = vdwg.mxu0
    %6338 = vmatpush.msra.mxu0 0.0
    %6339 = vmatpush.msra.mxu0 0.0
    %6340 = vmatpush.msra.mxu0 0.0
    %6341 = vmatpush.msra.mxu0 0.0
    %6342 = vmatpush.msra.mxu0 0.0
    %6343 = vmatpush.msra.mxu0 0.0
    %6344 = vmatpush.msra.mxu0 0.0
    %6345 = vmatpush.msra.mxu0 0.0
    %6346 = vmatpush.msra.mxu0 0.0
    %6347 = vmatpush.msra.mxu0 0.0
    %6348 = vmatpush.msra.mxu0 0.0
    %6349 = vmatpush.msra.mxu0 0.0
    %6350 = vmatpush.msra.mxu0 %v6274
    %6351 = vmatpush.msra.mxu0 %v6270
    %6352 = vmatpush.msra.mxu0 %v6266
    %6353 = vmatpush.msra.mxu0 %v6262
    %6354 = vmatmul.f32.gmra.mxu0 %v6276
    %v6355 = vpop.f32.mrf.mxu0
    %v6356 = vadd.f32 0.0, %v6355
    %6357 = vdwg.mxu0
    %v6358 = vadd.f32 %v6253, %v6296
    %v6359 = vadd.f32 %v6254, %v6316
    %v6360 = vadd.f32 %v6255, %v6336
    %v6361 = vadd.f32 %v6256, %v6356
    %v6362 = vld [vmem:[#allocation2 + $0x54] sm:$0x3]
    %s6363 = scalar_lea.vmem [#allocation12], 2048
    %v6364 = vld [vmem:[%s6363] sm:$0xff]
    %v6365 = vld [vmem:[%s6363 + $0x8] sm:$0xff]
    %v6366 = vld [vmem:[%s6363 + $0x10] sm:$0xff]
    %v6367 = vld [vmem:[%s6363 + $0x18] sm:$0xff]
    %v6368 = vld [vmem:[%s6363 + $0x20] sm:$0xff]
    %v6369 = vld [vmem:[%s6363 + $0x28] sm:$0xff]
    %v6370 = vld [vmem:[%s6363 + $0x30] sm:$0xff]
    %v6371 = vld [vmem:[%s6363 + $0x38] sm:$0xff]
    %v6372 = vld [vmem:[%s6363 + $0x40] sm:$0xff]
    %v6373 = vld [vmem:[%s6363 + $0x48] sm:$0xff]
    %v6374 = vld [vmem:[%s6363 + $0x50] sm:$0xff]
    %v6375 = vld [vmem:[%s6363 + $0x58] sm:$0xff]
    %v6376 = vld [vmem:[%s6363 + $0x60] sm:$0xff]
    %v6377 = vld [vmem:[%s6363 + $0x68] sm:$0xff]
    %v6378 = vld [vmem:[%s6363 + $0x70] sm:$0xff]
    %v6379 = vld [vmem:[%s6363 + $0x78] sm:$0xff]
    %v6381 = vsel %vm4672, %v6362, 0
    %6383 = vmatpush.msra.mxu0 0.0
    %6384 = vmatpush.msra.mxu0 0.0
    %6385 = vmatpush.msra.mxu0 0.0
    %6386 = vmatpush.msra.mxu0 0.0
    %6387 = vmatpush.msra.mxu0 0.0
    %6388 = vmatpush.msra.mxu0 0.0
    %6389 = vmatpush.msra.mxu0 0.0
    %6390 = vmatpush.msra.mxu0 0.0
    %6391 = vmatpush.msra.mxu0 0.0
    %6392 = vmatpush.msra.mxu0 0.0
    %6393 = vmatpush.msra.mxu0 0.0
    %6394 = vmatpush.msra.mxu0 0.0
    %6395 = vmatpush.msra.mxu0 %v6376
    %6396 = vmatpush.msra.mxu0 %v6372
    %6397 = vmatpush.msra.mxu0 %v6368
    %6398 = vmatpush.msra.mxu0 %v6364
    %6399 = vmatmul.f32.gmra.mxu0 %v6381
    %v6400 = vpop.f32.mrf.mxu0
    %v6401 = vadd.f32 0.0, %v6400
    %6402 = vdwg.mxu0
    %6403 = vmatpush.msra.mxu0 0.0
    %6404 = vmatpush.msra.mxu0 0.0
    %6405 = vmatpush.msra.mxu0 0.0
    %6406 = vmatpush.msra.mxu0 0.0
    %6407 = vmatpush.msra.mxu0 0.0
    %6408 = vmatpush.msra.mxu0 0.0
    %6409 = vmatpush.msra.mxu0 0.0
    %6410 = vmatpush.msra.mxu0 0.0
    %6411 = vmatpush.msra.mxu0 0.0
    %6412 = vmatpush.msra.mxu0 0.0
    %6413 = vmatpush.msra.mxu0 0.0
    %6414 = vmatpush.msra.mxu0 0.0
    %6415 = vmatpush.msra.mxu0 %v6377
    %6416 = vmatpush.msra.mxu0 %v6373
    %6417 = vmatpush.msra.mxu0 %v6369
    %6418 = vmatpush.msra.mxu0 %v6365
    %6419 = vmatmul.f32.gmra.mxu0 %v6381
    %v6420 = vpop.f32.mrf.mxu0
    %v6421 = vadd.f32 0.0, %v6420
    %6422 = vdwg.mxu0
    %6423 = vmatpush.msra.mxu0 0.0
    %6424 = vmatpush.msra.mxu0 0.0
    %6425 = vmatpush.msra.mxu0 0.0
    %6426 = vmatpush.msra.mxu0 0.0
    %6427 = vmatpush.msra.mxu0 0.0
    %6428 = vmatpush.msra.mxu0 0.0
    %6429 = vmatpush.msra.mxu0 0.0
    %6430 = vmatpush.msra.mxu0 0.0
    %6431 = vmatpush.msra.mxu0 0.0
    %6432 = vmatpush.msra.mxu0 0.0
    %6433 = vmatpush.msra.mxu0 0.0
    %6434 = vmatpush.msra.mxu0 0.0
    %6435 = vmatpush.msra.mxu0 %v6378
    %6436 = vmatpush.msra.mxu0 %v6374
    %6437 = vmatpush.msra.mxu0 %v6370
    %6438 = vmatpush.msra.mxu0 %v6366
    %6439 = vmatmul.f32.gmra.mxu0 %v6381
    %v6440 = vpop.f32.mrf.mxu0
    %v6441 = vadd.f32 0.0, %v6440
    %6442 = vdwg.mxu0
    %6443 = vmatpush.msra.mxu0 0.0
    %6444 = vmatpush.msra.mxu0 0.0
    %6445 = vmatpush.msra.mxu0 0.0
    %6446 = vmatpush.msra.mxu0 0.0
    %6447 = vmatpush.msra.mxu0 0.0
    %6448 = vmatpush.msra.mxu0 0.0
    %6449 = vmatpush.msra.mxu0 0.0
    %6450 = vmatpush.msra.mxu0 0.0
    %6451 = vmatpush.msra.mxu0 0.0
    %6452 = vmatpush.msra.mxu0 0.0
    %6453 = vmatpush.msra.mxu0 0.0
    %6454 = vmatpush.msra.mxu0 0.0
    %6455 = vmatpush.msra.mxu0 %v6379
    %6456 = vmatpush.msra.mxu0 %v6375
    %6457 = vmatpush.msra.mxu0 %v6371
    %6458 = vmatpush.msra.mxu0 %v6367
    %6459 = vmatmul.f32.gmra.mxu0 %v6381
    %v6460 = vpop.f32.mrf.mxu0
    %v6461 = vadd.f32 0.0, %v6460
    %6462 = vdwg.mxu0
    %v6463 = vadd.f32 %v6358, %v6401
    %v6464 = vadd.f32 %v6359, %v6421
    %v6465 = vadd.f32 %v6360, %v6441
    %v6466 = vadd.f32 %v6361, %v6461
    %v6467 = vld [vmem:[#allocation2 + $0x56] sm:$0x3]
    %s6468 = scalar_lea.vmem [#allocation12], 2176
    %v6469 = vld [vmem:[%s6468] sm:$0xff]
    %v6470 = vld [vmem:[%s6468 + $0x8] sm:$0xff]
    %v6471 = vld [vmem:[%s6468 + $0x10] sm:$0xff]
    %v6472 = vld [vmem:[%s6468 + $0x18] sm:$0xff]
    %v6473 = vld [vmem:[%s6468 + $0x20] sm:$0xff]
    %v6474 = vld [vmem:[%s6468 + $0x28] sm:$0xff]
    %v6475 = vld [vmem:[%s6468 + $0x30] sm:$0xff]
    %v6476 = vld [vmem:[%s6468 + $0x38] sm:$0xff]
    %v6477 = vld [vmem:[%s6468 + $0x40] sm:$0xff]
    %v6478 = vld [vmem:[%s6468 + $0x48] sm:$0xff]
    %v6479 = vld [vmem:[%s6468 + $0x50] sm:$0xff]
    %v6480 = vld [vmem:[%s6468 + $0x58] sm:$0xff]
    %v6481 = vld [vmem:[%s6468 + $0x60] sm:$0xff]
    %v6482 = vld [vmem:[%s6468 + $0x68] sm:$0xff]
    %v6483 = vld [vmem:[%s6468 + $0x70] sm:$0xff]
    %v6484 = vld [vmem:[%s6468 + $0x78] sm:$0xff]
    %v6486 = vsel %vm4672, %v6467, 0
    %6488 = vmatpush.msra.mxu0 0.0
    %6489 = vmatpush.msra.mxu0 0.0
    %6490 = vmatpush.msra.mxu0 0.0
    %6491 = vmatpush.msra.mxu0 0.0
    %6492 = vmatpush.msra.mxu0 0.0
    %6493 = vmatpush.msra.mxu0 0.0
    %6494 = vmatpush.msra.mxu0 0.0
    %6495 = vmatpush.msra.mxu0 0.0
    %6496 = vmatpush.msra.mxu0 0.0
    %6497 = vmatpush.msra.mxu0 0.0
    %6498 = vmatpush.msra.mxu0 0.0
    %6499 = vmatpush.msra.mxu0 0.0
    %6500 = vmatpush.msra.mxu0 %v6481
    %6501 = vmatpush.msra.mxu0 %v6477
    %6502 = vmatpush.msra.mxu0 %v6473
    %6503 = vmatpush.msra.mxu0 %v6469
    %6504 = vmatmul.f32.gmra.mxu0 %v6486
    %v6505 = vpop.f32.mrf.mxu0
    %v6506 = vadd.f32 0.0, %v6505
    %6507 = vdwg.mxu0
    %6508 = vmatpush.msra.mxu0 0.0
    %6509 = vmatpush.msra.mxu0 0.0
    %6510 = vmatpush.msra.mxu0 0.0
    %6511 = vmatpush.msra.mxu0 0.0
    %6512 = vmatpush.msra.mxu0 0.0
    %6513 = vmatpush.msra.mxu0 0.0
    %6514 = vmatpush.msra.mxu0 0.0
    %6515 = vmatpush.msra.mxu0 0.0
    %6516 = vmatpush.msra.mxu0 0.0
    %6517 = vmatpush.msra.mxu0 0.0
    %6518 = vmatpush.msra.mxu0 0.0
    %6519 = vmatpush.msra.mxu0 0.0
    %6520 = vmatpush.msra.mxu0 %v6482
    %6521 = vmatpush.msra.mxu0 %v6478
    %6522 = vmatpush.msra.mxu0 %v6474
    %6523 = vmatpush.msra.mxu0 %v6470
    %6524 = vmatmul.f32.gmra.mxu0 %v6486
    %v6525 = vpop.f32.mrf.mxu0
    %v6526 = vadd.f32 0.0, %v6525
    %6527 = vdwg.mxu0
    %6528 = vmatpush.msra.mxu0 0.0
    %6529 = vmatpush.msra.mxu0 0.0
    %6530 = vmatpush.msra.mxu0 0.0
    %6531 = vmatpush.msra.mxu0 0.0
    %6532 = vmatpush.msra.mxu0 0.0
    %6533 = vmatpush.msra.mxu0 0.0
    %6534 = vmatpush.msra.mxu0 0.0
    %6535 = vmatpush.msra.mxu0 0.0
    %6536 = vmatpush.msra.mxu0 0.0
    %6537 = vmatpush.msra.mxu0 0.0
    %6538 = vmatpush.msra.mxu0 0.0
    %6539 = vmatpush.msra.mxu0 0.0
    %6540 = vmatpush.msra.mxu0 %v6483
    %6541 = vmatpush.msra.mxu0 %v6479
    %6542 = vmatpush.msra.mxu0 %v6475
    %6543 = vmatpush.msra.mxu0 %v6471
    %6544 = vmatmul.f32.gmra.mxu0 %v6486
    %v6545 = vpop.f32.mrf.mxu0
    %v6546 = vadd.f32 0.0, %v6545
    %6547 = vdwg.mxu0
    %6548 = vmatpush.msra.mxu0 0.0
    %6549 = vmatpush.msra.mxu0 0.0
    %6550 = vmatpush.msra.mxu0 0.0
    %6551 = vmatpush.msra.mxu0 0.0
    %6552 = vmatpush.msra.mxu0 0.0
    %6553 = vmatpush.msra.mxu0 0.0
    %6554 = vmatpush.msra.mxu0 0.0
    %6555 = vmatpush.msra.mxu0 0.0
    %6556 = vmatpush.msra.mxu0 0.0
    %6557 = vmatpush.msra.mxu0 0.0
    %6558 = vmatpush.msra.mxu0 0.0
    %6559 = vmatpush.msra.mxu0 0.0
    %6560 = vmatpush.msra.mxu0 %v6484
    %6561 = vmatpush.msra.mxu0 %v6480
    %6562 = vmatpush.msra.mxu0 %v6476
    %6563 = vmatpush.msra.mxu0 %v6472
    %6564 = vmatmul.f32.gmra.mxu0 %v6486
    %v6565 = vpop.f32.mrf.mxu0
    %v6566 = vadd.f32 0.0, %v6565
    %6567 = vdwg.mxu0
    %v6568 = vadd.f32 %v6463, %v6506
    %v6569 = vadd.f32 %v6464, %v6526
    %v6570 = vadd.f32 %v6465, %v6546
    %v6571 = vadd.f32 %v6466, %v6566
    %v6572 = vld [vmem:[#allocation2 + $0x5c] sm:$0x3]
    %s6573 = scalar_lea.vmem [#allocation12], 2304
    %v6574 = vld [vmem:[%s6573] sm:$0xff]
    %v6575 = vld [vmem:[%s6573 + $0x8] sm:$0xff]
    %v6576 = vld [vmem:[%s6573 + $0x10] sm:$0xff]
    %v6577 = vld [vmem:[%s6573 + $0x18] sm:$0xff]
    %v6578 = vld [vmem:[%s6573 + $0x20] sm:$0xff]
    %v6579 = vld [vmem:[%s6573 + $0x28] sm:$0xff]
    %v6580 = vld [vmem:[%s6573 + $0x30] sm:$0xff]
    %v6581 = vld [vmem:[%s6573 + $0x38] sm:$0xff]
    %v6582 = vld [vmem:[%s6573 + $0x40] sm:$0xff]
    %v6583 = vld [vmem:[%s6573 + $0x48] sm:$0xff]
    %v6584 = vld [vmem:[%s6573 + $0x50] sm:$0xff]
    %v6585 = vld [vmem:[%s6573 + $0x58] sm:$0xff]
    %v6586 = vld [vmem:[%s6573 + $0x60] sm:$0xff]
    %v6587 = vld [vmem:[%s6573 + $0x68] sm:$0xff]
    %v6588 = vld [vmem:[%s6573 + $0x70] sm:$0xff]
    %v6589 = vld [vmem:[%s6573 + $0x78] sm:$0xff]
    %v6591 = vsel %vm4672, %v6572, 0
    %6593 = vmatpush.msra.mxu0 0.0
    %6594 = vmatpush.msra.mxu0 0.0
    %6595 = vmatpush.msra.mxu0 0.0
    %6596 = vmatpush.msra.mxu0 0.0
    %6597 = vmatpush.msra.mxu0 0.0
    %6598 = vmatpush.msra.mxu0 0.0
    %6599 = vmatpush.msra.mxu0 0.0
    %6600 = vmatpush.msra.mxu0 0.0
    %6601 = vmatpush.msra.mxu0 0.0
    %6602 = vmatpush.msra.mxu0 0.0
    %6603 = vmatpush.msra.mxu0 0.0
    %6604 = vmatpush.msra.mxu0 0.0
    %6605 = vmatpush.msra.mxu0 %v6586
    %6606 = vmatpush.msra.mxu0 %v6582
    %6607 = vmatpush.msra.mxu0 %v6578
    %6608 = vmatpush.msra.mxu0 %v6574
    %6609 = vmatmul.f32.gmra.mxu0 %v6591
    %v6610 = vpop.f32.mrf.mxu0
    %v6611 = vadd.f32 0.0, %v6610
    %6612 = vdwg.mxu0
    %6613 = vmatpush.msra.mxu0 0.0
    %6614 = vmatpush.msra.mxu0 0.0
    %6615 = vmatpush.msra.mxu0 0.0
    %6616 = vmatpush.msra.mxu0 0.0
    %6617 = vmatpush.msra.mxu0 0.0
    %6618 = vmatpush.msra.mxu0 0.0
    %6619 = vmatpush.msra.mxu0 0.0
    %6620 = vmatpush.msra.mxu0 0.0
    %6621 = vmatpush.msra.mxu0 0.0
    %6622 = vmatpush.msra.mxu0 0.0
    %6623 = vmatpush.msra.mxu0 0.0
    %6624 = vmatpush.msra.mxu0 0.0
    %6625 = vmatpush.msra.mxu0 %v6587
    %6626 = vmatpush.msra.mxu0 %v6583
    %6627 = vmatpush.msra.mxu0 %v6579
    %6628 = vmatpush.msra.mxu0 %v6575
    %6629 = vmatmul.f32.gmra.mxu0 %v6591
    %v6630 = vpop.f32.mrf.mxu0
    %v6631 = vadd.f32 0.0, %v6630
    %6632 = vdwg.mxu0
    %6633 = vmatpush.msra.mxu0 0.0
    %6634 = vmatpush.msra.mxu0 0.0
    %6635 = vmatpush.msra.mxu0 0.0
    %6636 = vmatpush.msra.mxu0 0.0
    %6637 = vmatpush.msra.mxu0 0.0
    %6638 = vmatpush.msra.mxu0 0.0
    %6639 = vmatpush.msra.mxu0 0.0
    %6640 = vmatpush.msra.mxu0 0.0
    %6641 = vmatpush.msra.mxu0 0.0
    %6642 = vmatpush.msra.mxu0 0.0
    %6643 = vmatpush.msra.mxu0 0.0
    %6644 = vmatpush.msra.mxu0 0.0
    %6645 = vmatpush.msra.mxu0 %v6588
    %6646 = vmatpush.msra.mxu0 %v6584
    %6647 = vmatpush.msra.mxu0 %v6580
    %6648 = vmatpush.msra.mxu0 %v6576
    %6649 = vmatmul.f32.gmra.mxu0 %v6591
    %v6650 = vpop.f32.mrf.mxu0
    %v6651 = vadd.f32 0.0, %v6650
    %6652 = vdwg.mxu0
    %6653 = vmatpush.msra.mxu0 0.0
    %6654 = vmatpush.msra.mxu0 0.0
    %6655 = vmatpush.msra.mxu0 0.0
    %6656 = vmatpush.msra.mxu0 0.0
    %6657 = vmatpush.msra.mxu0 0.0
    %6658 = vmatpush.msra.mxu0 0.0
    %6659 = vmatpush.msra.mxu0 0.0
    %6660 = vmatpush.msra.mxu0 0.0
    %6661 = vmatpush.msra.mxu0 0.0
    %6662 = vmatpush.msra.mxu0 0.0
    %6663 = vmatpush.msra.mxu0 0.0
    %6664 = vmatpush.msra.mxu0 0.0
    %6665 = vmatpush.msra.mxu0 %v6589
    %6666 = vmatpush.msra.mxu0 %v6585
    %6667 = vmatpush.msra.mxu0 %v6581
    %6668 = vmatpush.msra.mxu0 %v6577
    %6669 = vmatmul.f32.gmra.mxu0 %v6591
    %v6670 = vpop.f32.mrf.mxu0
    %v6671 = vadd.f32 0.0, %v6670
    %6672 = vdwg.mxu0
    %v6673 = vadd.f32 %v6568, %v6611
    %v6674 = vadd.f32 %v6569, %v6631
    %v6675 = vadd.f32 %v6570, %v6651
    %v6676 = vadd.f32 %v6571, %v6671
    %v6677 = vld [vmem:[#allocation2 + $0x5e] sm:$0x3]
    %s6678 = scalar_lea.vmem [#allocation12], 2432
    %v6679 = vld [vmem:[%s6678] sm:$0xff]
    %v6680 = vld [vmem:[%s6678 + $0x8] sm:$0xff]
    %v6681 = vld [vmem:[%s6678 + $0x10] sm:$0xff]
    %v6682 = vld [vmem:[%s6678 + $0x18] sm:$0xff]
    %v6683 = vld [vmem:[%s6678 + $0x20] sm:$0xff]
    %v6684 = vld [vmem:[%s6678 + $0x28] sm:$0xff]
    %v6685 = vld [vmem:[%s6678 + $0x30] sm:$0xff]
    %v6686 = vld [vmem:[%s6678 + $0x38] sm:$0xff]
    %v6687 = vld [vmem:[%s6678 + $0x40] sm:$0xff]
    %v6688 = vld [vmem:[%s6678 + $0x48] sm:$0xff]
    %v6689 = vld [vmem:[%s6678 + $0x50] sm:$0xff]
    %v6690 = vld [vmem:[%s6678 + $0x58] sm:$0xff]
    %v6691 = vld [vmem:[%s6678 + $0x60] sm:$0xff]
    %v6692 = vld [vmem:[%s6678 + $0x68] sm:$0xff]
    %v6693 = vld [vmem:[%s6678 + $0x70] sm:$0xff]
    %v6694 = vld [vmem:[%s6678 + $0x78] sm:$0xff]
    %v6696 = vsel %vm4672, %v6677, 0
    %6698 = vmatpush.msra.mxu0 0.0
    %6699 = vmatpush.msra.mxu0 0.0
    %6700 = vmatpush.msra.mxu0 0.0
    %6701 = vmatpush.msra.mxu0 0.0
    %6702 = vmatpush.msra.mxu0 0.0
    %6703 = vmatpush.msra.mxu0 0.0
    %6704 = vmatpush.msra.mxu0 0.0
    %6705 = vmatpush.msra.mxu0 0.0
    %6706 = vmatpush.msra.mxu0 0.0
    %6707 = vmatpush.msra.mxu0 0.0
    %6708 = vmatpush.msra.mxu0 0.0
    %6709 = vmatpush.msra.mxu0 0.0
    %6710 = vmatpush.msra.mxu0 %v6691
    %6711 = vmatpush.msra.mxu0 %v6687
    %6712 = vmatpush.msra.mxu0 %v6683
    %6713 = vmatpush.msra.mxu0 %v6679
    %6714 = vmatmul.f32.gmra.mxu0 %v6696
    %v6715 = vpop.f32.mrf.mxu0
    %v6716 = vadd.f32 0.0, %v6715
    %6717 = vdwg.mxu0
    %6718 = vmatpush.msra.mxu0 0.0
    %6719 = vmatpush.msra.mxu0 0.0
    %6720 = vmatpush.msra.mxu0 0.0
    %6721 = vmatpush.msra.mxu0 0.0
    %6722 = vmatpush.msra.mxu0 0.0
    %6723 = vmatpush.msra.mxu0 0.0
    %6724 = vmatpush.msra.mxu0 0.0
    %6725 = vmatpush.msra.mxu0 0.0
    %6726 = vmatpush.msra.mxu0 0.0
    %6727 = vmatpush.msra.mxu0 0.0
    %6728 = vmatpush.msra.mxu0 0.0
    %6729 = vmatpush.msra.mxu0 0.0
    %6730 = vmatpush.msra.mxu0 %v6692
    %6731 = vmatpush.msra.mxu0 %v6688
    %6732 = vmatpush.msra.mxu0 %v6684
    %6733 = vmatpush.msra.mxu0 %v6680
    %6734 = vmatmul.f32.gmra.mxu0 %v6696
    %v6735 = vpop.f32.mrf.mxu0
    %v6736 = vadd.f32 0.0, %v6735
    %6737 = vdwg.mxu0
    %6738 = vmatpush.msra.mxu0 0.0
    %6739 = vmatpush.msra.mxu0 0.0
    %6740 = vmatpush.msra.mxu0 0.0
    %6741 = vmatpush.msra.mxu0 0.0
    %6742 = vmatpush.msra.mxu0 0.0
    %6743 = vmatpush.msra.mxu0 0.0
    %6744 = vmatpush.msra.mxu0 0.0
    %6745 = vmatpush.msra.mxu0 0.0
    %6746 = vmatpush.msra.mxu0 0.0
    %6747 = vmatpush.msra.mxu0 0.0
    %6748 = vmatpush.msra.mxu0 0.0
    %6749 = vmatpush.msra.mxu0 0.0
    %6750 = vmatpush.msra.mxu0 %v6693
    %6751 = vmatpush.msra.mxu0 %v6689
    %6752 = vmatpush.msra.mxu0 %v6685
    %6753 = vmatpush.msra.mxu0 %v6681
    %6754 = vmatmul.f32.gmra.mxu0 %v6696
    %v6755 = vpop.f32.mrf.mxu0
    %v6756 = vadd.f32 0.0, %v6755
    %6757 = vdwg.mxu0
    %6758 = vmatpush.msra.mxu0 0.0
    %6759 = vmatpush.msra.mxu0 0.0
    %6760 = vmatpush.msra.mxu0 0.0
    %6761 = vmatpush.msra.mxu0 0.0
    %6762 = vmatpush.msra.mxu0 0.0
    %6763 = vmatpush.msra.mxu0 0.0
    %6764 = vmatpush.msra.mxu0 0.0
    %6765 = vmatpush.msra.mxu0 0.0
    %6766 = vmatpush.msra.mxu0 0.0
    %6767 = vmatpush.msra.mxu0 0.0
    %6768 = vmatpush.msra.mxu0 0.0
    %6769 = vmatpush.msra.mxu0 0.0
    %6770 = vmatpush.msra.mxu0 %v6694
    %6771 = vmatpush.msra.mxu0 %v6690
    %6772 = vmatpush.msra.mxu0 %v6686
    %6773 = vmatpush.msra.mxu0 %v6682
    %6774 = vmatmul.f32.gmra.mxu0 %v6696
    %v6775 = vpop.f32.mrf.mxu0
    %v6776 = vadd.f32 0.0, %v6775
    %6777 = vdwg.mxu0
    %v6778 = vadd.f32 %v6673, %v6716
    %v6779 = vadd.f32 %v6674, %v6736
    %v6780 = vadd.f32 %v6675, %v6756
    %v6781 = vadd.f32 %v6676, %v6776
    %v6782 = vld [vmem:[#allocation2 + $0x60] sm:$0x3]
    %s6783 = scalar_lea.vmem [#allocation12], 2560
    %v6784 = vld [vmem:[%s6783] sm:$0xff]
    %v6785 = vld [vmem:[%s6783 + $0x8] sm:$0xff]
    %v6786 = vld [vmem:[%s6783 + $0x10] sm:$0xff]
    %v6787 = vld [vmem:[%s6783 + $0x18] sm:$0xff]
    %v6788 = vld [vmem:[%s6783 + $0x20] sm:$0xff]
    %v6789 = vld [vmem:[%s6783 + $0x28] sm:$0xff]
    %v6790 = vld [vmem:[%s6783 + $0x30] sm:$0xff]
    %v6791 = vld [vmem:[%s6783 + $0x38] sm:$0xff]
    %v6792 = vld [vmem:[%s6783 + $0x40] sm:$0xff]
    %v6793 = vld [vmem:[%s6783 + $0x48] sm:$0xff]
    %v6794 = vld [vmem:[%s6783 + $0x50] sm:$0xff]
    %v6795 = vld [vmem:[%s6783 + $0x58] sm:$0xff]
    %v6796 = vld [vmem:[%s6783 + $0x60] sm:$0xff]
    %v6797 = vld [vmem:[%s6783 + $0x68] sm:$0xff]
    %v6798 = vld [vmem:[%s6783 + $0x70] sm:$0xff]
    %v6799 = vld [vmem:[%s6783 + $0x78] sm:$0xff]
    %v6801 = vsel %vm4672, %v6782, 0
    %6803 = vmatpush.msra.mxu0 0.0
    %6804 = vmatpush.msra.mxu0 0.0
    %6805 = vmatpush.msra.mxu0 0.0
    %6806 = vmatpush.msra.mxu0 0.0
    %6807 = vmatpush.msra.mxu0 0.0
    %6808 = vmatpush.msra.mxu0 0.0
    %6809 = vmatpush.msra.mxu0 0.0
    %6810 = vmatpush.msra.mxu0 0.0
    %6811 = vmatpush.msra.mxu0 0.0
    %6812 = vmatpush.msra.mxu0 0.0
    %6813 = vmatpush.msra.mxu0 0.0
    %6814 = vmatpush.msra.mxu0 0.0
    %6815 = vmatpush.msra.mxu0 %v6796
    %6816 = vmatpush.msra.mxu0 %v6792
    %6817 = vmatpush.msra.mxu0 %v6788
    %6818 = vmatpush.msra.mxu0 %v6784
    %6819 = vmatmul.f32.gmra.mxu0 %v6801
    %v6820 = vpop.f32.mrf.mxu0
    %v6821 = vadd.f32 0.0, %v6820
    %6822 = vdwg.mxu0
    %6823 = vmatpush.msra.mxu0 0.0
    %6824 = vmatpush.msra.mxu0 0.0
    %6825 = vmatpush.msra.mxu0 0.0
    %6826 = vmatpush.msra.mxu0 0.0
    %6827 = vmatpush.msra.mxu0 0.0
    %6828 = vmatpush.msra.mxu0 0.0
    %6829 = vmatpush.msra.mxu0 0.0
    %6830 = vmatpush.msra.mxu0 0.0
    %6831 = vmatpush.msra.mxu0 0.0
    %6832 = vmatpush.msra.mxu0 0.0
    %6833 = vmatpush.msra.mxu0 0.0
    %6834 = vmatpush.msra.mxu0 0.0
    %6835 = vmatpush.msra.mxu0 %v6797
    %6836 = vmatpush.msra.mxu0 %v6793
    %6837 = vmatpush.msra.mxu0 %v6789
    %6838 = vmatpush.msra.mxu0 %v6785
    %6839 = vmatmul.f32.gmra.mxu0 %v6801
    %v6840 = vpop.f32.mrf.mxu0
    %v6841 = vadd.f32 0.0, %v6840
    %6842 = vdwg.mxu0
    %6843 = vmatpush.msra.mxu0 0.0
    %6844 = vmatpush.msra.mxu0 0.0
    %6845 = vmatpush.msra.mxu0 0.0
    %6846 = vmatpush.msra.mxu0 0.0
    %6847 = vmatpush.msra.mxu0 0.0
    %6848 = vmatpush.msra.mxu0 0.0
    %6849 = vmatpush.msra.mxu0 0.0
    %6850 = vmatpush.msra.mxu0 0.0
    %6851 = vmatpush.msra.mxu0 0.0
    %6852 = vmatpush.msra.mxu0 0.0
    %6853 = vmatpush.msra.mxu0 0.0
    %6854 = vmatpush.msra.mxu0 0.0
    %6855 = vmatpush.msra.mxu0 %v6798
    %6856 = vmatpush.msra.mxu0 %v6794
    %6857 = vmatpush.msra.mxu0 %v6790
    %6858 = vmatpush.msra.mxu0 %v6786
    %6859 = vmatmul.f32.gmra.mxu0 %v6801
    %v6860 = vpop.f32.mrf.mxu0
    %v6861 = vadd.f32 0.0, %v6860
    %6862 = vdwg.mxu0
    %6863 = vmatpush.msra.mxu0 0.0
    %6864 = vmatpush.msra.mxu0 0.0
    %6865 = vmatpush.msra.mxu0 0.0
    %6866 = vmatpush.msra.mxu0 0.0
    %6867 = vmatpush.msra.mxu0 0.0
    %6868 = vmatpush.msra.mxu0 0.0
    %6869 = vmatpush.msra.mxu0 0.0
    %6870 = vmatpush.msra.mxu0 0.0
    %6871 = vmatpush.msra.mxu0 0.0
    %6872 = vmatpush.msra.mxu0 0.0
    %6873 = vmatpush.msra.mxu0 0.0
    %6874 = vmatpush.msra.mxu0 0.0
    %6875 = vmatpush.msra.mxu0 %v6799
    %6876 = vmatpush.msra.mxu0 %v6795
    %6877 = vmatpush.msra.mxu0 %v6791
    %6878 = vmatpush.msra.mxu0 %v6787
    %6879 = vmatmul.f32.gmra.mxu0 %v6801
    %v6880 = vpop.f32.mrf.mxu0
    %v6881 = vadd.f32 0.0, %v6880
    %6882 = vdwg.mxu0
    %v6883 = vadd.f32 %v6778, %v6821
    %v6884 = vadd.f32 %v6779, %v6841
    %v6885 = vadd.f32 %v6780, %v6861
    %v6886 = vadd.f32 %v6781, %v6881
    %v6887 = vld [vmem:[#allocation2 + $0x62] sm:$0x3]
    %s6888 = scalar_lea.vmem [#allocation12], 2688
    %v6889 = vld [vmem:[%s6888] sm:$0xff]
    %v6890 = vld [vmem:[%s6888 + $0x8] sm:$0xff]
    %v6891 = vld [vmem:[%s6888 + $0x10] sm:$0xff]
    %v6892 = vld [vmem:[%s6888 + $0x18] sm:$0xff]
    %v6893 = vld [vmem:[%s6888 + $0x20] sm:$0xff]
    %v6894 = vld [vmem:[%s6888 + $0x28] sm:$0xff]
    %v6895 = vld [vmem:[%s6888 + $0x30] sm:$0xff]
    %v6896 = vld [vmem:[%s6888 + $0x38] sm:$0xff]
    %v6897 = vld [vmem:[%s6888 + $0x40] sm:$0xff]
    %v6898 = vld [vmem:[%s6888 + $0x48] sm:$0xff]
    %v6899 = vld [vmem:[%s6888 + $0x50] sm:$0xff]
    %v6900 = vld [vmem:[%s6888 + $0x58] sm:$0xff]
    %v6901 = vld [vmem:[%s6888 + $0x60] sm:$0xff]
    %v6902 = vld [vmem:[%s6888 + $0x68] sm:$0xff]
    %v6903 = vld [vmem:[%s6888 + $0x70] sm:$0xff]
    %v6904 = vld [vmem:[%s6888 + $0x78] sm:$0xff]
    %v6906 = vsel %vm4672, %v6887, 0
    %6908 = vmatpush.msra.mxu0 0.0
    %6909 = vmatpush.msra.mxu0 0.0
    %6910 = vmatpush.msra.mxu0 0.0
    %6911 = vmatpush.msra.mxu0 0.0
    %6912 = vmatpush.msra.mxu0 0.0
    %6913 = vmatpush.msra.mxu0 0.0
    %6914 = vmatpush.msra.mxu0 0.0
    %6915 = vmatpush.msra.mxu0 0.0
    %6916 = vmatpush.msra.mxu0 0.0
    %6917 = vmatpush.msra.mxu0 0.0
    %6918 = vmatpush.msra.mxu0 0.0
    %6919 = vmatpush.msra.mxu0 0.0
    %6920 = vmatpush.msra.mxu0 %v6901
    %6921 = vmatpush.msra.mxu0 %v6897
    %6922 = vmatpush.msra.mxu0 %v6893
    %6923 = vmatpush.msra.mxu0 %v6889
    %6924 = vmatmul.f32.gmra.mxu0 %v6906
    %v6925 = vpop.f32.mrf.mxu0
    %v6926 = vadd.f32 0.0, %v6925
    %6927 = vdwg.mxu0
    %6928 = vmatpush.msra.mxu0 0.0
    %6929 = vmatpush.msra.mxu0 0.0
    %6930 = vmatpush.msra.mxu0 0.0
    %6931 = vmatpush.msra.mxu0 0.0
    %6932 = vmatpush.msra.mxu0 0.0
    %6933 = vmatpush.msra.mxu0 0.0
    %6934 = vmatpush.msra.mxu0 0.0
    %6935 = vmatpush.msra.mxu0 0.0
    %6936 = vmatpush.msra.mxu0 0.0
    %6937 = vmatpush.msra.mxu0 0.0
    %6938 = vmatpush.msra.mxu0 0.0
    %6939 = vmatpush.msra.mxu0 0.0
    %6940 = vmatpush.msra.mxu0 %v6902
    %6941 = vmatpush.msra.mxu0 %v6898
    %6942 = vmatpush.msra.mxu0 %v6894
    %6943 = vmatpush.msra.mxu0 %v6890
    %6944 = vmatmul.f32.gmra.mxu0 %v6906
    %v6945 = vpop.f32.mrf.mxu0
    %v6946 = vadd.f32 0.0, %v6945
    %6947 = vdwg.mxu0
    %6948 = vmatpush.msra.mxu0 0.0
    %6949 = vmatpush.msra.mxu0 0.0
    %6950 = vmatpush.msra.mxu0 0.0
    %6951 = vmatpush.msra.mxu0 0.0
    %6952 = vmatpush.msra.mxu0 0.0
    %6953 = vmatpush.msra.mxu0 0.0
    %6954 = vmatpush.msra.mxu0 0.0
    %6955 = vmatpush.msra.mxu0 0.0
    %6956 = vmatpush.msra.mxu0 0.0
    %6957 = vmatpush.msra.mxu0 0.0
    %6958 = vmatpush.msra.mxu0 0.0
    %6959 = vmatpush.msra.mxu0 0.0
    %6960 = vmatpush.msra.mxu0 %v6903
    %6961 = vmatpush.msra.mxu0 %v6899
    %6962 = vmatpush.msra.mxu0 %v6895
    %6963 = vmatpush.msra.mxu0 %v6891
    %6964 = vmatmul.f32.gmra.mxu0 %v6906
    %v6965 = vpop.f32.mrf.mxu0
    %v6966 = vadd.f32 0.0, %v6965
    %6967 = vdwg.mxu0
    %6968 = vmatpush.msra.mxu0 0.0
    %6969 = vmatpush.msra.mxu0 0.0
    %6970 = vmatpush.msra.mxu0 0.0
    %6971 = vmatpush.msra.mxu0 0.0
    %6972 = vmatpush.msra.mxu0 0.0
    %6973 = vmatpush.msra.mxu0 0.0
    %6974 = vmatpush.msra.mxu0 0.0
    %6975 = vmatpush.msra.mxu0 0.0
    %6976 = vmatpush.msra.mxu0 0.0
    %6977 = vmatpush.msra.mxu0 0.0
    %6978 = vmatpush.msra.mxu0 0.0
    %6979 = vmatpush.msra.mxu0 0.0
    %6980 = vmatpush.msra.mxu0 %v6904
    %6981 = vmatpush.msra.mxu0 %v6900
    %6982 = vmatpush.msra.mxu0 %v6896
    %6983 = vmatpush.msra.mxu0 %v6892
    %6984 = vmatmul.f32.gmra.mxu0 %v6906
    %v6985 = vpop.f32.mrf.mxu0
    %v6986 = vadd.f32 0.0, %v6985
    %6987 = vdwg.mxu0
    %v6988 = vadd.f32 %v6883, %v6926
    %v6989 = vadd.f32 %v6884, %v6946
    %v6990 = vadd.f32 %v6885, %v6966
    %v6991 = vadd.f32 %v6886, %v6986
    %v6992 = vld [vmem:[#allocation2 + $0x64] sm:$0x3]
    %s6993 = scalar_lea.vmem [#allocation12], 2816
    %v6994 = vld [vmem:[%s6993] sm:$0xff]
    %v6995 = vld [vmem:[%s6993 + $0x8] sm:$0xff]
    %v6996 = vld [vmem:[%s6993 + $0x10] sm:$0xff]
    %v6997 = vld [vmem:[%s6993 + $0x18] sm:$0xff]
    %v6998 = vld [vmem:[%s6993 + $0x20] sm:$0xff]
    %v6999 = vld [vmem:[%s6993 + $0x28] sm:$0xff]
    %v7000 = vld [vmem:[%s6993 + $0x30] sm:$0xff]
    %v7001 = vld [vmem:[%s6993 + $0x38] sm:$0xff]
    %v7002 = vld [vmem:[%s6993 + $0x40] sm:$0xff]
    %v7003 = vld [vmem:[%s6993 + $0x48] sm:$0xff]
    %v7004 = vld [vmem:[%s6993 + $0x50] sm:$0xff]
    %v7005 = vld [vmem:[%s6993 + $0x58] sm:$0xff]
    %v7006 = vld [vmem:[%s6993 + $0x60] sm:$0xff]
    %v7007 = vld [vmem:[%s6993 + $0x68] sm:$0xff]
    %v7008 = vld [vmem:[%s6993 + $0x70] sm:$0xff]
    %v7009 = vld [vmem:[%s6993 + $0x78] sm:$0xff]
    %v7011 = vsel %vm4672, %v6992, 0
    %7013 = vmatpush.msra.mxu0 0.0
    %7014 = vmatpush.msra.mxu0 0.0
    %7015 = vmatpush.msra.mxu0 0.0
    %7016 = vmatpush.msra.mxu0 0.0
    %7017 = vmatpush.msra.mxu0 0.0
    %7018 = vmatpush.msra.mxu0 0.0
    %7019 = vmatpush.msra.mxu0 0.0
    %7020 = vmatpush.msra.mxu0 0.0
    %7021 = vmatpush.msra.mxu0 0.0
    %7022 = vmatpush.msra.mxu0 0.0
    %7023 = vmatpush.msra.mxu0 0.0
    %7024 = vmatpush.msra.mxu0 0.0
    %7025 = vmatpush.msra.mxu0 %v7006
    %7026 = vmatpush.msra.mxu0 %v7002
    %7027 = vmatpush.msra.mxu0 %v6998
    %7028 = vmatpush.msra.mxu0 %v6994
    %7029 = vmatmul.f32.gmra.mxu0 %v7011
    %v7030 = vpop.f32.mrf.mxu0
    %v7031 = vadd.f32 0.0, %v7030
    %7032 = vdwg.mxu0
    %7033 = vmatpush.msra.mxu0 0.0
    %7034 = vmatpush.msra.mxu0 0.0
    %7035 = vmatpush.msra.mxu0 0.0
    %7036 = vmatpush.msra.mxu0 0.0
    %7037 = vmatpush.msra.mxu0 0.0
    %7038 = vmatpush.msra.mxu0 0.0
    %7039 = vmatpush.msra.mxu0 0.0
    %7040 = vmatpush.msra.mxu0 0.0
    %7041 = vmatpush.msra.mxu0 0.0
    %7042 = vmatpush.msra.mxu0 0.0
    %7043 = vmatpush.msra.mxu0 0.0
    %7044 = vmatpush.msra.mxu0 0.0
    %7045 = vmatpush.msra.mxu0 %v7007
    %7046 = vmatpush.msra.mxu0 %v7003
    %7047 = vmatpush.msra.mxu0 %v6999
    %7048 = vmatpush.msra.mxu0 %v6995
    %7049 = vmatmul.f32.gmra.mxu0 %v7011
    %v7050 = vpop.f32.mrf.mxu0
    %v7051 = vadd.f32 0.0, %v7050
    %7052 = vdwg.mxu0
    %7053 = vmatpush.msra.mxu0 0.0
    %7054 = vmatpush.msra.mxu0 0.0
    %7055 = vmatpush.msra.mxu0 0.0
    %7056 = vmatpush.msra.mxu0 0.0
    %7057 = vmatpush.msra.mxu0 0.0
    %7058 = vmatpush.msra.mxu0 0.0
    %7059 = vmatpush.msra.mxu0 0.0
    %7060 = vmatpush.msra.mxu0 0.0
    %7061 = vmatpush.msra.mxu0 0.0
    %7062 = vmatpush.msra.mxu0 0.0
    %7063 = vmatpush.msra.mxu0 0.0
    %7064 = vmatpush.msra.mxu0 0.0
    %7065 = vmatpush.msra.mxu0 %v7008
    %7066 = vmatpush.msra.mxu0 %v7004
    %7067 = vmatpush.msra.mxu0 %v7000
    %7068 = vmatpush.msra.mxu0 %v6996
    %7069 = vmatmul.f32.gmra.mxu0 %v7011
    %v7070 = vpop.f32.mrf.mxu0
    %v7071 = vadd.f32 0.0, %v7070
    %7072 = vdwg.mxu0
    %7073 = vmatpush.msra.mxu0 0.0
    %7074 = vmatpush.msra.mxu0 0.0
    %7075 = vmatpush.msra.mxu0 0.0
    %7076 = vmatpush.msra.mxu0 0.0
    %7077 = vmatpush.msra.mxu0 0.0
    %7078 = vmatpush.msra.mxu0 0.0
    %7079 = vmatpush.msra.mxu0 0.0
    %7080 = vmatpush.msra.mxu0 0.0
    %7081 = vmatpush.msra.mxu0 0.0
    %7082 = vmatpush.msra.mxu0 0.0
    %7083 = vmatpush.msra.mxu0 0.0
    %7084 = vmatpush.msra.mxu0 0.0
    %7085 = vmatpush.msra.mxu0 %v7009
    %7086 = vmatpush.msra.mxu0 %v7005
    %7087 = vmatpush.msra.mxu0 %v7001
    %7088 = vmatpush.msra.mxu0 %v6997
    %7089 = vmatmul.f32.gmra.mxu0 %v7011
    %v7090 = vpop.f32.mrf.mxu0
    %v7091 = vadd.f32 0.0, %v7090
    %7092 = vdwg.mxu0
    %v7093 = vadd.f32 %v6988, %v7031
    %v7094 = vadd.f32 %v6989, %v7051
    %v7095 = vadd.f32 %v6990, %v7071
    %v7096 = vadd.f32 %v6991, %v7091
    %v7097 = vld [vmem:[#allocation2 + $0x66] sm:$0x3]
    %s7098 = scalar_lea.vmem [#allocation12], 2944
    %v7099 = vld [vmem:[%s7098] sm:$0xff]
    %v7100 = vld [vmem:[%s7098 + $0x8] sm:$0xff]
    %v7101 = vld [vmem:[%s7098 + $0x10] sm:$0xff]
    %v7102 = vld [vmem:[%s7098 + $0x18] sm:$0xff]
    %v7103 = vld [vmem:[%s7098 + $0x20] sm:$0xff]
    %v7104 = vld [vmem:[%s7098 + $0x28] sm:$0xff]
    %v7105 = vld [vmem:[%s7098 + $0x30] sm:$0xff]
    %v7106 = vld [vmem:[%s7098 + $0x38] sm:$0xff]
    %v7107 = vld [vmem:[%s7098 + $0x40] sm:$0xff]
    %v7108 = vld [vmem:[%s7098 + $0x48] sm:$0xff]
    %v7109 = vld [vmem:[%s7098 + $0x50] sm:$0xff]
    %v7110 = vld [vmem:[%s7098 + $0x58] sm:$0xff]
    %v7111 = vld [vmem:[%s7098 + $0x60] sm:$0xff]
    %v7112 = vld [vmem:[%s7098 + $0x68] sm:$0xff]
    %v7113 = vld [vmem:[%s7098 + $0x70] sm:$0xff]
    %v7114 = vld [vmem:[%s7098 + $0x78] sm:$0xff]
    %v7116 = vsel %vm4672, %v7097, 0
    %7118 = vmatpush.msra.mxu0 0.0
    %7119 = vmatpush.msra.mxu0 0.0
    %7120 = vmatpush.msra.mxu0 0.0
    %7121 = vmatpush.msra.mxu0 0.0
    %7122 = vmatpush.msra.mxu0 0.0
    %7123 = vmatpush.msra.mxu0 0.0
    %7124 = vmatpush.msra.mxu0 0.0
    %7125 = vmatpush.msra.mxu0 0.0
    %7126 = vmatpush.msra.mxu0 0.0
    %7127 = vmatpush.msra.mxu0 0.0
    %7128 = vmatpush.msra.mxu0 0.0
    %7129 = vmatpush.msra.mxu0 0.0
    %7130 = vmatpush.msra.mxu0 %v7111
    %7131 = vmatpush.msra.mxu0 %v7107
    %7132 = vmatpush.msra.mxu0 %v7103
    %7133 = vmatpush.msra.mxu0 %v7099
    %7134 = vmatmul.f32.gmra.mxu0 %v7116
    %v7135 = vpop.f32.mrf.mxu0
    %v7136 = vadd.f32 0.0, %v7135
    %7137 = vdwg.mxu0
    %7138 = vmatpush.msra.mxu0 0.0
    %7139 = vmatpush.msra.mxu0 0.0
    %7140 = vmatpush.msra.mxu0 0.0
    %7141 = vmatpush.msra.mxu0 0.0
    %7142 = vmatpush.msra.mxu0 0.0
    %7143 = vmatpush.msra.mxu0 0.0
    %7144 = vmatpush.msra.mxu0 0.0
    %7145 = vmatpush.msra.mxu0 0.0
    %7146 = vmatpush.msra.mxu0 0.0
    %7147 = vmatpush.msra.mxu0 0.0
    %7148 = vmatpush.msra.mxu0 0.0
    %7149 = vmatpush.msra.mxu0 0.0
    %7150 = vmatpush.msra.mxu0 %v7112
    %7151 = vmatpush.msra.mxu0 %v7108
    %7152 = vmatpush.msra.mxu0 %v7104
    %7153 = vmatpush.msra.mxu0 %v7100
    %7154 = vmatmul.f32.gmra.mxu0 %v7116
    %v7155 = vpop.f32.mrf.mxu0
    %v7156 = vadd.f32 0.0, %v7155
    %7157 = vdwg.mxu0
    %7158 = vmatpush.msra.mxu0 0.0
    %7159 = vmatpush.msra.mxu0 0.0
    %7160 = vmatpush.msra.mxu0 0.0
    %7161 = vmatpush.msra.mxu0 0.0
    %7162 = vmatpush.msra.mxu0 0.0
    %7163 = vmatpush.msra.mxu0 0.0
    %7164 = vmatpush.msra.mxu0 0.0
    %7165 = vmatpush.msra.mxu0 0.0
    %7166 = vmatpush.msra.mxu0 0.0
    %7167 = vmatpush.msra.mxu0 0.0
    %7168 = vmatpush.msra.mxu0 0.0
    %7169 = vmatpush.msra.mxu0 0.0
    %7170 = vmatpush.msra.mxu0 %v7113
    %7171 = vmatpush.msra.mxu0 %v7109
    %7172 = vmatpush.msra.mxu0 %v7105
    %7173 = vmatpush.msra.mxu0 %v7101
    %7174 = vmatmul.f32.gmra.mxu0 %v7116
    %v7175 = vpop.f32.mrf.mxu0
    %v7176 = vadd.f32 0.0, %v7175
    %7177 = vdwg.mxu0
    %7178 = vmatpush.msra.mxu0 0.0
    %7179 = vmatpush.msra.mxu0 0.0
    %7180 = vmatpush.msra.mxu0 0.0
    %7181 = vmatpush.msra.mxu0 0.0
    %7182 = vmatpush.msra.mxu0 0.0
    %7183 = vmatpush.msra.mxu0 0.0
    %7184 = vmatpush.msra.mxu0 0.0
    %7185 = vmatpush.msra.mxu0 0.0
    %7186 = vmatpush.msra.mxu0 0.0
    %7187 = vmatpush.msra.mxu0 0.0
    %7188 = vmatpush.msra.mxu0 0.0
    %7189 = vmatpush.msra.mxu0 0.0
    %7190 = vmatpush.msra.mxu0 %v7114
    %7191 = vmatpush.msra.mxu0 %v7110
    %7192 = vmatpush.msra.mxu0 %v7106
    %7193 = vmatpush.msra.mxu0 %v7102
    %7194 = vmatmul.f32.gmra.mxu0 %v7116
    %v7195 = vpop.f32.mrf.mxu0
    %v7196 = vadd.f32 0.0, %v7195
    %7197 = vdwg.mxu0
    %v7198 = vadd.f32 %v7093, %v7136
    %v7199 = vadd.f32 %v7094, %v7156
    %v7200 = vadd.f32 %v7095, %v7176
    %v7201 = vadd.f32 %v7096, %v7196
    %v7202 = vld [vmem:[#allocation2 + $0x68] sm:$0x3]
    %s7203 = scalar_lea.vmem [#allocation12], 3072
    %v7204 = vld [vmem:[%s7203] sm:$0xff]
    %v7205 = vld [vmem:[%s7203 + $0x8] sm:$0xff]
    %v7206 = vld [vmem:[%s7203 + $0x10] sm:$0xff]
    %v7207 = vld [vmem:[%s7203 + $0x18] sm:$0xff]
    %v7208 = vld [vmem:[%s7203 + $0x20] sm:$0xff]
    %v7209 = vld [vmem:[%s7203 + $0x28] sm:$0xff]
    %v7210 = vld [vmem:[%s7203 + $0x30] sm:$0xff]
    %v7211 = vld [vmem:[%s7203 + $0x38] sm:$0xff]
    %v7212 = vld [vmem:[%s7203 + $0x40] sm:$0xff]
    %v7213 = vld [vmem:[%s7203 + $0x48] sm:$0xff]
    %v7214 = vld [vmem:[%s7203 + $0x50] sm:$0xff]
    %v7215 = vld [vmem:[%s7203 + $0x58] sm:$0xff]
    %v7216 = vld [vmem:[%s7203 + $0x60] sm:$0xff]
    %v7217 = vld [vmem:[%s7203 + $0x68] sm:$0xff]
    %v7218 = vld [vmem:[%s7203 + $0x70] sm:$0xff]
    %v7219 = vld [vmem:[%s7203 + $0x78] sm:$0xff]
    %v7221 = vsel %vm4672, %v7202, 0
    %7223 = vmatpush.msra.mxu0 0.0
    %7224 = vmatpush.msra.mxu0 0.0
    %7225 = vmatpush.msra.mxu0 0.0
    %7226 = vmatpush.msra.mxu0 0.0
    %7227 = vmatpush.msra.mxu0 0.0
    %7228 = vmatpush.msra.mxu0 0.0
    %7229 = vmatpush.msra.mxu0 0.0
    %7230 = vmatpush.msra.mxu0 0.0
    %7231 = vmatpush.msra.mxu0 0.0
    %7232 = vmatpush.msra.mxu0 0.0
    %7233 = vmatpush.msra.mxu0 0.0
    %7234 = vmatpush.msra.mxu0 0.0
    %7235 = vmatpush.msra.mxu0 %v7216
    %7236 = vmatpush.msra.mxu0 %v7212
    %7237 = vmatpush.msra.mxu0 %v7208
    %7238 = vmatpush.msra.mxu0 %v7204
    %7239 = vmatmul.f32.gmra.mxu0 %v7221
    %v7240 = vpop.f32.mrf.mxu0
    %v7241 = vadd.f32 0.0, %v7240
    %7242 = vdwg.mxu0
    %7243 = vmatpush.msra.mxu0 0.0
    %7244 = vmatpush.msra.mxu0 0.0
    %7245 = vmatpush.msra.mxu0 0.0
    %7246 = vmatpush.msra.mxu0 0.0
    %7247 = vmatpush.msra.mxu0 0.0
    %7248 = vmatpush.msra.mxu0 0.0
    %7249 = vmatpush.msra.mxu0 0.0
    %7250 = vmatpush.msra.mxu0 0.0
    %7251 = vmatpush.msra.mxu0 0.0
    %7252 = vmatpush.msra.mxu0 0.0
    %7253 = vmatpush.msra.mxu0 0.0
    %7254 = vmatpush.msra.mxu0 0.0
    %7255 = vmatpush.msra.mxu0 %v7217
    %7256 = vmatpush.msra.mxu0 %v7213
    %7257 = vmatpush.msra.mxu0 %v7209
    %7258 = vmatpush.msra.mxu0 %v7205
    %7259 = vmatmul.f32.gmra.mxu0 %v7221
    %v7260 = vpop.f32.mrf.mxu0
    %v7261 = vadd.f32 0.0, %v7260
    %7262 = vdwg.mxu0
    %7263 = vmatpush.msra.mxu0 0.0
    %7264 = vmatpush.msra.mxu0 0.0
    %7265 = vmatpush.msra.mxu0 0.0
    %7266 = vmatpush.msra.mxu0 0.0
    %7267 = vmatpush.msra.mxu0 0.0
    %7268 = vmatpush.msra.mxu0 0.0
    %7269 = vmatpush.msra.mxu0 0.0
    %7270 = vmatpush.msra.mxu0 0.0
    %7271 = vmatpush.msra.mxu0 0.0
    %7272 = vmatpush.msra.mxu0 0.0
    %7273 = vmatpush.msra.mxu0 0.0
    %7274 = vmatpush.msra.mxu0 0.0
    %7275 = vmatpush.msra.mxu0 %v7218
    %7276 = vmatpush.msra.mxu0 %v7214
    %7277 = vmatpush.msra.mxu0 %v7210
    %7278 = vmatpush.msra.mxu0 %v7206
    %7279 = vmatmul.f32.gmra.mxu0 %v7221
    %v7280 = vpop.f32.mrf.mxu0
    %v7281 = vadd.f32 0.0, %v7280
    %7282 = vdwg.mxu0
    %7283 = vmatpush.msra.mxu0 0.0
    %7284 = vmatpush.msra.mxu0 0.0
    %7285 = vmatpush.msra.mxu0 0.0
    %7286 = vmatpush.msra.mxu0 0.0
    %7287 = vmatpush.msra.mxu0 0.0
    %7288 = vmatpush.msra.mxu0 0.0
    %7289 = vmatpush.msra.mxu0 0.0
    %7290 = vmatpush.msra.mxu0 0.0
    %7291 = vmatpush.msra.mxu0 0.0
    %7292 = vmatpush.msra.mxu0 0.0
    %7293 = vmatpush.msra.mxu0 0.0
    %7294 = vmatpush.msra.mxu0 0.0
    %7295 = vmatpush.msra.mxu0 %v7219
    %7296 = vmatpush.msra.mxu0 %v7215
    %7297 = vmatpush.msra.mxu0 %v7211
    %7298 = vmatpush.msra.mxu0 %v7207
    %7299 = vmatmul.f32.gmra.mxu0 %v7221
    %v7300 = vpop.f32.mrf.mxu0
    %v7301 = vadd.f32 0.0, %v7300
    %7302 = vdwg.mxu0
    %v7303 = vadd.f32 %v7198, %v7241
    %v7304 = vadd.f32 %v7199, %v7261
    %v7305 = vadd.f32 %v7200, %v7281
    %v7306 = vadd.f32 %v7201, %v7301
    %v7307 = vld [vmem:[#allocation2 + $0x6a] sm:$0x3]
    %s7308 = scalar_lea.vmem [#allocation12], 3200
    %v7309 = vld [vmem:[%s7308] sm:$0xff]
    %v7310 = vld [vmem:[%s7308 + $0x8] sm:$0xff]
    %v7311 = vld [vmem:[%s7308 + $0x10] sm:$0xff]
    %v7312 = vld [vmem:[%s7308 + $0x18] sm:$0xff]
    %v7313 = vld [vmem:[%s7308 + $0x20] sm:$0xff]
    %v7314 = vld [vmem:[%s7308 + $0x28] sm:$0xff]
    %v7315 = vld [vmem:[%s7308 + $0x30] sm:$0xff]
    %v7316 = vld [vmem:[%s7308 + $0x38] sm:$0xff]
    %v7317 = vld [vmem:[%s7308 + $0x40] sm:$0xff]
    %v7318 = vld [vmem:[%s7308 + $0x48] sm:$0xff]
    %v7319 = vld [vmem:[%s7308 + $0x50] sm:$0xff]
    %v7320 = vld [vmem:[%s7308 + $0x58] sm:$0xff]
    %v7321 = vld [vmem:[%s7308 + $0x60] sm:$0xff]
    %v7322 = vld [vmem:[%s7308 + $0x68] sm:$0xff]
    %v7323 = vld [vmem:[%s7308 + $0x70] sm:$0xff]
    %v7324 = vld [vmem:[%s7308 + $0x78] sm:$0xff]
    %v7326 = vsel %vm4672, %v7307, 0
    %7328 = vmatpush.msra.mxu0 0.0
    %7329 = vmatpush.msra.mxu0 0.0
    %7330 = vmatpush.msra.mxu0 0.0
    %7331 = vmatpush.msra.mxu0 0.0
    %7332 = vmatpush.msra.mxu0 0.0
    %7333 = vmatpush.msra.mxu0 0.0
    %7334 = vmatpush.msra.mxu0 0.0
    %7335 = vmatpush.msra.mxu0 0.0
    %7336 = vmatpush.msra.mxu0 0.0
    %7337 = vmatpush.msra.mxu0 0.0
    %7338 = vmatpush.msra.mxu0 0.0
    %7339 = vmatpush.msra.mxu0 0.0
    %7340 = vmatpush.msra.mxu0 %v7321
    %7341 = vmatpush.msra.mxu0 %v7317
    %7342 = vmatpush.msra.mxu0 %v7313
    %7343 = vmatpush.msra.mxu0 %v7309
    %7344 = vmatmul.f32.gmra.mxu0 %v7326
    %v7345 = vpop.f32.mrf.mxu0
    %v7346 = vadd.f32 0.0, %v7345
    %7347 = vdwg.mxu0
    %7348 = vmatpush.msra.mxu0 0.0
    %7349 = vmatpush.msra.mxu0 0.0
    %7350 = vmatpush.msra.mxu0 0.0
    %7351 = vmatpush.msra.mxu0 0.0
    %7352 = vmatpush.msra.mxu0 0.0
    %7353 = vmatpush.msra.mxu0 0.0
    %7354 = vmatpush.msra.mxu0 0.0
    %7355 = vmatpush.msra.mxu0 0.0
    %7356 = vmatpush.msra.mxu0 0.0
    %7357 = vmatpush.msra.mxu0 0.0
    %7358 = vmatpush.msra.mxu0 0.0
    %7359 = vmatpush.msra.mxu0 0.0
    %7360 = vmatpush.msra.mxu0 %v7322
    %7361 = vmatpush.msra.mxu0 %v7318
    %7362 = vmatpush.msra.mxu0 %v7314
    %7363 = vmatpush.msra.mxu0 %v7310
    %7364 = vmatmul.f32.gmra.mxu0 %v7326
    %v7365 = vpop.f32.mrf.mxu0
    %v7366 = vadd.f32 0.0, %v7365
    %7367 = vdwg.mxu0
    %7368 = vmatpush.msra.mxu0 0.0
    %7369 = vmatpush.msra.mxu0 0.0
    %7370 = vmatpush.msra.mxu0 0.0
    %7371 = vmatpush.msra.mxu0 0.0
    %7372 = vmatpush.msra.mxu0 0.0
    %7373 = vmatpush.msra.mxu0 0.0
    %7374 = vmatpush.msra.mxu0 0.0
    %7375 = vmatpush.msra.mxu0 0.0
    %7376 = vmatpush.msra.mxu0 0.0
    %7377 = vmatpush.msra.mxu0 0.0
    %7378 = vmatpush.msra.mxu0 0.0
    %7379 = vmatpush.msra.mxu0 0.0
    %7380 = vmatpush.msra.mxu0 %v7323
    %7381 = vmatpush.msra.mxu0 %v7319
    %7382 = vmatpush.msra.mxu0 %v7315
    %7383 = vmatpush.msra.mxu0 %v7311
    %7384 = vmatmul.f32.gmra.mxu0 %v7326
    %v7385 = vpop.f32.mrf.mxu0
    %v7386 = vadd.f32 0.0, %v7385
    %7387 = vdwg.mxu0
    %7388 = vmatpush.msra.mxu0 0.0
    %7389 = vmatpush.msra.mxu0 0.0
    %7390 = vmatpush.msra.mxu0 0.0
    %7391 = vmatpush.msra.mxu0 0.0
    %7392 = vmatpush.msra.mxu0 0.0
    %7393 = vmatpush.msra.mxu0 0.0
    %7394 = vmatpush.msra.mxu0 0.0
    %7395 = vmatpush.msra.mxu0 0.0
    %7396 = vmatpush.msra.mxu0 0.0
    %7397 = vmatpush.msra.mxu0 0.0
    %7398 = vmatpush.msra.mxu0 0.0
    %7399 = vmatpush.msra.mxu0 0.0
    %7400 = vmatpush.msra.mxu0 %v7324
    %7401 = vmatpush.msra.mxu0 %v7320
    %7402 = vmatpush.msra.mxu0 %v7316
    %7403 = vmatpush.msra.mxu0 %v7312
    %7404 = vmatmul.f32.gmra.mxu0 %v7326
    %v7405 = vpop.f32.mrf.mxu0
    %v7406 = vadd.f32 0.0, %v7405
    %7407 = vdwg.mxu0
    %v7408 = vadd.f32 %v7303, %v7346
    %v7409 = vadd.f32 %v7304, %v7366
    %v7410 = vadd.f32 %v7305, %v7386
    %v7411 = vadd.f32 %v7306, %v7406
    %v7412 = vld [vmem:[#allocation2 + $0x6c] sm:$0x3]
    %s7413 = scalar_lea.vmem [#allocation12], 3328
    %v7414 = vld [vmem:[%s7413] sm:$0xff]
    %v7415 = vld [vmem:[%s7413 + $0x8] sm:$0xff]
    %v7416 = vld [vmem:[%s7413 + $0x10] sm:$0xff]
    %v7417 = vld [vmem:[%s7413 + $0x18] sm:$0xff]
    %v7418 = vld [vmem:[%s7413 + $0x20] sm:$0xff]
    %v7419 = vld [vmem:[%s7413 + $0x28] sm:$0xff]
    %v7420 = vld [vmem:[%s7413 + $0x30] sm:$0xff]
    %v7421 = vld [vmem:[%s7413 + $0x38] sm:$0xff]
    %v7422 = vld [vmem:[%s7413 + $0x40] sm:$0xff]
    %v7423 = vld [vmem:[%s7413 + $0x48] sm:$0xff]
    %v7424 = vld [vmem:[%s7413 + $0x50] sm:$0xff]
    %v7425 = vld [vmem:[%s7413 + $0x58] sm:$0xff]
    %v7426 = vld [vmem:[%s7413 + $0x60] sm:$0xff]
    %v7427 = vld [vmem:[%s7413 + $0x68] sm:$0xff]
    %v7428 = vld [vmem:[%s7413 + $0x70] sm:$0xff]
    %v7429 = vld [vmem:[%s7413 + $0x78] sm:$0xff]
    %v7431 = vsel %vm4672, %v7412, 0
    %7433 = vmatpush.msra.mxu0 0.0
    %7434 = vmatpush.msra.mxu0 0.0
    %7435 = vmatpush.msra.mxu0 0.0
    %7436 = vmatpush.msra.mxu0 0.0
    %7437 = vmatpush.msra.mxu0 0.0
    %7438 = vmatpush.msra.mxu0 0.0
    %7439 = vmatpush.msra.mxu0 0.0
    %7440 = vmatpush.msra.mxu0 0.0
    %7441 = vmatpush.msra.mxu0 0.0
    %7442 = vmatpush.msra.mxu0 0.0
    %7443 = vmatpush.msra.mxu0 0.0
    %7444 = vmatpush.msra.mxu0 0.0
    %7445 = vmatpush.msra.mxu0 %v7426
    %7446 = vmatpush.msra.mxu0 %v7422
    %7447 = vmatpush.msra.mxu0 %v7418
    %7448 = vmatpush.msra.mxu0 %v7414
    %7449 = vmatmul.f32.gmra.mxu0 %v7431
    %v7450 = vpop.f32.mrf.mxu0
    %v7451 = vadd.f32 0.0, %v7450
    %7452 = vdwg.mxu0
    %7453 = vmatpush.msra.mxu0 0.0
    %7454 = vmatpush.msra.mxu0 0.0
    %7455 = vmatpush.msra.mxu0 0.0
    %7456 = vmatpush.msra.mxu0 0.0
    %7457 = vmatpush.msra.mxu0 0.0
    %7458 = vmatpush.msra.mxu0 0.0
    %7459 = vmatpush.msra.mxu0 0.0
    %7460 = vmatpush.msra.mxu0 0.0
    %7461 = vmatpush.msra.mxu0 0.0
    %7462 = vmatpush.msra.mxu0 0.0
    %7463 = vmatpush.msra.mxu0 0.0
    %7464 = vmatpush.msra.mxu0 0.0
    %7465 = vmatpush.msra.mxu0 %v7427
    %7466 = vmatpush.msra.mxu0 %v7423
    %7467 = vmatpush.msra.mxu0 %v7419
    %7468 = vmatpush.msra.mxu0 %v7415
    %7469 = vmatmul.f32.gmra.mxu0 %v7431
    %v7470 = vpop.f32.mrf.mxu0
    %v7471 = vadd.f32 0.0, %v7470
    %7472 = vdwg.mxu0
    %7473 = vmatpush.msra.mxu0 0.0
    %7474 = vmatpush.msra.mxu0 0.0
    %7475 = vmatpush.msra.mxu0 0.0
    %7476 = vmatpush.msra.mxu0 0.0
    %7477 = vmatpush.msra.mxu0 0.0
    %7478 = vmatpush.msra.mxu0 0.0
    %7479 = vmatpush.msra.mxu0 0.0
    %7480 = vmatpush.msra.mxu0 0.0
    %7481 = vmatpush.msra.mxu0 0.0
    %7482 = vmatpush.msra.mxu0 0.0
    %7483 = vmatpush.msra.mxu0 0.0
    %7484 = vmatpush.msra.mxu0 0.0
    %7485 = vmatpush.msra.mxu0 %v7428
    %7486 = vmatpush.msra.mxu0 %v7424
    %7487 = vmatpush.msra.mxu0 %v7420
    %7488 = vmatpush.msra.mxu0 %v7416
    %7489 = vmatmul.f32.gmra.mxu0 %v7431
    %v7490 = vpop.f32.mrf.mxu0
    %v7491 = vadd.f32 0.0, %v7490
    %7492 = vdwg.mxu0
    %7493 = vmatpush.msra.mxu0 0.0
    %7494 = vmatpush.msra.mxu0 0.0
    %7495 = vmatpush.msra.mxu0 0.0
    %7496 = vmatpush.msra.mxu0 0.0
    %7497 = vmatpush.msra.mxu0 0.0
    %7498 = vmatpush.msra.mxu0 0.0
    %7499 = vmatpush.msra.mxu0 0.0
    %7500 = vmatpush.msra.mxu0 0.0
    %7501 = vmatpush.msra.mxu0 0.0
    %7502 = vmatpush.msra.mxu0 0.0
    %7503 = vmatpush.msra.mxu0 0.0
    %7504 = vmatpush.msra.mxu0 0.0
    %7505 = vmatpush.msra.mxu0 %v7429
    %7506 = vmatpush.msra.mxu0 %v7425
    %7507 = vmatpush.msra.mxu0 %v7421
    %7508 = vmatpush.msra.mxu0 %v7417
    %7509 = vmatmul.f32.gmra.mxu0 %v7431
    %v7510 = vpop.f32.mrf.mxu0
    %v7511 = vadd.f32 0.0, %v7510
    %7512 = vdwg.mxu0
    %v7513 = vadd.f32 %v7408, %v7451
    %v7514 = vadd.f32 %v7409, %v7471
    %v7515 = vadd.f32 %v7410, %v7491
    %v7516 = vadd.f32 %v7411, %v7511
    %v7517 = vld [vmem:[#allocation2 + $0x72] sm:$0x3]
    %s7518 = scalar_lea.vmem [#allocation12], 3456
    %v7519 = vld [vmem:[%s7518] sm:$0xff]
    %v7520 = vld [vmem:[%s7518 + $0x8] sm:$0xff]
    %v7521 = vld [vmem:[%s7518 + $0x10] sm:$0xff]
    %v7522 = vld [vmem:[%s7518 + $0x18] sm:$0xff]
    %v7523 = vld [vmem:[%s7518 + $0x20] sm:$0xff]
    %v7524 = vld [vmem:[%s7518 + $0x28] sm:$0xff]
    %v7525 = vld [vmem:[%s7518 + $0x30] sm:$0xff]
    %v7526 = vld [vmem:[%s7518 + $0x38] sm:$0xff]
    %v7527 = vld [vmem:[%s7518 + $0x40] sm:$0xff]
    %v7528 = vld [vmem:[%s7518 + $0x48] sm:$0xff]
    %v7529 = vld [vmem:[%s7518 + $0x50] sm:$0xff]
    %v7530 = vld [vmem:[%s7518 + $0x58] sm:$0xff]
    %v7531 = vld [vmem:[%s7518 + $0x60] sm:$0xff]
    %v7532 = vld [vmem:[%s7518 + $0x68] sm:$0xff]
    %v7533 = vld [vmem:[%s7518 + $0x70] sm:$0xff]
    %v7534 = vld [vmem:[%s7518 + $0x78] sm:$0xff]
    %v7536 = vsel %vm4672, %v7517, 0
    %7538 = vmatpush.msra.mxu0 0.0
    %7539 = vmatpush.msra.mxu0 0.0
    %7540 = vmatpush.msra.mxu0 0.0
    %7541 = vmatpush.msra.mxu0 0.0
    %7542 = vmatpush.msra.mxu0 0.0
    %7543 = vmatpush.msra.mxu0 0.0
    %7544 = vmatpush.msra.mxu0 0.0
    %7545 = vmatpush.msra.mxu0 0.0
    %7546 = vmatpush.msra.mxu0 0.0
    %7547 = vmatpush.msra.mxu0 0.0
    %7548 = vmatpush.msra.mxu0 0.0
    %7549 = vmatpush.msra.mxu0 0.0
    %7550 = vmatpush.msra.mxu0 %v7531
    %7551 = vmatpush.msra.mxu0 %v7527
    %7552 = vmatpush.msra.mxu0 %v7523
    %7553 = vmatpush.msra.mxu0 %v7519
    %7554 = vmatmul.f32.gmra.mxu0 %v7536
    %v7555 = vpop.f32.mrf.mxu0
    %v7556 = vadd.f32 0.0, %v7555
    %7557 = vdwg.mxu0
    %7558 = vmatpush.msra.mxu0 0.0
    %7559 = vmatpush.msra.mxu0 0.0
    %7560 = vmatpush.msra.mxu0 0.0
    %7561 = vmatpush.msra.mxu0 0.0
    %7562 = vmatpush.msra.mxu0 0.0
    %7563 = vmatpush.msra.mxu0 0.0
    %7564 = vmatpush.msra.mxu0 0.0
    %7565 = vmatpush.msra.mxu0 0.0
    %7566 = vmatpush.msra.mxu0 0.0
    %7567 = vmatpush.msra.mxu0 0.0
    %7568 = vmatpush.msra.mxu0 0.0
    %7569 = vmatpush.msra.mxu0 0.0
    %7570 = vmatpush.msra.mxu0 %v7532
    %7571 = vmatpush.msra.mxu0 %v7528
    %7572 = vmatpush.msra.mxu0 %v7524
    %7573 = vmatpush.msra.mxu0 %v7520
    %7574 = vmatmul.f32.gmra.mxu0 %v7536
    %v7575 = vpop.f32.mrf.mxu0
    %v7576 = vadd.f32 0.0, %v7575
    %7577 = vdwg.mxu0
    %7578 = vmatpush.msra.mxu0 0.0
    %7579 = vmatpush.msra.mxu0 0.0
    %7580 = vmatpush.msra.mxu0 0.0
    %7581 = vmatpush.msra.mxu0 0.0
    %7582 = vmatpush.msra.mxu0 0.0
    %7583 = vmatpush.msra.mxu0 0.0
    %7584 = vmatpush.msra.mxu0 0.0
    %7585 = vmatpush.msra.mxu0 0.0
    %7586 = vmatpush.msra.mxu0 0.0
    %7587 = vmatpush.msra.mxu0 0.0
    %7588 = vmatpush.msra.mxu0 0.0
    %7589 = vmatpush.msra.mxu0 0.0
    %7590 = vmatpush.msra.mxu0 %v7533
    %7591 = vmatpush.msra.mxu0 %v7529
    %7592 = vmatpush.msra.mxu0 %v7525
    %7593 = vmatpush.msra.mxu0 %v7521
    %7594 = vmatmul.f32.gmra.mxu0 %v7536
    %v7595 = vpop.f32.mrf.mxu0
    %v7596 = vadd.f32 0.0, %v7595
    %7597 = vdwg.mxu0
    %7598 = vmatpush.msra.mxu0 0.0
    %7599 = vmatpush.msra.mxu0 0.0
    %7600 = vmatpush.msra.mxu0 0.0
    %7601 = vmatpush.msra.mxu0 0.0
    %7602 = vmatpush.msra.mxu0 0.0
    %7603 = vmatpush.msra.mxu0 0.0
    %7604 = vmatpush.msra.mxu0 0.0
    %7605 = vmatpush.msra.mxu0 0.0
    %7606 = vmatpush.msra.mxu0 0.0
    %7607 = vmatpush.msra.mxu0 0.0
    %7608 = vmatpush.msra.mxu0 0.0
    %7609 = vmatpush.msra.mxu0 0.0
    %7610 = vmatpush.msra.mxu0 %v7534
    %7611 = vmatpush.msra.mxu0 %v7530
    %7612 = vmatpush.msra.mxu0 %v7526
    %7613 = vmatpush.msra.mxu0 %v7522
    %7614 = vmatmul.f32.gmra.mxu0 %v7536
    %v7615 = vpop.f32.mrf.mxu0
    %v7616 = vadd.f32 0.0, %v7615
    %7617 = vdwg.mxu0
    %v7618 = vadd.f32 %v7513, %v7556
    %v7619 = vadd.f32 %v7514, %v7576
    %v7620 = vadd.f32 %v7515, %v7596
    %v7621 = vadd.f32 %v7516, %v7616
    %v7622 = vld [vmem:[#allocation2 + $0x74] sm:$0x3]
    %s7623 = scalar_lea.vmem [#allocation12], 3584
    %v7624 = vld [vmem:[%s7623] sm:$0xff]
    %v7625 = vld [vmem:[%s7623 + $0x8] sm:$0xff]
    %v7626 = vld [vmem:[%s7623 + $0x10] sm:$0xff]
    %v7627 = vld [vmem:[%s7623 + $0x18] sm:$0xff]
    %v7628 = vld [vmem:[%s7623 + $0x20] sm:$0xff]
    %v7629 = vld [vmem:[%s7623 + $0x28] sm:$0xff]
    %v7630 = vld [vmem:[%s7623 + $0x30] sm:$0xff]
    %v7631 = vld [vmem:[%s7623 + $0x38] sm:$0xff]
    %v7632 = vld [vmem:[%s7623 + $0x40] sm:$0xff]
    %v7633 = vld [vmem:[%s7623 + $0x48] sm:$0xff]
    %v7634 = vld [vmem:[%s7623 + $0x50] sm:$0xff]
    %v7635 = vld [vmem:[%s7623 + $0x58] sm:$0xff]
    %v7636 = vld [vmem:[%s7623 + $0x60] sm:$0xff]
    %v7637 = vld [vmem:[%s7623 + $0x68] sm:$0xff]
    %v7638 = vld [vmem:[%s7623 + $0x70] sm:$0xff]
    %v7639 = vld [vmem:[%s7623 + $0x78] sm:$0xff]
    %v7641 = vsel %vm4672, %v7622, 0
    %7643 = vmatpush.msra.mxu0 0.0
    %7644 = vmatpush.msra.mxu0 0.0
    %7645 = vmatpush.msra.mxu0 0.0
    %7646 = vmatpush.msra.mxu0 0.0
    %7647 = vmatpush.msra.mxu0 0.0
    %7648 = vmatpush.msra.mxu0 0.0
    %7649 = vmatpush.msra.mxu0 0.0
    %7650 = vmatpush.msra.mxu0 0.0
    %7651 = vmatpush.msra.mxu0 0.0
    %7652 = vmatpush.msra.mxu0 0.0
    %7653 = vmatpush.msra.mxu0 0.0
    %7654 = vmatpush.msra.mxu0 0.0
    %7655 = vmatpush.msra.mxu0 %v7636
    %7656 = vmatpush.msra.mxu0 %v7632
    %7657 = vmatpush.msra.mxu0 %v7628
    %7658 = vmatpush.msra.mxu0 %v7624
    %7659 = vmatmul.f32.gmra.mxu0 %v7641
    %v7660 = vpop.f32.mrf.mxu0
    %v7661 = vadd.f32 0.0, %v7660
    %7662 = vdwg.mxu0
    %7663 = vmatpush.msra.mxu0 0.0
    %7664 = vmatpush.msra.mxu0 0.0
    %7665 = vmatpush.msra.mxu0 0.0
    %7666 = vmatpush.msra.mxu0 0.0
    %7667 = vmatpush.msra.mxu0 0.0
    %7668 = vmatpush.msra.mxu0 0.0
    %7669 = vmatpush.msra.mxu0 0.0
    %7670 = vmatpush.msra.mxu0 0.0
    %7671 = vmatpush.msra.mxu0 0.0
    %7672 = vmatpush.msra.mxu0 0.0
    %7673 = vmatpush.msra.mxu0 0.0
    %7674 = vmatpush.msra.mxu0 0.0
    %7675 = vmatpush.msra.mxu0 %v7637
    %7676 = vmatpush.msra.mxu0 %v7633
    %7677 = vmatpush.msra.mxu0 %v7629
    %7678 = vmatpush.msra.mxu0 %v7625
    %7679 = vmatmul.f32.gmra.mxu0 %v7641
    %v7680 = vpop.f32.mrf.mxu0
    %v7681 = vadd.f32 0.0, %v7680
    %7682 = vdwg.mxu0
    %7683 = vmatpush.msra.mxu0 0.0
    %7684 = vmatpush.msra.mxu0 0.0
    %7685 = vmatpush.msra.mxu0 0.0
    %7686 = vmatpush.msra.mxu0 0.0
    %7687 = vmatpush.msra.mxu0 0.0
    %7688 = vmatpush.msra.mxu0 0.0
    %7689 = vmatpush.msra.mxu0 0.0
    %7690 = vmatpush.msra.mxu0 0.0
    %7691 = vmatpush.msra.mxu0 0.0
    %7692 = vmatpush.msra.mxu0 0.0
    %7693 = vmatpush.msra.mxu0 0.0
    %7694 = vmatpush.msra.mxu0 0.0
    %7695 = vmatpush.msra.mxu0 %v7638
    %7696 = vmatpush.msra.mxu0 %v7634
    %7697 = vmatpush.msra.mxu0 %v7630
    %7698 = vmatpush.msra.mxu0 %v7626
    %7699 = vmatmul.f32.gmra.mxu0 %v7641
    %v7700 = vpop.f32.mrf.mxu0
    %v7701 = vadd.f32 0.0, %v7700
    %7702 = vdwg.mxu0
    %7703 = vmatpush.msra.mxu0 0.0
    %7704 = vmatpush.msra.mxu0 0.0
    %7705 = vmatpush.msra.mxu0 0.0
    %7706 = vmatpush.msra.mxu0 0.0
    %7707 = vmatpush.msra.mxu0 0.0
    %7708 = vmatpush.msra.mxu0 0.0
    %7709 = vmatpush.msra.mxu0 0.0
    %7710 = vmatpush.msra.mxu0 0.0
    %7711 = vmatpush.msra.mxu0 0.0
    %7712 = vmatpush.msra.mxu0 0.0
    %7713 = vmatpush.msra.mxu0 0.0
    %7714 = vmatpush.msra.mxu0 0.0
    %7715 = vmatpush.msra.mxu0 %v7639
    %7716 = vmatpush.msra.mxu0 %v7635
    %7717 = vmatpush.msra.mxu0 %v7631
    %7718 = vmatpush.msra.mxu0 %v7627
    %7719 = vmatmul.f32.gmra.mxu0 %v7641
    %v7720 = vpop.f32.mrf.mxu0
    %v7721 = vadd.f32 0.0, %v7720
    %7722 = vdwg.mxu0
    %v7723 = vadd.f32 %v7618, %v7661
    %v7724 = vadd.f32 %v7619, %v7681
    %v7725 = vadd.f32 %v7620, %v7701
    %v7726 = vadd.f32 %v7621, %v7721
    %v7727 = vld [vmem:[#allocation2 + $0x76] sm:$0x3]
    %s7728 = scalar_lea.vmem [#allocation12], 3712
    %v7729 = vld [vmem:[%s7728] sm:$0xff]
    %v7730 = vld [vmem:[%s7728 + $0x8] sm:$0xff]
    %v7731 = vld [vmem:[%s7728 + $0x10] sm:$0xff]
    %v7732 = vld [vmem:[%s7728 + $0x18] sm:$0xff]
    %v7733 = vld [vmem:[%s7728 + $0x20] sm:$0xff]
    %v7734 = vld [vmem:[%s7728 + $0x28] sm:$0xff]
    %v7735 = vld [vmem:[%s7728 + $0x30] sm:$0xff]
    %v7736 = vld [vmem:[%s7728 + $0x38] sm:$0xff]
    %v7737 = vld [vmem:[%s7728 + $0x40] sm:$0xff]
    %v7738 = vld [vmem:[%s7728 + $0x48] sm:$0xff]
    %v7739 = vld [vmem:[%s7728 + $0x50] sm:$0xff]
    %v7740 = vld [vmem:[%s7728 + $0x58] sm:$0xff]
    %v7741 = vld [vmem:[%s7728 + $0x60] sm:$0xff]
    %v7742 = vld [vmem:[%s7728 + $0x68] sm:$0xff]
    %v7743 = vld [vmem:[%s7728 + $0x70] sm:$0xff]
    %v7744 = vld [vmem:[%s7728 + $0x78] sm:$0xff]
    %v7746 = vsel %vm4672, %v7727, 0
    %7748 = vmatpush.msra.mxu0 0.0
    %7749 = vmatpush.msra.mxu0 0.0
    %7750 = vmatpush.msra.mxu0 0.0
    %7751 = vmatpush.msra.mxu0 0.0
    %7752 = vmatpush.msra.mxu0 0.0
    %7753 = vmatpush.msra.mxu0 0.0
    %7754 = vmatpush.msra.mxu0 0.0
    %7755 = vmatpush.msra.mxu0 0.0
    %7756 = vmatpush.msra.mxu0 0.0
    %7757 = vmatpush.msra.mxu0 0.0
    %7758 = vmatpush.msra.mxu0 0.0
    %7759 = vmatpush.msra.mxu0 0.0
    %7760 = vmatpush.msra.mxu0 %v7741
    %7761 = vmatpush.msra.mxu0 %v7737
    %7762 = vmatpush.msra.mxu0 %v7733
    %7763 = vmatpush.msra.mxu0 %v7729
    %7764 = vmatmul.f32.gmra.mxu0 %v7746
    %v7765 = vpop.f32.mrf.mxu0
    %v7766 = vadd.f32 0.0, %v7765
    %7767 = vdwg.mxu0
    %7768 = vmatpush.msra.mxu0 0.0
    %7769 = vmatpush.msra.mxu0 0.0
    %7770 = vmatpush.msra.mxu0 0.0
    %7771 = vmatpush.msra.mxu0 0.0
    %7772 = vmatpush.msra.mxu0 0.0
    %7773 = vmatpush.msra.mxu0 0.0
    %7774 = vmatpush.msra.mxu0 0.0
    %7775 = vmatpush.msra.mxu0 0.0
    %7776 = vmatpush.msra.mxu0 0.0
    %7777 = vmatpush.msra.mxu0 0.0
    %7778 = vmatpush.msra.mxu0 0.0
    %7779 = vmatpush.msra.mxu0 0.0
    %7780 = vmatpush.msra.mxu0 %v7742
    %7781 = vmatpush.msra.mxu0 %v7738
    %7782 = vmatpush.msra.mxu0 %v7734
    %7783 = vmatpush.msra.mxu0 %v7730
    %7784 = vmatmul.f32.gmra.mxu0 %v7746
    %v7785 = vpop.f32.mrf.mxu0
    %v7786 = vadd.f32 0.0, %v7785
    %7787 = vdwg.mxu0
    %7788 = vmatpush.msra.mxu0 0.0
    %7789 = vmatpush.msra.mxu0 0.0
    %7790 = vmatpush.msra.mxu0 0.0
    %7791 = vmatpush.msra.mxu0 0.0
    %7792 = vmatpush.msra.mxu0 0.0
    %7793 = vmatpush.msra.mxu0 0.0
    %7794 = vmatpush.msra.mxu0 0.0
    %7795 = vmatpush.msra.mxu0 0.0
    %7796 = vmatpush.msra.mxu0 0.0
    %7797 = vmatpush.msra.mxu0 0.0
    %7798 = vmatpush.msra.mxu0 0.0
    %7799 = vmatpush.msra.mxu0 0.0
    %7800 = vmatpush.msra.mxu0 %v7743
    %7801 = vmatpush.msra.mxu0 %v7739
    %7802 = vmatpush.msra.mxu0 %v7735
    %7803 = vmatpush.msra.mxu0 %v7731
    %7804 = vmatmul.f32.gmra.mxu0 %v7746
    %v7805 = vpop.f32.mrf.mxu0
    %v7806 = vadd.f32 0.0, %v7805
    %7807 = vdwg.mxu0
    %7808 = vmatpush.msra.mxu0 0.0
    %7809 = vmatpush.msra.mxu0 0.0
    %7810 = vmatpush.msra.mxu0 0.0
    %7811 = vmatpush.msra.mxu0 0.0
    %7812 = vmatpush.msra.mxu0 0.0
    %7813 = vmatpush.msra.mxu0 0.0
    %7814 = vmatpush.msra.mxu0 0.0
    %7815 = vmatpush.msra.mxu0 0.0
    %7816 = vmatpush.msra.mxu0 0.0
    %7817 = vmatpush.msra.mxu0 0.0
    %7818 = vmatpush.msra.mxu0 0.0
    %7819 = vmatpush.msra.mxu0 0.0
    %7820 = vmatpush.msra.mxu0 %v7744
    %7821 = vmatpush.msra.mxu0 %v7740
    %7822 = vmatpush.msra.mxu0 %v7736
    %7823 = vmatpush.msra.mxu0 %v7732
    %7824 = vmatmul.f32.gmra.mxu0 %v7746
    %v7825 = vpop.f32.mrf.mxu0
    %v7826 = vadd.f32 0.0, %v7825
    %7827 = vdwg.mxu0
    %v7828 = vadd.f32 %v7723, %v7766
    %v7829 = vadd.f32 %v7724, %v7786
    %v7830 = vadd.f32 %v7725, %v7806
    %v7831 = vadd.f32 %v7726, %v7826
    %v7832 = vld [vmem:[#allocation2 + $0x78] sm:$0x3]
    %s7833 = scalar_lea.vmem [#allocation12], 3840
    %v7834 = vld [vmem:[%s7833] sm:$0xff]
    %v7835 = vld [vmem:[%s7833 + $0x8] sm:$0xff]
    %v7836 = vld [vmem:[%s7833 + $0x10] sm:$0xff]
    %v7837 = vld [vmem:[%s7833 + $0x18] sm:$0xff]
    %v7838 = vld [vmem:[%s7833 + $0x20] sm:$0xff]
    %v7839 = vld [vmem:[%s7833 + $0x28] sm:$0xff]
    %v7840 = vld [vmem:[%s7833 + $0x30] sm:$0xff]
    %v7841 = vld [vmem:[%s7833 + $0x38] sm:$0xff]
    %v7842 = vld [vmem:[%s7833 + $0x40] sm:$0xff]
    %v7843 = vld [vmem:[%s7833 + $0x48] sm:$0xff]
    %v7844 = vld [vmem:[%s7833 + $0x50] sm:$0xff]
    %v7845 = vld [vmem:[%s7833 + $0x58] sm:$0xff]
    %v7846 = vld [vmem:[%s7833 + $0x60] sm:$0xff]
    %v7847 = vld [vmem:[%s7833 + $0x68] sm:$0xff]
    %v7848 = vld [vmem:[%s7833 + $0x70] sm:$0xff]
    %v7849 = vld [vmem:[%s7833 + $0x78] sm:$0xff]
    %v7851 = vsel %vm4672, %v7832, 0
    %7853 = vmatpush.msra.mxu0 0.0
    %7854 = vmatpush.msra.mxu0 0.0
    %7855 = vmatpush.msra.mxu0 0.0
    %7856 = vmatpush.msra.mxu0 0.0
    %7857 = vmatpush.msra.mxu0 0.0
    %7858 = vmatpush.msra.mxu0 0.0
    %7859 = vmatpush.msra.mxu0 0.0
    %7860 = vmatpush.msra.mxu0 0.0
    %7861 = vmatpush.msra.mxu0 0.0
    %7862 = vmatpush.msra.mxu0 0.0
    %7863 = vmatpush.msra.mxu0 0.0
    %7864 = vmatpush.msra.mxu0 0.0
    %7865 = vmatpush.msra.mxu0 %v7846
    %7866 = vmatpush.msra.mxu0 %v7842
    %7867 = vmatpush.msra.mxu0 %v7838
    %7868 = vmatpush.msra.mxu0 %v7834
    %7869 = vmatmul.f32.gmra.mxu0 %v7851
    %v7870 = vpop.f32.mrf.mxu0
    %v7871 = vadd.f32 0.0, %v7870
    %7872 = vdwg.mxu0
    %7873 = vmatpush.msra.mxu0 0.0
    %7874 = vmatpush.msra.mxu0 0.0
    %7875 = vmatpush.msra.mxu0 0.0
    %7876 = vmatpush.msra.mxu0 0.0
    %7877 = vmatpush.msra.mxu0 0.0
    %7878 = vmatpush.msra.mxu0 0.0
    %7879 = vmatpush.msra.mxu0 0.0
    %7880 = vmatpush.msra.mxu0 0.0
    %7881 = vmatpush.msra.mxu0 0.0
    %7882 = vmatpush.msra.mxu0 0.0
    %7883 = vmatpush.msra.mxu0 0.0
    %7884 = vmatpush.msra.mxu0 0.0
    %7885 = vmatpush.msra.mxu0 %v7847
    %7886 = vmatpush.msra.mxu0 %v7843
    %7887 = vmatpush.msra.mxu0 %v7839
    %7888 = vmatpush.msra.mxu0 %v7835
    %7889 = vmatmul.f32.gmra.mxu0 %v7851
    %v7890 = vpop.f32.mrf.mxu0
    %v7891 = vadd.f32 0.0, %v7890
    %7892 = vdwg.mxu0
    %7893 = vmatpush.msra.mxu0 0.0
    %7894 = vmatpush.msra.mxu0 0.0
    %7895 = vmatpush.msra.mxu0 0.0
    %7896 = vmatpush.msra.mxu0 0.0
    %7897 = vmatpush.msra.mxu0 0.0
    %7898 = vmatpush.msra.mxu0 0.0
    %7899 = vmatpush.msra.mxu0 0.0
    %7900 = vmatpush.msra.mxu0 0.0
    %7901 = vmatpush.msra.mxu0 0.0
    %7902 = vmatpush.msra.mxu0 0.0
    %7903 = vmatpush.msra.mxu0 0.0
    %7904 = vmatpush.msra.mxu0 0.0
    %7905 = vmatpush.msra.mxu0 %v7848
    %7906 = vmatpush.msra.mxu0 %v7844
    %7907 = vmatpush.msra.mxu0 %v7840
    %7908 = vmatpush.msra.mxu0 %v7836
    %7909 = vmatmul.f32.gmra.mxu0 %v7851
    %v7910 = vpop.f32.mrf.mxu0
    %v7911 = vadd.f32 0.0, %v7910
    %7912 = vdwg.mxu0
    %7913 = vmatpush.msra.mxu0 0.0
    %7914 = vmatpush.msra.mxu0 0.0
    %7915 = vmatpush.msra.mxu0 0.0
    %7916 = vmatpush.msra.mxu0 0.0
    %7917 = vmatpush.msra.mxu0 0.0
    %7918 = vmatpush.msra.mxu0 0.0
    %7919 = vmatpush.msra.mxu0 0.0
    %7920 = vmatpush.msra.mxu0 0.0
    %7921 = vmatpush.msra.mxu0 0.0
    %7922 = vmatpush.msra.mxu0 0.0
    %7923 = vmatpush.msra.mxu0 0.0
    %7924 = vmatpush.msra.mxu0 0.0
    %7925 = vmatpush.msra.mxu0 %v7849
    %7926 = vmatpush.msra.mxu0 %v7845
    %7927 = vmatpush.msra.mxu0 %v7841
    %7928 = vmatpush.msra.mxu0 %v7837
    %7929 = vmatmul.f32.gmra.mxu0 %v7851
    %v7930 = vpop.f32.mrf.mxu0
    %v7931 = vadd.f32 0.0, %v7930
    %7932 = vdwg.mxu0
    %v7933 = vadd.f32 %v7828, %v7871
    %v7934 = vadd.f32 %v7829, %v7891
    %v7935 = vadd.f32 %v7830, %v7911
    %v7936 = vadd.f32 %v7831, %v7931
    %v7937 = vld [vmem:[#allocation2 + $0x7a] sm:$0x3]
    %s7938 = scalar_lea.vmem [#allocation12], 3968
    %v7939 = vld [vmem:[%s7938] sm:$0xff]
    %v7940 = vld [vmem:[%s7938 + $0x8] sm:$0xff]
    %v7941 = vld [vmem:[%s7938 + $0x10] sm:$0xff]
    %v7942 = vld [vmem:[%s7938 + $0x18] sm:$0xff]
    %v7943 = vld [vmem:[%s7938 + $0x20] sm:$0xff]
    %v7944 = vld [vmem:[%s7938 + $0x28] sm:$0xff]
    %v7945 = vld [vmem:[%s7938 + $0x30] sm:$0xff]
    %v7946 = vld [vmem:[%s7938 + $0x38] sm:$0xff]
    %v7947 = vld [vmem:[%s7938 + $0x40] sm:$0xff]
    %v7948 = vld [vmem:[%s7938 + $0x48] sm:$0xff]
    %v7949 = vld [vmem:[%s7938 + $0x50] sm:$0xff]
    %v7950 = vld [vmem:[%s7938 + $0x58] sm:$0xff]
    %v7951 = vld [vmem:[%s7938 + $0x60] sm:$0xff]
    %v7952 = vld [vmem:[%s7938 + $0x68] sm:$0xff]
    %v7953 = vld [vmem:[%s7938 + $0x70] sm:$0xff]
    %v7954 = vld [vmem:[%s7938 + $0x78] sm:$0xff]
    %v7956 = vsel %vm4672, %v7937, 0
    %7958 = vmatpush.msra.mxu0 0.0
    %7959 = vmatpush.msra.mxu0 0.0
    %7960 = vmatpush.msra.mxu0 0.0
    %7961 = vmatpush.msra.mxu0 0.0
    %7962 = vmatpush.msra.mxu0 0.0
    %7963 = vmatpush.msra.mxu0 0.0
    %7964 = vmatpush.msra.mxu0 0.0
    %7965 = vmatpush.msra.mxu0 0.0
    %7966 = vmatpush.msra.mxu0 0.0
    %7967 = vmatpush.msra.mxu0 0.0
    %7968 = vmatpush.msra.mxu0 0.0
    %7969 = vmatpush.msra.mxu0 0.0
    %7970 = vmatpush.msra.mxu0 %v7951
    %7971 = vmatpush.msra.mxu0 %v7947
    %7972 = vmatpush.msra.mxu0 %v7943
    %7973 = vmatpush.msra.mxu0 %v7939
    %7974 = vmatmul.f32.gmra.mxu0 %v7956
    %v7975 = vpop.f32.mrf.mxu0
    %v7976 = vadd.f32 0.0, %v7975
    %7977 = vdwg.mxu0
    %7978 = vmatpush.msra.mxu0 0.0
    %7979 = vmatpush.msra.mxu0 0.0
    %7980 = vmatpush.msra.mxu0 0.0
    %7981 = vmatpush.msra.mxu0 0.0
    %7982 = vmatpush.msra.mxu0 0.0
    %7983 = vmatpush.msra.mxu0 0.0
    %7984 = vmatpush.msra.mxu0 0.0
    %7985 = vmatpush.msra.mxu0 0.0
    %7986 = vmatpush.msra.mxu0 0.0
    %7987 = vmatpush.msra.mxu0 0.0
    %7988 = vmatpush.msra.mxu0 0.0
    %7989 = vmatpush.msra.mxu0 0.0
    %7990 = vmatpush.msra.mxu0 %v7952
    %7991 = vmatpush.msra.mxu0 %v7948
    %7992 = vmatpush.msra.mxu0 %v7944
    %7993 = vmatpush.msra.mxu0 %v7940
    %7994 = vmatmul.f32.gmra.mxu0 %v7956
    %v7995 = vpop.f32.mrf.mxu0
    %v7996 = vadd.f32 0.0, %v7995
    %7997 = vdwg.mxu0
    %7998 = vmatpush.msra.mxu0 0.0
    %7999 = vmatpush.msra.mxu0 0.0
    %8000 = vmatpush.msra.mxu0 0.0
    %8001 = vmatpush.msra.mxu0 0.0
    %8002 = vmatpush.msra.mxu0 0.0
    %8003 = vmatpush.msra.mxu0 0.0
    %8004 = vmatpush.msra.mxu0 0.0
    %8005 = vmatpush.msra.mxu0 0.0
    %8006 = vmatpush.msra.mxu0 0.0
    %8007 = vmatpush.msra.mxu0 0.0
    %8008 = vmatpush.msra.mxu0 0.0
    %8009 = vmatpush.msra.mxu0 0.0
    %8010 = vmatpush.msra.mxu0 %v7953
    %8011 = vmatpush.msra.mxu0 %v7949
    %8012 = vmatpush.msra.mxu0 %v7945
    %8013 = vmatpush.msra.mxu0 %v7941
    %8014 = vmatmul.f32.gmra.mxu0 %v7956
    %v8015 = vpop.f32.mrf.mxu0
    %v8016 = vadd.f32 0.0, %v8015
    %8017 = vdwg.mxu0
    %8018 = vmatpush.msra.mxu0 0.0
    %8019 = vmatpush.msra.mxu0 0.0
    %8020 = vmatpush.msra.mxu0 0.0
    %8021 = vmatpush.msra.mxu0 0.0
    %8022 = vmatpush.msra.mxu0 0.0
    %8023 = vmatpush.msra.mxu0 0.0
    %8024 = vmatpush.msra.mxu0 0.0
    %8025 = vmatpush.msra.mxu0 0.0
    %8026 = vmatpush.msra.mxu0 0.0
    %8027 = vmatpush.msra.mxu0 0.0
    %8028 = vmatpush.msra.mxu0 0.0
    %8029 = vmatpush.msra.mxu0 0.0
    %8030 = vmatpush.msra.mxu0 %v7954
    %8031 = vmatpush.msra.mxu0 %v7950
    %8032 = vmatpush.msra.mxu0 %v7946
    %8033 = vmatpush.msra.mxu0 %v7942
    %8034 = vmatmul.f32.gmra.mxu0 %v7956
    %v8035 = vpop.f32.mrf.mxu0
    %v8036 = vadd.f32 0.0, %v8035
    %8037 = vdwg.mxu0
    %v8038 = vadd.f32 %v7933, %v7976
    %v8039 = vadd.f32 %v7934, %v7996
    %v8040 = vadd.f32 %v7935, %v8016
    %v8041 = vadd.f32 %v7936, %v8036
    %v8042 = vld [vmem:[#allocation2 + $0x7c] sm:$0x3]
    %s8043 = scalar_lea.vmem [#allocation12], 4096
    %v8044 = vld [vmem:[%s8043] sm:$0xff]
    %v8045 = vld [vmem:[%s8043 + $0x8] sm:$0xff]
    %v8046 = vld [vmem:[%s8043 + $0x10] sm:$0xff]
    %v8047 = vld [vmem:[%s8043 + $0x18] sm:$0xff]
    %v8048 = vld [vmem:[%s8043 + $0x20] sm:$0xff]
    %v8049 = vld [vmem:[%s8043 + $0x28] sm:$0xff]
    %v8050 = vld [vmem:[%s8043 + $0x30] sm:$0xff]
    %v8051 = vld [vmem:[%s8043 + $0x38] sm:$0xff]
    %v8052 = vld [vmem:[%s8043 + $0x40] sm:$0xff]
    %v8053 = vld [vmem:[%s8043 + $0x48] sm:$0xff]
    %v8054 = vld [vmem:[%s8043 + $0x50] sm:$0xff]
    %v8055 = vld [vmem:[%s8043 + $0x58] sm:$0xff]
    %v8056 = vld [vmem:[%s8043 + $0x60] sm:$0xff]
    %v8057 = vld [vmem:[%s8043 + $0x68] sm:$0xff]
    %v8058 = vld [vmem:[%s8043 + $0x70] sm:$0xff]
    %v8059 = vld [vmem:[%s8043 + $0x78] sm:$0xff]
    %v8061 = vsel %vm4672, %v8042, 0
    %8063 = vmatpush.msra.mxu0 0.0
    %8064 = vmatpush.msra.mxu0 0.0
    %8065 = vmatpush.msra.mxu0 0.0
    %8066 = vmatpush.msra.mxu0 0.0
    %8067 = vmatpush.msra.mxu0 0.0
    %8068 = vmatpush.msra.mxu0 0.0
    %8069 = vmatpush.msra.mxu0 0.0
    %8070 = vmatpush.msra.mxu0 0.0
    %8071 = vmatpush.msra.mxu0 0.0
    %8072 = vmatpush.msra.mxu0 0.0
    %8073 = vmatpush.msra.mxu0 0.0
    %8074 = vmatpush.msra.mxu0 0.0
    %8075 = vmatpush.msra.mxu0 %v8056
    %8076 = vmatpush.msra.mxu0 %v8052
    %8077 = vmatpush.msra.mxu0 %v8048
    %8078 = vmatpush.msra.mxu0 %v8044
    %8079 = vmatmul.f32.gmra.mxu0 %v8061
    %v8080 = vpop.f32.mrf.mxu0
    %v8081 = vadd.f32 0.0, %v8080
    %8082 = vdwg.mxu0
    %8083 = vmatpush.msra.mxu0 0.0
    %8084 = vmatpush.msra.mxu0 0.0
    %8085 = vmatpush.msra.mxu0 0.0
    %8086 = vmatpush.msra.mxu0 0.0
    %8087 = vmatpush.msra.mxu0 0.0
    %8088 = vmatpush.msra.mxu0 0.0
    %8089 = vmatpush.msra.mxu0 0.0
    %8090 = vmatpush.msra.mxu0 0.0
    %8091 = vmatpush.msra.mxu0 0.0
    %8092 = vmatpush.msra.mxu0 0.0
    %8093 = vmatpush.msra.mxu0 0.0
    %8094 = vmatpush.msra.mxu0 0.0
    %8095 = vmatpush.msra.mxu0 %v8057
    %8096 = vmatpush.msra.mxu0 %v8053
    %8097 = vmatpush.msra.mxu0 %v8049
    %8098 = vmatpush.msra.mxu0 %v8045
    %8099 = vmatmul.f32.gmra.mxu0 %v8061
    %v8100 = vpop.f32.mrf.mxu0
    %v8101 = vadd.f32 0.0, %v8100
    %8102 = vdwg.mxu0
    %8103 = vmatpush.msra.mxu0 0.0
    %8104 = vmatpush.msra.mxu0 0.0
    %8105 = vmatpush.msra.mxu0 0.0
    %8106 = vmatpush.msra.mxu0 0.0
    %8107 = vmatpush.msra.mxu0 0.0
    %8108 = vmatpush.msra.mxu0 0.0
    %8109 = vmatpush.msra.mxu0 0.0
    %8110 = vmatpush.msra.mxu0 0.0
    %8111 = vmatpush.msra.mxu0 0.0
    %8112 = vmatpush.msra.mxu0 0.0
    %8113 = vmatpush.msra.mxu0 0.0
    %8114 = vmatpush.msra.mxu0 0.0
    %8115 = vmatpush.msra.mxu0 %v8058
    %8116 = vmatpush.msra.mxu0 %v8054
    %8117 = vmatpush.msra.mxu0 %v8050
    %8118 = vmatpush.msra.mxu0 %v8046
    %8119 = vmatmul.f32.gmra.mxu0 %v8061
    %v8120 = vpop.f32.mrf.mxu0
    %v8121 = vadd.f32 0.0, %v8120
    %8122 = vdwg.mxu0
    %8123 = vmatpush.msra.mxu0 0.0
    %8124 = vmatpush.msra.mxu0 0.0
    %8125 = vmatpush.msra.mxu0 0.0
    %8126 = vmatpush.msra.mxu0 0.0
    %8127 = vmatpush.msra.mxu0 0.0
    %8128 = vmatpush.msra.mxu0 0.0
    %8129 = vmatpush.msra.mxu0 0.0
    %8130 = vmatpush.msra.mxu0 0.0
    %8131 = vmatpush.msra.mxu0 0.0
    %8132 = vmatpush.msra.mxu0 0.0
    %8133 = vmatpush.msra.mxu0 0.0
    %8134 = vmatpush.msra.mxu0 0.0
    %8135 = vmatpush.msra.mxu0 %v8059
    %8136 = vmatpush.msra.mxu0 %v8055
    %8137 = vmatpush.msra.mxu0 %v8051
    %8138 = vmatpush.msra.mxu0 %v8047
    %8139 = vmatmul.f32.gmra.mxu0 %v8061
    %v8140 = vpop.f32.mrf.mxu0
    %v8141 = vadd.f32 0.0, %v8140
    %8142 = vdwg.mxu0
    %v8143 = vadd.f32 %v8038, %v8081
    %v8144 = vadd.f32 %v8039, %v8101
    %v8145 = vadd.f32 %v8040, %v8121
    %v8146 = vadd.f32 %v8041, %v8141
    %v8147 = vld [vmem:[#allocation2 + $0x7e] sm:$0x3]
    %s8148 = scalar_lea.vmem [#allocation12], 4224
    %v8149 = vld [vmem:[%s8148] sm:$0xff]
    %v8150 = vld [vmem:[%s8148 + $0x8] sm:$0xff]
    %v8151 = vld [vmem:[%s8148 + $0x10] sm:$0xff]
    %v8152 = vld [vmem:[%s8148 + $0x18] sm:$0xff]
    %v8153 = vld [vmem:[%s8148 + $0x20] sm:$0xff]
    %v8154 = vld [vmem:[%s8148 + $0x28] sm:$0xff]
    %v8155 = vld [vmem:[%s8148 + $0x30] sm:$0xff]
    %v8156 = vld [vmem:[%s8148 + $0x38] sm:$0xff]
    %v8157 = vld [vmem:[%s8148 + $0x40] sm:$0xff]
    %v8158 = vld [vmem:[%s8148 + $0x48] sm:$0xff]
    %v8159 = vld [vmem:[%s8148 + $0x50] sm:$0xff]
    %v8160 = vld [vmem:[%s8148 + $0x58] sm:$0xff]
    %v8161 = vld [vmem:[%s8148 + $0x60] sm:$0xff]
    %v8162 = vld [vmem:[%s8148 + $0x68] sm:$0xff]
    %v8163 = vld [vmem:[%s8148 + $0x70] sm:$0xff]
    %v8164 = vld [vmem:[%s8148 + $0x78] sm:$0xff]
    %v8166 = vsel %vm4672, %v8147, 0
    %8168 = vmatpush.msra.mxu0 0.0
    %8169 = vmatpush.msra.mxu0 0.0
    %8170 = vmatpush.msra.mxu0 0.0
    %8171 = vmatpush.msra.mxu0 0.0
    %8172 = vmatpush.msra.mxu0 0.0
    %8173 = vmatpush.msra.mxu0 0.0
    %8174 = vmatpush.msra.mxu0 0.0
    %8175 = vmatpush.msra.mxu0 0.0
    %8176 = vmatpush.msra.mxu0 0.0
    %8177 = vmatpush.msra.mxu0 0.0
    %8178 = vmatpush.msra.mxu0 0.0
    %8179 = vmatpush.msra.mxu0 0.0
    %8180 = vmatpush.msra.mxu0 %v8161
    %8181 = vmatpush.msra.mxu0 %v8157
    %8182 = vmatpush.msra.mxu0 %v8153
    %8183 = vmatpush.msra.mxu0 %v8149
    %8184 = vmatmul.f32.gmra.mxu0 %v8166
    %v8185 = vpop.f32.mrf.mxu0
    %v8186 = vadd.f32 0.0, %v8185
    %8187 = vdwg.mxu0
    %8188 = vmatpush.msra.mxu0 0.0
    %8189 = vmatpush.msra.mxu0 0.0
    %8190 = vmatpush.msra.mxu0 0.0
    %8191 = vmatpush.msra.mxu0 0.0
    %8192 = vmatpush.msra.mxu0 0.0
    %8193 = vmatpush.msra.mxu0 0.0
    %8194 = vmatpush.msra.mxu0 0.0
    %8195 = vmatpush.msra.mxu0 0.0
    %8196 = vmatpush.msra.mxu0 0.0
    %8197 = vmatpush.msra.mxu0 0.0
    %8198 = vmatpush.msra.mxu0 0.0
    %8199 = vmatpush.msra.mxu0 0.0
    %8200 = vmatpush.msra.mxu0 %v8162
    %8201 = vmatpush.msra.mxu0 %v8158
    %8202 = vmatpush.msra.mxu0 %v8154
    %8203 = vmatpush.msra.mxu0 %v8150
    %8204 = vmatmul.f32.gmra.mxu0 %v8166
    %v8205 = vpop.f32.mrf.mxu0
    %v8206 = vadd.f32 0.0, %v8205
    %8207 = vdwg.mxu0
    %8208 = vmatpush.msra.mxu0 0.0
    %8209 = vmatpush.msra.mxu0 0.0
    %8210 = vmatpush.msra.mxu0 0.0
    %8211 = vmatpush.msra.mxu0 0.0
    %8212 = vmatpush.msra.mxu0 0.0
    %8213 = vmatpush.msra.mxu0 0.0
    %8214 = vmatpush.msra.mxu0 0.0
    %8215 = vmatpush.msra.mxu0 0.0
    %8216 = vmatpush.msra.mxu0 0.0
    %8217 = vmatpush.msra.mxu0 0.0
    %8218 = vmatpush.msra.mxu0 0.0
    %8219 = vmatpush.msra.mxu0 0.0
    %8220 = vmatpush.msra.mxu0 %v8163
    %8221 = vmatpush.msra.mxu0 %v8159
    %8222 = vmatpush.msra.mxu0 %v8155
    %8223 = vmatpush.msra.mxu0 %v8151
    %8224 = vmatmul.f32.gmra.mxu0 %v8166
    %v8225 = vpop.f32.mrf.mxu0
    %v8226 = vadd.f32 0.0, %v8225
    %8227 = vdwg.mxu0
    %8228 = vmatpush.msra.mxu0 0.0
    %8229 = vmatpush.msra.mxu0 0.0
    %8230 = vmatpush.msra.mxu0 0.0
    %8231 = vmatpush.msra.mxu0 0.0
    %8232 = vmatpush.msra.mxu0 0.0
    %8233 = vmatpush.msra.mxu0 0.0
    %8234 = vmatpush.msra.mxu0 0.0
    %8235 = vmatpush.msra.mxu0 0.0
    %8236 = vmatpush.msra.mxu0 0.0
    %8237 = vmatpush.msra.mxu0 0.0
    %8238 = vmatpush.msra.mxu0 0.0
    %8239 = vmatpush.msra.mxu0 0.0
    %8240 = vmatpush.msra.mxu0 %v8164
    %8241 = vmatpush.msra.mxu0 %v8160
    %8242 = vmatpush.msra.mxu0 %v8156
    %8243 = vmatpush.msra.mxu0 %v8152
    %8244 = vmatmul.f32.gmra.mxu0 %v8166
    %v8245 = vpop.f32.mrf.mxu0
    %v8246 = vadd.f32 0.0, %v8245
    %8247 = vdwg.mxu0
    %v8248 = vadd.f32 %v8143, %v8186
    %v8249 = vadd.f32 %v8144, %v8206
    %v8250 = vadd.f32 %v8145, %v8226
    %v8251 = vadd.f32 %v8146, %v8246
    %v8252 = vld [vmem:[#allocation2 + $0x80] sm:$0x3]
    %s8253 = scalar_lea.vmem [#allocation12], 4352
    %v8254 = vld [vmem:[%s8253] sm:$0xff]
    %v8255 = vld [vmem:[%s8253 + $0x8] sm:$0xff]
    %v8256 = vld [vmem:[%s8253 + $0x10] sm:$0xff]
    %v8257 = vld [vmem:[%s8253 + $0x18] sm:$0xff]
    %v8258 = vld [vmem:[%s8253 + $0x20] sm:$0xff]
    %v8259 = vld [vmem:[%s8253 + $0x28] sm:$0xff]
    %v8260 = vld [vmem:[%s8253 + $0x30] sm:$0xff]
    %v8261 = vld [vmem:[%s8253 + $0x38] sm:$0xff]
    %v8262 = vld [vmem:[%s8253 + $0x40] sm:$0xff]
    %v8263 = vld [vmem:[%s8253 + $0x48] sm:$0xff]
    %v8264 = vld [vmem:[%s8253 + $0x50] sm:$0xff]
    %v8265 = vld [vmem:[%s8253 + $0x58] sm:$0xff]
    %v8266 = vld [vmem:[%s8253 + $0x60] sm:$0xff]
    %v8267 = vld [vmem:[%s8253 + $0x68] sm:$0xff]
    %v8268 = vld [vmem:[%s8253 + $0x70] sm:$0xff]
    %v8269 = vld [vmem:[%s8253 + $0x78] sm:$0xff]
    %v8271 = vsel %vm4672, %v8252, 0
    %8273 = vmatpush.msra.mxu0 0.0
    %8274 = vmatpush.msra.mxu0 0.0
    %8275 = vmatpush.msra.mxu0 0.0
    %8276 = vmatpush.msra.mxu0 0.0
    %8277 = vmatpush.msra.mxu0 0.0
    %8278 = vmatpush.msra.mxu0 0.0
    %8279 = vmatpush.msra.mxu0 0.0
    %8280 = vmatpush.msra.mxu0 0.0
    %8281 = vmatpush.msra.mxu0 0.0
    %8282 = vmatpush.msra.mxu0 0.0
    %8283 = vmatpush.msra.mxu0 0.0
    %8284 = vmatpush.msra.mxu0 0.0
    %8285 = vmatpush.msra.mxu0 %v8266
    %8286 = vmatpush.msra.mxu0 %v8262
    %8287 = vmatpush.msra.mxu0 %v8258
    %8288 = vmatpush.msra.mxu0 %v8254
    %8289 = vmatmul.f32.gmra.mxu0 %v8271
    %v8290 = vpop.f32.mrf.mxu0
    %v8291 = vadd.f32 0.0, %v8290
    %8292 = vdwg.mxu0
    %8293 = vmatpush.msra.mxu0 0.0
    %8294 = vmatpush.msra.mxu0 0.0
    %8295 = vmatpush.msra.mxu0 0.0
    %8296 = vmatpush.msra.mxu0 0.0
    %8297 = vmatpush.msra.mxu0 0.0
    %8298 = vmatpush.msra.mxu0 0.0
    %8299 = vmatpush.msra.mxu0 0.0
    %8300 = vmatpush.msra.mxu0 0.0
    %8301 = vmatpush.msra.mxu0 0.0
    %8302 = vmatpush.msra.mxu0 0.0
    %8303 = vmatpush.msra.mxu0 0.0
    %8304 = vmatpush.msra.mxu0 0.0
    %8305 = vmatpush.msra.mxu0 %v8267
    %8306 = vmatpush.msra.mxu0 %v8263
    %8307 = vmatpush.msra.mxu0 %v8259
    %8308 = vmatpush.msra.mxu0 %v8255
    %8309 = vmatmul.f32.gmra.mxu0 %v8271
    %v8310 = vpop.f32.mrf.mxu0
    %v8311 = vadd.f32 0.0, %v8310
    %8312 = vdwg.mxu0
    %8313 = vmatpush.msra.mxu0 0.0
    %8314 = vmatpush.msra.mxu0 0.0
    %8315 = vmatpush.msra.mxu0 0.0
    %8316 = vmatpush.msra.mxu0 0.0
    %8317 = vmatpush.msra.mxu0 0.0
    %8318 = vmatpush.msra.mxu0 0.0
    %8319 = vmatpush.msra.mxu0 0.0
    %8320 = vmatpush.msra.mxu0 0.0
    %8321 = vmatpush.msra.mxu0 0.0
    %8322 = vmatpush.msra.mxu0 0.0
    %8323 = vmatpush.msra.mxu0 0.0
    %8324 = vmatpush.msra.mxu0 0.0
    %8325 = vmatpush.msra.mxu0 %v8268
    %8326 = vmatpush.msra.mxu0 %v8264
    %8327 = vmatpush.msra.mxu0 %v8260
    %8328 = vmatpush.msra.mxu0 %v8256
    %8329 = vmatmul.f32.gmra.mxu0 %v8271
    %v8330 = vpop.f32.mrf.mxu0
    %v8331 = vadd.f32 0.0, %v8330
    %8332 = vdwg.mxu0
    %8333 = vmatpush.msra.mxu0 0.0
    %8334 = vmatpush.msra.mxu0 0.0
    %8335 = vmatpush.msra.mxu0 0.0
    %8336 = vmatpush.msra.mxu0 0.0
    %8337 = vmatpush.msra.mxu0 0.0
    %8338 = vmatpush.msra.mxu0 0.0
    %8339 = vmatpush.msra.mxu0 0.0
    %8340 = vmatpush.msra.mxu0 0.0
    %8341 = vmatpush.msra.mxu0 0.0
    %8342 = vmatpush.msra.mxu0 0.0
    %8343 = vmatpush.msra.mxu0 0.0
    %8344 = vmatpush.msra.mxu0 0.0
    %8345 = vmatpush.msra.mxu0 %v8269
    %8346 = vmatpush.msra.mxu0 %v8265
    %8347 = vmatpush.msra.mxu0 %v8261
    %8348 = vmatpush.msra.mxu0 %v8257
    %8349 = vmatmul.f32.gmra.mxu0 %v8271
    %v8350 = vpop.f32.mrf.mxu0
    %v8351 = vadd.f32 0.0, %v8350
    %8352 = vdwg.mxu0
    %v8353 = vadd.f32 %v8248, %v8291
    %v8354 = vadd.f32 %v8249, %v8311
    %v8355 = vadd.f32 %v8250, %v8331
    %v8356 = vadd.f32 %v8251, %v8351
    %v8357 = vld [vmem:[#allocation2 + $0x82] sm:$0x3]
    %s8358 = scalar_lea.vmem [#allocation12], 4480
    %v8359 = vld [vmem:[%s8358] sm:$0xff]
    %v8360 = vld [vmem:[%s8358 + $0x8] sm:$0xff]
    %v8361 = vld [vmem:[%s8358 + $0x10] sm:$0xff]
    %v8362 = vld [vmem:[%s8358 + $0x18] sm:$0xff]
    %v8363 = vld [vmem:[%s8358 + $0x20] sm:$0xff]
    %v8364 = vld [vmem:[%s8358 + $0x28] sm:$0xff]
    %v8365 = vld [vmem:[%s8358 + $0x30] sm:$0xff]
    %v8366 = vld [vmem:[%s8358 + $0x38] sm:$0xff]
    %v8367 = vld [vmem:[%s8358 + $0x40] sm:$0xff]
    %v8368 = vld [vmem:[%s8358 + $0x48] sm:$0xff]
    %v8369 = vld [vmem:[%s8358 + $0x50] sm:$0xff]
    %v8370 = vld [vmem:[%s8358 + $0x58] sm:$0xff]
    %v8371 = vld [vmem:[%s8358 + $0x60] sm:$0xff]
    %v8372 = vld [vmem:[%s8358 + $0x68] sm:$0xff]
    %v8373 = vld [vmem:[%s8358 + $0x70] sm:$0xff]
    %v8374 = vld [vmem:[%s8358 + $0x78] sm:$0xff]
    %v8376 = vsel %vm4672, %v8357, 0
    %8378 = vmatpush.msra.mxu0 0.0
    %8379 = vmatpush.msra.mxu0 0.0
    %8380 = vmatpush.msra.mxu0 0.0
    %8381 = vmatpush.msra.mxu0 0.0
    %8382 = vmatpush.msra.mxu0 0.0
    %8383 = vmatpush.msra.mxu0 0.0
    %8384 = vmatpush.msra.mxu0 0.0
    %8385 = vmatpush.msra.mxu0 0.0
    %8386 = vmatpush.msra.mxu0 0.0
    %8387 = vmatpush.msra.mxu0 0.0
    %8388 = vmatpush.msra.mxu0 0.0
    %8389 = vmatpush.msra.mxu0 0.0
    %8390 = vmatpush.msra.mxu0 %v8371
    %8391 = vmatpush.msra.mxu0 %v8367
    %8392 = vmatpush.msra.mxu0 %v8363
    %8393 = vmatpush.msra.mxu0 %v8359
    %8394 = vmatmul.f32.gmra.mxu0 %v8376
    %v8395 = vpop.f32.mrf.mxu0
    %v8396 = vadd.f32 0.0, %v8395
    %8397 = vdwg.mxu0
    %8398 = vmatpush.msra.mxu0 0.0
    %8399 = vmatpush.msra.mxu0 0.0
    %8400 = vmatpush.msra.mxu0 0.0
    %8401 = vmatpush.msra.mxu0 0.0
    %8402 = vmatpush.msra.mxu0 0.0
    %8403 = vmatpush.msra.mxu0 0.0
    %8404 = vmatpush.msra.mxu0 0.0
    %8405 = vmatpush.msra.mxu0 0.0
    %8406 = vmatpush.msra.mxu0 0.0
    %8407 = vmatpush.msra.mxu0 0.0
    %8408 = vmatpush.msra.mxu0 0.0
    %8409 = vmatpush.msra.mxu0 0.0
    %8410 = vmatpush.msra.mxu0 %v8372
    %8411 = vmatpush.msra.mxu0 %v8368
    %8412 = vmatpush.msra.mxu0 %v8364
    %8413 = vmatpush.msra.mxu0 %v8360
    %8414 = vmatmul.f32.gmra.mxu0 %v8376
    %v8415 = vpop.f32.mrf.mxu0
    %v8416 = vadd.f32 0.0, %v8415
    %8417 = vdwg.mxu0
    %8418 = vmatpush.msra.mxu0 0.0
    %8419 = vmatpush.msra.mxu0 0.0
    %8420 = vmatpush.msra.mxu0 0.0
    %8421 = vmatpush.msra.mxu0 0.0
    %8422 = vmatpush.msra.mxu0 0.0
    %8423 = vmatpush.msra.mxu0 0.0
    %8424 = vmatpush.msra.mxu0 0.0
    %8425 = vmatpush.msra.mxu0 0.0
    %8426 = vmatpush.msra.mxu0 0.0
    %8427 = vmatpush.msra.mxu0 0.0
    %8428 = vmatpush.msra.mxu0 0.0
    %8429 = vmatpush.msra.mxu0 0.0
    %8430 = vmatpush.msra.mxu0 %v8373
    %8431 = vmatpush.msra.mxu0 %v8369
    %8432 = vmatpush.msra.mxu0 %v8365
    %8433 = vmatpush.msra.mxu0 %v8361
    %8434 = vmatmul.f32.gmra.mxu0 %v8376
    %v8435 = vpop.f32.mrf.mxu0
    %v8436 = vadd.f32 0.0, %v8435
    %8437 = vdwg.mxu0
    %8438 = vmatpush.msra.mxu0 0.0
    %8439 = vmatpush.msra.mxu0 0.0
    %8440 = vmatpush.msra.mxu0 0.0
    %8441 = vmatpush.msra.mxu0 0.0
    %8442 = vmatpush.msra.mxu0 0.0
    %8443 = vmatpush.msra.mxu0 0.0
    %8444 = vmatpush.msra.mxu0 0.0
    %8445 = vmatpush.msra.mxu0 0.0
    %8446 = vmatpush.msra.mxu0 0.0
    %8447 = vmatpush.msra.mxu0 0.0
    %8448 = vmatpush.msra.mxu0 0.0
    %8449 = vmatpush.msra.mxu0 0.0
    %8450 = vmatpush.msra.mxu0 %v8374
    %8451 = vmatpush.msra.mxu0 %v8370
    %8452 = vmatpush.msra.mxu0 %v8366
    %8453 = vmatpush.msra.mxu0 %v8362
    %8454 = vmatmul.f32.gmra.mxu0 %v8376
    %v8455 = vpop.f32.mrf.mxu0
    %v8456 = vadd.f32 0.0, %v8455
    %8457 = vdwg.mxu0
    %v8458 = vadd.f32 %v8353, %v8396
    %v8459 = vadd.f32 %v8354, %v8416
    %v8460 = vadd.f32 %v8355, %v8436
    %v8461 = vadd.f32 %v8356, %v8456
    %v8462 = vld [vmem:[#allocation13] sm:$0xf]
    %v8464 = vperm.slane %v8462, 0
    %v8465 = vperm.slane %v8462, 1
    %v8466 = vperm.slane %v8462, 2
    %v8467 = vperm.slane %v8462, 3
    %v8472 = vadd.f32 %v8458, %v8464
    %v8473 = vadd.f32 %v8459, %v8465
    %v8474 = vadd.f32 %v8460, %v8466
    %v8475 = vadd.f32 %v8461, %v8467
    %v8476 = vmax.f32 %v8472, 0.0
    %v8477 = vmax.f32 %v8473, 0.0
    %v8478 = vmax.f32 %v8474, 0.0
    %v8479 = vmax.f32 %v8475, 0.0
    %v8480 = vld [vmem:[%s8] sm:$0xff]
    %v8481 = vld [vmem:[%s8 + $0x8] sm:$0xff]
    %v8482 = vld [vmem:[%s8 + $0x10] sm:$0xff]
    %v8483 = vld [vmem:[%s8 + $0x18] sm:$0xff]
    %v8484 = vld [vmem:[%s8 + $0x20] sm:$0xff]
    %v8485 = vld [vmem:[%s8 + $0x28] sm:$0xff]
    %v8486 = vld [vmem:[%s8 + $0x30] sm:$0xff]
    %v8487 = vld [vmem:[%s8 + $0x38] sm:$0xff]
    %v8488 = vld [vmem:[%s8 + $0x40] sm:$0xff]
    %v8489 = vld [vmem:[%s8 + $0x48] sm:$0xff]
    %v8490 = vld [vmem:[%s8 + $0x50] sm:$0xff]
    %v8491 = vld [vmem:[%s8 + $0x58] sm:$0xff]
    %v8492 = vld [vmem:[%s8 + $0x60] sm:$0xff]
    %v8493 = vld [vmem:[%s8 + $0x68] sm:$0xff]
    %v8494 = vld [vmem:[%s8 + $0x70] sm:$0xff]
    %v8495 = vld [vmem:[%s8 + $0x78] sm:$0xff]
    %v8496 = vld [vmem:[%s8 + $0x80] sm:$0xff]
    %v8497 = vld [vmem:[%s8 + $0x88] sm:$0xff]
    %v8498 = vld [vmem:[%s8 + $0x90] sm:$0xff]
    %v8499 = vld [vmem:[%s8 + $0x98] sm:$0xff]
    %v8500 = vld [vmem:[%s8 + $0xa0] sm:$0xff]
    %v8501 = vld [vmem:[%s8 + $0xa8] sm:$0xff]
    %v8502 = vld [vmem:[%s8 + $0xb0] sm:$0xff]
    %v8503 = vld [vmem:[%s8 + $0xb8] sm:$0xff]
    %v8504 = vld [vmem:[%s8 + $0xc0] sm:$0xff]
    %v8505 = vld [vmem:[%s8 + $0xc8] sm:$0xff]
    %v8506 = vld [vmem:[%s8 + $0xd0] sm:$0xff]
    %v8507 = vld [vmem:[%s8 + $0xd8] sm:$0xff]
    %v8508 = vld [vmem:[%s8 + $0xe0] sm:$0xff]
    %v8509 = vld [vmem:[%s8 + $0xe8] sm:$0xff]
    %v8510 = vld [vmem:[%s8 + $0xf0] sm:$0xff]
    %v8511 = vld [vmem:[%s8 + $0xf8] sm:$0xff]
    %v8512 = vld [vmem:[%s8 + $0x100] sm:$0xff]
    %v8513 = vld [vmem:[%s8 + $0x108] sm:$0xff]
    %v8514 = vld [vmem:[%s8 + $0x110] sm:$0xff]
    %v8515 = vld [vmem:[%s8 + $0x118] sm:$0xff]
    %v8516 = vld [vmem:[%s8 + $0x120] sm:$0xff]
    %v8517 = vld [vmem:[%s8 + $0x128] sm:$0xff]
    %v8518 = vld [vmem:[%s8 + $0x130] sm:$0xff]
    %v8519 = vld [vmem:[%s8 + $0x138] sm:$0xff]
    %v8520 = vld [vmem:[%s8 + $0x140] sm:$0xff]
    %v8521 = vld [vmem:[%s8 + $0x148] sm:$0xff]
    %v8522 = vld [vmem:[%s8 + $0x150] sm:$0xff]
    %v8523 = vld [vmem:[%s8 + $0x158] sm:$0xff]
    %v8524 = vld [vmem:[%s8 + $0x160] sm:$0xff]
    %v8525 = vld [vmem:[%s8 + $0x168] sm:$0xff]
    %v8526 = vld [vmem:[%s8 + $0x170] sm:$0xff]
    %v8527 = vld [vmem:[%s8 + $0x178] sm:$0xff]
    %v8528 = vld [vmem:[%s8 + $0x180] sm:$0xff]
    %v8529 = vld [vmem:[%s8 + $0x188] sm:$0xff]
    %v8530 = vld [vmem:[%s8 + $0x190] sm:$0xff]
    %v8531 = vld [vmem:[%s8 + $0x198] sm:$0xff]
    %v8532 = vld [vmem:[%s8 + $0x1a0] sm:$0xff]
    %v8533 = vld [vmem:[%s8 + $0x1a8] sm:$0xff]
    %v8534 = vld [vmem:[%s8 + $0x1b0] sm:$0xff]
    %v8535 = vld [vmem:[%s8 + $0x1b8] sm:$0xff]
    %v8536 = vld [vmem:[%s8 + $0x1c0] sm:$0xff]
    %v8537 = vld [vmem:[%s8 + $0x1c8] sm:$0xff]
    %v8538 = vld [vmem:[%s8 + $0x1d0] sm:$0xff]
    %v8539 = vld [vmem:[%s8 + $0x1d8] sm:$0xff]
    %v8540 = vld [vmem:[%s8 + $0x1e0] sm:$0xff]
    %v8541 = vld [vmem:[%s8 + $0x1e8] sm:$0xff]
    %v8542 = vld [vmem:[%s8 + $0x1f0] sm:$0xff]
    %v8543 = vld [vmem:[%s8 + $0x1f8] sm:$0xff]
    %v8544 = vld [vmem:[#allocation15] sm:$0x3]
    %v8546 = vperm.slane %v8544, 0
    %v8547 = vperm.slane %v8544, 1
    %8550 = vmatpush.msra.mxu0 %v8510
    %8551 = vmatpush.msra.mxu0 %v8508
    %8552 = vmatpush.msra.mxu0 %v8506
    %8553 = vmatpush.msra.mxu0 %v8504
    %8554 = vmatpush.msra.mxu0 %v8502
    %8555 = vmatpush.msra.mxu0 %v8500
    %8556 = vmatpush.msra.mxu0 %v8498
    %8557 = vmatpush.msra.mxu0 %v8496
    %8558 = vmatpush.msra.mxu0 %v8494
    %8559 = vmatpush.msra.mxu0 %v8492
    %8560 = vmatpush.msra.mxu0 %v8490
    %8561 = vmatpush.msra.mxu0 %v8488
    %8562 = vmatpush.msra.mxu0 %v8486
    %8563 = vmatpush.msra.mxu0 %v8484
    %8564 = vmatpush.msra.mxu0 %v8482
    %8565 = vmatpush.msra.mxu0 %v8480
    %8566 = vmatmul.f32.gmra.mxu0 %v8476
    %v8567 = vpop.f32.mrf.mxu0
    %v8568 = vadd.f32 %v8546, %v8567
    %8569 = vdwg.mxu0
    %8570 = vmatpush.msra.mxu0 %v8542
    %8571 = vmatpush.msra.mxu0 %v8540
    %8572 = vmatpush.msra.mxu0 %v8538
    %8573 = vmatpush.msra.mxu0 %v8536
    %8574 = vmatpush.msra.mxu0 %v8534
    %8575 = vmatpush.msra.mxu0 %v8532
    %8576 = vmatpush.msra.mxu0 %v8530
    %8577 = vmatpush.msra.mxu0 %v8528
    %8578 = vmatpush.msra.mxu0 %v8526
    %8579 = vmatpush.msra.mxu0 %v8524
    %8580 = vmatpush.msra.mxu0 %v8522
    %8581 = vmatpush.msra.mxu0 %v8520
    %8582 = vmatpush.msra.mxu0 %v8518
    %8583 = vmatpush.msra.mxu0 %v8516
    %8584 = vmatpush.msra.mxu0 %v8514
    %8585 = vmatpush.msra.mxu0 %v8512
    %8586 = vmatmul.f32.gmra.mxu0 %v8477
    %v8587 = vpop.f32.mrf.mxu0
    %v8588 = vadd.f32 %v8568, %v8587
    %8589 = vdwg.mxu0
    %8590 = vmatpush.msra.mxu0 %v8511
    %8591 = vmatpush.msra.mxu0 %v8509
    %8592 = vmatpush.msra.mxu0 %v8507
    %8593 = vmatpush.msra.mxu0 %v8505
    %8594 = vmatpush.msra.mxu0 %v8503
    %8595 = vmatpush.msra.mxu0 %v8501
    %8596 = vmatpush.msra.mxu0 %v8499
    %8597 = vmatpush.msra.mxu0 %v8497
    %8598 = vmatpush.msra.mxu0 %v8495
    %8599 = vmatpush.msra.mxu0 %v8493
    %8600 = vmatpush.msra.mxu0 %v8491
    %8601 = vmatpush.msra.mxu0 %v8489
    %8602 = vmatpush.msra.mxu0 %v8487
    %8603 = vmatpush.msra.mxu0 %v8485
    %8604 = vmatpush.msra.mxu0 %v8483
    %8605 = vmatpush.msra.mxu0 %v8481
    %8606 = vmatmul.f32.gmra.mxu0 %v8476
    %v8607 = vpop.f32.mrf.mxu0
    %v8608 = vadd.f32 %v8547, %v8607
    %8609 = vdwg.mxu0
    %8610 = vmatpush.msra.mxu0 %v8543
    %8611 = vmatpush.msra.mxu0 %v8541
    %8612 = vmatpush.msra.mxu0 %v8539
    %8613 = vmatpush.msra.mxu0 %v8537
    %8614 = vmatpush.msra.mxu0 %v8535
    %8615 = vmatpush.msra.mxu0 %v8533
    %8616 = vmatpush.msra.mxu0 %v8531
    %8617 = vmatpush.msra.mxu0 %v8529
    %8618 = vmatpush.msra.mxu0 %v8527
    %8619 = vmatpush.msra.mxu0 %v8525
    %8620 = vmatpush.msra.mxu0 %v8523
    %8621 = vmatpush.msra.mxu0 %v8521
    %8622 = vmatpush.msra.mxu0 %v8519
    %8623 = vmatpush.msra.mxu0 %v8517
    %8624 = vmatpush.msra.mxu0 %v8515
    %8625 = vmatpush.msra.mxu0 %v8513
    %8626 = vmatmul.f32.gmra.mxu0 %v8477
    %v8627 = vpop.f32.mrf.mxu0
    %v8628 = vadd.f32 %v8608, %v8627
    %8629 = vdwg.mxu0
    %v8630 = vld [vmem:[#allocation4] sm:$0xf]
    %v8631 = vlog2.pop %v8630
    %v8632 = vmul.f32 %v8631, 0.6931472
    %v8633 = vmax.f32 %v8632, -1e+38
    %v8634 = vmin.f32 %v8633, 1e+38
    %8636 = vst [vmem:[#allocation1] ss:$4 sm:$0xff] %v8634
    %v8637 = vld.sshfl [vmem:[#allocation1] sm:$0xff pattern:$0x73625140]
    %v8638 = vld.sshfl [vmem:[#allocation1 + $0x8] sm:$0xff pattern:$0x73625140]
    %v8641 = vadd.f32 %v8588, %v8637
    %v8642 = vadd.f32 %v8628, %v8638
    %v8645 = vrot.slane %v8642, 6
    %vm8646 = vcmask 1041408
    %v8647 = vsel %vm8646, %v8641, %v8645
    %vm8649 = vcmask 871426
    %vm8650 = vmor %vm8649, %vm8646
    %8651 = vst.msk [vmem:[#allocation16] sm:$0xf] %vm8650, %v8647
    %v8652 = vld [vmem:[%s10] sm:$0xff]
    %v8653 = vld [vmem:[%s10 + $0x8] sm:$0xff]
    %v8654 = vld [vmem:[%s10 + $0x10] sm:$0xff]
    %v8655 = vld [vmem:[%s10 + $0x18] sm:$0xff]
    %v8656 = vld [vmem:[%s10 + $0x20] sm:$0xff]
    %v8657 = vld [vmem:[%s10 + $0x28] sm:$0xff]
    %v8658 = vld [vmem:[%s10 + $0x30] sm:$0xff]
    %v8659 = vld [vmem:[%s10 + $0x38] sm:$0xff]
    %v8660 = vld [vmem:[%s10 + $0x40] sm:$0xff]
    %v8661 = vld [vmem:[%s10 + $0x48] sm:$0xff]
    %v8662 = vld [vmem:[%s10 + $0x50] sm:$0xff]
    %v8663 = vld [vmem:[%s10 + $0x58] sm:$0xff]
    %v8664 = vld [vmem:[%s10 + $0x60] sm:$0xff]
    %v8665 = vld [vmem:[%s10 + $0x68] sm:$0xff]
    %v8666 = vld [vmem:[%s10 + $0x70] sm:$0xff]
    %v8667 = vld [vmem:[%s10 + $0x78] sm:$0xff]
    %v8668 = vld [vmem:[%s10 + $0x80] sm:$0xff]
    %v8669 = vld [vmem:[%s10 + $0x88] sm:$0xff]
    %v8670 = vld [vmem:[%s10 + $0x90] sm:$0xff]
    %v8671 = vld [vmem:[%s10 + $0x98] sm:$0xff]
    %v8672 = vld [vmem:[%s10 + $0xa0] sm:$0xff]
    %v8673 = vld [vmem:[%s10 + $0xa8] sm:$0xff]
    %v8674 = vld [vmem:[%s10 + $0xb0] sm:$0xff]
    %v8675 = vld [vmem:[%s10 + $0xb8] sm:$0xff]
    %v8676 = vld [vmem:[%s10 + $0xc0] sm:$0xff]
    %v8677 = vld [vmem:[%s10 + $0xc8] sm:$0xff]
    %v8678 = vld [vmem:[%s10 + $0xd0] sm:$0xff]
    %v8679 = vld [vmem:[%s10 + $0xd8] sm:$0xff]
    %v8680 = vld [vmem:[%s10 + $0xe0] sm:$0xff]
    %v8681 = vld [vmem:[%s10 + $0xe8] sm:$0xff]
    %v8682 = vld [vmem:[%s10 + $0xf0] sm:$0xff]
    %v8683 = vld [vmem:[%s10 + $0xf8] sm:$0xff]
    %v8684 = vld [vmem:[#allocation3] sm:$0x1]
    %v8686 = vperm.slane %v8684, 0
    %8688 = vmatpush.msra.mxu0 %v8667
    %8689 = vmatpush.msra.mxu0 %v8666
    %8690 = vmatpush.msra.mxu0 %v8665
    %8691 = vmatpush.msra.mxu0 %v8664
    %8692 = vmatpush.msra.mxu0 %v8663
    %8693 = vmatpush.msra.mxu0 %v8662
    %8694 = vmatpush.msra.mxu0 %v8661
    %8695 = vmatpush.msra.mxu0 %v8660
    %8696 = vmatpush.msra.mxu0 %v8659
    %8697 = vmatpush.msra.mxu0 %v8658
    %8698 = vmatpush.msra.mxu0 %v8657
    %8699 = vmatpush.msra.mxu0 %v8656
    %8700 = vmatpush.msra.mxu0 %v8655
    %8701 = vmatpush.msra.mxu0 %v8654
    %8702 = vmatpush.msra.mxu0 %v8653
    %8703 = vmatpush.msra.mxu0 %v8652
    %8704 = vmatmul.f32.gmra.mxu0 %v8478
    %v8705 = vpop.f32.mrf.mxu0
    %v8706 = vadd.f32 %v8686, %v8705
    %8707 = vdwg.mxu0
    %8708 = vmatpush.msra.mxu0 %v8683
    %8709 = vmatpush.msra.mxu0 %v8682
    %8710 = vmatpush.msra.mxu0 %v8681
    %8711 = vmatpush.msra.mxu0 %v8680
    %8712 = vmatpush.msra.mxu0 %v8679
    %8713 = vmatpush.msra.mxu0 %v8678
    %8714 = vmatpush.msra.mxu0 %v8677
    %8715 = vmatpush.msra.mxu0 %v8676
    %8716 = vmatpush.msra.mxu0 %v8675
    %8717 = vmatpush.msra.mxu0 %v8674
    %8718 = vmatpush.msra.mxu0 %v8673
    %8719 = vmatpush.msra.mxu0 %v8672
    %8720 = vmatpush.msra.mxu0 %v8671
    %8721 = vmatpush.msra.mxu0 %v8670
    %8722 = vmatpush.msra.mxu0 %v8669
    %8723 = vmatpush.msra.mxu0 %v8668
    %8724 = vmatmul.f32.gmra.mxu0 %v8479
    %v8725 = vpop.f32.mrf.mxu0
    %v8726 = vadd.f32 %v8706, %v8725
    %8727 = vdwg.mxu0
    %vm8728 = vcmask 1024
    %8729 = vst.msk [vmem:[%s13] sm:$0x3] %vm8728, %v8726
    // Predicated region
    $region78: #{pallas_forward.1} parent=1 // pred_check
      _
    $region79: #{pallas_forward.1} parent=1 // pred_check_branch
      %8731 = sbr.rel (0) target = $region81
    $region80: #{pallas_forward.1} parent=1 // pred_region
      %8733 = vsyncadd [#allocation6], 0
      %s8735 = sshll.u32 [#allocation16], 4
      %s8736 = int_to_ptr.vmem [resolvable:$true] %s8735
      %s8737 = sshll.u32 %s12, 4
      %s8738 = int_to_ptr.hbm [resolvable:$true] %s8737
      %8740 = dma.vmem_to_hbm [thread:$0]  %s8736, 64, %s8738, [#allocation6]
    $region81: #{pallas_forward.1} parent=1 // pred_fallthru
      _
    // Predicated region
    $region82: #{pallas_forward.1} parent=1 // pred_check
      _
    $region83: #{pallas_forward.1} parent=1 // pred_check_branch
      %8742 = sbr.rel (0) target = $region85
    $region84: #{pallas_forward.1} parent=1 // pred_region
      _
    $region85: #{pallas_forward.1} parent=1 // pred_fallthru
      _
    // Predicated region
    $region86: #{pallas_forward.1} parent=1 // pred_check
      _
    $region87: #{pallas_forward.1} parent=1 // pred_check_branch
      %8744 = sbr.rel (0) target = $region89
    $region88: #{pallas_forward.1} parent=1 // pred_region
      %8746 = dma.done [#allocation6], 64
    $region89: #{pallas_forward.1} parent=1 // pred_fallthru
      _
    // Predicated region
    $region90: #{pallas_forward.1} parent=1 // pred_check
      _
    $region91: #{pallas_forward.1} parent=1 // pred_check_branch
      %8748 = sbr.rel (0) target = $region93
    $region92: #{pallas_forward.1} parent=1 // pred_region
      _
    $region93: #{pallas_forward.1} parent=1 // pred_fallthru
      _
    %8749 = vsyncpa [#allocation5], 1
    %8750 = vsyncpa [#allocation8], 1
    %8751 = vsyncpa [#allocation11], 1
    %8752 = vsyncpa [#allocation14], 1
    %8753 = vsyncpa [#allocation6], 1

</llo_original>
